<compile_context>
chip_gen: v5e
topology: v5e:2x2
jax: 0.10.0
libtpu: 0.0.40
codegen_flags: <defaults>
</compile_context>

<pallas_src>
import jax
import jax.numpy as jnp
from jax.experimental import pallas as pl
from jax.experimental.pallas import tpu as pltpu


# -----------------------------------------------------------------------------
# In-kernel helpers (all shapes static; everything lives in VMEM / vregs)
# -----------------------------------------------------------------------------
def _wtaps3(a):
    """H-padded, W-shifted variants of a (N,H,W,C) map for a 3x3 'same' conv.

    Returns (v0, v1, v2), each (N, H+2, W, C), with v[kx][:, y, x] = in[y-1, x+kx-1]
    (zeros outside the image).  H pad/slice is a leading-dim op (free); each W shift is
    one 1-wide slice + one 2-part concat on the sublane axis (O(1) ops, replacing the
    previous full-tensor pad + 3 misaligned W-wide slices per tap)."""
    n, h, w, c = a.shape
    zr = jnp.zeros((n, 1, w, c), a.dtype)
    ap = jnp.concatenate([zr, a, zr], axis=1)                  # (N, H+2, W, C)
    zc = jnp.zeros((n, h + 2, 1, c), a.dtype)
    return (jnp.concatenate([zc, ap[:, :, :-1, :]], axis=2),   # kx=0: in[.., x-1]
            ap,                                                # kx=1: in[.., x  ]
            jnp.concatenate([ap[:, :, 1:, :], zc], axis=2))    # kx=2: in[.., x+1]


def _conv3x3_relu(a, w_ref, b_ref):
    """3x3 same-conv + bias + ReLU as 9 accumulated MXU matmuls (one per tap).

    a: (N,H,W,Cin) f32;  w_ref: (3,3,Cin,Cout) bf16;  b_ref: (1,Cout) f32.
    No (N,H,W,9*Cin) im2col intermediate is materialized; each tap is a cheap slice of
    the three W-shifted variants, reshaped to (N*H*W, Cin) and fed to the MXU with f32
    accumulation.  Single bf16 cast per layer; bias + ReLU fused on the f32 accumulator."""
    n, h, w, cin = a.shape
    wt = w_ref[...]                                            # (3,3,Cin,Cout) bf16
    cout = wt.shape[-1]
    var = _wtaps3(a.astype(jnp.bfloat16))
    acc = jnp.zeros((n * h * w, cout), jnp.float32)
    for ky in range(3):
        for kx in range(3):
            tap = var[kx][:, ky:ky + h]                        # (N,H,W,Cin) leading-dim slice
            acc = acc + jnp.dot(tap.reshape(n * h * w, cin), wt[ky, kx],
                                preferred_element_type=jnp.float32)
    acc = jnp.maximum(acc + b_ref[...], 0.0)
    return acc.reshape(n, h, w, cout)


def _maxpool2(a):
    """2x2 max-pool, stride 2: (N,H,W,C) -> (N,H//2,W//2,C).  H, W even.

    Each direction is one reshape + two slices + one maximum (previously the W direction
    was an O(W/2) loop of 1-column slices plus a W/2-way concat)."""
    n, h, w, c = a.shape
    a = a.reshape(n, h // 2, 2, w, c)                          # split H (leading dim)
    a = jnp.maximum(a[:, :, 0], a[:, :, 1])                    # pool H
    a = a.reshape(n, h // 2, w // 2, 2, c)                     # split W (sublane dim)
    a = jnp.maximum(a[:, :, :, 0:1, :], a[:, :, :, 1:2, :])    # pool W
    return a.reshape(n, h // 2, w // 2, c)


def _interleave2(x0, x1, axis):
    """out[2i] = x0[i], out[2i+1] = x1[i] along `axis`, as ONE stack + reshape
    (previously an O(L) loop of 1-wide slices + a 2L-way concat)."""
    out_shape = list(x0.shape)
    out_shape[axis] *= 2
    return jnp.stack([x0, x1], axis=axis + 1).reshape(out_shape)


def _upsample2x(a):
    """Bilinear x2 upsample matching F.interpolate(scale=2, bilinear, align_corners=False).

    1-D stencil for scale 2, align_corners=False (edge-clamped):
        out[2i]   = 0.75*x[i] + 0.25*x[i-1]
        out[2i+1] = 0.75*x[i] + 0.25*x[i+1]
    applied separably along H then W."""
    # H direction (leading dim)
    prev_h = jnp.concatenate([a[:, :1], a[:, :-1]], axis=1)
    next_h = jnp.concatenate([a[:, 1:], a[:, -1:]], axis=1)
    a = _interleave2(0.75 * a + 0.25 * prev_h, 0.75 * a + 0.25 * next_h, axis=1)
    # W direction (sublane dim)
    prev_w = jnp.concatenate([a[:, :, :1, :], a[:, :, :-1, :]], axis=2)
    next_w = jnp.concatenate([a[:, :, 1:, :], a[:, :, -1:, :]], axis=2)
    return _interleave2(0.75 * a + 0.25 * prev_w, 0.75 * a + 0.25 * next_w, axis=2)


def _dec1_sigmoid(a, w_ref, b_ref):
    """dec1 (16 -> 1) + sigmoid on the VPU: with Cout=1 an MXU pass / output store would
    be ~1/128 utilized, so do multiply + lane-reduce and emit a lane-dense (N, H*W) row.

    a: (N,H,W,16) f32;  w_ref: (1, 9*16) f32 (ky-major tap order);  b_ref: (1,1) f32."""
    n, h, w, c = a.shape
    var = _wtaps3(a)                                           # f32 (VPU math stays f32)
    taps = [var[kx][:, ky:ky + h] for ky in range(3) for kx in range(3)]   # ky-major
    col = jnp.concatenate(taps, axis=-1).reshape(n, h * w, 9 * c)
    z = jnp.sum(col * w_ref[...][:, None, :], axis=-1) + b_ref[...]        # (N, H*W)
    return jax.nn.sigmoid(z)


# -----------------------------------------------------------------------------
# Fused forward-pass kernel: one grid step per batch element, everything in VMEM
# -----------------------------------------------------------------------------
def _change_detector_kernel(x_ref,
                            w1_ref, b1_ref, w2_ref, b2_ref, w3_ref, b3_ref,
                            w4_ref, b4_ref, w5_ref, b5_ref, w6_ref, b6_ref,
                            o_ref):
    a = x_ref[...]                                   # (1, H, W, 6) f32
    a = _conv3x3_relu(a, w1_ref, b1_ref)             # enc1: 6  -> 16
    a = _maxpool2(a)
    a = _conv3x3_relu(a, w2_ref, b2_ref)             # enc2: 16 -> 32
    a = _maxpool2(a)
    a = _conv3x3_relu(a, w3_ref, b3_ref)             # enc3: 32 -> 64
    a = _upsample2x(a)
    a = _conv3x3_relu(a, w4_ref, b4_ref)             # dec3: 64 -> 32
    a = _upsample2x(a)
    a = _conv3x3_relu(a, w5_ref, b5_ref)             # dec2: 32 -> 16
    z = _dec1_sigmoid(a, w6_ref, b6_ref)             # (1, H*W)
    o_ref[...] = z.reshape(o_ref.shape)              # lane-dense (1, 1, H*W) store


# -----------------------------------------------------------------------------
# Parameters (deterministic synthetic init, PyTorch-shaped, converted for the kernel)
# -----------------------------------------------------------------------------
def _conv_w(w_oihw):
    """Conv2d weight (Cout, Cin, 3, 3) -> (ky, kx, Cin, Cout)."""
    return jnp.transpose(w_oihw, (2, 3, 1, 0))


def _convT_w(w_iohw):
    """ConvTranspose2d weight (Cin, Cout, 3, 3), stride=1, pad=1  ==  same-conv with the
    kernel spatially flipped and in/out channels swapped -> (ky, kx, Cin, Cout)."""
    return jnp.transpose(jnp.flip(w_iohw, axis=(2, 3)), (2, 3, 0, 1))


def init_params(key):
    layers = [
        ("enc1", 6, 16, "conv"),
        ("enc2", 16, 32, "conv"),
        ("enc3", 32, 64, "conv"),
        ("dec3", 64, 32, "convT"),
        ("dec2", 32, 16, "convT"),
        ("dec1", 16, 1, "convT"),
    ]
    params = {}
    for name, cin, cout, kind in layers:
        key, kw, kb = jax.random.split(key, 3)
        if kind == "conv":
            w_pt = jax.random.normal(kw, (cout, cin, 3, 3), jnp.float32) * 0.1
            w = _conv_w(w_pt)
        else:
            w_pt = jax.random.normal(kw, (cin, cout, 3, 3), jnp.float32) * 0.1
            w = _convT_w(w_pt)
        b = jax.random.normal(kb, (1, cout), jnp.float32) * 0.01
        if name == "dec1":
            # VPU path (Cout == 1): f32 row vector, ky-major tap order.
            params[name + "_w"] = jnp.transpose(w.reshape(9 * cin, cout), (1, 0))  # (1, 144)
            params[name + "_b"] = b                               # (1, 1) f32
        else:
            # MXU operands in bf16; accumulation stays f32 inside the kernel.
            params[name + "_w"] = w.astype(jnp.bfloat16)          # (3,3,Cin,Cout) bf16
            params[name + "_b"] = b                               # (1, Cout) f32
    return params


# -----------------------------------------------------------------------------
# Forward pass (semantics of ChangeDetector.forward)
# -----------------------------------------------------------------------------
def _resident_spec(arr):
    """Whole-array block with a constant index map: weights stay VMEM-resident across
    all grid steps (no re-DMA between batch elements)."""
    nd = arr.ndim
    return pl.BlockSpec(arr.shape, lambda i: (0,) * nd)


@jax.jit
def change_detector_forward(x_nchw, params):
    x = jnp.transpose(x_nchw, (0, 2, 3, 1)).astype(jnp.float32)   # NCHW -> NHWC
    n, h, w, c_in = x.shape
    assert h % 4 == 0 and w % 4 == 0, "two 2x2 max-pools require H, W % 4 == 0"
    weight_args = (
        params["enc1_w"], params["enc1_b"], params["enc2_w"], params["enc2_b"],
        params["enc3_w"], params["enc3_b"], params["dec3_w"], params["dec3_b"],
        params["dec2_w"], params["dec2_b"], params["dec1_w"], params["dec1_b"])
    out = pl.pallas_call(
        _change_detector_kernel,
        out_shape=jax.ShapeDtypeStruct((n, 1, h * w), jnp.float32),
        grid=(n,),
        in_specs=[pl.BlockSpec((1, h, w, c_in), lambda i: (i, 0, 0, 0))]
                 + [_resident_spec(a) for a in weight_args],
        out_specs=pl.BlockSpec((1, 1, h * w), lambda i: (i, 0, 0)),
        compiler_params=pltpu.CompilerParams(
            dimension_semantics=("parallel",)),   # v7x: batch split across both TensorCores
    )(x, *weight_args)
    return out.reshape(n, 1, h, w)                                # (N, 1, H, W)


if __name__ == "__main__":
    key = jax.random.PRNGKey(0)
    k_params, k_x = jax.random.split(key)
    params = init_params(k_params)

    # two concatenated RGB images -> 6 channels, small spatial size
    x = jax.random.normal(k_x, (2, 6, 16, 16), jnp.float32)

    out = change_detector_forward(x, params)
    out = jax.block_until_ready(out)

    assert out.shape == (2, 1, 16, 16), out.shape
    assert bool(jnp.all((out >= 0.0) & (out <= 1.0))), "sigmoid range violated"
    print("KERNEL_OK")
</pallas_src>

<mosaic_0001>
module attributes {stable_mosaic.version = 11 : i64} {
  func.func @_change_detector_kernel(%arg0: i32, %arg1: memref<1x16x16x6xf32, #tpu.memory_space<vmem>>, %arg2: memref<3x3x6x16xbf16, #tpu.memory_space<vmem>>, %arg3: memref<1x16xf32, #tpu.memory_space<vmem>>, %arg4: memref<3x3x16x32xbf16, #tpu.memory_space<vmem>>, %arg5: memref<1x32xf32, #tpu.memory_space<vmem>>, %arg6: memref<3x3x32x64xbf16, #tpu.memory_space<vmem>>, %arg7: memref<1x64xf32, #tpu.memory_space<vmem>>, %arg8: memref<3x3x64x32xbf16, #tpu.memory_space<vmem>>, %arg9: memref<1x32xf32, #tpu.memory_space<vmem>>, %arg10: memref<3x3x32x16xbf16, #tpu.memory_space<vmem>>, %arg11: memref<1x16xf32, #tpu.memory_space<vmem>>, %arg12: memref<1x144xf32, #tpu.memory_space<vmem>>, %arg13: memref<1x1xf32, #tpu.memory_space<vmem>>, %arg14: memref<1x1x256xf32, #tpu.memory_space<vmem>>) attributes {dimension_semantics = [#tpu.dimension_semantics<parallel>], iteration_bounds = array<i64: 2>, scalar_prefetch = 0 : i64, scratch_operands = 0 : i64, tpu.core_type = #tpu.core_type<tc>, window_params = [{transform_indices = @transform_0, window_bounds = array<i64: 1, 16, 16, 6>}, {pipeline_mode = #tpu.pipeline_mode<synchronous>, transform_indices = @transform_1, window_bounds = array<i64: 3, 3, 6, 16>}, {pipeline_mode = #tpu.pipeline_mode<synchronous>, transform_indices = @transform_2, window_bounds = array<i64: 1, 16>}, {pipeline_mode = #tpu.pipeline_mode<synchronous>, transform_indices = @transform_3, window_bounds = array<i64: 3, 3, 16, 32>}, {pipeline_mode = #tpu.pipeline_mode<synchronous>, transform_indices = @transform_4, window_bounds = array<i64: 1, 32>}, {pipeline_mode = #tpu.pipeline_mode<synchronous>, transform_indices = @transform_5, window_bounds = array<i64: 3, 3, 32, 64>}, {pipeline_mode = #tpu.pipeline_mode<synchronous>, transform_indices = @transform_6, window_bounds = array<i64: 1, 64>}, {pipeline_mode = #tpu.pipeline_mode<synchronous>, transform_indices = @transform_7, window_bounds = array<i64: 3, 3, 64, 32>}, {pipeline_mode = #tpu.pipeline_mode<synchronous>, transform_indices = @transform_8, window_bounds = array<i64: 1, 32>}, {pipeline_mode = #tpu.pipeline_mode<synchronous>, transform_indices = @transform_9, window_bounds = array<i64: 3, 3, 32, 16>}, {pipeline_mode = #tpu.pipeline_mode<synchronous>, transform_indices = @transform_10, window_bounds = array<i64: 1, 16>}, {pipeline_mode = #tpu.pipeline_mode<synchronous>, transform_indices = @transform_11, window_bounds = array<i64: 1, 144>}, {pipeline_mode = #tpu.pipeline_mode<synchronous>, transform_indices = @transform_12, window_bounds = array<i64: 1, 1>}, {transform_indices = @transform_13, window_bounds = array<i64: 1, 1, 256>}]} {
    %c0 = arith.constant 0 : index
    %c0_0 = arith.constant 0 : index
    %c0_1 = arith.constant 0 : index
    %c0_2 = arith.constant 0 : index
    %0 = vector.load %arg1[%c0, %c0_0, %c0_1, %c0_2] : memref<1x16x16x6xf32, #tpu.memory_space<vmem>>, vector<1x16x16x6xf32>
    %c0_3 = arith.constant 0 : index
    %c0_4 = arith.constant 0 : index
    %c0_5 = arith.constant 0 : index
    %c0_6 = arith.constant 0 : index
    %1 = vector.load %arg2[%c0_3, %c0_4, %c0_5, %c0_6] : memref<3x3x6x16xbf16, #tpu.memory_space<vmem>>, vector<3x3x6x16xbf16>
    %2 = arith.truncf %0 : vector<1x16x16x6xf32> to vector<1x16x16x6xbf16>
    %cst = arith.constant 0.000000e+00 : bf16
    %3 = vector.broadcast %cst : bf16 to vector<1x1x16x6xbf16>
    %4 = tpu.concatenate %3, %2, %3 in 1 : vector<1x1x16x6xbf16>, vector<1x16x16x6xbf16>, vector<1x1x16x6xbf16> -> vector<1x18x16x6xbf16>
    %cst_7 = arith.constant 0.000000e+00 : bf16
    %5 = vector.broadcast %cst_7 : bf16 to vector<1x18x1x6xbf16>
    %6 = vector.extract_strided_slice %4 {offsets = [0, 0, 0, 0], sizes = [1, 18, 15, 6], strides = [1, 1, 1, 1]} : vector<1x18x16x6xbf16> to vector<1x18x15x6xbf16>
    %7 = tpu.concatenate %5, %6 in 2 : vector<1x18x1x6xbf16>, vector<1x18x15x6xbf16> -> vector<1x18x16x6xbf16>
    %8 = vector.extract_strided_slice %4 {offsets = [0, 0, 1, 0], sizes = [1, 18, 15, 6], strides = [1, 1, 1, 1]} : vector<1x18x16x6xbf16> to vector<1x18x15x6xbf16>
    %9 = tpu.concatenate %8, %5 in 2 : vector<1x18x15x6xbf16>, vector<1x18x1x6xbf16> -> vector<1x18x16x6xbf16>
    %cst_8 = arith.constant 0.000000e+00 : f32
    %10 = vector.broadcast %cst_8 : f32 to vector<256x16xf32>
    %11 = vector.extract_strided_slice %7 {offsets = [0, 0, 0, 0], sizes = [1, 16, 16, 6], strides = [1, 1, 1, 1]} : vector<1x18x16x6xbf16> to vector<1x16x16x6xbf16>
    %12 = vector.shape_cast %11 : vector<1x16x16x6xbf16> to vector<256x6xbf16>
    %13 = vector.extract_strided_slice %1 {offsets = [0, 0, 0, 0], sizes = [1, 1, 6, 16], strides = [1, 1, 1, 1]} : vector<3x3x6x16xbf16> to vector<1x1x6x16xbf16>
    %14 = vector.shape_cast %13 : vector<1x1x6x16xbf16> to vector<6x16xbf16>
    %cst_9 = arith.constant dense<0.000000e+00> : vector<256x16xf32>
    %15 = tpu.matmul %12, %14, %cst_9 {dimension_numbers = #tpu.dot_dimension_numbers<[1], [0], [0], [1], [0, 0, 1, 1], [], []>} : vector<256x6xbf16>, vector<6x16xbf16>, vector<256x16xf32> -> vector<256x16xf32>
    %16 = arith.addf %10, %15 : vector<256x16xf32>
    %17 = vector.extract_strided_slice %4 {offsets = [0, 0, 0, 0], sizes = [1, 16, 16, 6], strides = [1, 1, 1, 1]} : vector<1x18x16x6xbf16> to vector<1x16x16x6xbf16>
    %18 = vector.shape_cast %17 : vector<1x16x16x6xbf16> to vector<256x6xbf16>
    %19 = vector.extract_strided_slice %1 {offsets = [0, 1, 0, 0], sizes = [1, 1, 6, 16], strides = [1, 1, 1, 1]} : vector<3x3x6x16xbf16> to vector<1x1x6x16xbf16>
    %20 = vector.shape_cast %19 : vector<1x1x6x16xbf16> to vector<6x16xbf16>
    %cst_10 = arith.constant dense<0.000000e+00> : vector<256x16xf32>
    %21 = tpu.matmul %18, %20, %cst_10 {dimension_numbers = #tpu.dot_dimension_numbers<[1], [0], [0], [1], [0, 0, 1, 1], [], []>} : vector<256x6xbf16>, vector<6x16xbf16>, vector<256x16xf32> -> vector<256x16xf32>
    %22 = arith.addf %16, %21 : vector<256x16xf32>
    %23 = vector.extract_strided_slice %9 {offsets = [0, 0, 0, 0], sizes = [1, 16, 16, 6], strides = [1, 1, 1, 1]} : vector<1x18x16x6xbf16> to vector<1x16x16x6xbf16>
    %24 = vector.shape_cast %23 : vector<1x16x16x6xbf16> to vector<256x6xbf16>
    %25 = vector.extract_strided_slice %1 {offsets = [0, 2, 0, 0], sizes = [1, 1, 6, 16], strides = [1, 1, 1, 1]} : vector<3x3x6x16xbf16> to vector<1x1x6x16xbf16>
    %26 = vector.shape_cast %25 : vector<1x1x6x16xbf16> to vector<6x16xbf16>
    %cst_11 = arith.constant dense<0.000000e+00> : vector<256x16xf32>
    %27 = tpu.matmul %24, %26, %cst_11 {dimension_numbers = #tpu.dot_dimension_numbers<[1], [0], [0], [1], [0, 0, 1, 1], [], []>} : vector<256x6xbf16>, vector<6x16xbf16>, vector<256x16xf32> -> vector<256x16xf32>
    %28 = arith.addf %22, %27 : vector<256x16xf32>
    %29 = vector.extract_strided_slice %7 {offsets = [0, 1, 0, 0], sizes = [1, 16, 16, 6], strides = [1, 1, 1, 1]} : vector<1x18x16x6xbf16> to vector<1x16x16x6xbf16>
    %30 = vector.shape_cast %29 : vector<1x16x16x6xbf16> to vector<256x6xbf16>
    %31 = vector.extract_strided_slice %1 {offsets = [1, 0, 0, 0], sizes = [1, 1, 6, 16], strides = [1, 1, 1, 1]} : vector<3x3x6x16xbf16> to vector<1x1x6x16xbf16>
    %32 = vector.shape_cast %31 : vector<1x1x6x16xbf16> to vector<6x16xbf16>
    %cst_12 = arith.constant dense<0.000000e+00> : vector<256x16xf32>
    %33 = tpu.matmul %30, %32, %cst_12 {dimension_numbers = #tpu.dot_dimension_numbers<[1], [0], [0], [1], [0, 0, 1, 1], [], []>} : vector<256x6xbf16>, vector<6x16xbf16>, vector<256x16xf32> -> vector<256x16xf32>
    %34 = arith.addf %28, %33 : vector<256x16xf32>
    %35 = vector.extract_strided_slice %4 {offsets = [0, 1, 0, 0], sizes = [1, 16, 16, 6], strides = [1, 1, 1, 1]} : vector<1x18x16x6xbf16> to vector<1x16x16x6xbf16>
    %36 = vector.shape_cast %35 : vector<1x16x16x6xbf16> to vector<256x6xbf16>
    %37 = vector.extract_strided_slice %1 {offsets = [1, 1, 0, 0], sizes = [1, 1, 6, 16], strides = [1, 1, 1, 1]} : vector<3x3x6x16xbf16> to vector<1x1x6x16xbf16>
    %38 = vector.shape_cast %37 : vector<1x1x6x16xbf16> to vector<6x16xbf16>
    %cst_13 = arith.constant dense<0.000000e+00> : vector<256x16xf32>
    %39 = tpu.matmul %36, %38, %cst_13 {dimension_numbers = #tpu.dot_dimension_numbers<[1], [0], [0], [1], [0, 0, 1, 1], [], []>} : vector<256x6xbf16>, vector<6x16xbf16>, vector<256x16xf32> -> vector<256x16xf32>
    %40 = arith.addf %34, %39 : vector<256x16xf32>
    %41 = vector.extract_strided_slice %9 {offsets = [0, 1, 0, 0], sizes = [1, 16, 16, 6], strides = [1, 1, 1, 1]} : vector<1x18x16x6xbf16> to vector<1x16x16x6xbf16>
    %42 = vector.shape_cast %41 : vector<1x16x16x6xbf16> to vector<256x6xbf16>
    %43 = vector.extract_strided_slice %1 {offsets = [1, 2, 0, 0], sizes = [1, 1, 6, 16], strides = [1, 1, 1, 1]} : vector<3x3x6x16xbf16> to vector<1x1x6x16xbf16>
    %44 = vector.shape_cast %43 : vector<1x1x6x16xbf16> to vector<6x16xbf16>
    %cst_14 = arith.constant dense<0.000000e+00> : vector<256x16xf32>
    %45 = tpu.matmul %42, %44, %cst_14 {dimension_numbers = #tpu.dot_dimension_numbers<[1], [0], [0], [1], [0, 0, 1, 1], [], []>} : vector<256x6xbf16>, vector<6x16xbf16>, vector<256x16xf32> -> vector<256x16xf32>
    %46 = arith.addf %40, %45 : vector<256x16xf32>
    %47 = vector.extract_strided_slice %7 {offsets = [0, 2, 0, 0], sizes = [1, 16, 16, 6], strides = [1, 1, 1, 1]} : vector<1x18x16x6xbf16> to vector<1x16x16x6xbf16>
    %48 = vector.shape_cast %47 : vector<1x16x16x6xbf16> to vector<256x6xbf16>
    %49 = vector.extract_strided_slice %1 {offsets = [2, 0, 0, 0], sizes = [1, 1, 6, 16], strides = [1, 1, 1, 1]} : vector<3x3x6x16xbf16> to vector<1x1x6x16xbf16>
    %50 = vector.shape_cast %49 : vector<1x1x6x16xbf16> to vector<6x16xbf16>
    %cst_15 = arith.constant dense<0.000000e+00> : vector<256x16xf32>
    %51 = tpu.matmul %48, %50, %cst_15 {dimension_numbers = #tpu.dot_dimension_numbers<[1], [0], [0], [1], [0, 0, 1, 1], [], []>} : vector<256x6xbf16>, vector<6x16xbf16>, vector<256x16xf32> -> vector<256x16xf32>
    %52 = arith.addf %46, %51 : vector<256x16xf32>
    %53 = vector.extract_strided_slice %4 {offsets = [0, 2, 0, 0], sizes = [1, 16, 16, 6], strides = [1, 1, 1, 1]} : vector<1x18x16x6xbf16> to vector<1x16x16x6xbf16>
    %54 = vector.shape_cast %53 : vector<1x16x16x6xbf16> to vector<256x6xbf16>
    %55 = vector.extract_strided_slice %1 {offsets = [2, 1, 0, 0], sizes = [1, 1, 6, 16], strides = [1, 1, 1, 1]} : vector<3x3x6x16xbf16> to vector<1x1x6x16xbf16>
    %56 = vector.shape_cast %55 : vector<1x1x6x16xbf16> to vector<6x16xbf16>
    %cst_16 = arith.constant dense<0.000000e+00> : vector<256x16xf32>
    %57 = tpu.matmul %54, %56, %cst_16 {dimension_numbers = #tpu.dot_dimension_numbers<[1], [0], [0], [1], [0, 0, 1, 1], [], []>} : vector<256x6xbf16>, vector<6x16xbf16>, vector<256x16xf32> -> vector<256x16xf32>
    %58 = arith.addf %52, %57 : vector<256x16xf32>
    %59 = vector.extract_strided_slice %9 {offsets = [0, 2, 0, 0], sizes = [1, 16, 16, 6], strides = [1, 1, 1, 1]} : vector<1x18x16x6xbf16> to vector<1x16x16x6xbf16>
    %60 = vector.shape_cast %59 : vector<1x16x16x6xbf16> to vector<256x6xbf16>
    %61 = vector.extract_strided_slice %1 {offsets = [2, 2, 0, 0], sizes = [1, 1, 6, 16], strides = [1, 1, 1, 1]} : vector<3x3x6x16xbf16> to vector<1x1x6x16xbf16>
    %62 = vector.shape_cast %61 : vector<1x1x6x16xbf16> to vector<6x16xbf16>
    %cst_17 = arith.constant dense<0.000000e+00> : vector<256x16xf32>
    %63 = tpu.matmul %60, %62, %cst_17 {dimension_numbers = #tpu.dot_dimension_numbers<[1], [0], [0], [1], [0, 0, 1, 1], [], []>} : vector<256x6xbf16>, vector<6x16xbf16>, vector<256x16xf32> -> vector<256x16xf32>
    %64 = arith.addf %58, %63 : vector<256x16xf32>
    %c0_18 = arith.constant 0 : index
    %c0_19 = arith.constant 0 : index
    %65 = vector.load %arg3[%c0_18, %c0_19] : memref<1x16xf32, #tpu.memory_space<vmem>>, vector<1x16xf32>
    %66 = vector.broadcast %65 : vector<1x16xf32> to vector<256x16xf32>
    %67 = arith.addf %64, %66 : vector<256x16xf32>
    %cst_20 = arith.constant 0.000000e+00 : f32
    %68 = vector.broadcast %cst_20 : f32 to vector<256x16xf32>
    %69 = arith.maximumf %67, %68 : vector<256x16xf32>
    %70 = vector.shape_cast %69 : vector<256x16xf32> to vector<1x16x16x16xf32>
    %71 = vector.shape_cast %70 : vector<1x16x16x16xf32> to vector<1x8x2x16x16xf32>
    %72 = vector.extract_strided_slice %71 {offsets = [0, 0, 0, 0, 0], sizes = [1, 8, 1, 16, 16], strides = [1, 1, 1, 1, 1]} : vector<1x8x2x16x16xf32> to vector<1x8x1x16x16xf32>
    %73 = vector.shape_cast %72 : vector<1x8x1x16x16xf32> to vector<1x8x16x16xf32>
    %74 = vector.extract_strided_slice %71 {offsets = [0, 0, 1, 0, 0], sizes = [1, 8, 1, 16, 16], strides = [1, 1, 1, 1, 1]} : vector<1x8x2x16x16xf32> to vector<1x8x1x16x16xf32>
    %75 = vector.shape_cast %74 : vector<1x8x1x16x16xf32> to vector<1x8x16x16xf32>
    %76 = arith.maximumf %73, %75 : vector<1x8x16x16xf32>
    %77 = vector.shape_cast %76 : vector<1x8x16x16xf32> to vector<1x8x8x2x16xf32>
    %78 = vector.extract_strided_slice %77 {offsets = [0, 0, 0, 0, 0], sizes = [1, 8, 8, 1, 16], strides = [1, 1, 1, 1, 1]} : vector<1x8x8x2x16xf32> to vector<1x8x8x1x16xf32>
    %79 = vector.extract_strided_slice %77 {offsets = [0, 0, 0, 1, 0], sizes = [1, 8, 8, 1, 16], strides = [1, 1, 1, 1, 1]} : vector<1x8x8x2x16xf32> to vector<1x8x8x1x16xf32>
    %80 = arith.maximumf %78, %79 : vector<1x8x8x1x16xf32>
    %81 = vector.shape_cast %80 : vector<1x8x8x1x16xf32> to vector<1x8x8x16xf32>
    %c0_21 = arith.constant 0 : index
    %c0_22 = arith.constant 0 : index
    %c0_23 = arith.constant 0 : index
    %c0_24 = arith.constant 0 : index
    %82 = vector.load %arg4[%c0_21, %c0_22, %c0_23, %c0_24] : memref<3x3x16x32xbf16, #tpu.memory_space<vmem>>, vector<3x3x16x32xbf16>
    %83 = arith.truncf %81 : vector<1x8x8x16xf32> to vector<1x8x8x16xbf16>
    %cst_25 = arith.constant 0.000000e+00 : bf16
    %84 = vector.broadcast %cst_25 : bf16 to vector<1x1x8x16xbf16>
    %85 = tpu.concatenate %84, %83, %84 in 1 : vector<1x1x8x16xbf16>, vector<1x8x8x16xbf16>, vector<1x1x8x16xbf16> -> vector<1x10x8x16xbf16>
    %cst_26 = arith.constant 0.000000e+00 : bf16
    %86 = vector.broadcast %cst_26 : bf16 to vector<1x10x1x16xbf16>
    %87 = vector.extract_strided_slice %85 {offsets = [0, 0, 0, 0], sizes = [1, 10, 7, 16], strides = [1, 1, 1, 1]} : vector<1x10x8x16xbf16> to vector<1x10x7x16xbf16>
    %88 = tpu.concatenate %86, %87 in 2 : vector<1x10x1x16xbf16>, vector<1x10x7x16xbf16> -> vector<1x10x8x16xbf16>
    %89 = vector.extract_strided_slice %85 {offsets = [0, 0, 1, 0], sizes = [1, 10, 7, 16], strides = [1, 1, 1, 1]} : vector<1x10x8x16xbf16> to vector<1x10x7x16xbf16>
    %90 = tpu.concatenate %89, %86 in 2 : vector<1x10x7x16xbf16>, vector<1x10x1x16xbf16> -> vector<1x10x8x16xbf16>
    %cst_27 = arith.constant 0.000000e+00 : f32
    %91 = vector.broadcast %cst_27 : f32 to vector<64x32xf32>
    %92 = vector.extract_strided_slice %88 {offsets = [0, 0, 0, 0], sizes = [1, 8, 8, 16], strides = [1, 1, 1, 1]} : vector<1x10x8x16xbf16> to vector<1x8x8x16xbf16>
    %93 = vector.shape_cast %92 : vector<1x8x8x16xbf16> to vector<64x16xbf16>
    %94 = vector.extract_strided_slice %82 {offsets = [0, 0, 0, 0], sizes = [1, 1, 16, 32], strides = [1, 1, 1, 1]} : vector<3x3x16x32xbf16> to vector<1x1x16x32xbf16>
    %95 = vector.shape_cast %94 : vector<1x1x16x32xbf16> to vector<16x32xbf16>
    %cst_28 = arith.constant dense<0.000000e+00> : vector<64x32xf32>
    %96 = tpu.matmul %93, %95, %cst_28 {dimension_numbers = #tpu.dot_dimension_numbers<[1], [0], [0], [1], [0, 0, 1, 1], [], []>} : vector<64x16xbf16>, vector<16x32xbf16>, vector<64x32xf32> -> vector<64x32xf32>
    %97 = arith.addf %91, %96 : vector<64x32xf32>
    %98 = vector.extract_strided_slice %85 {offsets = [0, 0, 0, 0], sizes = [1, 8, 8, 16], strides = [1, 1, 1, 1]} : vector<1x10x8x16xbf16> to vector<1x8x8x16xbf16>
    %99 = vector.shape_cast %98 : vector<1x8x8x16xbf16> to vector<64x16xbf16>
    %100 = vector.extract_strided_slice %82 {offsets = [0, 1, 0, 0], sizes = [1, 1, 16, 32], strides = [1, 1, 1, 1]} : vector<3x3x16x32xbf16> to vector<1x1x16x32xbf16>
    %101 = vector.shape_cast %100 : vector<1x1x16x32xbf16> to vector<16x32xbf16>
    %cst_29 = arith.constant dense<0.000000e+00> : vector<64x32xf32>
    %102 = tpu.matmul %99, %101, %cst_29 {dimension_numbers = #tpu.dot_dimension_numbers<[1], [0], [0], [1], [0, 0, 1, 1], [], []>} : vector<64x16xbf16>, vector<16x32xbf16>, vector<64x32xf32> -> vector<64x32xf32>
    %103 = arith.addf %97, %102 : vector<64x32xf32>
    %104 = vector.extract_strided_slice %90 {offsets = [0, 0, 0, 0], sizes = [1, 8, 8, 16], strides = [1, 1, 1, 1]} : vector<1x10x8x16xbf16> to vector<1x8x8x16xbf16>
    %105 = vector.shape_cast %104 : vector<1x8x8x16xbf16> to vector<64x16xbf16>
    %106 = vector.extract_strided_slice %82 {offsets = [0, 2, 0, 0], sizes = [1, 1, 16, 32], strides = [1, 1, 1, 1]} : vector<3x3x16x32xbf16> to vector<1x1x16x32xbf16>
    %107 = vector.shape_cast %106 : vector<1x1x16x32xbf16> to vector<16x32xbf16>
    %cst_30 = arith.constant dense<0.000000e+00> : vector<64x32xf32>
    %108 = tpu.matmul %105, %107, %cst_30 {dimension_numbers = #tpu.dot_dimension_numbers<[1], [0], [0], [1], [0, 0, 1, 1], [], []>} : vector<64x16xbf16>, vector<16x32xbf16>, vector<64x32xf32> -> vector<64x32xf32>
    %109 = arith.addf %103, %108 : vector<64x32xf32>
    %110 = vector.extract_strided_slice %88 {offsets = [0, 1, 0, 0], sizes = [1, 8, 8, 16], strides = [1, 1, 1, 1]} : vector<1x10x8x16xbf16> to vector<1x8x8x16xbf16>
    %111 = vector.shape_cast %110 : vector<1x8x8x16xbf16> to vector<64x16xbf16>
    %112 = vector.extract_strided_slice %82 {offsets = [1, 0, 0, 0], sizes = [1, 1, 16, 32], strides = [1, 1, 1, 1]} : vector<3x3x16x32xbf16> to vector<1x1x16x32xbf16>
    %113 = vector.shape_cast %112 : vector<1x1x16x32xbf16> to vector<16x32xbf16>
    %cst_31 = arith.constant dense<0.000000e+00> : vector<64x32xf32>
    %114 = tpu.matmul %111, %113, %cst_31 {dimension_numbers = #tpu.dot_dimension_numbers<[1], [0], [0], [1], [0, 0, 1, 1], [], []>} : vector<64x16xbf16>, vector<16x32xbf16>, vector<64x32xf32> -> vector<64x32xf32>
    %115 = arith.addf %109, %114 : vector<64x32xf32>
    %116 = vector.extract_strided_slice %85 {offsets = [0, 1, 0, 0], sizes = [1, 8, 8, 16], strides = [1, 1, 1, 1]} : vector<1x10x8x16xbf16> to vector<1x8x8x16xbf16>
    %117 = vector.shape_cast %116 : vector<1x8x8x16xbf16> to vector<64x16xbf16>
    %118 = vector.extract_strided_slice %82 {offsets = [1, 1, 0, 0], sizes = [1, 1, 16, 32], strides = [1, 1, 1, 1]} : vector<3x3x16x32xbf16> to vector<1x1x16x32xbf16>
    %119 = vector.shape_cast %118 : vector<1x1x16x32xbf16> to vector<16x32xbf16>
    %cst_32 = arith.constant dense<0.000000e+00> : vector<64x32xf32>
    %120 = tpu.matmul %117, %119, %cst_32 {dimension_numbers = #tpu.dot_dimension_numbers<[1], [0], [0], [1], [0, 0, 1, 1], [], []>} : vector<64x16xbf16>, vector<16x32xbf16>, vector<64x32xf32> -> vector<64x32xf32>
    %121 = arith.addf %115, %120 : vector<64x32xf32>
    %122 = vector.extract_strided_slice %90 {offsets = [0, 1, 0, 0], sizes = [1, 8, 8, 16], strides = [1, 1, 1, 1]} : vector<1x10x8x16xbf16> to vector<1x8x8x16xbf16>
    %123 = vector.shape_cast %122 : vector<1x8x8x16xbf16> to vector<64x16xbf16>
    %124 = vector.extract_strided_slice %82 {offsets = [1, 2, 0, 0], sizes = [1, 1, 16, 32], strides = [1, 1, 1, 1]} : vector<3x3x16x32xbf16> to vector<1x1x16x32xbf16>
    %125 = vector.shape_cast %124 : vector<1x1x16x32xbf16> to vector<16x32xbf16>
    %cst_33 = arith.constant dense<0.000000e+00> : vector<64x32xf32>
    %126 = tpu.matmul %123, %125, %cst_33 {dimension_numbers = #tpu.dot_dimension_numbers<[1], [0], [0], [1], [0, 0, 1, 1], [], []>} : vector<64x16xbf16>, vector<16x32xbf16>, vector<64x32xf32> -> vector<64x32xf32>
    %127 = arith.addf %121, %126 : vector<64x32xf32>
    %128 = vector.extract_strided_slice %88 {offsets = [0, 2, 0, 0], sizes = [1, 8, 8, 16], strides = [1, 1, 1, 1]} : vector<1x10x8x16xbf16> to vector<1x8x8x16xbf16>
    %129 = vector.shape_cast %128 : vector<1x8x8x16xbf16> to vector<64x16xbf16>
    %130 = vector.extract_strided_slice %82 {offsets = [2, 0, 0, 0], sizes = [1, 1, 16, 32], strides = [1, 1, 1, 1]} : vector<3x3x16x32xbf16> to vector<1x1x16x32xbf16>
    %131 = vector.shape_cast %130 : vector<1x1x16x32xbf16> to vector<16x32xbf16>
    %cst_34 = arith.constant dense<0.000000e+00> : vector<64x32xf32>
    %132 = tpu.matmul %129, %131, %cst_34 {dimension_numbers = #tpu.dot_dimension_numbers<[1], [0], [0], [1], [0, 0, 1, 1], [], []>} : vector<64x16xbf16>, vector<16x32xbf16>, vector<64x32xf32> -> vector<64x32xf32>
    %133 = arith.addf %127, %132 : vector<64x32xf32>
    %134 = vector.extract_strided_slice %85 {offsets = [0, 2, 0, 0], sizes = [1, 8, 8, 16], strides = [1, 1, 1, 1]} : vector<1x10x8x16xbf16> to vector<1x8x8x16xbf16>
    %135 = vector.shape_cast %134 : vector<1x8x8x16xbf16> to vector<64x16xbf16>
    %136 = vector.extract_strided_slice %82 {offsets = [2, 1, 0, 0], sizes = [1, 1, 16, 32], strides = [1, 1, 1, 1]} : vector<3x3x16x32xbf16> to vector<1x1x16x32xbf16>
    %137 = vector.shape_cast %136 : vector<1x1x16x32xbf16> to vector<16x32xbf16>
    %cst_35 = arith.constant dense<0.000000e+00> : vector<64x32xf32>
    %138 = tpu.matmul %135, %137, %cst_35 {dimension_numbers = #tpu.dot_dimension_numbers<[1], [0], [0], [1], [0, 0, 1, 1], [], []>} : vector<64x16xbf16>, vector<16x32xbf16>, vector<64x32xf32> -> vector<64x32xf32>
    %139 = arith.addf %133, %138 : vector<64x32xf32>
    %140 = vector.extract_strided_slice %90 {offsets = [0, 2, 0, 0], sizes = [1, 8, 8, 16], strides = [1, 1, 1, 1]} : vector<1x10x8x16xbf16> to vector<1x8x8x16xbf16>
    %141 = vector.shape_cast %140 : vector<1x8x8x16xbf16> to vector<64x16xbf16>
    %142 = vector.extract_strided_slice %82 {offsets = [2, 2, 0, 0], sizes = [1, 1, 16, 32], strides = [1, 1, 1, 1]} : vector<3x3x16x32xbf16> to vector<1x1x16x32xbf16>
    %143 = vector.shape_cast %142 : vector<1x1x16x32xbf16> to vector<16x32xbf16>
    %cst_36 = arith.constant dense<0.000000e+00> : vector<64x32xf32>
    %144 = tpu.matmul %141, %143, %cst_36 {dimension_numbers = #tpu.dot_dimension_numbers<[1], [0], [0], [1], [0, 0, 1, 1], [], []>} : vector<64x16xbf16>, vector<16x32xbf16>, vector<64x32xf32> -> vector<64x32xf32>
    %145 = arith.addf %139, %144 : vector<64x32xf32>
    %c0_37 = arith.constant 0 : index
    %c0_38 = arith.constant 0 : index
    %146 = vector.load %arg5[%c0_37, %c0_38] : memref<1x32xf32, #tpu.memory_space<vmem>>, vector<1x32xf32>
    %147 = vector.broadcast %146 : vector<1x32xf32> to vector<64x32xf32>
    %148 = arith.addf %145, %147 : vector<64x32xf32>
    %cst_39 = arith.constant 0.000000e+00 : f32
    %149 = vector.broadcast %cst_39 : f32 to vector<64x32xf32>
    %150 = arith.maximumf %148, %149 : vector<64x32xf32>
    %151 = vector.shape_cast %150 : vector<64x32xf32> to vector<1x8x8x32xf32>
    %152 = vector.shape_cast %151 : vector<1x8x8x32xf32> to vector<1x4x2x8x32xf32>
    %153 = vector.extract_strided_slice %152 {offsets = [0, 0, 0, 0, 0], sizes = [1, 4, 1, 8, 32], strides = [1, 1, 1, 1, 1]} : vector<1x4x2x8x32xf32> to vector<1x4x1x8x32xf32>
    %154 = vector.shape_cast %153 : vector<1x4x1x8x32xf32> to vector<1x4x8x32xf32>
    %155 = vector.extract_strided_slice %152 {offsets = [0, 0, 1, 0, 0], sizes = [1, 4, 1, 8, 32], strides = [1, 1, 1, 1, 1]} : vector<1x4x2x8x32xf32> to vector<1x4x1x8x32xf32>
    %156 = vector.shape_cast %155 : vector<1x4x1x8x32xf32> to vector<1x4x8x32xf32>
    %157 = arith.maximumf %154, %156 : vector<1x4x8x32xf32>
    %158 = vector.shape_cast %157 : vector<1x4x8x32xf32> to vector<1x4x4x2x32xf32>
    %159 = vector.extract_strided_slice %158 {offsets = [0, 0, 0, 0, 0], sizes = [1, 4, 4, 1, 32], strides = [1, 1, 1, 1, 1]} : vector<1x4x4x2x32xf32> to vector<1x4x4x1x32xf32>
    %160 = vector.extract_strided_slice %158 {offsets = [0, 0, 0, 1, 0], sizes = [1, 4, 4, 1, 32], strides = [1, 1, 1, 1, 1]} : vector<1x4x4x2x32xf32> to vector<1x4x4x1x32xf32>
    %161 = arith.maximumf %159, %160 : vector<1x4x4x1x32xf32>
    %162 = vector.shape_cast %161 : vector<1x4x4x1x32xf32> to vector<1x4x4x32xf32>
    %c0_40 = arith.constant 0 : index
    %c0_41 = arith.constant 0 : index
    %c0_42 = arith.constant 0 : index
    %c0_43 = arith.constant 0 : index
    %163 = vector.load %arg6[%c0_40, %c0_41, %c0_42, %c0_43] : memref<3x3x32x64xbf16, #tpu.memory_space<vmem>>, vector<3x3x32x64xbf16>
    %164 = arith.truncf %162 : vector<1x4x4x32xf32> to vector<1x4x4x32xbf16>
    %cst_44 = arith.constant 0.000000e+00 : bf16
    %165 = vector.broadcast %cst_44 : bf16 to vector<1x1x4x32xbf16>
    %166 = tpu.concatenate %165, %164, %165 in 1 : vector<1x1x4x32xbf16>, vector<1x4x4x32xbf16>, vector<1x1x4x32xbf16> -> vector<1x6x4x32xbf16>
    %cst_45 = arith.constant 0.000000e+00 : bf16
    %167 = vector.broadcast %cst_45 : bf16 to vector<1x6x1x32xbf16>
    %168 = vector.extract_strided_slice %166 {offsets = [0, 0, 0, 0], sizes = [1, 6, 3, 32], strides = [1, 1, 1, 1]} : vector<1x6x4x32xbf16> to vector<1x6x3x32xbf16>
    %169 = tpu.concatenate %167, %168 in 2 : vector<1x6x1x32xbf16>, vector<1x6x3x32xbf16> -> vector<1x6x4x32xbf16>
    %170 = vector.extract_strided_slice %166 {offsets = [0, 0, 1, 0], sizes = [1, 6, 3, 32], strides = [1, 1, 1, 1]} : vector<1x6x4x32xbf16> to vector<1x6x3x32xbf16>
    %171 = tpu.concatenate %170, %167 in 2 : vector<1x6x3x32xbf16>, vector<1x6x1x32xbf16> -> vector<1x6x4x32xbf16>
    %cst_46 = arith.constant 0.000000e+00 : f32
    %172 = vector.broadcast %cst_46 : f32 to vector<16x64xf32>
    %173 = vector.extract_strided_slice %169 {offsets = [0, 0, 0, 0], sizes = [1, 4, 4, 32], strides = [1, 1, 1, 1]} : vector<1x6x4x32xbf16> to vector<1x4x4x32xbf16>
    %174 = vector.shape_cast %173 : vector<1x4x4x32xbf16> to vector<16x32xbf16>
    %175 = vector.extract_strided_slice %163 {offsets = [0, 0, 0, 0], sizes = [1, 1, 32, 64], strides = [1, 1, 1, 1]} : vector<3x3x32x64xbf16> to vector<1x1x32x64xbf16>
    %176 = vector.shape_cast %175 : vector<1x1x32x64xbf16> to vector<32x64xbf16>
    %cst_47 = arith.constant dense<0.000000e+00> : vector<16x64xf32>
    %177 = tpu.matmul %174, %176, %cst_47 {dimension_numbers = #tpu.dot_dimension_numbers<[1], [0], [0], [1], [0, 0, 1, 1], [], []>} : vector<16x32xbf16>, vector<32x64xbf16>, vector<16x64xf32> -> vector<16x64xf32>
    %178 = arith.addf %172, %177 : vector<16x64xf32>
    %179 = vector.extract_strided_slice %166 {offsets = [0, 0, 0, 0], sizes = [1, 4, 4, 32], strides = [1, 1, 1, 1]} : vector<1x6x4x32xbf16> to vector<1x4x4x32xbf16>
    %180 = vector.shape_cast %179 : vector<1x4x4x32xbf16> to vector<16x32xbf16>
    %181 = vector.extract_strided_slice %163 {offsets = [0, 1, 0, 0], sizes = [1, 1, 32, 64], strides = [1, 1, 1, 1]} : vector<3x3x32x64xbf16> to vector<1x1x32x64xbf16>
    %182 = vector.shape_cast %181 : vector<1x1x32x64xbf16> to vector<32x64xbf16>
    %cst_48 = arith.constant dense<0.000000e+00> : vector<16x64xf32>
    %183 = tpu.matmul %180, %182, %cst_48 {dimension_numbers = #tpu.dot_dimension_numbers<[1], [0], [0], [1], [0, 0, 1, 1], [], []>} : vector<16x32xbf16>, vector<32x64xbf16>, vector<16x64xf32> -> vector<16x64xf32>
    %184 = arith.addf %178, %183 : vector<16x64xf32>
    %185 = vector.extract_strided_slice %171 {offsets = [0, 0, 0, 0], sizes = [1, 4, 4, 32], strides = [1, 1, 1, 1]} : vector<1x6x4x32xbf16> to vector<1x4x4x32xbf16>
    %186 = vector.shape_cast %185 : vector<1x4x4x32xbf16> to vector<16x32xbf16>
    %187 = vector.extract_strided_slice %163 {offsets = [0, 2, 0, 0], sizes = [1, 1, 32, 64], strides = [1, 1, 1, 1]} : vector<3x3x32x64xbf16> to vector<1x1x32x64xbf16>
    %188 = vector.shape_cast %187 : vector<1x1x32x64xbf16> to vector<32x64xbf16>
    %cst_49 = arith.constant dense<0.000000e+00> : vector<16x64xf32>
    %189 = tpu.matmul %186, %188, %cst_49 {dimension_numbers = #tpu.dot_dimension_numbers<[1], [0], [0], [1], [0, 0, 1, 1], [], []>} : vector<16x32xbf16>, vector<32x64xbf16>, vector<16x64xf32> -> vector<16x64xf32>
    %190 = arith.addf %184, %189 : vector<16x64xf32>
    %191 = vector.extract_strided_slice %169 {offsets = [0, 1, 0, 0], sizes = [1, 4, 4, 32], strides = [1, 1, 1, 1]} : vector<1x6x4x32xbf16> to vector<1x4x4x32xbf16>
    %192 = vector.shape_cast %191 : vector<1x4x4x32xbf16> to vector<16x32xbf16>
    %193 = vector.extract_strided_slice %163 {offsets = [1, 0, 0, 0], sizes = [1, 1, 32, 64], strides = [1, 1, 1, 1]} : vector<3x3x32x64xbf16> to vector<1x1x32x64xbf16>
    %194 = vector.shape_cast %193 : vector<1x1x32x64xbf16> to vector<32x64xbf16>
    %cst_50 = arith.constant dense<0.000000e+00> : vector<16x64xf32>
    %195 = tpu.matmul %192, %194, %cst_50 {dimension_numbers = #tpu.dot_dimension_numbers<[1], [0], [0], [1], [0, 0, 1, 1], [], []>} : vector<16x32xbf16>, vector<32x64xbf16>, vector<16x64xf32> -> vector<16x64xf32>
    %196 = arith.addf %190, %195 : vector<16x64xf32>
    %197 = vector.extract_strided_slice %166 {offsets = [0, 1, 0, 0], sizes = [1, 4, 4, 32], strides = [1, 1, 1, 1]} : vector<1x6x4x32xbf16> to vector<1x4x4x32xbf16>
    %198 = vector.shape_cast %197 : vector<1x4x4x32xbf16> to vector<16x32xbf16>
    %199 = vector.extract_strided_slice %163 {offsets = [1, 1, 0, 0], sizes = [1, 1, 32, 64], strides = [1, 1, 1, 1]} : vector<3x3x32x64xbf16> to vector<1x1x32x64xbf16>
    %200 = vector.shape_cast %199 : vector<1x1x32x64xbf16> to vector<32x64xbf16>
    %cst_51 = arith.constant dense<0.000000e+00> : vector<16x64xf32>
    %201 = tpu.matmul %198, %200, %cst_51 {dimension_numbers = #tpu.dot_dimension_numbers<[1], [0], [0], [1], [0, 0, 1, 1], [], []>} : vector<16x32xbf16>, vector<32x64xbf16>, vector<16x64xf32> -> vector<16x64xf32>
    %202 = arith.addf %196, %201 : vector<16x64xf32>
    %203 = vector.extract_strided_slice %171 {offsets = [0, 1, 0, 0], sizes = [1, 4, 4, 32], strides = [1, 1, 1, 1]} : vector<1x6x4x32xbf16> to vector<1x4x4x32xbf16>
    %204 = vector.shape_cast %203 : vector<1x4x4x32xbf16> to vector<16x32xbf16>
    %205 = vector.extract_strided_slice %163 {offsets = [1, 2, 0, 0], sizes = [1, 1, 32, 64], strides = [1, 1, 1, 1]} : vector<3x3x32x64xbf16> to vector<1x1x32x64xbf16>
    %206 = vector.shape_cast %205 : vector<1x1x32x64xbf16> to vector<32x64xbf16>
    %cst_52 = arith.constant dense<0.000000e+00> : vector<16x64xf32>
    %207 = tpu.matmul %204, %206, %cst_52 {dimension_numbers = #tpu.dot_dimension_numbers<[1], [0], [0], [1], [0, 0, 1, 1], [], []>} : vector<16x32xbf16>, vector<32x64xbf16>, vector<16x64xf32> -> vector<16x64xf32>
    %208 = arith.addf %202, %207 : vector<16x64xf32>
    %209 = vector.extract_strided_slice %169 {offsets = [0, 2, 0, 0], sizes = [1, 4, 4, 32], strides = [1, 1, 1, 1]} : vector<1x6x4x32xbf16> to vector<1x4x4x32xbf16>
    %210 = vector.shape_cast %209 : vector<1x4x4x32xbf16> to vector<16x32xbf16>
    %211 = vector.extract_strided_slice %163 {offsets = [2, 0, 0, 0], sizes = [1, 1, 32, 64], strides = [1, 1, 1, 1]} : vector<3x3x32x64xbf16> to vector<1x1x32x64xbf16>
    %212 = vector.shape_cast %211 : vector<1x1x32x64xbf16> to vector<32x64xbf16>
    %cst_53 = arith.constant dense<0.000000e+00> : vector<16x64xf32>
    %213 = tpu.matmul %210, %212, %cst_53 {dimension_numbers = #tpu.dot_dimension_numbers<[1], [0], [0], [1], [0, 0, 1, 1], [], []>} : vector<16x32xbf16>, vector<32x64xbf16>, vector<16x64xf32> -> vector<16x64xf32>
    %214 = arith.addf %208, %213 : vector<16x64xf32>
    %215 = vector.extract_strided_slice %166 {offsets = [0, 2, 0, 0], sizes = [1, 4, 4, 32], strides = [1, 1, 1, 1]} : vector<1x6x4x32xbf16> to vector<1x4x4x32xbf16>
    %216 = vector.shape_cast %215 : vector<1x4x4x32xbf16> to vector<16x32xbf16>
    %217 = vector.extract_strided_slice %163 {offsets = [2, 1, 0, 0], sizes = [1, 1, 32, 64], strides = [1, 1, 1, 1]} : vector<3x3x32x64xbf16> to vector<1x1x32x64xbf16>
    %218 = vector.shape_cast %217 : vector<1x1x32x64xbf16> to vector<32x64xbf16>
    %cst_54 = arith.constant dense<0.000000e+00> : vector<16x64xf32>
    %219 = tpu.matmul %216, %218, %cst_54 {dimension_numbers = #tpu.dot_dimension_numbers<[1], [0], [0], [1], [0, 0, 1, 1], [], []>} : vector<16x32xbf16>, vector<32x64xbf16>, vector<16x64xf32> -> vector<16x64xf32>
    %220 = arith.addf %214, %219 : vector<16x64xf32>
    %221 = vector.extract_strided_slice %171 {offsets = [0, 2, 0, 0], sizes = [1, 4, 4, 32], strides = [1, 1, 1, 1]} : vector<1x6x4x32xbf16> to vector<1x4x4x32xbf16>
    %222 = vector.shape_cast %221 : vector<1x4x4x32xbf16> to vector<16x32xbf16>
    %223 = vector.extract_strided_slice %163 {offsets = [2, 2, 0, 0], sizes = [1, 1, 32, 64], strides = [1, 1, 1, 1]} : vector<3x3x32x64xbf16> to vector<1x1x32x64xbf16>
    %224 = vector.shape_cast %223 : vector<1x1x32x64xbf16> to vector<32x64xbf16>
    %cst_55 = arith.constant dense<0.000000e+00> : vector<16x64xf32>
    %225 = tpu.matmul %222, %224, %cst_55 {dimension_numbers = #tpu.dot_dimension_numbers<[1], [0], [0], [1], [0, 0, 1, 1], [], []>} : vector<16x32xbf16>, vector<32x64xbf16>, vector<16x64xf32> -> vector<16x64xf32>
    %226 = arith.addf %220, %225 : vector<16x64xf32>
    %c0_56 = arith.constant 0 : index
    %c0_57 = arith.constant 0 : index
    %227 = vector.load %arg7[%c0_56, %c0_57] : memref<1x64xf32, #tpu.memory_space<vmem>>, vector<1x64xf32>
    %228 = vector.broadcast %227 : vector<1x64xf32> to vector<16x64xf32>
    %229 = arith.addf %226, %228 : vector<16x64xf32>
    %cst_58 = arith.constant 0.000000e+00 : f32
    %230 = vector.broadcast %cst_58 : f32 to vector<16x64xf32>
    %231 = arith.maximumf %229, %230 : vector<16x64xf32>
    %232 = vector.shape_cast %231 : vector<16x64xf32> to vector<1x4x4x64xf32>
    %233 = vector.extract_strided_slice %232 {offsets = [0, 0, 0, 0], sizes = [1, 1, 4, 64], strides = [1, 1, 1, 1]} : vector<1x4x4x64xf32> to vector<1x1x4x64xf32>
    %234 = vector.extract_strided_slice %232 {offsets = [0, 0, 0, 0], sizes = [1, 3, 4, 64], strides = [1, 1, 1, 1]} : vector<1x4x4x64xf32> to vector<1x3x4x64xf32>
    %235 = tpu.concatenate %233, %234 in 1 : vector<1x1x4x64xf32>, vector<1x3x4x64xf32> -> vector<1x4x4x64xf32>
    %236 = vector.extract_strided_slice %232 {offsets = [0, 1, 0, 0], sizes = [1, 3, 4, 64], strides = [1, 1, 1, 1]} : vector<1x4x4x64xf32> to vector<1x3x4x64xf32>
    %237 = vector.extract_strided_slice %232 {offsets = [0, 3, 0, 0], sizes = [1, 1, 4, 64], strides = [1, 1, 1, 1]} : vector<1x4x4x64xf32> to vector<1x1x4x64xf32>
    %238 = tpu.concatenate %236, %237 in 1 : vector<1x3x4x64xf32>, vector<1x1x4x64xf32> -> vector<1x4x4x64xf32>
    %cst_59 = arith.constant 7.500000e-01 : f32
    %239 = vector.broadcast %cst_59 : f32 to vector<1x4x4x64xf32>
    %240 = arith.mulf %239, %232 : vector<1x4x4x64xf32>
    %cst_60 = arith.constant 2.500000e-01 : f32
    %241 = vector.broadcast %cst_60 : f32 to vector<1x4x4x64xf32>
    %242 = arith.mulf %241, %235 : vector<1x4x4x64xf32>
    %243 = arith.addf %240, %242 : vector<1x4x4x64xf32>
    %cst_61 = arith.constant 7.500000e-01 : f32
    %244 = vector.broadcast %cst_61 : f32 to vector<1x4x4x64xf32>
    %245 = arith.mulf %244, %232 : vector<1x4x4x64xf32>
    %cst_62 = arith.constant 2.500000e-01 : f32
    %246 = vector.broadcast %cst_62 : f32 to vector<1x4x4x64xf32>
    %247 = arith.mulf %246, %238 : vector<1x4x4x64xf32>
    %248 = arith.addf %245, %247 : vector<1x4x4x64xf32>
    %249 = vector.shape_cast %243 : vector<1x4x4x64xf32> to vector<1x4x1x4x64xf32>
    %250 = vector.shape_cast %248 : vector<1x4x4x64xf32> to vector<1x4x1x4x64xf32>
    %251 = tpu.concatenate %249, %250 in 2 : vector<1x4x1x4x64xf32>, vector<1x4x1x4x64xf32> -> vector<1x4x2x4x64xf32>
    %252 = vector.shape_cast %251 : vector<1x4x2x4x64xf32> to vector<1x8x4x64xf32>
    %253 = vector.extract_strided_slice %252 {offsets = [0, 0, 0, 0], sizes = [1, 8, 1, 64], strides = [1, 1, 1, 1]} : vector<1x8x4x64xf32> to vector<1x8x1x64xf32>
    %254 = vector.extract_strided_slice %252 {offsets = [0, 0, 0, 0], sizes = [1, 8, 3, 64], strides = [1, 1, 1, 1]} : vector<1x8x4x64xf32> to vector<1x8x3x64xf32>
    %255 = tpu.concatenate %253, %254 in 2 : vector<1x8x1x64xf32>, vector<1x8x3x64xf32> -> vector<1x8x4x64xf32>
    %256 = vector.extract_strided_slice %252 {offsets = [0, 0, 1, 0], sizes = [1, 8, 3, 64], strides = [1, 1, 1, 1]} : vector<1x8x4x64xf32> to vector<1x8x3x64xf32>
    %257 = vector.extract_strided_slice %252 {offsets = [0, 0, 3, 0], sizes = [1, 8, 1, 64], strides = [1, 1, 1, 1]} : vector<1x8x4x64xf32> to vector<1x8x1x64xf32>
    %258 = tpu.concatenate %256, %257 in 2 : vector<1x8x3x64xf32>, vector<1x8x1x64xf32> -> vector<1x8x4x64xf32>
    %cst_63 = arith.constant 7.500000e-01 : f32
    %259 = vector.broadcast %cst_63 : f32 to vector<1x8x4x64xf32>
    %260 = arith.mulf %259, %252 : vector<1x8x4x64xf32>
    %cst_64 = arith.constant 2.500000e-01 : f32
    %261 = vector.broadcast %cst_64 : f32 to vector<1x8x4x64xf32>
    %262 = arith.mulf %261, %255 : vector<1x8x4x64xf32>
    %263 = arith.addf %260, %262 : vector<1x8x4x64xf32>
    %cst_65 = arith.constant 7.500000e-01 : f32
    %264 = vector.broadcast %cst_65 : f32 to vector<1x8x4x64xf32>
    %265 = arith.mulf %264, %252 : vector<1x8x4x64xf32>
    %cst_66 = arith.constant 2.500000e-01 : f32
    %266 = vector.broadcast %cst_66 : f32 to vector<1x8x4x64xf32>
    %267 = arith.mulf %266, %258 : vector<1x8x4x64xf32>
    %268 = arith.addf %265, %267 : vector<1x8x4x64xf32>
    %269 = vector.shape_cast %263 : vector<1x8x4x64xf32> to vector<1x8x4x1x64xf32>
    %270 = vector.shape_cast %268 : vector<1x8x4x64xf32> to vector<1x8x4x1x64xf32>
    %271 = tpu.concatenate %269, %270 in 3 : vector<1x8x4x1x64xf32>, vector<1x8x4x1x64xf32> -> vector<1x8x4x2x64xf32>
    %272 = vector.shape_cast %271 : vector<1x8x4x2x64xf32> to vector<1x8x8x64xf32>
    %c0_67 = arith.constant 0 : index
    %c0_68 = arith.constant 0 : index
    %c0_69 = arith.constant 0 : index
    %c0_70 = arith.constant 0 : index
    %273 = vector.load %arg8[%c0_67, %c0_68, %c0_69, %c0_70] : memref<3x3x64x32xbf16, #tpu.memory_space<vmem>>, vector<3x3x64x32xbf16>
    %274 = arith.truncf %272 : vector<1x8x8x64xf32> to vector<1x8x8x64xbf16>
    %cst_71 = arith.constant 0.000000e+00 : bf16
    %275 = vector.broadcast %cst_71 : bf16 to vector<1x1x8x64xbf16>
    %276 = tpu.concatenate %275, %274, %275 in 1 : vector<1x1x8x64xbf16>, vector<1x8x8x64xbf16>, vector<1x1x8x64xbf16> -> vector<1x10x8x64xbf16>
    %cst_72 = arith.constant 0.000000e+00 : bf16
    %277 = vector.broadcast %cst_72 : bf16 to vector<1x10x1x64xbf16>
    %278 = vector.extract_strided_slice %276 {offsets = [0, 0, 0, 0], sizes = [1, 10, 7, 64], strides = [1, 1, 1, 1]} : vector<1x10x8x64xbf16> to vector<1x10x7x64xbf16>
    %279 = tpu.concatenate %277, %278 in 2 : vector<1x10x1x64xbf16>, vector<1x10x7x64xbf16> -> vector<1x10x8x64xbf16>
    %280 = vector.extract_strided_slice %276 {offsets = [0, 0, 1, 0], sizes = [1, 10, 7, 64], strides = [1, 1, 1, 1]} : vector<1x10x8x64xbf16> to vector<1x10x7x64xbf16>
    %281 = tpu.concatenate %280, %277 in 2 : vector<1x10x7x64xbf16>, vector<1x10x1x64xbf16> -> vector<1x10x8x64xbf16>
    %cst_73 = arith.constant 0.000000e+00 : f32
    %282 = vector.broadcast %cst_73 : f32 to vector<64x32xf32>
    %283 = vector.extract_strided_slice %279 {offsets = [0, 0, 0, 0], sizes = [1, 8, 8, 64], strides = [1, 1, 1, 1]} : vector<1x10x8x64xbf16> to vector<1x8x8x64xbf16>
    %284 = vector.shape_cast %283 : vector<1x8x8x64xbf16> to vector<64x64xbf16>
    %285 = vector.extract_strided_slice %273 {offsets = [0, 0, 0, 0], sizes = [1, 1, 64, 32], strides = [1, 1, 1, 1]} : vector<3x3x64x32xbf16> to vector<1x1x64x32xbf16>
    %286 = vector.shape_cast %285 : vector<1x1x64x32xbf16> to vector<64x32xbf16>
    %cst_74 = arith.constant dense<0.000000e+00> : vector<64x32xf32>
    %287 = tpu.matmul %284, %286, %cst_74 {dimension_numbers = #tpu.dot_dimension_numbers<[1], [0], [0], [1], [0, 0, 1, 1], [], []>} : vector<64x64xbf16>, vector<64x32xbf16>, vector<64x32xf32> -> vector<64x32xf32>
    %288 = arith.addf %282, %287 : vector<64x32xf32>
    %289 = vector.extract_strided_slice %276 {offsets = [0, 0, 0, 0], sizes = [1, 8, 8, 64], strides = [1, 1, 1, 1]} : vector<1x10x8x64xbf16> to vector<1x8x8x64xbf16>
    %290 = vector.shape_cast %289 : vector<1x8x8x64xbf16> to vector<64x64xbf16>
    %291 = vector.extract_strided_slice %273 {offsets = [0, 1, 0, 0], sizes = [1, 1, 64, 32], strides = [1, 1, 1, 1]} : vector<3x3x64x32xbf16> to vector<1x1x64x32xbf16>
    %292 = vector.shape_cast %291 : vector<1x1x64x32xbf16> to vector<64x32xbf16>
    %cst_75 = arith.constant dense<0.000000e+00> : vector<64x32xf32>
    %293 = tpu.matmul %290, %292, %cst_75 {dimension_numbers = #tpu.dot_dimension_numbers<[1], [0], [0], [1], [0, 0, 1, 1], [], []>} : vector<64x64xbf16>, vector<64x32xbf16>, vector<64x32xf32> -> vector<64x32xf32>
    %294 = arith.addf %288, %293 : vector<64x32xf32>
    %295 = vector.extract_strided_slice %281 {offsets = [0, 0, 0, 0], sizes = [1, 8, 8, 64], strides = [1, 1, 1, 1]} : vector<1x10x8x64xbf16> to vector<1x8x8x64xbf16>
    %296 = vector.shape_cast %295 : vector<1x8x8x64xbf16> to vector<64x64xbf16>
    %297 = vector.extract_strided_slice %273 {offsets = [0, 2, 0, 0], sizes = [1, 1, 64, 32], strides = [1, 1, 1, 1]} : vector<3x3x64x32xbf16> to vector<1x1x64x32xbf16>
    %298 = vector.shape_cast %297 : vector<1x1x64x32xbf16> to vector<64x32xbf16>
    %cst_76 = arith.constant dense<0.000000e+00> : vector<64x32xf32>
    %299 = tpu.matmul %296, %298, %cst_76 {dimension_numbers = #tpu.dot_dimension_numbers<[1], [0], [0], [1], [0, 0, 1, 1], [], []>} : vector<64x64xbf16>, vector<64x32xbf16>, vector<64x32xf32> -> vector<64x32xf32>
    %300 = arith.addf %294, %299 : vector<64x32xf32>
    %301 = vector.extract_strided_slice %279 {offsets = [0, 1, 0, 0], sizes = [1, 8, 8, 64], strides = [1, 1, 1, 1]} : vector<1x10x8x64xbf16> to vector<1x8x8x64xbf16>
    %302 = vector.shape_cast %301 : vector<1x8x8x64xbf16> to vector<64x64xbf16>
    %303 = vector.extract_strided_slice %273 {offsets = [1, 0, 0, 0], sizes = [1, 1, 64, 32], strides = [1, 1, 1, 1]} : vector<3x3x64x32xbf16> to vector<1x1x64x32xbf16>
    %304 = vector.shape_cast %303 : vector<1x1x64x32xbf16> to vector<64x32xbf16>
    %cst_77 = arith.constant dense<0.000000e+00> : vector<64x32xf32>
    %305 = tpu.matmul %302, %304, %cst_77 {dimension_numbers = #tpu.dot_dimension_numbers<[1], [0], [0], [1], [0, 0, 1, 1], [], []>} : vector<64x64xbf16>, vector<64x32xbf16>, vector<64x32xf32> -> vector<64x32xf32>
    %306 = arith.addf %300, %305 : vector<64x32xf32>
    %307 = vector.extract_strided_slice %276 {offsets = [0, 1, 0, 0], sizes = [1, 8, 8, 64], strides = [1, 1, 1, 1]} : vector<1x10x8x64xbf16> to vector<1x8x8x64xbf16>
    %308 = vector.shape_cast %307 : vector<1x8x8x64xbf16> to vector<64x64xbf16>
    %309 = vector.extract_strided_slice %273 {offsets = [1, 1, 0, 0], sizes = [1, 1, 64, 32], strides = [1, 1, 1, 1]} : vector<3x3x64x32xbf16> to vector<1x1x64x32xbf16>
    %310 = vector.shape_cast %309 : vector<1x1x64x32xbf16> to vector<64x32xbf16>
    %cst_78 = arith.constant dense<0.000000e+00> : vector<64x32xf32>
    %311 = tpu.matmul %308, %310, %cst_78 {dimension_numbers = #tpu.dot_dimension_numbers<[1], [0], [0], [1], [0, 0, 1, 1], [], []>} : vector<64x64xbf16>, vector<64x32xbf16>, vector<64x32xf32> -> vector<64x32xf32>
    %312 = arith.addf %306, %311 : vector<64x32xf32>
    %313 = vector.extract_strided_slice %281 {offsets = [0, 1, 0, 0], sizes = [1, 8, 8, 64], strides = [1, 1, 1, 1]} : vector<1x10x8x64xbf16> to vector<1x8x8x64xbf16>
    %314 = vector.shape_cast %313 : vector<1x8x8x64xbf16> to vector<64x64xbf16>
    %315 = vector.extract_strided_slice %273 {offsets = [1, 2, 0, 0], sizes = [1, 1, 64, 32], strides = [1, 1, 1, 1]} : vector<3x3x64x32xbf16> to vector<1x1x64x32xbf16>
    %316 = vector.shape_cast %315 : vector<1x1x64x32xbf16> to vector<64x32xbf16>
    %cst_79 = arith.constant dense<0.000000e+00> : vector<64x32xf32>
    %317 = tpu.matmul %314, %316, %cst_79 {dimension_numbers = #tpu.dot_dimension_numbers<[1], [0], [0], [1], [0, 0, 1, 1], [], []>} : vector<64x64xbf16>, vector<64x32xbf16>, vector<64x32xf32> -> vector<64x32xf32>
    %318 = arith.addf %312, %317 : vector<64x32xf32>
    %319 = vector.extract_strided_slice %279 {offsets = [0, 2, 0, 0], sizes = [1, 8, 8, 64], strides = [1, 1, 1, 1]} : vector<1x10x8x64xbf16> to vector<1x8x8x64xbf16>
    %320 = vector.shape_cast %319 : vector<1x8x8x64xbf16> to vector<64x64xbf16>
    %321 = vector.extract_strided_slice %273 {offsets = [2, 0, 0, 0], sizes = [1, 1, 64, 32], strides = [1, 1, 1, 1]} : vector<3x3x64x32xbf16> to vector<1x1x64x32xbf16>
    %322 = vector.shape_cast %321 : vector<1x1x64x32xbf16> to vector<64x32xbf16>
    %cst_80 = arith.constant dense<0.000000e+00> : vector<64x32xf32>
    %323 = tpu.matmul %320, %322, %cst_80 {dimension_numbers = #tpu.dot_dimension_numbers<[1], [0], [0], [1], [0, 0, 1, 1], [], []>} : vector<64x64xbf16>, vector<64x32xbf16>, vector<64x32xf32> -> vector<64x32xf32>
    %324 = arith.addf %318, %323 : vector<64x32xf32>
    %325 = vector.extract_strided_slice %276 {offsets = [0, 2, 0, 0], sizes = [1, 8, 8, 64], strides = [1, 1, 1, 1]} : vector<1x10x8x64xbf16> to vector<1x8x8x64xbf16>
    %326 = vector.shape_cast %325 : vector<1x8x8x64xbf16> to vector<64x64xbf16>
    %327 = vector.extract_strided_slice %273 {offsets = [2, 1, 0, 0], sizes = [1, 1, 64, 32], strides = [1, 1, 1, 1]} : vector<3x3x64x32xbf16> to vector<1x1x64x32xbf16>
    %328 = vector.shape_cast %327 : vector<1x1x64x32xbf16> to vector<64x32xbf16>
    %cst_81 = arith.constant dense<0.000000e+00> : vector<64x32xf32>
    %329 = tpu.matmul %326, %328, %cst_81 {dimension_numbers = #tpu.dot_dimension_numbers<[1], [0], [0], [1], [0, 0, 1, 1], [], []>} : vector<64x64xbf16>, vector<64x32xbf16>, vector<64x32xf32> -> vector<64x32xf32>
    %330 = arith.addf %324, %329 : vector<64x32xf32>
    %331 = vector.extract_strided_slice %281 {offsets = [0, 2, 0, 0], sizes = [1, 8, 8, 64], strides = [1, 1, 1, 1]} : vector<1x10x8x64xbf16> to vector<1x8x8x64xbf16>
    %332 = vector.shape_cast %331 : vector<1x8x8x64xbf16> to vector<64x64xbf16>
    %333 = vector.extract_strided_slice %273 {offsets = [2, 2, 0, 0], sizes = [1, 1, 64, 32], strides = [1, 1, 1, 1]} : vector<3x3x64x32xbf16> to vector<1x1x64x32xbf16>
    %334 = vector.shape_cast %333 : vector<1x1x64x32xbf16> to vector<64x32xbf16>
    %cst_82 = arith.constant dense<0.000000e+00> : vector<64x32xf32>
    %335 = tpu.matmul %332, %334, %cst_82 {dimension_numbers = #tpu.dot_dimension_numbers<[1], [0], [0], [1], [0, 0, 1, 1], [], []>} : vector<64x64xbf16>, vector<64x32xbf16>, vector<64x32xf32> -> vector<64x32xf32>
    %336 = arith.addf %330, %335 : vector<64x32xf32>
    %c0_83 = arith.constant 0 : index
    %c0_84 = arith.constant 0 : index
    %337 = vector.load %arg9[%c0_83, %c0_84] : memref<1x32xf32, #tpu.memory_space<vmem>>, vector<1x32xf32>
    %338 = vector.broadcast %337 : vector<1x32xf32> to vector<64x32xf32>
    %339 = arith.addf %336, %338 : vector<64x32xf32>
    %cst_85 = arith.constant 0.000000e+00 : f32
    %340 = vector.broadcast %cst_85 : f32 to vector<64x32xf32>
    %341 = arith.maximumf %339, %340 : vector<64x32xf32>
    %342 = vector.shape_cast %341 : vector<64x32xf32> to vector<1x8x8x32xf32>
    %343 = vector.extract_strided_slice %342 {offsets = [0, 0, 0, 0], sizes = [1, 1, 8, 32], strides = [1, 1, 1, 1]} : vector<1x8x8x32xf32> to vector<1x1x8x32xf32>
    %344 = vector.extract_strided_slice %342 {offsets = [0, 0, 0, 0], sizes = [1, 7, 8, 32], strides = [1, 1, 1, 1]} : vector<1x8x8x32xf32> to vector<1x7x8x32xf32>
    %345 = tpu.concatenate %343, %344 in 1 : vector<1x1x8x32xf32>, vector<1x7x8x32xf32> -> vector<1x8x8x32xf32>
    %346 = vector.extract_strided_slice %342 {offsets = [0, 1, 0, 0], sizes = [1, 7, 8, 32], strides = [1, 1, 1, 1]} : vector<1x8x8x32xf32> to vector<1x7x8x32xf32>
    %347 = vector.extract_strided_slice %342 {offsets = [0, 7, 0, 0], sizes = [1, 1, 8, 32], strides = [1, 1, 1, 1]} : vector<1x8x8x32xf32> to vector<1x1x8x32xf32>
    %348 = tpu.concatenate %346, %347 in 1 : vector<1x7x8x32xf32>, vector<1x1x8x32xf32> -> vector<1x8x8x32xf32>
    %cst_86 = arith.constant 7.500000e-01 : f32
    %349 = vector.broadcast %cst_86 : f32 to vector<1x8x8x32xf32>
    %350 = arith.mulf %349, %342 : vector<1x8x8x32xf32>
    %cst_87 = arith.constant 2.500000e-01 : f32
    %351 = vector.broadcast %cst_87 : f32 to vector<1x8x8x32xf32>
    %352 = arith.mulf %351, %345 : vector<1x8x8x32xf32>
    %353 = arith.addf %350, %352 : vector<1x8x8x32xf32>
    %cst_88 = arith.constant 7.500000e-01 : f32
    %354 = vector.broadcast %cst_88 : f32 to vector<1x8x8x32xf32>
    %355 = arith.mulf %354, %342 : vector<1x8x8x32xf32>
    %cst_89 = arith.constant 2.500000e-01 : f32
    %356 = vector.broadcast %cst_89 : f32 to vector<1x8x8x32xf32>
    %357 = arith.mulf %356, %348 : vector<1x8x8x32xf32>
    %358 = arith.addf %355, %357 : vector<1x8x8x32xf32>
    %359 = vector.shape_cast %353 : vector<1x8x8x32xf32> to vector<1x8x1x8x32xf32>
    %360 = vector.shape_cast %358 : vector<1x8x8x32xf32> to vector<1x8x1x8x32xf32>
    %361 = tpu.concatenate %359, %360 in 2 : vector<1x8x1x8x32xf32>, vector<1x8x1x8x32xf32> -> vector<1x8x2x8x32xf32>
    %362 = vector.shape_cast %361 : vector<1x8x2x8x32xf32> to vector<1x16x8x32xf32>
    %363 = vector.extract_strided_slice %362 {offsets = [0, 0, 0, 0], sizes = [1, 16, 1, 32], strides = [1, 1, 1, 1]} : vector<1x16x8x32xf32> to vector<1x16x1x32xf32>
    %364 = vector.extract_strided_slice %362 {offsets = [0, 0, 0, 0], sizes = [1, 16, 7, 32], strides = [1, 1, 1, 1]} : vector<1x16x8x32xf32> to vector<1x16x7x32xf32>
    %365 = tpu.concatenate %363, %364 in 2 : vector<1x16x1x32xf32>, vector<1x16x7x32xf32> -> vector<1x16x8x32xf32>
    %366 = vector.extract_strided_slice %362 {offsets = [0, 0, 1, 0], sizes = [1, 16, 7, 32], strides = [1, 1, 1, 1]} : vector<1x16x8x32xf32> to vector<1x16x7x32xf32>
    %367 = vector.extract_strided_slice %362 {offsets = [0, 0, 7, 0], sizes = [1, 16, 1, 32], strides = [1, 1, 1, 1]} : vector<1x16x8x32xf32> to vector<1x16x1x32xf32>
    %368 = tpu.concatenate %366, %367 in 2 : vector<1x16x7x32xf32>, vector<1x16x1x32xf32> -> vector<1x16x8x32xf32>
    %cst_90 = arith.constant 7.500000e-01 : f32
    %369 = vector.broadcast %cst_90 : f32 to vector<1x16x8x32xf32>
    %370 = arith.mulf %369, %362 : vector<1x16x8x32xf32>
    %cst_91 = arith.constant 2.500000e-01 : f32
    %371 = vector.broadcast %cst_91 : f32 to vector<1x16x8x32xf32>
    %372 = arith.mulf %371, %365 : vector<1x16x8x32xf32>
    %373 = arith.addf %370, %372 : vector<1x16x8x32xf32>
    %cst_92 = arith.constant 7.500000e-01 : f32
    %374 = vector.broadcast %cst_92 : f32 to vector<1x16x8x32xf32>
    %375 = arith.mulf %374, %362 : vector<1x16x8x32xf32>
    %cst_93 = arith.constant 2.500000e-01 : f32
    %376 = vector.broadcast %cst_93 : f32 to vector<1x16x8x32xf32>
    %377 = arith.mulf %376, %368 : vector<1x16x8x32xf32>
    %378 = arith.addf %375, %377 : vector<1x16x8x32xf32>
    %379 = vector.shape_cast %373 : vector<1x16x8x32xf32> to vector<1x16x8x1x32xf32>
    %380 = vector.shape_cast %378 : vector<1x16x8x32xf32> to vector<1x16x8x1x32xf32>
    %381 = tpu.concatenate %379, %380 in 3 : vector<1x16x8x1x32xf32>, vector<1x16x8x1x32xf32> -> vector<1x16x8x2x32xf32>
    %382 = vector.shape_cast %381 : vector<1x16x8x2x32xf32> to vector<1x16x16x32xf32>
    %c0_94 = arith.constant 0 : index
    %c0_95 = arith.constant 0 : index
    %c0_96 = arith.constant 0 : index
    %c0_97 = arith.constant 0 : index
    %383 = vector.load %arg10[%c0_94, %c0_95, %c0_96, %c0_97] : memref<3x3x32x16xbf16, #tpu.memory_space<vmem>>, vector<3x3x32x16xbf16>
    %384 = arith.truncf %382 : vector<1x16x16x32xf32> to vector<1x16x16x32xbf16>
    %cst_98 = arith.constant 0.000000e+00 : bf16
    %385 = vector.broadcast %cst_98 : bf16 to vector<1x1x16x32xbf16>
    %386 = tpu.concatenate %385, %384, %385 in 1 : vector<1x1x16x32xbf16>, vector<1x16x16x32xbf16>, vector<1x1x16x32xbf16> -> vector<1x18x16x32xbf16>
    %cst_99 = arith.constant 0.000000e+00 : bf16
    %387 = vector.broadcast %cst_99 : bf16 to vector<1x18x1x32xbf16>
    %388 = vector.extract_strided_slice %386 {offsets = [0, 0, 0, 0], sizes = [1, 18, 15, 32], strides = [1, 1, 1, 1]} : vector<1x18x16x32xbf16> to vector<1x18x15x32xbf16>
    %389 = tpu.concatenate %387, %388 in 2 : vector<1x18x1x32xbf16>, vector<1x18x15x32xbf16> -> vector<1x18x16x32xbf16>
    %390 = vector.extract_strided_slice %386 {offsets = [0, 0, 1, 0], sizes = [1, 18, 15, 32], strides = [1, 1, 1, 1]} : vector<1x18x16x32xbf16> to vector<1x18x15x32xbf16>
    %391 = tpu.concatenate %390, %387 in 2 : vector<1x18x15x32xbf16>, vector<1x18x1x32xbf16> -> vector<1x18x16x32xbf16>
    %cst_100 = arith.constant 0.000000e+00 : f32
    %392 = vector.broadcast %cst_100 : f32 to vector<256x16xf32>
    %393 = vector.extract_strided_slice %389 {offsets = [0, 0, 0, 0], sizes = [1, 16, 16, 32], strides = [1, 1, 1, 1]} : vector<1x18x16x32xbf16> to vector<1x16x16x32xbf16>
    %394 = vector.shape_cast %393 : vector<1x16x16x32xbf16> to vector<256x32xbf16>
    %395 = vector.extract_strided_slice %383 {offsets = [0, 0, 0, 0], sizes = [1, 1, 32, 16], strides = [1, 1, 1, 1]} : vector<3x3x32x16xbf16> to vector<1x1x32x16xbf16>
    %396 = vector.shape_cast %395 : vector<1x1x32x16xbf16> to vector<32x16xbf16>
    %cst_101 = arith.constant dense<0.000000e+00> : vector<256x16xf32>
    %397 = tpu.matmul %394, %396, %cst_101 {dimension_numbers = #tpu.dot_dimension_numbers<[1], [0], [0], [1], [0, 0, 1, 1], [], []>} : vector<256x32xbf16>, vector<32x16xbf16>, vector<256x16xf32> -> vector<256x16xf32>
    %398 = arith.addf %392, %397 : vector<256x16xf32>
    %399 = vector.extract_strided_slice %386 {offsets = [0, 0, 0, 0], sizes = [1, 16, 16, 32], strides = [1, 1, 1, 1]} : vector<1x18x16x32xbf16> to vector<1x16x16x32xbf16>
    %400 = vector.shape_cast %399 : vector<1x16x16x32xbf16> to vector<256x32xbf16>
    %401 = vector.extract_strided_slice %383 {offsets = [0, 1, 0, 0], sizes = [1, 1, 32, 16], strides = [1, 1, 1, 1]} : vector<3x3x32x16xbf16> to vector<1x1x32x16xbf16>
    %402 = vector.shape_cast %401 : vector<1x1x32x16xbf16> to vector<32x16xbf16>
    %cst_102 = arith.constant dense<0.000000e+00> : vector<256x16xf32>
    %403 = tpu.matmul %400, %402, %cst_102 {dimension_numbers = #tpu.dot_dimension_numbers<[1], [0], [0], [1], [0, 0, 1, 1], [], []>} : vector<256x32xbf16>, vector<32x16xbf16>, vector<256x16xf32> -> vector<256x16xf32>
    %404 = arith.addf %398, %403 : vector<256x16xf32>
    %405 = vector.extract_strided_slice %391 {offsets = [0, 0, 0, 0], sizes = [1, 16, 16, 32], strides = [1, 1, 1, 1]} : vector<1x18x16x32xbf16> to vector<1x16x16x32xbf16>
    %406 = vector.shape_cast %405 : vector<1x16x16x32xbf16> to vector<256x32xbf16>
    %407 = vector.extract_strided_slice %383 {offsets = [0, 2, 0, 0], sizes = [1, 1, 32, 16], strides = [1, 1, 1, 1]} : vector<3x3x32x16xbf16> to vector<1x1x32x16xbf16>
    %408 = vector.shape_cast %407 : vector<1x1x32x16xbf16> to vector<32x16xbf16>
    %cst_103 = arith.constant dense<0.000000e+00> : vector<256x16xf32>
    %409 = tpu.matmul %406, %408, %cst_103 {dimension_numbers = #tpu.dot_dimension_numbers<[1], [0], [0], [1], [0, 0, 1, 1], [], []>} : vector<256x32xbf16>, vector<32x16xbf16>, vector<256x16xf32> -> vector<256x16xf32>
    %410 = arith.addf %404, %409 : vector<256x16xf32>
    %411 = vector.extract_strided_slice %389 {offsets = [0, 1, 0, 0], sizes = [1, 16, 16, 32], strides = [1, 1, 1, 1]} : vector<1x18x16x32xbf16> to vector<1x16x16x32xbf16>
    %412 = vector.shape_cast %411 : vector<1x16x16x32xbf16> to vector<256x32xbf16>
    %413 = vector.extract_strided_slice %383 {offsets = [1, 0, 0, 0], sizes = [1, 1, 32, 16], strides = [1, 1, 1, 1]} : vector<3x3x32x16xbf16> to vector<1x1x32x16xbf16>
    %414 = vector.shape_cast %413 : vector<1x1x32x16xbf16> to vector<32x16xbf16>
    %cst_104 = arith.constant dense<0.000000e+00> : vector<256x16xf32>
    %415 = tpu.matmul %412, %414, %cst_104 {dimension_numbers = #tpu.dot_dimension_numbers<[1], [0], [0], [1], [0, 0, 1, 1], [], []>} : vector<256x32xbf16>, vector<32x16xbf16>, vector<256x16xf32> -> vector<256x16xf32>
    %416 = arith.addf %410, %415 : vector<256x16xf32>
    %417 = vector.extract_strided_slice %386 {offsets = [0, 1, 0, 0], sizes = [1, 16, 16, 32], strides = [1, 1, 1, 1]} : vector<1x18x16x32xbf16> to vector<1x16x16x32xbf16>
    %418 = vector.shape_cast %417 : vector<1x16x16x32xbf16> to vector<256x32xbf16>
    %419 = vector.extract_strided_slice %383 {offsets = [1, 1, 0, 0], sizes = [1, 1, 32, 16], strides = [1, 1, 1, 1]} : vector<3x3x32x16xbf16> to vector<1x1x32x16xbf16>
    %420 = vector.shape_cast %419 : vector<1x1x32x16xbf16> to vector<32x16xbf16>
    %cst_105 = arith.constant dense<0.000000e+00> : vector<256x16xf32>
    %421 = tpu.matmul %418, %420, %cst_105 {dimension_numbers = #tpu.dot_dimension_numbers<[1], [0], [0], [1], [0, 0, 1, 1], [], []>} : vector<256x32xbf16>, vector<32x16xbf16>, vector<256x16xf32> -> vector<256x16xf32>
    %422 = arith.addf %416, %421 : vector<256x16xf32>
    %423 = vector.extract_strided_slice %391 {offsets = [0, 1, 0, 0], sizes = [1, 16, 16, 32], strides = [1, 1, 1, 1]} : vector<1x18x16x32xbf16> to vector<1x16x16x32xbf16>
    %424 = vector.shape_cast %423 : vector<1x16x16x32xbf16> to vector<256x32xbf16>
    %425 = vector.extract_strided_slice %383 {offsets = [1, 2, 0, 0], sizes = [1, 1, 32, 16], strides = [1, 1, 1, 1]} : vector<3x3x32x16xbf16> to vector<1x1x32x16xbf16>
    %426 = vector.shape_cast %425 : vector<1x1x32x16xbf16> to vector<32x16xbf16>
    %cst_106 = arith.constant dense<0.000000e+00> : vector<256x16xf32>
    %427 = tpu.matmul %424, %426, %cst_106 {dimension_numbers = #tpu.dot_dimension_numbers<[1], [0], [0], [1], [0, 0, 1, 1], [], []>} : vector<256x32xbf16>, vector<32x16xbf16>, vector<256x16xf32> -> vector<256x16xf32>
    %428 = arith.addf %422, %427 : vector<256x16xf32>
    %429 = vector.extract_strided_slice %389 {offsets = [0, 2, 0, 0], sizes = [1, 16, 16, 32], strides = [1, 1, 1, 1]} : vector<1x18x16x32xbf16> to vector<1x16x16x32xbf16>
    %430 = vector.shape_cast %429 : vector<1x16x16x32xbf16> to vector<256x32xbf16>
    %431 = vector.extract_strided_slice %383 {offsets = [2, 0, 0, 0], sizes = [1, 1, 32, 16], strides = [1, 1, 1, 1]} : vector<3x3x32x16xbf16> to vector<1x1x32x16xbf16>
    %432 = vector.shape_cast %431 : vector<1x1x32x16xbf16> to vector<32x16xbf16>
    %cst_107 = arith.constant dense<0.000000e+00> : vector<256x16xf32>
    %433 = tpu.matmul %430, %432, %cst_107 {dimension_numbers = #tpu.dot_dimension_numbers<[1], [0], [0], [1], [0, 0, 1, 1], [], []>} : vector<256x32xbf16>, vector<32x16xbf16>, vector<256x16xf32> -> vector<256x16xf32>
    %434 = arith.addf %428, %433 : vector<256x16xf32>
    %435 = vector.extract_strided_slice %386 {offsets = [0, 2, 0, 0], sizes = [1, 16, 16, 32], strides = [1, 1, 1, 1]} : vector<1x18x16x32xbf16> to vector<1x16x16x32xbf16>
    %436 = vector.shape_cast %435 : vector<1x16x16x32xbf16> to vector<256x32xbf16>
    %437 = vector.extract_strided_slice %383 {offsets = [2, 1, 0, 0], sizes = [1, 1, 32, 16], strides = [1, 1, 1, 1]} : vector<3x3x32x16xbf16> to vector<1x1x32x16xbf16>
    %438 = vector.shape_cast %437 : vector<1x1x32x16xbf16> to vector<32x16xbf16>
    %cst_108 = arith.constant dense<0.000000e+00> : vector<256x16xf32>
    %439 = tpu.matmul %436, %438, %cst_108 {dimension_numbers = #tpu.dot_dimension_numbers<[1], [0], [0], [1], [0, 0, 1, 1], [], []>} : vector<256x32xbf16>, vector<32x16xbf16>, vector<256x16xf32> -> vector<256x16xf32>
    %440 = arith.addf %434, %439 : vector<256x16xf32>
    %441 = vector.extract_strided_slice %391 {offsets = [0, 2, 0, 0], sizes = [1, 16, 16, 32], strides = [1, 1, 1, 1]} : vector<1x18x16x32xbf16> to vector<1x16x16x32xbf16>
    %442 = vector.shape_cast %441 : vector<1x16x16x32xbf16> to vector<256x32xbf16>
    %443 = vector.extract_strided_slice %383 {offsets = [2, 2, 0, 0], sizes = [1, 1, 32, 16], strides = [1, 1, 1, 1]} : vector<3x3x32x16xbf16> to vector<1x1x32x16xbf16>
    %444 = vector.shape_cast %443 : vector<1x1x32x16xbf16> to vector<32x16xbf16>
    %cst_109 = arith.constant dense<0.000000e+00> : vector<256x16xf32>
    %445 = tpu.matmul %442, %444, %cst_109 {dimension_numbers = #tpu.dot_dimension_numbers<[1], [0], [0], [1], [0, 0, 1, 1], [], []>} : vector<256x32xbf16>, vector<32x16xbf16>, vector<256x16xf32> -> vector<256x16xf32>
    %446 = arith.addf %440, %445 : vector<256x16xf32>
    %c0_110 = arith.constant 0 : index
    %c0_111 = arith.constant 0 : index
    %447 = vector.load %arg11[%c0_110, %c0_111] : memref<1x16xf32, #tpu.memory_space<vmem>>, vector<1x16xf32>
    %448 = vector.broadcast %447 : vector<1x16xf32> to vector<256x16xf32>
    %449 = arith.addf %446, %448 : vector<256x16xf32>
    %cst_112 = arith.constant 0.000000e+00 : f32
    %450 = vector.broadcast %cst_112 : f32 to vector<256x16xf32>
    %451 = arith.maximumf %449, %450 : vector<256x16xf32>
    %452 = vector.shape_cast %451 : vector<256x16xf32> to vector<1x16x16x16xf32>
    %cst_113 = arith.constant 0.000000e+00 : f32
    %453 = vector.broadcast %cst_113 : f32 to vector<1x1x16x16xf32>
    %454 = tpu.concatenate %453, %452, %453 in 1 : vector<1x1x16x16xf32>, vector<1x16x16x16xf32>, vector<1x1x16x16xf32> -> vector<1x18x16x16xf32>
    %cst_114 = arith.constant 0.000000e+00 : f32
    %455 = vector.broadcast %cst_114 : f32 to vector<1x18x1x16xf32>
    %456 = vector.extract_strided_slice %454 {offsets = [0, 0, 0, 0], sizes = [1, 18, 15, 16], strides = [1, 1, 1, 1]} : vector<1x18x16x16xf32> to vector<1x18x15x16xf32>
    %457 = tpu.concatenate %455, %456 in 2 : vector<1x18x1x16xf32>, vector<1x18x15x16xf32> -> vector<1x18x16x16xf32>
    %458 = vector.extract_strided_slice %454 {offsets = [0, 0, 1, 0], sizes = [1, 18, 15, 16], strides = [1, 1, 1, 1]} : vector<1x18x16x16xf32> to vector<1x18x15x16xf32>
    %459 = tpu.concatenate %458, %455 in 2 : vector<1x18x15x16xf32>, vector<1x18x1x16xf32> -> vector<1x18x16x16xf32>
    %460 = vector.extract_strided_slice %457 {offsets = [0, 0, 0, 0], sizes = [1, 16, 16, 16], strides = [1, 1, 1, 1]} : vector<1x18x16x16xf32> to vector<1x16x16x16xf32>
    %461 = vector.extract_strided_slice %454 {offsets = [0, 0, 0, 0], sizes = [1, 16, 16, 16], strides = [1, 1, 1, 1]} : vector<1x18x16x16xf32> to vector<1x16x16x16xf32>
    %462 = vector.extract_strided_slice %459 {offsets = [0, 0, 0, 0], sizes = [1, 16, 16, 16], strides = [1, 1, 1, 1]} : vector<1x18x16x16xf32> to vector<1x16x16x16xf32>
    %463 = vector.extract_strided_slice %457 {offsets = [0, 1, 0, 0], sizes = [1, 16, 16, 16], strides = [1, 1, 1, 1]} : vector<1x18x16x16xf32> to vector<1x16x16x16xf32>
    %464 = vector.extract_strided_slice %454 {offsets = [0, 1, 0, 0], sizes = [1, 16, 16, 16], strides = [1, 1, 1, 1]} : vector<1x18x16x16xf32> to vector<1x16x16x16xf32>
    %465 = vector.extract_strided_slice %459 {offsets = [0, 1, 0, 0], sizes = [1, 16, 16, 16], strides = [1, 1, 1, 1]} : vector<1x18x16x16xf32> to vector<1x16x16x16xf32>
    %466 = vector.extract_strided_slice %457 {offsets = [0, 2, 0, 0], sizes = [1, 16, 16, 16], strides = [1, 1, 1, 1]} : vector<1x18x16x16xf32> to vector<1x16x16x16xf32>
    %467 = vector.extract_strided_slice %454 {offsets = [0, 2, 0, 0], sizes = [1, 16, 16, 16], strides = [1, 1, 1, 1]} : vector<1x18x16x16xf32> to vector<1x16x16x16xf32>
    %468 = vector.extract_strided_slice %459 {offsets = [0, 2, 0, 0], sizes = [1, 16, 16, 16], strides = [1, 1, 1, 1]} : vector<1x18x16x16xf32> to vector<1x16x16x16xf32>
    %469 = tpu.concatenate %460, %461, %462, %463, %464, %465, %466, %467, %468 in 3 : vector<1x16x16x16xf32>, vector<1x16x16x16xf32>, vector<1x16x16x16xf32>, vector<1x16x16x16xf32>, vector<1x16x16x16xf32>, vector<1x16x16x16xf32>, vector<1x16x16x16xf32>, vector<1x16x16x16xf32>, vector<1x16x16x16xf32> -> vector<1x16x16x144xf32>
    %470 = vector.shape_cast %469 : vector<1x16x16x144xf32> to vector<1x256x144xf32>
    %c0_115 = arith.constant 0 : index
    %c0_116 = arith.constant 0 : index
    %471 = vector.load %arg12[%c0_115, %c0_116] : memref<1x144xf32, #tpu.memory_space<vmem>>, vector<1x144xf32>
    %472 = vector.shape_cast %471 : vector<1x144xf32> to vector<1x1x144xf32>
    %473 = vector.broadcast %472 : vector<1x1x144xf32> to vector<1x256x144xf32>
    %474 = arith.mulf %470, %473 : vector<1x256x144xf32>
    %cst_117 = arith.constant dense<0.000000e+00> : vector<1x256xf32>
    %475 = vector.multi_reduction <add>, %474, %cst_117 [2] : vector<1x256x144xf32> to vector<1x256xf32>
    %c0_118 = arith.constant 0 : index
    %c0_119 = arith.constant 0 : index
    %476 = vector.load %arg13[%c0_118, %c0_119] : memref<1x1xf32, #tpu.memory_space<vmem>>, vector<1x1xf32>
    %477 = vector.broadcast %476 : vector<1x1xf32> to vector<1x256xf32>
    %478 = arith.addf %475, %477 : vector<1x256xf32>
    %479 = arith.negf %478 : vector<1x256xf32>
    %480 = math.exp %479 : vector<1x256xf32>
    %cst_120 = arith.constant 1.000000e+00 : f32
    %481 = vector.broadcast %cst_120 : f32 to vector<1x256xf32>
    %482 = arith.addf %481, %480 : vector<1x256xf32>
    %483 = arith.divf %481, %482 : vector<1x256xf32>
    %484 = vector.shape_cast %483 : vector<1x256xf32> to vector<1x1x256xf32>
    %c0_121 = arith.constant 0 : index
    %c0_122 = arith.constant 0 : index
    %c0_123 = arith.constant 0 : index
    %485 = vector.load %arg14[%c0_121, %c0_122, %c0_123] : memref<1x1x256xf32, #tpu.memory_space<vmem>>, vector<1x1x256xf32>
    tpu.vector_store %arg14[%c0_121, %c0_122, %c0_123], %484 {strides = array<i32>} : memref<1x1x256xf32, #tpu.memory_space<vmem>>, vector<1x1x256xf32>,
    return
  }
  func.func @transform_0(%arg0: i32) -> (i32, i32, i32, i32) {
    %c0_i32 = arith.constant 0 : i32
    %c0_i32_0 = arith.constant 0 : i32
    %c0_i32_1 = arith.constant 0 : i32
    %c0_i32_2 = arith.constant 0 : i32
    return %arg0, %c0_i32, %c0_i32_0, %c0_i32_1 : i32, i32, i32, i32
  }
  func.func @transform_1(%arg0: i32) -> (i32, i32, i32, i32) {
    %c0_i32 = arith.constant 0 : i32
    %c0_i32_0 = arith.constant 0 : i32
    %c0_i32_1 = arith.constant 0 : i32
    %c0_i32_2 = arith.constant 0 : i32
    %c0_i32_3 = arith.constant 0 : i32
    return %c0_i32, %c0_i32_0, %c0_i32_1, %c0_i32_2 : i32, i32, i32, i32
  }
  func.func @transform_2(%arg0: i32) -> (i32, i32) {
    %c0_i32 = arith.constant 0 : i32
    %c0_i32_0 = arith.constant 0 : i32
    %c0_i32_1 = arith.constant 0 : i32
    return %c0_i32, %c0_i32_0 : i32, i32
  }
  func.func @transform_3(%arg0: i32) -> (i32, i32, i32, i32) {
    %c0_i32 = arith.constant 0 : i32
    %c0_i32_0 = arith.constant 0 : i32
    %c0_i32_1 = arith.constant 0 : i32
    %c0_i32_2 = arith.constant 0 : i32
    %c0_i32_3 = arith.constant 0 : i32
    return %c0_i32, %c0_i32_0, %c0_i32_1, %c0_i32_2 : i32, i32, i32, i32
  }
  func.func @transform_4(%arg0: i32) -> (i32, i32) {
    %c0_i32 = arith.constant 0 : i32
    %c0_i32_0 = arith.constant 0 : i32
    %c0_i32_1 = arith.constant 0 : i32
    return %c0_i32, %c0_i32_0 : i32, i32
  }
  func.func @transform_5(%arg0: i32) -> (i32, i32, i32, i32) {
    %c0_i32 = arith.constant 0 : i32
    %c0_i32_0 = arith.constant 0 : i32
    %c0_i32_1 = arith.constant 0 : i32
    %c0_i32_2 = arith.constant 0 : i32
    %c0_i32_3 = arith.constant 0 : i32
    return %c0_i32, %c0_i32_0, %c0_i32_1, %c0_i32_2 : i32, i32, i32, i32
  }
  func.func @transform_6(%arg0: i32) -> (i32, i32) {
    %c0_i32 = arith.constant 0 : i32
    %c0_i32_0 = arith.constant 0 : i32
    %c0_i32_1 = arith.constant 0 : i32
    return %c0_i32, %c0_i32_0 : i32, i32
  }
  func.func @transform_7(%arg0: i32) -> (i32, i32, i32, i32) {
    %c0_i32 = arith.constant 0 : i32
    %c0_i32_0 = arith.constant 0 : i32
    %c0_i32_1 = arith.constant 0 : i32
    %c0_i32_2 = arith.constant 0 : i32
    %c0_i32_3 = arith.constant 0 : i32
    return %c0_i32, %c0_i32_0, %c0_i32_1, %c0_i32_2 : i32, i32, i32, i32
  }
  func.func @transform_8(%arg0: i32) -> (i32, i32) {
    %c0_i32 = arith.constant 0 : i32
    %c0_i32_0 = arith.constant 0 : i32
    %c0_i32_1 = arith.constant 0 : i32
    return %c0_i32, %c0_i32_0 : i32, i32
  }
  func.func @transform_9(%arg0: i32) -> (i32, i32, i32, i32) {
    %c0_i32 = arith.constant 0 : i32
    %c0_i32_0 = arith.constant 0 : i32
    %c0_i32_1 = arith.constant 0 : i32
    %c0_i32_2 = arith.constant 0 : i32
    %c0_i32_3 = arith.constant 0 : i32
    return %c0_i32, %c0_i32_0, %c0_i32_1, %c0_i32_2 : i32, i32, i32, i32
  }
  func.func @transform_10(%arg0: i32) -> (i32, i32) {
    %c0_i32 = arith.constant 0 : i32
    %c0_i32_0 = arith.constant 0 : i32
    %c0_i32_1 = arith.constant 0 : i32
    return %c0_i32, %c0_i32_0 : i32, i32
  }
  func.func @transform_11(%arg0: i32) -> (i32, i32) {
    %c0_i32 = arith.constant 0 : i32
    %c0_i32_0 = arith.constant 0 : i32
    %c0_i32_1 = arith.constant 0 : i32
    return %c0_i32, %c0_i32_0 : i32, i32
  }
  func.func @transform_12(%arg0: i32) -> (i32, i32) {
    %c0_i32 = arith.constant 0 : i32
    %c0_i32_0 = arith.constant 0 : i32
    %c0_i32_1 = arith.constant 0 : i32
    return %c0_i32, %c0_i32_0 : i32, i32
  }
  func.func @transform_13(%arg0: i32) -> (i32, i32, i32) {
    %c0_i32 = arith.constant 0 : i32
    %c0_i32_0 = arith.constant 0 : i32
    %c0_i32_1 = arith.constant 0 : i32
    return %arg0, %c0_i32, %c0_i32_0 : i32, i32, i32
  }
}

</mosaic_0001>

<llo_original>
// kernel: change_detector_forward.1
$region0: #{change_detector_forward.1}
  #allocation0 [shape = 'u32[]', space=smem, size = 0x4, offset = 0x4, fixed_abs, tag = 'smem constant byte address 0x4 - core index']
  #allocation1 [shape = 'u32[72,128]{1,0:T(1,128)}', space=vmem, size = 0x9000, scoped, tag = 'internal scratch']
  #allocation2 [shape = 'f32[1,1]{1,0:T(1,128)S(1)}', space=vmem, size = 0x200, scoped, tag = 'scoped memory for change_detector_forward.1']
  %s0 = inlined_call_operand.vmem [shape: f32[2,16,16,6], index: 0, kind: input, shape index: {}]
  %s1 = inlined_call_operand.vmem [shape: bf16[3,3,6,16], index: 1, kind: input, shape index: {}]
  %s2 = inlined_call_operand.vmem [shape: f32[1,16], index: 2, kind: input, shape index: {}]
  %s3 = inlined_call_operand.vmem [shape: bf16[3,3,16,32], index: 3, kind: input, shape index: {}]
  %s4 = inlined_call_operand.vmem [shape: f32[1,32], index: 4, kind: input, shape index: {}]
  %s5 = inlined_call_operand.vmem [shape: bf16[3,3,32,64], index: 5, kind: input, shape index: {}]
  %s6 = inlined_call_operand.vmem [shape: f32[1,64], index: 6, kind: input, shape index: {}]
  %s7 = inlined_call_operand.vmem [shape: bf16[3,3,64,32], index: 7, kind: input, shape index: {}]
  %s8 = inlined_call_operand.vmem [shape: f32[1,32], index: 8, kind: input, shape index: {}]
  %s9 = inlined_call_operand.vmem [shape: bf16[3,3,32,16], index: 9, kind: input, shape index: {}]
  %s10 = inlined_call_operand.vmem [shape: f32[1,16], index: 10, kind: input, shape index: {}]
  %s11 = inlined_call_operand.vmem [shape: f32[1,144], index: 11, kind: input, shape index: {}]
  %s12 = inlined_call_operand.<no memory space> [shape: f32[1,1], index: 12, kind: input, shape index: {}]
  %s13 = inlined_call_operand.vmem [shape: f32[2,1,256], index: 13, kind: output, shape index: {}]
  %s14 = sld [smem:[#allocation0]]
  $region85: #{change_detector_forward.1} parent=0
    _
  %s16 = ssub.s32 1, %s14
  %s17 = scalar_select 0, %s16, %s14
  %v18 = vstv %s12
  %19 = vst [vmem:[#allocation2] sm:$0x1] %v18
  loop: start=0, step=1, limit=4
  $region2: #{change_detector_forward.1} parent=0 // loop_pre_header
    _
  $region3: #{change_detector_forward.1} parent=0 // loop_header
    %s21 = sphi 0, %s25
    %p22 = scmp.ge.s32.totalorder %s21, 4
    %s31 = sphi 0, %s33
    %s34 = sphi 0, %s31
    %s35 = sphi 0, %s34
    %s51 = sphi 0, %s35
    %s55 = sphi 0, %s55
    %s57 = sphi 0, %s55
    %s58 = sphi 0, %s57
    %s72 = sphi 0, %s58
    %s76 = sphi 0, %s76
    %s78 = sphi 0, %s76
    %s79 = sphi 0, %s78
    %s93 = sphi 0, %s79
    %s97 = sphi 0, %s97
    %s99 = sphi 0, %s97
    %s100 = sphi 0, %s99
    %s114 = sphi 0, %s100
    %s118 = sphi 0, %s118
    %s120 = sphi 0, %s118
    %s121 = sphi 0, %s120
    %s135 = sphi 0, %s121
    %s139 = sphi 0, %s139
    %s141 = sphi 0, %s139
    %s142 = sphi 0, %s141
    %s156 = sphi 0, %s142
    %s160 = sphi 0, %s160
    %s162 = sphi 0, %s160
    %s163 = sphi 0, %s162
    %s177 = sphi 0, %s163
    %s181 = sphi 0, %s181
    %s183 = sphi 0, %s181
    %s184 = sphi 0, %s183
    %s198 = sphi 0, %s184
    %s202 = sphi 0, %s202
    %s204 = sphi 0, %s202
    %s205 = sphi 0, %s204
    %s219 = sphi 0, %s205
    %s223 = sphi 0, %s223
    %s225 = sphi 0, %s223
    %s226 = sphi 0, %s225
    %s240 = sphi 0, %s226
    %s244 = sphi 0, %s244
    %s246 = sphi 0, %s244
    %s247 = sphi 0, %s246
    %s261 = sphi 0, %s247
    %s265 = sphi 0, %s265
    %s267 = sphi 0, %s265
    %s268 = sphi 0, %s267
    %s282 = sphi 0, %s268
    %s286 = sphi 0, %s286
    %s288 = sphi 0, %s286
    %s289 = sphi 0, %s288
    %s303 = sphi 0, %s289
    %s309 = sphi 0, %s311
    %s312 = sphi 0, %s309
    %s313 = sphi 0, %s312
    %s329 = sphi 0, %s313
  $region4: #{change_detector_forward.1} parent=0 // loop_header_branch
    %24 = sbr.rel (%p22) target = $region8
  $region5: #{change_detector_forward.1} parent=0 // loop_body
    %s26 = ssub.s32 %s21, 1
    %s27 = ssub.s32 %s21, 2
    %s28 = sadd.s32 %s21, 1
    %s29 = ssub.s32 %s21, %s28
    %p30 = scmp.eq.s32.totalorder %s29, 0
    %s32 = sadd.s32 %s31, 1
    %s33 = scalar_select %p30, %s31, %s32
    %p36 = pneg %p30
    %p37 = scmp.eq.s32.totalorder %s21, 1
    %p38 = por %p36, %p37
    %p39 = scmp.ne.s32.totalorder %s31, %s34
    %p40 = scmp.eq.s32.totalorder %s21, 0
    %p41 = por %p39, %p40
    %p42 = scmp.ne.s32.totalorder %s31, %s34
    %p43 = scmp.eq.s32.totalorder %s26, 1
    %p44 = por %p42, %p43
    %p45 = scmp.ne.s32.totalorder %s34, %s35
    %p46 = scmp.eq.s32.totalorder %s26, 0
    %p47 = por %p45, %p46
    %p48 = scmp.ne.s32.totalorder %s34, %s35
    %p49 = scmp.eq.s32.totalorder %s27, 1
    %p50 = por %p48, %p49
    %p52 = scmp.ne.s32.totalorder %s35, %s51
    %p53 = scmp.eq.s32.totalorder %s27, 0
    %p54 = por %p52, %p53
    %s56 = sadd.s32 %s55, 1
    %p59 = scmp.eq.s32.totalorder %s21, 1
    %p60 = scmp.ne.s32.totalorder %s55, %s57
    %p61 = scmp.eq.s32.totalorder %s21, 0
    %p62 = por %p60, %p61
    %p63 = scmp.ne.s32.totalorder %s55, %s57
    %p64 = scmp.eq.s32.totalorder %s26, 1
    %p65 = por %p63, %p64
    %p66 = scmp.ne.s32.totalorder %s57, %s58
    %p67 = scmp.eq.s32.totalorder %s26, 0
    %p68 = por %p66, %p67
    %p69 = scmp.ne.s32.totalorder %s57, %s58
    %p70 = scmp.eq.s32.totalorder %s27, 1
    %p71 = por %p69, %p70
    %p73 = scmp.ne.s32.totalorder %s58, %s72
    %p74 = scmp.eq.s32.totalorder %s27, 0
    %p75 = por %p73, %p74
    %s77 = sadd.s32 %s76, 1
    %p80 = scmp.eq.s32.totalorder %s21, 1
    %p81 = scmp.ne.s32.totalorder %s76, %s78
    %p82 = scmp.eq.s32.totalorder %s21, 0
    %p83 = por %p81, %p82
    %p84 = scmp.ne.s32.totalorder %s76, %s78
    %p85 = scmp.eq.s32.totalorder %s26, 1
    %p86 = por %p84, %p85
    %p87 = scmp.ne.s32.totalorder %s78, %s79
    %p88 = scmp.eq.s32.totalorder %s26, 0
    %p89 = por %p87, %p88
    %p90 = scmp.ne.s32.totalorder %s78, %s79
    %p91 = scmp.eq.s32.totalorder %s27, 1
    %p92 = por %p90, %p91
    %p94 = scmp.ne.s32.totalorder %s79, %s93
    %p95 = scmp.eq.s32.totalorder %s27, 0
    %p96 = por %p94, %p95
    %s98 = sadd.s32 %s97, 1
    %p101 = scmp.eq.s32.totalorder %s21, 1
    %p102 = scmp.ne.s32.totalorder %s97, %s99
    %p103 = scmp.eq.s32.totalorder %s21, 0
    %p104 = por %p102, %p103
    %p105 = scmp.ne.s32.totalorder %s97, %s99
    %p106 = scmp.eq.s32.totalorder %s26, 1
    %p107 = por %p105, %p106
    %p108 = scmp.ne.s32.totalorder %s99, %s100
    %p109 = scmp.eq.s32.totalorder %s26, 0
    %p110 = por %p108, %p109
    %p111 = scmp.ne.s32.totalorder %s99, %s100
    %p112 = scmp.eq.s32.totalorder %s27, 1
    %p113 = por %p111, %p112
    %p115 = scmp.ne.s32.totalorder %s100, %s114
    %p116 = scmp.eq.s32.totalorder %s27, 0
    %p117 = por %p115, %p116
    %s119 = sadd.s32 %s118, 1
    %p122 = scmp.eq.s32.totalorder %s21, 1
    %p123 = scmp.ne.s32.totalorder %s118, %s120
    %p124 = scmp.eq.s32.totalorder %s21, 0
    %p125 = por %p123, %p124
    %p126 = scmp.ne.s32.totalorder %s118, %s120
    %p127 = scmp.eq.s32.totalorder %s26, 1
    %p128 = por %p126, %p127
    %p129 = scmp.ne.s32.totalorder %s120, %s121
    %p130 = scmp.eq.s32.totalorder %s26, 0
    %p131 = por %p129, %p130
    %p132 = scmp.ne.s32.totalorder %s120, %s121
    %p133 = scmp.eq.s32.totalorder %s27, 1
    %p134 = por %p132, %p133
    %p136 = scmp.ne.s32.totalorder %s121, %s135
    %p137 = scmp.eq.s32.totalorder %s27, 0
    %p138 = por %p136, %p137
    %s140 = sadd.s32 %s139, 1
    %p143 = scmp.eq.s32.totalorder %s21, 1
    %p144 = scmp.ne.s32.totalorder %s139, %s141
    %p145 = scmp.eq.s32.totalorder %s21, 0
    %p146 = por %p144, %p145
    %p147 = scmp.ne.s32.totalorder %s139, %s141
    %p148 = scmp.eq.s32.totalorder %s26, 1
    %p149 = por %p147, %p148
    %p150 = scmp.ne.s32.totalorder %s141, %s142
    %p151 = scmp.eq.s32.totalorder %s26, 0
    %p152 = por %p150, %p151
    %p153 = scmp.ne.s32.totalorder %s141, %s142
    %p154 = scmp.eq.s32.totalorder %s27, 1
    %p155 = por %p153, %p154
    %p157 = scmp.ne.s32.totalorder %s142, %s156
    %p158 = scmp.eq.s32.totalorder %s27, 0
    %p159 = por %p157, %p158
    %s161 = sadd.s32 %s160, 1
    %p164 = scmp.eq.s32.totalorder %s21, 1
    %p165 = scmp.ne.s32.totalorder %s160, %s162
    %p166 = scmp.eq.s32.totalorder %s21, 0
    %p167 = por %p165, %p166
    %p168 = scmp.ne.s32.totalorder %s160, %s162
    %p169 = scmp.eq.s32.totalorder %s26, 1
    %p170 = por %p168, %p169
    %p171 = scmp.ne.s32.totalorder %s162, %s163
    %p172 = scmp.eq.s32.totalorder %s26, 0
    %p173 = por %p171, %p172
    %p174 = scmp.ne.s32.totalorder %s162, %s163
    %p175 = scmp.eq.s32.totalorder %s27, 1
    %p176 = por %p174, %p175
    %p178 = scmp.ne.s32.totalorder %s163, %s177
    %p179 = scmp.eq.s32.totalorder %s27, 0
    %p180 = por %p178, %p179
    %s182 = sadd.s32 %s181, 1
    %p185 = scmp.eq.s32.totalorder %s21, 1
    %p186 = scmp.ne.s32.totalorder %s181, %s183
    %p187 = scmp.eq.s32.totalorder %s21, 0
    %p188 = por %p186, %p187
    %p189 = scmp.ne.s32.totalorder %s181, %s183
    %p190 = scmp.eq.s32.totalorder %s26, 1
    %p191 = por %p189, %p190
    %p192 = scmp.ne.s32.totalorder %s183, %s184
    %p193 = scmp.eq.s32.totalorder %s26, 0
    %p194 = por %p192, %p193
    %p195 = scmp.ne.s32.totalorder %s183, %s184
    %p196 = scmp.eq.s32.totalorder %s27, 1
    %p197 = por %p195, %p196
    %p199 = scmp.ne.s32.totalorder %s184, %s198
    %p200 = scmp.eq.s32.totalorder %s27, 0
    %p201 = por %p199, %p200
    %s203 = sadd.s32 %s202, 1
    %p206 = scmp.eq.s32.totalorder %s21, 1
    %p207 = scmp.ne.s32.totalorder %s202, %s204
    %p208 = scmp.eq.s32.totalorder %s21, 0
    %p209 = por %p207, %p208
    %p210 = scmp.ne.s32.totalorder %s202, %s204
    %p211 = scmp.eq.s32.totalorder %s26, 1
    %p212 = por %p210, %p211
    %p213 = scmp.ne.s32.totalorder %s204, %s205
    %p214 = scmp.eq.s32.totalorder %s26, 0
    %p215 = por %p213, %p214
    %p216 = scmp.ne.s32.totalorder %s204, %s205
    %p217 = scmp.eq.s32.totalorder %s27, 1
    %p218 = por %p216, %p217
    %p220 = scmp.ne.s32.totalorder %s205, %s219
    %p221 = scmp.eq.s32.totalorder %s27, 0
    %p222 = por %p220, %p221
    %s224 = sadd.s32 %s223, 1
    %p227 = scmp.eq.s32.totalorder %s21, 1
    %p228 = scmp.ne.s32.totalorder %s223, %s225
    %p229 = scmp.eq.s32.totalorder %s21, 0
    %p230 = por %p228, %p229
    %p231 = scmp.ne.s32.totalorder %s223, %s225
    %p232 = scmp.eq.s32.totalorder %s26, 1
    %p233 = por %p231, %p232
    %p234 = scmp.ne.s32.totalorder %s225, %s226
    %p235 = scmp.eq.s32.totalorder %s26, 0
    %p236 = por %p234, %p235
    %p237 = scmp.ne.s32.totalorder %s225, %s226
    %p238 = scmp.eq.s32.totalorder %s27, 1
    %p239 = por %p237, %p238
    %p241 = scmp.ne.s32.totalorder %s226, %s240
    %p242 = scmp.eq.s32.totalorder %s27, 0
    %p243 = por %p241, %p242
    %s245 = sadd.s32 %s244, 1
    %p248 = scmp.eq.s32.totalorder %s21, 1
    %p249 = scmp.ne.s32.totalorder %s244, %s246
    %p250 = scmp.eq.s32.totalorder %s21, 0
    %p251 = por %p249, %p250
    %p252 = scmp.ne.s32.totalorder %s244, %s246
    %p253 = scmp.eq.s32.totalorder %s26, 1
    %p254 = por %p252, %p253
    %p255 = scmp.ne.s32.totalorder %s246, %s247
    %p256 = scmp.eq.s32.totalorder %s26, 0
    %p257 = por %p255, %p256
    %p258 = scmp.ne.s32.totalorder %s246, %s247
    %p259 = scmp.eq.s32.totalorder %s27, 1
    %p260 = por %p258, %p259
    %p262 = scmp.ne.s32.totalorder %s247, %s261
    %p263 = scmp.eq.s32.totalorder %s27, 0
    %p264 = por %p262, %p263
    %s266 = sadd.s32 %s265, 1
    %p269 = scmp.eq.s32.totalorder %s21, 1
    %p270 = scmp.ne.s32.totalorder %s265, %s267
    %p271 = scmp.eq.s32.totalorder %s21, 0
    %p272 = por %p270, %p271
    %p273 = scmp.ne.s32.totalorder %s265, %s267
    %p274 = scmp.eq.s32.totalorder %s26, 1
    %p275 = por %p273, %p274
    %p276 = scmp.ne.s32.totalorder %s267, %s268
    %p277 = scmp.eq.s32.totalorder %s26, 0
    %p278 = por %p276, %p277
    %p279 = scmp.ne.s32.totalorder %s267, %s268
    %p280 = scmp.eq.s32.totalorder %s27, 1
    %p281 = por %p279, %p280
    %p283 = scmp.ne.s32.totalorder %s268, %s282
    %p284 = scmp.eq.s32.totalorder %s27, 0
    %p285 = por %p283, %p284
    %s287 = sadd.s32 %s286, 1
    %p290 = scmp.eq.s32.totalorder %s21, 1
    %p291 = scmp.ne.s32.totalorder %s286, %s288
    %p292 = scmp.eq.s32.totalorder %s21, 0
    %p293 = por %p291, %p292
    %p294 = scmp.ne.s32.totalorder %s286, %s288
    %p295 = scmp.eq.s32.totalorder %s26, 1
    %p296 = por %p294, %p295
    %p297 = scmp.ne.s32.totalorder %s288, %s289
    %p298 = scmp.eq.s32.totalorder %s26, 0
    %p299 = por %p297, %p298
    %p300 = scmp.ne.s32.totalorder %s288, %s289
    %p301 = scmp.eq.s32.totalorder %s27, 1
    %p302 = por %p300, %p301
    %p304 = scmp.ne.s32.totalorder %s289, %s303
    %p305 = scmp.eq.s32.totalorder %s27, 0
    %p306 = por %p304, %p305
    %s307 = ssub.s32 %s21, %s28
    %p308 = scmp.eq.s32.totalorder %s307, 0
    %s310 = sadd.s32 %s309, 1
    %s311 = scalar_select %p308, %s309, %s310
    %p314 = pneg %p308
    %p315 = scmp.eq.s32.totalorder %s21, 1
    %p316 = por %p314, %p315
    %p317 = scmp.ne.s32.totalorder %s309, %s312
    %p318 = scmp.eq.s32.totalorder %s21, 0
    %p319 = por %p317, %p318
    %p320 = scmp.ne.s32.totalorder %s309, %s312
    %p321 = scmp.eq.s32.totalorder %s26, 1
    %p322 = por %p320, %p321
    %p323 = scmp.ne.s32.totalorder %s312, %s313
    %p324 = scmp.eq.s32.totalorder %s26, 0
    %p325 = por %p323, %p324
    %p326 = scmp.ne.s32.totalorder %s312, %s313
    %p327 = scmp.eq.s32.totalorder %s27, 1
    %p328 = por %p326, %p327
    %p330 = scmp.ne.s32.totalorder %s313, %s329
    %p331 = scmp.eq.s32.totalorder %s27, 0
    %p332 = por %p330, %p331
    %p333 = scmp.le.s32.totalorder 1, %s21
    %p334 = scmp.lt.s32.totalorder %s21, 3
    %p335 = pnand %p333, %p334
    %p336 = pneg %p335
    // Predicated region
    $region9: #{change_detector_forward.1} parent=5 // pred_check
      _
    $region10: #{change_detector_forward.1} parent=5 // pred_check_branch
      %338 = sbr.rel (%p335) target = $region12
    $region11: #{change_detector_forward.1} parent=5 // pred_region
      %s339 = ssub.s32 %s21, 1
      // Predicated region
      $region13: #{change_detector_forward.1} parent=11 // pred_check
        %p340 = pneg %p68
      $region14: #{change_detector_forward.1} parent=11 // pred_check_branch
        %342 = sbr.rel (%p340) target = $region16
      $region15: #{change_detector_forward.1} parent=11 // pred_region
        _
      $region16: #{change_detector_forward.1} parent=11 // pred_fallthru
        _
      // Predicated region
      $region17: #{change_detector_forward.1} parent=11 // pred_check
        %p343 = pneg %p89
      $region18: #{change_detector_forward.1} parent=11 // pred_check_branch
        %345 = sbr.rel (%p343) target = $region20
      $region19: #{change_detector_forward.1} parent=11 // pred_region
        _
      $region20: #{change_detector_forward.1} parent=11 // pred_fallthru
        _
      // Predicated region
      $region21: #{change_detector_forward.1} parent=11 // pred_check
        %p346 = pneg %p110
      $region22: #{change_detector_forward.1} parent=11 // pred_check_branch
        %348 = sbr.rel (%p346) target = $region24
      $region23: #{change_detector_forward.1} parent=11 // pred_region
        _
      $region24: #{change_detector_forward.1} parent=11 // pred_fallthru
        _
      // Predicated region
      $region25: #{change_detector_forward.1} parent=11 // pred_check
        %p349 = pneg %p131
      $region26: #{change_detector_forward.1} parent=11 // pred_check_branch
        %351 = sbr.rel (%p349) target = $region28
      $region27: #{change_detector_forward.1} parent=11 // pred_region
        _
      $region28: #{change_detector_forward.1} parent=11 // pred_fallthru
        _
      // Predicated region
      $region29: #{change_detector_forward.1} parent=11 // pred_check
        %p352 = pneg %p152
      $region30: #{change_detector_forward.1} parent=11 // pred_check_branch
        %354 = sbr.rel (%p352) target = $region32
      $region31: #{change_detector_forward.1} parent=11 // pred_region
        _
      $region32: #{change_detector_forward.1} parent=11 // pred_fallthru
        _
      // Predicated region
      $region33: #{change_detector_forward.1} parent=11 // pred_check
        %p355 = pneg %p173
      $region34: #{change_detector_forward.1} parent=11 // pred_check_branch
        %357 = sbr.rel (%p355) target = $region36
      $region35: #{change_detector_forward.1} parent=11 // pred_region
        _
      $region36: #{change_detector_forward.1} parent=11 // pred_fallthru
        _
      // Predicated region
      $region37: #{change_detector_forward.1} parent=11 // pred_check
        %p358 = pneg %p194
      $region38: #{change_detector_forward.1} parent=11 // pred_check_branch
        %360 = sbr.rel (%p358) target = $region40
      $region39: #{change_detector_forward.1} parent=11 // pred_region
        _
      $region40: #{change_detector_forward.1} parent=11 // pred_fallthru
        _
      // Predicated region
      $region41: #{change_detector_forward.1} parent=11 // pred_check
        %p361 = pneg %p215
      $region42: #{change_detector_forward.1} parent=11 // pred_check_branch
        %363 = sbr.rel (%p361) target = $region44
      $region43: #{change_detector_forward.1} parent=11 // pred_region
        _
      $region44: #{change_detector_forward.1} parent=11 // pred_fallthru
        _
      // Predicated region
      $region45: #{change_detector_forward.1} parent=11 // pred_check
        %p364 = pneg %p236
      $region46: #{change_detector_forward.1} parent=11 // pred_check_branch
        %366 = sbr.rel (%p364) target = $region48
      $region47: #{change_detector_forward.1} parent=11 // pred_region
        _
      $region48: #{change_detector_forward.1} parent=11 // pred_fallthru
        _
      // Predicated region
      $region49: #{change_detector_forward.1} parent=11 // pred_check
        %p367 = pneg %p257
      $region50: #{change_detector_forward.1} parent=11 // pred_check_branch
        %369 = sbr.rel (%p367) target = $region52
      $region51: #{change_detector_forward.1} parent=11 // pred_region
        _
      $region52: #{change_detector_forward.1} parent=11 // pred_fallthru
        _
      // Predicated region
      $region53: #{change_detector_forward.1} parent=11 // pred_check
        %p370 = pneg %p278
      $region54: #{change_detector_forward.1} parent=11 // pred_check_branch
        %372 = sbr.rel (%p370) target = $region56
      $region55: #{change_detector_forward.1} parent=11 // pred_region
        _
      $region56: #{change_detector_forward.1} parent=11 // pred_fallthru
        _
      // Predicated region
      $region57: #{change_detector_forward.1} parent=11 // pred_check
        %p373 = pneg %p299
      $region58: #{change_detector_forward.1} parent=11 // pred_check_branch
        %375 = sbr.rel (%p373) target = $region60
      $region59: #{change_detector_forward.1} parent=11 // pred_region
        _
      $region60: #{change_detector_forward.1} parent=11 // pred_fallthru
        _
    $region12: #{change_detector_forward.1} parent=5 // pred_fallthru
      _
    %p376 = scmp.lt.s32.totalorder %s21, 2
    // Predicated region
    $region61: #{change_detector_forward.1} parent=5 // pred_check
      %p377 = pneg %p376
    $region62: #{change_detector_forward.1} parent=5 // pred_check_branch
      %379 = sbr.rel (%p377) target = $region64
    $region63: #{change_detector_forward.1} parent=5 // pred_region
      // Predicated region
      $region65: #{change_detector_forward.1} parent=63 // pred_check
        %p380 = pneg %p41
      $region66: #{change_detector_forward.1} parent=63 // pred_check_branch
        %382 = sbr.rel (%p380) target = $region68
      $region67: #{change_detector_forward.1} parent=63 // pred_region
        %p383 = scmp.lt.s32.totalorder %s21, 1
        %s384 = scalar_select %p383, %s21, 1
        %s385 = smul.addr %s384, 32
        %s386 = smul.addr %s385, 8
        %s387 = scalar_lea.vmem %s0, %s386
      $region68: #{change_detector_forward.1} parent=63 // pred_fallthru
        _
    $region64: #{change_detector_forward.1} parent=5 // pred_fallthru
      _
    %p388 = scmp.le.s32.totalorder 1, %s21
    %p389 = scmp.lt.s32.totalorder %s21, 3
    %p390 = pnand %p388, %p389
    %p391 = pneg %p390
    // Predicated region
    $region69: #{change_detector_forward.1} parent=5 // pred_check
      _
    $region70: #{change_detector_forward.1} parent=5 // pred_check_branch
      %393 = sbr.rel (%p390) target = $region72
    $region71: #{change_detector_forward.1} parent=5 // pred_region
      %s394 = ssub.s32 %s21, 1
      %p395 = scmp.lt.s32.totalorder %s26, 1
      %s396 = scalar_select %p395, %s26, 1
      %s397 = smul.addr %s396, 32
      %s398 = smul.addr %s397, 8
      %s399 = scalar_lea.vmem %s0, %s398
      %p400 = pneg %p47
      %p401 = pneg %p44
      %p402 = pneg %p68
      %p403 = pneg %p65
      %p404 = pneg %p89
      %p405 = pneg %p86
      %p406 = pneg %p110
      %p407 = pneg %p107
      %p408 = pneg %p131
      %p409 = pneg %p128
      %p410 = pneg %p152
      %p411 = pneg %p149
      %p412 = pneg %p173
      %p413 = pneg %p170
      %p414 = pneg %p194
      %p415 = pneg %p191
      %p416 = pneg %p215
      %p417 = pneg %p212
      %p418 = pneg %p236
      %p419 = pneg %p233
      %p420 = pneg %p257
      %p421 = pneg %p254
      %p422 = pneg %p278
      %p423 = pneg %p275
      %p424 = pneg %p299
      %p425 = pneg %p296
      %p426 = pneg %p325
      %p427 = pneg %p322
      %p428 = scmp.lt.s32.totalorder %s26, 1
      %s429 = scalar_select %p428, %s26, 1
      %s430 = smul.addr %s429, 2
      %s431 = scalar_lea.vmem %s13, %s430
      %p432 = scmp.lt.s32.totalorder %s26, 1
      %s433 = scalar_select %p432, %s26, 1
      %s434 = smul.addr %s433, 32
      %s435 = smul.addr %s434, 8
      %s436 = scalar_lea.vmem %s0, %s435
      %p437 = scmp.lt.s32.totalorder %s26, 1
      %s438 = scalar_select %p437, %s26, 1
      %s439 = smul.addr %s438, 2
      %s440 = scalar_lea.vmem %s13, %s439
      %v442 = vld [vmem:[%s436] sm:$0xff]
      %v443 = vld [vmem:[%s436 + $0x8] sm:$0xff]
      %v444 = vld [vmem:[%s436 + $0x10] sm:$0xff]
      %v445 = vld [vmem:[%s436 + $0x18] sm:$0xff]
      %v446 = vld [vmem:[%s436 + $0x20] sm:$0xff]
      %v447 = vld [vmem:[%s436 + $0x28] sm:$0xff]
      %v448 = vld [vmem:[%s436 + $0x30] sm:$0xff]
      %v449 = vld [vmem:[%s436 + $0x38] sm:$0xff]
      %v450 = vld [vmem:[%s436 + $0x40] sm:$0xff]
      %v451 = vld [vmem:[%s436 + $0x48] sm:$0xff]
      %v452 = vld [vmem:[%s436 + $0x50] sm:$0xff]
      %v453 = vld [vmem:[%s436 + $0x58] sm:$0xff]
      %v454 = vld [vmem:[%s436 + $0x60] sm:$0xff]
      %v455 = vld [vmem:[%s436 + $0x68] sm:$0xff]
      %v456 = vld [vmem:[%s436 + $0x70] sm:$0xff]
      %v457 = vld [vmem:[%s436 + $0x78] sm:$0xff]
      %v458 = vld [vmem:[%s436 + $0x80] sm:$0xff]
      %v459 = vld [vmem:[%s436 + $0x88] sm:$0xff]
      %v460 = vld [vmem:[%s436 + $0x90] sm:$0xff]
      %v461 = vld [vmem:[%s436 + $0x98] sm:$0xff]
      %v462 = vld [vmem:[%s436 + $0xa0] sm:$0xff]
      %v463 = vld [vmem:[%s436 + $0xa8] sm:$0xff]
      %v464 = vld [vmem:[%s436 + $0xb0] sm:$0xff]
      %v465 = vld [vmem:[%s436 + $0xb8] sm:$0xff]
      %v466 = vld [vmem:[%s436 + $0xc0] sm:$0xff]
      %v467 = vld [vmem:[%s436 + $0xc8] sm:$0xff]
      %v468 = vld [vmem:[%s436 + $0xd0] sm:$0xff]
      %v469 = vld [vmem:[%s436 + $0xd8] sm:$0xff]
      %v470 = vld [vmem:[%s436 + $0xe0] sm:$0xff]
      %v471 = vld [vmem:[%s436 + $0xe8] sm:$0xff]
      %v472 = vld [vmem:[%s436 + $0xf0] sm:$0xff]
      %v473 = vld [vmem:[%s436 + $0xf8] sm:$0xff]
      %v474 = vld [vmem:[%s1] sm:$0x7]
      %v475 = vld [vmem:[%s1 + $0x4] sm:$0x7]
      %v476 = vld [vmem:[%s1 + $0x8] sm:$0x7]
      %v477 = vld [vmem:[%s1 + $0xc] sm:$0x7]
      %v478 = vld [vmem:[%s1 + $0x10] sm:$0x7]
      %v479 = vld [vmem:[%s1 + $0x14] sm:$0x7]
      %v480 = vld [vmem:[%s1 + $0x18] sm:$0x7]
      %v481 = vld [vmem:[%s1 + $0x1c] sm:$0x7]
      %v482 = vld [vmem:[%s1 + $0x20] sm:$0x7]
      %v483 = vpack.c.bf16 %v442, %v442
      %v484 = vpack.c.bf16 %v443, %v443
      %v485 = vpack.c.bf16 %v444, %v444
      %v486 = vpack.c.bf16 %v445, %v445
      %v487 = vpack.c.bf16 %v446, %v446
      %v488 = vpack.c.bf16 %v447, %v447
      %v489 = vpack.c.bf16 %v448, %v448
      %v490 = vpack.c.bf16 %v449, %v449
      %v491 = vpack.c.bf16 %v450, %v450
      %v492 = vpack.c.bf16 %v451, %v451
      %v493 = vpack.c.bf16 %v452, %v452
      %v494 = vpack.c.bf16 %v453, %v453
      %v495 = vpack.c.bf16 %v454, %v454
      %v496 = vpack.c.bf16 %v455, %v455
      %v497 = vpack.c.bf16 %v456, %v456
      %v498 = vpack.c.bf16 %v457, %v457
      %v499 = vpack.c.bf16 %v458, %v458
      %v500 = vpack.c.bf16 %v459, %v459
      %v501 = vpack.c.bf16 %v460, %v460
      %v502 = vpack.c.bf16 %v461, %v461
      %v503 = vpack.c.bf16 %v462, %v462
      %v504 = vpack.c.bf16 %v463, %v463
      %v505 = vpack.c.bf16 %v464, %v464
      %v506 = vpack.c.bf16 %v465, %v465
      %v507 = vpack.c.bf16 %v466, %v466
      %v508 = vpack.c.bf16 %v467, %v467
      %v509 = vpack.c.bf16 %v468, %v468
      %v510 = vpack.c.bf16 %v469, %v469
      %v511 = vpack.c.bf16 %v470, %v470
      %v512 = vpack.c.bf16 %v471, %v471
      %v513 = vpack.c.bf16 %v472, %v472
      %v514 = vpack.c.bf16 %v473, %v473
      %v547 = vunpack.c.l.b16 %v483
      %v548 = vunpack.c.l.b16 %v484
      %v549 = vunpack.c.l.b16 %v485
      %v550 = vunpack.c.l.b16 %v486
      %v551 = vunpack.c.l.b16 %v487
      %v552 = vunpack.c.l.b16 %v488
      %v553 = vunpack.c.l.b16 %v489
      %v554 = vunpack.c.l.b16 %v490
      %v555 = vunpack.c.l.b16 %v491
      %v556 = vunpack.c.l.b16 %v492
      %v557 = vunpack.c.l.b16 %v493
      %v558 = vunpack.c.l.b16 %v494
      %v559 = vunpack.c.l.b16 %v495
      %v560 = vunpack.c.l.b16 %v496
      %v561 = vunpack.c.l.b16 %v497
      %v562 = vunpack.c.l.b16 %v498
      %v563 = vunpack.c.l.b16 %v499
      %v564 = vunpack.c.l.b16 %v500
      %v565 = vunpack.c.l.b16 %v501
      %v566 = vunpack.c.l.b16 %v502
      %v567 = vunpack.c.l.b16 %v503
      %v568 = vunpack.c.l.b16 %v504
      %v569 = vunpack.c.l.b16 %v505
      %v570 = vunpack.c.l.b16 %v506
      %v571 = vunpack.c.l.b16 %v507
      %v572 = vunpack.c.l.b16 %v508
      %v573 = vunpack.c.l.b16 %v509
      %v574 = vunpack.c.l.b16 %v510
      %v575 = vunpack.c.l.b16 %v511
      %v576 = vunpack.c.l.b16 %v512
      %v577 = vunpack.c.l.b16 %v513
      %v578 = vunpack.c.l.b16 %v514
      %v579 = vpack.c.b16 %v548, %v547
      %v580 = vpack.c.b16 %v550, %v549
      %v581 = vpack.c.b16 %v552, %v551
      %v582 = vpack.c.b16 %v554, %v553
      %v583 = vpack.c.b16 %v556, %v555
      %v584 = vpack.c.b16 %v558, %v557
      %v585 = vpack.c.b16 %v560, %v559
      %v586 = vpack.c.b16 %v562, %v561
      %v587 = vpack.c.b16 %v564, %v563
      %v588 = vpack.c.b16 %v566, %v565
      %v589 = vpack.c.b16 %v568, %v567
      %v590 = vpack.c.b16 %v570, %v569
      %v591 = vpack.c.b16 %v572, %v571
      %v592 = vpack.c.b16 %v574, %v573
      %v593 = vpack.c.b16 %v576, %v575
      %v594 = vpack.c.b16 %v578, %v577
      %v596 = vshrl.u32 0, 16
      %v598 = vrot.slane %v596, 7
      %v599 = vshll.u32 0, 16
      %v601 = vor.u32 %v598, %v599
      %v603 = vshrl.u32 %v579, 16
      %v605 = vrot.slane %v603, 7
      %v606 = vshll.u32 %v579, 16
      %v608 = vor.u32 %v605, %v606
      %v610 = vshrl.u32 %v580, 16
      %v612 = vrot.slane %v610, 7
      %v613 = vshll.u32 %v580, 16
      %v615 = vor.u32 %v612, %v613
      %v617 = vshrl.u32 %v581, 16
      %v619 = vrot.slane %v617, 7
      %v620 = vshll.u32 %v581, 16
      %v622 = vor.u32 %v619, %v620
      %v624 = vshrl.u32 %v582, 16
      %v626 = vrot.slane %v624, 7
      %v627 = vshll.u32 %v582, 16
      %v629 = vor.u32 %v626, %v627
      %v631 = vshrl.u32 %v583, 16
      %v633 = vrot.slane %v631, 7
      %v634 = vshll.u32 %v583, 16
      %v636 = vor.u32 %v633, %v634
      %v638 = vshrl.u32 %v584, 16
      %v640 = vrot.slane %v638, 7
      %v641 = vshll.u32 %v584, 16
      %v643 = vor.u32 %v640, %v641
      %v645 = vshrl.u32 %v585, 16
      %v647 = vrot.slane %v645, 7
      %v648 = vshll.u32 %v585, 16
      %v650 = vor.u32 %v647, %v648
      %v652 = vshrl.u32 %v586, 16
      %v654 = vrot.slane %v652, 7
      %v655 = vshll.u32 %v586, 16
      %v657 = vor.u32 %v654, %v655
      %v659 = vshrl.u32 %v587, 16
      %v661 = vrot.slane %v659, 7
      %v662 = vshll.u32 %v587, 16
      %v664 = vor.u32 %v661, %v662
      %v666 = vshrl.u32 %v588, 16
      %v668 = vrot.slane %v666, 7
      %v669 = vshll.u32 %v588, 16
      %v671 = vor.u32 %v668, %v669
      %v673 = vshrl.u32 %v589, 16
      %v675 = vrot.slane %v673, 7
      %v676 = vshll.u32 %v589, 16
      %v678 = vor.u32 %v675, %v676
      %v680 = vshrl.u32 %v590, 16
      %v682 = vrot.slane %v680, 7
      %v683 = vshll.u32 %v590, 16
      %v685 = vor.u32 %v682, %v683
      %v687 = vshrl.u32 %v591, 16
      %v689 = vrot.slane %v687, 7
      %v690 = vshll.u32 %v591, 16
      %v692 = vor.u32 %v689, %v690
      %v694 = vshrl.u32 %v592, 16
      %v696 = vrot.slane %v694, 7
      %v697 = vshll.u32 %v592, 16
      %v699 = vor.u32 %v696, %v697
      %v701 = vshrl.u32 %v593, 16
      %v703 = vrot.slane %v701, 7
      %v704 = vshll.u32 %v593, 16
      %v706 = vor.u32 %v703, %v704
      %v708 = vshrl.u32 %v594, 16
      %v710 = vrot.slane %v708, 7
      %v711 = vshll.u32 %v594, 16
      %v713 = vor.u32 %v710, %v711
      %vm731 = vcmask 1040384
      %vm732 = vsmask.f32 256
      %vm733 = vmand %vm731, %vm732
      %v734 = vsel %vm733, 0, %v601
      %v735 = vsel %vm733, 0, %v608
      %v736 = vsel %vm733, 0, %v615
      %v737 = vsel %vm733, 0, %v622
      %v738 = vsel %vm733, 0, %v629
      %v739 = vsel %vm733, 0, %v636
      %v740 = vsel %vm733, 0, %v643
      %v741 = vsel %vm733, 0, %v650
      %v742 = vsel %vm733, 0, %v657
      %v743 = vsel %vm733, 0, %v664
      %v744 = vsel %vm733, 0, %v671
      %v745 = vsel %vm733, 0, %v678
      %v746 = vsel %vm733, 0, %v685
      %v747 = vsel %vm733, 0, %v692
      %v748 = vsel %vm733, 0, %v699
      %v749 = vsel %vm733, 0, %v706
      %v750 = vsel %vm733, 0, %v713
      %v751 = vrot.slane %v599, 1
      %v752 = vor.u32 %v596, %v751
      %v753 = vrot.slane %v606, 1
      %v754 = vor.u32 %v603, %v753
      %v755 = vrot.slane %v613, 1
      %v756 = vor.u32 %v610, %v755
      %v757 = vrot.slane %v620, 1
      %v758 = vor.u32 %v617, %v757
      %v759 = vrot.slane %v627, 1
      %v760 = vor.u32 %v624, %v759
      %v761 = vrot.slane %v634, 1
      %v762 = vor.u32 %v631, %v761
      %v763 = vrot.slane %v641, 1
      %v764 = vor.u32 %v638, %v763
      %v765 = vrot.slane %v648, 1
      %v766 = vor.u32 %v645, %v765
      %v767 = vrot.slane %v655, 1
      %v768 = vor.u32 %v652, %v767
      %v769 = vrot.slane %v662, 1
      %v770 = vor.u32 %v659, %v769
      %v771 = vrot.slane %v669, 1
      %v772 = vor.u32 %v666, %v771
      %v773 = vrot.slane %v676, 1
      %v774 = vor.u32 %v673, %v773
      %v775 = vrot.slane %v683, 1
      %v776 = vor.u32 %v680, %v775
      %v777 = vrot.slane %v690, 1
      %v778 = vor.u32 %v687, %v777
      %v779 = vrot.slane %v697, 1
      %v780 = vor.u32 %v694, %v779
      %v781 = vrot.slane %v704, 1
      %v782 = vor.u32 %v701, %v781
      %v783 = vrot.slane %v711, 1
      %v784 = vor.u32 %v708, %v783
      %vm802 = vcmask 1047552
      %vm803 = vsmask.f32 7424
      %vm804 = vmand %vm802, %vm803
      %v805 = vsel %vm804, %v752, 0
      %v806 = vsel %vm804, %v754, 0
      %v807 = vsel %vm804, %v756, 0
      %v808 = vsel %vm804, %v758, 0
      %v809 = vsel %vm804, %v760, 0
      %v810 = vsel %vm804, %v762, 0
      %v811 = vsel %vm804, %v764, 0
      %v812 = vsel %vm804, %v766, 0
      %v813 = vsel %vm804, %v768, 0
      %v814 = vsel %vm804, %v770, 0
      %v815 = vsel %vm804, %v772, 0
      %v816 = vsel %vm804, %v774, 0
      %v817 = vsel %vm804, %v776, 0
      %v818 = vsel %vm804, %v778, 0
      %v819 = vsel %vm804, %v780, 0
      %v820 = vsel %vm804, %v782, 0
      %v821 = vsel %vm804, %v784, 0
      %vm822 = vcmask 48128
      %v823 = vsel %vm822, 0, 0
      %v825 = vsel %vm822, %v579, 0
      %v827 = vsel %vm822, %v580, 0
      %v829 = vsel %vm822, %v581, 0
      %v831 = vsel %vm822, %v582, 0
      %v833 = vsel %vm822, %v583, 0
      %v835 = vsel %vm822, %v584, 0
      %v837 = vsel %vm822, %v585, 0
      %v839 = vsel %vm822, %v586, 0
      %v841 = vsel %vm822, %v587, 0
      %v843 = vsel %vm822, %v588, 0
      %v845 = vsel %vm822, %v589, 0
      %v847 = vsel %vm822, %v590, 0
      %v849 = vsel %vm822, %v591, 0
      %v851 = vsel %vm822, %v592, 0
      %v853 = vsel %vm822, %v593, 0
      %vm855 = vcmask 1042432
      %v857 = vsel %vm855, %v475, 0
      %859 = vmatpush.bf16.msra.mxu0 0
      %860 = vmatpush.bf16.msra.mxu0 0
      %861 = vmatpush.bf16.msra.mxu0 0
      %862 = vmatpush.bf16.msra.mxu0 0
      %863 = vmatpush.bf16.msra.mxu0 0
      %864 = vmatpush.bf16.msra.mxu0 0
      %865 = vmatpush.bf16.msra.mxu0 0
      %866 = vmatpush.bf16.msra.mxu0 %v857
      %867 = vmatmul.bf16.gmra.mxu0 %v823
      %v868 = vpop.f32.mrf.mxu0
      %v869 = vadd.f32 0.0, %v868
      %v870 = vpop.f32.mrf.mxu0
      %v871 = vadd.f32 0.0, %v870
      %872 = vmatmul.bf16.gmra.mxu0 %v825
      %v873 = vpop.f32.mrf.mxu0
      %v874 = vadd.f32 0.0, %v873
      %v875 = vpop.f32.mrf.mxu0
      %v876 = vadd.f32 0.0, %v875
      %877 = vmatmul.bf16.gmra.mxu0 %v827
      %v878 = vpop.f32.mrf.mxu0
      %v879 = vadd.f32 0.0, %v878
      %v880 = vpop.f32.mrf.mxu0
      %v881 = vadd.f32 0.0, %v880
      %882 = vmatmul.bf16.gmra.mxu0 %v829
      %v883 = vpop.f32.mrf.mxu0
      %v884 = vadd.f32 0.0, %v883
      %v885 = vpop.f32.mrf.mxu0
      %v886 = vadd.f32 0.0, %v885
      %887 = vmatmul.bf16.gmra.mxu0 %v831
      %v888 = vpop.f32.mrf.mxu0
      %v889 = vadd.f32 0.0, %v888
      %v890 = vpop.f32.mrf.mxu0
      %v891 = vadd.f32 0.0, %v890
      %892 = vmatmul.bf16.gmra.mxu0 %v833
      %v893 = vpop.f32.mrf.mxu0
      %v894 = vadd.f32 0.0, %v893
      %v895 = vpop.f32.mrf.mxu0
      %v896 = vadd.f32 0.0, %v895
      %897 = vmatmul.bf16.gmra.mxu0 %v835
      %v898 = vpop.f32.mrf.mxu0
      %v899 = vadd.f32 0.0, %v898
      %v900 = vpop.f32.mrf.mxu0
      %v901 = vadd.f32 0.0, %v900
      %902 = vmatmul.bf16.gmra.mxu0 %v837
      %v903 = vpop.f32.mrf.mxu0
      %v904 = vadd.f32 0.0, %v903
      %v905 = vpop.f32.mrf.mxu0
      %v906 = vadd.f32 0.0, %v905
      %907 = vmatmul.bf16.gmra.mxu0 %v839
      %v908 = vpop.f32.mrf.mxu0
      %v909 = vadd.f32 0.0, %v908
      %v910 = vpop.f32.mrf.mxu0
      %v911 = vadd.f32 0.0, %v910
      %912 = vmatmul.bf16.gmra.mxu0 %v841
      %v913 = vpop.f32.mrf.mxu0
      %v914 = vadd.f32 0.0, %v913
      %v915 = vpop.f32.mrf.mxu0
      %v916 = vadd.f32 0.0, %v915
      %917 = vmatmul.bf16.gmra.mxu0 %v843
      %v918 = vpop.f32.mrf.mxu0
      %v919 = vadd.f32 0.0, %v918
      %v920 = vpop.f32.mrf.mxu0
      %v921 = vadd.f32 0.0, %v920
      %922 = vmatmul.bf16.gmra.mxu0 %v845
      %v923 = vpop.f32.mrf.mxu0
      %v924 = vadd.f32 0.0, %v923
      %v925 = vpop.f32.mrf.mxu0
      %v926 = vadd.f32 0.0, %v925
      %927 = vmatmul.bf16.gmra.mxu0 %v847
      %v928 = vpop.f32.mrf.mxu0
      %v929 = vadd.f32 0.0, %v928
      %v930 = vpop.f32.mrf.mxu0
      %v931 = vadd.f32 0.0, %v930
      %932 = vmatmul.bf16.gmra.mxu0 %v849
      %v933 = vpop.f32.mrf.mxu0
      %v934 = vadd.f32 0.0, %v933
      %v935 = vpop.f32.mrf.mxu0
      %v936 = vadd.f32 0.0, %v935
      %937 = vmatmul.bf16.gmra.mxu0 %v851
      %v938 = vpop.f32.mrf.mxu0
      %v939 = vadd.f32 0.0, %v938
      %v940 = vpop.f32.mrf.mxu0
      %v941 = vadd.f32 0.0, %v940
      %942 = vmatmul.bf16.gmra.mxu0 %v853
      %v943 = vpop.f32.mrf.mxu0
      %v944 = vadd.f32 0.0, %v943
      %v945 = vpop.f32.mrf.mxu0
      %v946 = vadd.f32 0.0, %v945
      %947 = vdwg.mxu0
      %v949 = vsel %vm822, %v734, 0
      %v952 = vsel %vm822, %v735, 0
      %v955 = vsel %vm822, %v736, 0
      %v958 = vsel %vm822, %v737, 0
      %v961 = vsel %vm822, %v738, 0
      %v964 = vsel %vm822, %v739, 0
      %v967 = vsel %vm822, %v740, 0
      %v970 = vsel %vm822, %v741, 0
      %v973 = vsel %vm822, %v742, 0
      %v976 = vsel %vm822, %v743, 0
      %v979 = vsel %vm822, %v744, 0
      %v982 = vsel %vm822, %v745, 0
      %v985 = vsel %vm822, %v746, 0
      %v988 = vsel %vm822, %v747, 0
      %v991 = vsel %vm822, %v748, 0
      %v994 = vsel %vm822, %v749, 0
      %v997 = vsel %vm855, %v474, 0
      %999 = vmatpush.bf16.msra.mxu0 0
      %1000 = vmatpush.bf16.msra.mxu0 0
      %1001 = vmatpush.bf16.msra.mxu0 0
      %1002 = vmatpush.bf16.msra.mxu0 0
      %1003 = vmatpush.bf16.msra.mxu0 0
      %1004 = vmatpush.bf16.msra.mxu0 0
      %1005 = vmatpush.bf16.msra.mxu0 0
      %1006 = vmatpush.bf16.msra.mxu0 %v997
      %1007 = vmatmul.bf16.gmra.mxu0 %v949
      %v1008 = vpop.f32.mrf.mxu0
      %v1009 = vadd.f32 %v869, %v1008
      %v1010 = vpop.f32.mrf.mxu0
      %v1011 = vadd.f32 %v871, %v1010
      %1012 = vmatmul.bf16.gmra.mxu0 %v952
      %v1013 = vpop.f32.mrf.mxu0
      %v1014 = vadd.f32 %v874, %v1013
      %v1015 = vpop.f32.mrf.mxu0
      %v1016 = vadd.f32 %v876, %v1015
      %1017 = vmatmul.bf16.gmra.mxu0 %v955
      %v1018 = vpop.f32.mrf.mxu0
      %v1019 = vadd.f32 %v879, %v1018
      %v1020 = vpop.f32.mrf.mxu0
      %v1021 = vadd.f32 %v881, %v1020
      %1022 = vmatmul.bf16.gmra.mxu0 %v958
      %v1023 = vpop.f32.mrf.mxu0
      %v1024 = vadd.f32 %v884, %v1023
      %v1025 = vpop.f32.mrf.mxu0
      %v1026 = vadd.f32 %v886, %v1025
      %1027 = vmatmul.bf16.gmra.mxu0 %v961
      %v1028 = vpop.f32.mrf.mxu0
      %v1029 = vadd.f32 %v889, %v1028
      %v1030 = vpop.f32.mrf.mxu0
      %v1031 = vadd.f32 %v891, %v1030
      %1032 = vmatmul.bf16.gmra.mxu0 %v964
      %v1033 = vpop.f32.mrf.mxu0
      %v1034 = vadd.f32 %v894, %v1033
      %v1035 = vpop.f32.mrf.mxu0
      %v1036 = vadd.f32 %v896, %v1035
      %1037 = vmatmul.bf16.gmra.mxu0 %v967
      %v1038 = vpop.f32.mrf.mxu0
      %v1039 = vadd.f32 %v899, %v1038
      %v1040 = vpop.f32.mrf.mxu0
      %v1041 = vadd.f32 %v901, %v1040
      %1042 = vmatmul.bf16.gmra.mxu0 %v970
      %v1043 = vpop.f32.mrf.mxu0
      %v1044 = vadd.f32 %v904, %v1043
      %v1045 = vpop.f32.mrf.mxu0
      %v1046 = vadd.f32 %v906, %v1045
      %1047 = vmatmul.bf16.gmra.mxu0 %v973
      %v1048 = vpop.f32.mrf.mxu0
      %v1049 = vadd.f32 %v909, %v1048
      %v1050 = vpop.f32.mrf.mxu0
      %v1051 = vadd.f32 %v911, %v1050
      %1052 = vmatmul.bf16.gmra.mxu0 %v976
      %v1053 = vpop.f32.mrf.mxu0
      %v1054 = vadd.f32 %v914, %v1053
      %v1055 = vpop.f32.mrf.mxu0
      %v1056 = vadd.f32 %v916, %v1055
      %1057 = vmatmul.bf16.gmra.mxu0 %v979
      %v1058 = vpop.f32.mrf.mxu0
      %v1059 = vadd.f32 %v919, %v1058
      %v1060 = vpop.f32.mrf.mxu0
      %v1061 = vadd.f32 %v921, %v1060
      %1062 = vmatmul.bf16.gmra.mxu0 %v982
      %v1063 = vpop.f32.mrf.mxu0
      %v1064 = vadd.f32 %v924, %v1063
      %v1065 = vpop.f32.mrf.mxu0
      %v1066 = vadd.f32 %v926, %v1065
      %1067 = vmatmul.bf16.gmra.mxu0 %v985
      %v1068 = vpop.f32.mrf.mxu0
      %v1069 = vadd.f32 %v929, %v1068
      %v1070 = vpop.f32.mrf.mxu0
      %v1071 = vadd.f32 %v931, %v1070
      %1072 = vmatmul.bf16.gmra.mxu0 %v988
      %v1073 = vpop.f32.mrf.mxu0
      %v1074 = vadd.f32 %v934, %v1073
      %v1075 = vpop.f32.mrf.mxu0
      %v1076 = vadd.f32 %v936, %v1075
      %1077 = vmatmul.bf16.gmra.mxu0 %v991
      %v1078 = vpop.f32.mrf.mxu0
      %v1079 = vadd.f32 %v939, %v1078
      %v1080 = vpop.f32.mrf.mxu0
      %v1081 = vadd.f32 %v941, %v1080
      %1082 = vmatmul.bf16.gmra.mxu0 %v994
      %v1083 = vpop.f32.mrf.mxu0
      %v1084 = vadd.f32 %v944, %v1083
      %v1085 = vpop.f32.mrf.mxu0
      %v1086 = vadd.f32 %v946, %v1085
      %1087 = vdwg.mxu0
      %v1089 = vsel %vm822, %v805, 0
      %v1092 = vsel %vm822, %v806, 0
      %v1095 = vsel %vm822, %v807, 0
      %v1098 = vsel %vm822, %v808, 0
      %v1101 = vsel %vm822, %v809, 0
      %v1104 = vsel %vm822, %v810, 0
      %v1107 = vsel %vm822, %v811, 0
      %v1110 = vsel %vm822, %v812, 0
      %v1113 = vsel %vm822, %v813, 0
      %v1116 = vsel %vm822, %v814, 0
      %v1119 = vsel %vm822, %v815, 0
      %v1122 = vsel %vm822, %v816, 0
      %v1125 = vsel %vm822, %v817, 0
      %v1128 = vsel %vm822, %v818, 0
      %v1131 = vsel %vm822, %v819, 0
      %v1134 = vsel %vm822, %v820, 0
      %v1137 = vsel %vm855, %v476, 0
      %1139 = vmatpush.bf16.msra.mxu0 0
      %1140 = vmatpush.bf16.msra.mxu0 0
      %1141 = vmatpush.bf16.msra.mxu0 0
      %1142 = vmatpush.bf16.msra.mxu0 0
      %1143 = vmatpush.bf16.msra.mxu0 0
      %1144 = vmatpush.bf16.msra.mxu0 0
      %1145 = vmatpush.bf16.msra.mxu0 0
      %1146 = vmatpush.bf16.msra.mxu0 %v1137
      %1147 = vmatmul.bf16.gmra.mxu0 %v1089
      %v1148 = vpop.f32.mrf.mxu0
      %v1149 = vadd.f32 0.0, %v1148
      %v1150 = vpop.f32.mrf.mxu0
      %v1151 = vadd.f32 0.0, %v1150
      %1152 = vmatmul.bf16.gmra.mxu0 %v1092
      %v1153 = vpop.f32.mrf.mxu0
      %v1154 = vadd.f32 0.0, %v1153
      %v1155 = vpop.f32.mrf.mxu0
      %v1156 = vadd.f32 0.0, %v1155
      %1157 = vmatmul.bf16.gmra.mxu0 %v1095
      %v1158 = vpop.f32.mrf.mxu0
      %v1159 = vadd.f32 0.0, %v1158
      %v1160 = vpop.f32.mrf.mxu0
      %v1161 = vadd.f32 0.0, %v1160
      %1162 = vmatmul.bf16.gmra.mxu0 %v1098
      %v1163 = vpop.f32.mrf.mxu0
      %v1164 = vadd.f32 0.0, %v1163
      %v1165 = vpop.f32.mrf.mxu0
      %v1166 = vadd.f32 0.0, %v1165
      %1167 = vmatmul.bf16.gmra.mxu0 %v1101
      %v1168 = vpop.f32.mrf.mxu0
      %v1169 = vadd.f32 0.0, %v1168
      %v1170 = vpop.f32.mrf.mxu0
      %v1171 = vadd.f32 0.0, %v1170
      %1172 = vmatmul.bf16.gmra.mxu0 %v1104
      %v1173 = vpop.f32.mrf.mxu0
      %v1174 = vadd.f32 0.0, %v1173
      %v1175 = vpop.f32.mrf.mxu0
      %v1176 = vadd.f32 0.0, %v1175
      %1177 = vmatmul.bf16.gmra.mxu0 %v1107
      %v1178 = vpop.f32.mrf.mxu0
      %v1179 = vadd.f32 0.0, %v1178
      %v1180 = vpop.f32.mrf.mxu0
      %v1181 = vadd.f32 0.0, %v1180
      %1182 = vmatmul.bf16.gmra.mxu0 %v1110
      %v1183 = vpop.f32.mrf.mxu0
      %v1184 = vadd.f32 0.0, %v1183
      %v1185 = vpop.f32.mrf.mxu0
      %v1186 = vadd.f32 0.0, %v1185
      %1187 = vmatmul.bf16.gmra.mxu0 %v1113
      %v1188 = vpop.f32.mrf.mxu0
      %v1189 = vadd.f32 0.0, %v1188
      %v1190 = vpop.f32.mrf.mxu0
      %v1191 = vadd.f32 0.0, %v1190
      %1192 = vmatmul.bf16.gmra.mxu0 %v1116
      %v1193 = vpop.f32.mrf.mxu0
      %v1194 = vadd.f32 0.0, %v1193
      %v1195 = vpop.f32.mrf.mxu0
      %v1196 = vadd.f32 0.0, %v1195
      %1197 = vmatmul.bf16.gmra.mxu0 %v1119
      %v1198 = vpop.f32.mrf.mxu0
      %v1199 = vadd.f32 0.0, %v1198
      %v1200 = vpop.f32.mrf.mxu0
      %v1201 = vadd.f32 0.0, %v1200
      %1202 = vmatmul.bf16.gmra.mxu0 %v1122
      %v1203 = vpop.f32.mrf.mxu0
      %v1204 = vadd.f32 0.0, %v1203
      %v1205 = vpop.f32.mrf.mxu0
      %v1206 = vadd.f32 0.0, %v1205
      %1207 = vmatmul.bf16.gmra.mxu0 %v1125
      %v1208 = vpop.f32.mrf.mxu0
      %v1209 = vadd.f32 0.0, %v1208
      %v1210 = vpop.f32.mrf.mxu0
      %v1211 = vadd.f32 0.0, %v1210
      %1212 = vmatmul.bf16.gmra.mxu0 %v1128
      %v1213 = vpop.f32.mrf.mxu0
      %v1214 = vadd.f32 0.0, %v1213
      %v1215 = vpop.f32.mrf.mxu0
      %v1216 = vadd.f32 0.0, %v1215
      %1217 = vmatmul.bf16.gmra.mxu0 %v1131
      %v1218 = vpop.f32.mrf.mxu0
      %v1219 = vadd.f32 0.0, %v1218
      %v1220 = vpop.f32.mrf.mxu0
      %v1221 = vadd.f32 0.0, %v1220
      %1222 = vmatmul.bf16.gmra.mxu0 %v1134
      %v1223 = vpop.f32.mrf.mxu0
      %v1224 = vadd.f32 0.0, %v1223
      %v1225 = vpop.f32.mrf.mxu0
      %v1226 = vadd.f32 0.0, %v1225
      %1227 = vdwg.mxu0
      %v1228 = vadd.f32 %v1009, %v1149
      %v1229 = vadd.f32 %v1011, %v1151
      %v1230 = vadd.f32 %v1014, %v1154
      %v1231 = vadd.f32 %v1016, %v1156
      %v1232 = vadd.f32 %v1019, %v1159
      %v1233 = vadd.f32 %v1021, %v1161
      %v1234 = vadd.f32 %v1024, %v1164
      %v1235 = vadd.f32 %v1026, %v1166
      %v1236 = vadd.f32 %v1029, %v1169
      %v1237 = vadd.f32 %v1031, %v1171
      %v1238 = vadd.f32 %v1034, %v1174
      %v1239 = vadd.f32 %v1036, %v1176
      %v1240 = vadd.f32 %v1039, %v1179
      %v1241 = vadd.f32 %v1041, %v1181
      %v1242 = vadd.f32 %v1044, %v1184
      %v1243 = vadd.f32 %v1046, %v1186
      %v1244 = vadd.f32 %v1049, %v1189
      %v1245 = vadd.f32 %v1051, %v1191
      %v1246 = vadd.f32 %v1054, %v1194
      %v1247 = vadd.f32 %v1056, %v1196
      %v1248 = vadd.f32 %v1059, %v1199
      %v1249 = vadd.f32 %v1061, %v1201
      %v1250 = vadd.f32 %v1064, %v1204
      %v1251 = vadd.f32 %v1066, %v1206
      %v1252 = vadd.f32 %v1069, %v1209
      %v1253 = vadd.f32 %v1071, %v1211
      %v1254 = vadd.f32 %v1074, %v1214
      %v1255 = vadd.f32 %v1076, %v1216
      %v1256 = vadd.f32 %v1079, %v1219
      %v1257 = vadd.f32 %v1081, %v1221
      %v1258 = vadd.f32 %v1084, %v1224
      %v1259 = vadd.f32 %v1086, %v1226
      %v1261 = vsel %vm822, %v750, 0
      %v1264 = vsel %vm855, %v477, 0
      %1266 = vmatpush.bf16.msra.mxu0 0
      %1267 = vmatpush.bf16.msra.mxu0 0
      %1268 = vmatpush.bf16.msra.mxu0 0
      %1269 = vmatpush.bf16.msra.mxu0 0
      %1270 = vmatpush.bf16.msra.mxu0 0
      %1271 = vmatpush.bf16.msra.mxu0 0
      %1272 = vmatpush.bf16.msra.mxu0 0
      %1273 = vmatpush.bf16.msra.mxu0 %v1264
      %1274 = vmatmul.bf16.gmra.mxu0 %v952
      %v1275 = vpop.f32.mrf.mxu0
      %v1276 = vadd.f32 0.0, %v1275
      %v1277 = vpop.f32.mrf.mxu0
      %v1278 = vadd.f32 0.0, %v1277
      %1279 = vmatmul.bf16.gmra.mxu0 %v955
      %v1280 = vpop.f32.mrf.mxu0
      %v1281 = vadd.f32 0.0, %v1280
      %v1282 = vpop.f32.mrf.mxu0
      %v1283 = vadd.f32 0.0, %v1282
      %1284 = vmatmul.bf16.gmra.mxu0 %v958
      %v1285 = vpop.f32.mrf.mxu0
      %v1286 = vadd.f32 0.0, %v1285
      %v1287 = vpop.f32.mrf.mxu0
      %v1288 = vadd.f32 0.0, %v1287
      %1289 = vmatmul.bf16.gmra.mxu0 %v961
      %v1290 = vpop.f32.mrf.mxu0
      %v1291 = vadd.f32 0.0, %v1290
      %v1292 = vpop.f32.mrf.mxu0
      %v1293 = vadd.f32 0.0, %v1292
      %1294 = vmatmul.bf16.gmra.mxu0 %v964
      %v1295 = vpop.f32.mrf.mxu0
      %v1296 = vadd.f32 0.0, %v1295
      %v1297 = vpop.f32.mrf.mxu0
      %v1298 = vadd.f32 0.0, %v1297
      %1299 = vmatmul.bf16.gmra.mxu0 %v967
      %v1300 = vpop.f32.mrf.mxu0
      %v1301 = vadd.f32 0.0, %v1300
      %v1302 = vpop.f32.mrf.mxu0
      %v1303 = vadd.f32 0.0, %v1302
      %1304 = vmatmul.bf16.gmra.mxu0 %v970
      %v1305 = vpop.f32.mrf.mxu0
      %v1306 = vadd.f32 0.0, %v1305
      %v1307 = vpop.f32.mrf.mxu0
      %v1308 = vadd.f32 0.0, %v1307
      %1309 = vmatmul.bf16.gmra.mxu0 %v973
      %v1310 = vpop.f32.mrf.mxu0
      %v1311 = vadd.f32 0.0, %v1310
      %v1312 = vpop.f32.mrf.mxu0
      %v1313 = vadd.f32 0.0, %v1312
      %1314 = vmatmul.bf16.gmra.mxu0 %v976
      %v1315 = vpop.f32.mrf.mxu0
      %v1316 = vadd.f32 0.0, %v1315
      %v1317 = vpop.f32.mrf.mxu0
      %v1318 = vadd.f32 0.0, %v1317
      %1319 = vmatmul.bf16.gmra.mxu0 %v979
      %v1320 = vpop.f32.mrf.mxu0
      %v1321 = vadd.f32 0.0, %v1320
      %v1322 = vpop.f32.mrf.mxu0
      %v1323 = vadd.f32 0.0, %v1322
      %1324 = vmatmul.bf16.gmra.mxu0 %v982
      %v1325 = vpop.f32.mrf.mxu0
      %v1326 = vadd.f32 0.0, %v1325
      %v1327 = vpop.f32.mrf.mxu0
      %v1328 = vadd.f32 0.0, %v1327
      %1329 = vmatmul.bf16.gmra.mxu0 %v985
      %v1330 = vpop.f32.mrf.mxu0
      %v1331 = vadd.f32 0.0, %v1330
      %v1332 = vpop.f32.mrf.mxu0
      %v1333 = vadd.f32 0.0, %v1332
      %1334 = vmatmul.bf16.gmra.mxu0 %v988
      %v1335 = vpop.f32.mrf.mxu0
      %v1336 = vadd.f32 0.0, %v1335
      %v1337 = vpop.f32.mrf.mxu0
      %v1338 = vadd.f32 0.0, %v1337
      %1339 = vmatmul.bf16.gmra.mxu0 %v991
      %v1340 = vpop.f32.mrf.mxu0
      %v1341 = vadd.f32 0.0, %v1340
      %v1342 = vpop.f32.mrf.mxu0
      %v1343 = vadd.f32 0.0, %v1342
      %1344 = vmatmul.bf16.gmra.mxu0 %v994
      %v1345 = vpop.f32.mrf.mxu0
      %v1346 = vadd.f32 0.0, %v1345
      %v1347 = vpop.f32.mrf.mxu0
      %v1348 = vadd.f32 0.0, %v1347
      %1349 = vmatmul.bf16.gmra.mxu0 %v1261
      %v1350 = vpop.f32.mrf.mxu0
      %v1351 = vadd.f32 0.0, %v1350
      %v1352 = vpop.f32.mrf.mxu0
      %v1353 = vadd.f32 0.0, %v1352
      %1354 = vdwg.mxu0
      %v1355 = vadd.f32 %v1228, %v1276
      %v1356 = vadd.f32 %v1229, %v1278
      %v1357 = vadd.f32 %v1230, %v1281
      %v1358 = vadd.f32 %v1231, %v1283
      %v1359 = vadd.f32 %v1232, %v1286
      %v1360 = vadd.f32 %v1233, %v1288
      %v1361 = vadd.f32 %v1234, %v1291
      %v1362 = vadd.f32 %v1235, %v1293
      %v1363 = vadd.f32 %v1236, %v1296
      %v1364 = vadd.f32 %v1237, %v1298
      %v1365 = vadd.f32 %v1238, %v1301
      %v1366 = vadd.f32 %v1239, %v1303
      %v1367 = vadd.f32 %v1240, %v1306
      %v1368 = vadd.f32 %v1241, %v1308
      %v1369 = vadd.f32 %v1242, %v1311
      %v1370 = vadd.f32 %v1243, %v1313
      %v1371 = vadd.f32 %v1244, %v1316
      %v1372 = vadd.f32 %v1245, %v1318
      %v1373 = vadd.f32 %v1246, %v1321
      %v1374 = vadd.f32 %v1247, %v1323
      %v1375 = vadd.f32 %v1248, %v1326
      %v1376 = vadd.f32 %v1249, %v1328
      %v1377 = vadd.f32 %v1250, %v1331
      %v1378 = vadd.f32 %v1251, %v1333
      %v1379 = vadd.f32 %v1252, %v1336
      %v1380 = vadd.f32 %v1253, %v1338
      %v1381 = vadd.f32 %v1254, %v1341
      %v1382 = vadd.f32 %v1255, %v1343
      %v1383 = vadd.f32 %v1256, %v1346
      %v1384 = vadd.f32 %v1257, %v1348
      %v1385 = vadd.f32 %v1258, %v1351
      %v1386 = vadd.f32 %v1259, %v1353
      %v1387 = vsel %vm822, %v594, 0
      %v1390 = vsel %vm855, %v478, 0
      %1392 = vmatpush.bf16.msra.mxu0 0
      %1393 = vmatpush.bf16.msra.mxu0 0
      %1394 = vmatpush.bf16.msra.mxu0 0
      %1395 = vmatpush.bf16.msra.mxu0 0
      %1396 = vmatpush.bf16.msra.mxu0 0
      %1397 = vmatpush.bf16.msra.mxu0 0
      %1398 = vmatpush.bf16.msra.mxu0 0
      %1399 = vmatpush.bf16.msra.mxu0 %v1390
      %1400 = vmatmul.bf16.gmra.mxu0 %v825
      %v1401 = vpop.f32.mrf.mxu0
      %v1402 = vadd.f32 0.0, %v1401
      %v1403 = vpop.f32.mrf.mxu0
      %v1404 = vadd.f32 0.0, %v1403
      %1405 = vmatmul.bf16.gmra.mxu0 %v827
      %v1406 = vpop.f32.mrf.mxu0
      %v1407 = vadd.f32 0.0, %v1406
      %v1408 = vpop.f32.mrf.mxu0
      %v1409 = vadd.f32 0.0, %v1408
      %1410 = vmatmul.bf16.gmra.mxu0 %v829
      %v1411 = vpop.f32.mrf.mxu0
      %v1412 = vadd.f32 0.0, %v1411
      %v1413 = vpop.f32.mrf.mxu0
      %v1414 = vadd.f32 0.0, %v1413
      %1415 = vmatmul.bf16.gmra.mxu0 %v831
      %v1416 = vpop.f32.mrf.mxu0
      %v1417 = vadd.f32 0.0, %v1416
      %v1418 = vpop.f32.mrf.mxu0
      %v1419 = vadd.f32 0.0, %v1418
      %1420 = vmatmul.bf16.gmra.mxu0 %v833
      %v1421 = vpop.f32.mrf.mxu0
      %v1422 = vadd.f32 0.0, %v1421
      %v1423 = vpop.f32.mrf.mxu0
      %v1424 = vadd.f32 0.0, %v1423
      %1425 = vmatmul.bf16.gmra.mxu0 %v835
      %v1426 = vpop.f32.mrf.mxu0
      %v1427 = vadd.f32 0.0, %v1426
      %v1428 = vpop.f32.mrf.mxu0
      %v1429 = vadd.f32 0.0, %v1428
      %1430 = vmatmul.bf16.gmra.mxu0 %v837
      %v1431 = vpop.f32.mrf.mxu0
      %v1432 = vadd.f32 0.0, %v1431
      %v1433 = vpop.f32.mrf.mxu0
      %v1434 = vadd.f32 0.0, %v1433
      %1435 = vmatmul.bf16.gmra.mxu0 %v839
      %v1436 = vpop.f32.mrf.mxu0
      %v1437 = vadd.f32 0.0, %v1436
      %v1438 = vpop.f32.mrf.mxu0
      %v1439 = vadd.f32 0.0, %v1438
      %1440 = vmatmul.bf16.gmra.mxu0 %v841
      %v1441 = vpop.f32.mrf.mxu0
      %v1442 = vadd.f32 0.0, %v1441
      %v1443 = vpop.f32.mrf.mxu0
      %v1444 = vadd.f32 0.0, %v1443
      %1445 = vmatmul.bf16.gmra.mxu0 %v843
      %v1446 = vpop.f32.mrf.mxu0
      %v1447 = vadd.f32 0.0, %v1446
      %v1448 = vpop.f32.mrf.mxu0
      %v1449 = vadd.f32 0.0, %v1448
      %1450 = vmatmul.bf16.gmra.mxu0 %v845
      %v1451 = vpop.f32.mrf.mxu0
      %v1452 = vadd.f32 0.0, %v1451
      %v1453 = vpop.f32.mrf.mxu0
      %v1454 = vadd.f32 0.0, %v1453
      %1455 = vmatmul.bf16.gmra.mxu0 %v847
      %v1456 = vpop.f32.mrf.mxu0
      %v1457 = vadd.f32 0.0, %v1456
      %v1458 = vpop.f32.mrf.mxu0
      %v1459 = vadd.f32 0.0, %v1458
      %1460 = vmatmul.bf16.gmra.mxu0 %v849
      %v1461 = vpop.f32.mrf.mxu0
      %v1462 = vadd.f32 0.0, %v1461
      %v1463 = vpop.f32.mrf.mxu0
      %v1464 = vadd.f32 0.0, %v1463
      %1465 = vmatmul.bf16.gmra.mxu0 %v851
      %v1466 = vpop.f32.mrf.mxu0
      %v1467 = vadd.f32 0.0, %v1466
      %v1468 = vpop.f32.mrf.mxu0
      %v1469 = vadd.f32 0.0, %v1468
      %1470 = vmatmul.bf16.gmra.mxu0 %v853
      %v1471 = vpop.f32.mrf.mxu0
      %v1472 = vadd.f32 0.0, %v1471
      %v1473 = vpop.f32.mrf.mxu0
      %v1474 = vadd.f32 0.0, %v1473
      %1475 = vmatmul.bf16.gmra.mxu0 %v1387
      %v1476 = vpop.f32.mrf.mxu0
      %v1477 = vadd.f32 0.0, %v1476
      %v1478 = vpop.f32.mrf.mxu0
      %v1479 = vadd.f32 0.0, %v1478
      %1480 = vdwg.mxu0
      %v1481 = vadd.f32 %v1355, %v1402
      %v1482 = vadd.f32 %v1356, %v1404
      %v1483 = vadd.f32 %v1357, %v1407
      %v1484 = vadd.f32 %v1358, %v1409
      %v1485 = vadd.f32 %v1359, %v1412
      %v1486 = vadd.f32 %v1360, %v1414
      %v1487 = vadd.f32 %v1361, %v1417
      %v1488 = vadd.f32 %v1362, %v1419
      %v1489 = vadd.f32 %v1363, %v1422
      %v1490 = vadd.f32 %v1364, %v1424
      %v1491 = vadd.f32 %v1365, %v1427
      %v1492 = vadd.f32 %v1366, %v1429
      %v1493 = vadd.f32 %v1367, %v1432
      %v1494 = vadd.f32 %v1368, %v1434
      %v1495 = vadd.f32 %v1369, %v1437
      %v1496 = vadd.f32 %v1370, %v1439
      %v1497 = vadd.f32 %v1371, %v1442
      %v1498 = vadd.f32 %v1372, %v1444
      %v1499 = vadd.f32 %v1373, %v1447
      %v1500 = vadd.f32 %v1374, %v1449
      %v1501 = vadd.f32 %v1375, %v1452
      %v1502 = vadd.f32 %v1376, %v1454
      %v1503 = vadd.f32 %v1377, %v1457
      %v1504 = vadd.f32 %v1378, %v1459
      %v1505 = vadd.f32 %v1379, %v1462
      %v1506 = vadd.f32 %v1380, %v1464
      %v1507 = vadd.f32 %v1381, %v1467
      %v1508 = vadd.f32 %v1382, %v1469
      %v1509 = vadd.f32 %v1383, %v1472
      %v1510 = vadd.f32 %v1384, %v1474
      %v1511 = vadd.f32 %v1385, %v1477
      %v1512 = vadd.f32 %v1386, %v1479
      %v1514 = vsel %vm822, %v821, 0
      %v1517 = vsel %vm855, %v479, 0
      %1519 = vmatpush.bf16.msra.mxu0 0
      %1520 = vmatpush.bf16.msra.mxu0 0
      %1521 = vmatpush.bf16.msra.mxu0 0
      %1522 = vmatpush.bf16.msra.mxu0 0
      %1523 = vmatpush.bf16.msra.mxu0 0
      %1524 = vmatpush.bf16.msra.mxu0 0
      %1525 = vmatpush.bf16.msra.mxu0 0
      %1526 = vmatpush.bf16.msra.mxu0 %v1517
      %1527 = vmatmul.bf16.gmra.mxu0 %v1092
      %v1528 = vpop.f32.mrf.mxu0
      %v1529 = vadd.f32 0.0, %v1528
      %v1530 = vpop.f32.mrf.mxu0
      %v1531 = vadd.f32 0.0, %v1530
      %1532 = vmatmul.bf16.gmra.mxu0 %v1095
      %v1533 = vpop.f32.mrf.mxu0
      %v1534 = vadd.f32 0.0, %v1533
      %v1535 = vpop.f32.mrf.mxu0
      %v1536 = vadd.f32 0.0, %v1535
      %1537 = vmatmul.bf16.gmra.mxu0 %v1098
      %v1538 = vpop.f32.mrf.mxu0
      %v1539 = vadd.f32 0.0, %v1538
      %v1540 = vpop.f32.mrf.mxu0
      %v1541 = vadd.f32 0.0, %v1540
      %1542 = vmatmul.bf16.gmra.mxu0 %v1101
      %v1543 = vpop.f32.mrf.mxu0
      %v1544 = vadd.f32 0.0, %v1543
      %v1545 = vpop.f32.mrf.mxu0
      %v1546 = vadd.f32 0.0, %v1545
      %1547 = vmatmul.bf16.gmra.mxu0 %v1104
      %v1548 = vpop.f32.mrf.mxu0
      %v1549 = vadd.f32 0.0, %v1548
      %v1550 = vpop.f32.mrf.mxu0
      %v1551 = vadd.f32 0.0, %v1550
      %1552 = vmatmul.bf16.gmra.mxu0 %v1107
      %v1553 = vpop.f32.mrf.mxu0
      %v1554 = vadd.f32 0.0, %v1553
      %v1555 = vpop.f32.mrf.mxu0
      %v1556 = vadd.f32 0.0, %v1555
      %1557 = vmatmul.bf16.gmra.mxu0 %v1110
      %v1558 = vpop.f32.mrf.mxu0
      %v1559 = vadd.f32 0.0, %v1558
      %v1560 = vpop.f32.mrf.mxu0
      %v1561 = vadd.f32 0.0, %v1560
      %1562 = vmatmul.bf16.gmra.mxu0 %v1113
      %v1563 = vpop.f32.mrf.mxu0
      %v1564 = vadd.f32 0.0, %v1563
      %v1565 = vpop.f32.mrf.mxu0
      %v1566 = vadd.f32 0.0, %v1565
      %1567 = vmatmul.bf16.gmra.mxu0 %v1116
      %v1568 = vpop.f32.mrf.mxu0
      %v1569 = vadd.f32 0.0, %v1568
      %v1570 = vpop.f32.mrf.mxu0
      %v1571 = vadd.f32 0.0, %v1570
      %1572 = vmatmul.bf16.gmra.mxu0 %v1119
      %v1573 = vpop.f32.mrf.mxu0
      %v1574 = vadd.f32 0.0, %v1573
      %v1575 = vpop.f32.mrf.mxu0
      %v1576 = vadd.f32 0.0, %v1575
      %1577 = vmatmul.bf16.gmra.mxu0 %v1122
      %v1578 = vpop.f32.mrf.mxu0
      %v1579 = vadd.f32 0.0, %v1578
      %v1580 = vpop.f32.mrf.mxu0
      %v1581 = vadd.f32 0.0, %v1580
      %1582 = vmatmul.bf16.gmra.mxu0 %v1125
      %v1583 = vpop.f32.mrf.mxu0
      %v1584 = vadd.f32 0.0, %v1583
      %v1585 = vpop.f32.mrf.mxu0
      %v1586 = vadd.f32 0.0, %v1585
      %1587 = vmatmul.bf16.gmra.mxu0 %v1128
      %v1588 = vpop.f32.mrf.mxu0
      %v1589 = vadd.f32 0.0, %v1588
      %v1590 = vpop.f32.mrf.mxu0
      %v1591 = vadd.f32 0.0, %v1590
      %1592 = vmatmul.bf16.gmra.mxu0 %v1131
      %v1593 = vpop.f32.mrf.mxu0
      %v1594 = vadd.f32 0.0, %v1593
      %v1595 = vpop.f32.mrf.mxu0
      %v1596 = vadd.f32 0.0, %v1595
      %1597 = vmatmul.bf16.gmra.mxu0 %v1134
      %v1598 = vpop.f32.mrf.mxu0
      %v1599 = vadd.f32 0.0, %v1598
      %v1600 = vpop.f32.mrf.mxu0
      %v1601 = vadd.f32 0.0, %v1600
      %1602 = vmatmul.bf16.gmra.mxu0 %v1514
      %v1603 = vpop.f32.mrf.mxu0
      %v1604 = vadd.f32 0.0, %v1603
      %v1605 = vpop.f32.mrf.mxu0
      %v1606 = vadd.f32 0.0, %v1605
      %1607 = vdwg.mxu0
      %v1608 = vadd.f32 %v1481, %v1529
      %v1609 = vadd.f32 %v1482, %v1531
      %v1610 = vadd.f32 %v1483, %v1534
      %v1611 = vadd.f32 %v1484, %v1536
      %v1612 = vadd.f32 %v1485, %v1539
      %v1613 = vadd.f32 %v1486, %v1541
      %v1614 = vadd.f32 %v1487, %v1544
      %v1615 = vadd.f32 %v1488, %v1546
      %v1616 = vadd.f32 %v1489, %v1549
      %v1617 = vadd.f32 %v1490, %v1551
      %v1618 = vadd.f32 %v1491, %v1554
      %v1619 = vadd.f32 %v1492, %v1556
      %v1620 = vadd.f32 %v1493, %v1559
      %v1621 = vadd.f32 %v1494, %v1561
      %v1622 = vadd.f32 %v1495, %v1564
      %v1623 = vadd.f32 %v1496, %v1566
      %v1624 = vadd.f32 %v1497, %v1569
      %v1625 = vadd.f32 %v1498, %v1571
      %v1626 = vadd.f32 %v1499, %v1574
      %v1627 = vadd.f32 %v1500, %v1576
      %v1628 = vadd.f32 %v1501, %v1579
      %v1629 = vadd.f32 %v1502, %v1581
      %v1630 = vadd.f32 %v1503, %v1584
      %v1631 = vadd.f32 %v1504, %v1586
      %v1632 = vadd.f32 %v1505, %v1589
      %v1633 = vadd.f32 %v1506, %v1591
      %v1634 = vadd.f32 %v1507, %v1594
      %v1635 = vadd.f32 %v1508, %v1596
      %v1636 = vadd.f32 %v1509, %v1599
      %v1637 = vadd.f32 %v1510, %v1601
      %v1638 = vadd.f32 %v1511, %v1604
      %v1639 = vadd.f32 %v1512, %v1606
      %v1641 = vsel %vm855, %v480, 0
      %1643 = vmatpush.bf16.msra.mxu0 0
      %1644 = vmatpush.bf16.msra.mxu0 0
      %1645 = vmatpush.bf16.msra.mxu0 0
      %1646 = vmatpush.bf16.msra.mxu0 0
      %1647 = vmatpush.bf16.msra.mxu0 0
      %1648 = vmatpush.bf16.msra.mxu0 0
      %1649 = vmatpush.bf16.msra.mxu0 0
      %1650 = vmatpush.bf16.msra.mxu0 %v1641
      %1651 = vmatmul.bf16.gmra.mxu0 %v955
      %v1652 = vpop.f32.mrf.mxu0
      %v1653 = vadd.f32 0.0, %v1652
      %v1654 = vpop.f32.mrf.mxu0
      %v1655 = vadd.f32 0.0, %v1654
      %1656 = vmatmul.bf16.gmra.mxu0 %v958
      %v1657 = vpop.f32.mrf.mxu0
      %v1658 = vadd.f32 0.0, %v1657
      %v1659 = vpop.f32.mrf.mxu0
      %v1660 = vadd.f32 0.0, %v1659
      %1661 = vmatmul.bf16.gmra.mxu0 %v961
      %v1662 = vpop.f32.mrf.mxu0
      %v1663 = vadd.f32 0.0, %v1662
      %v1664 = vpop.f32.mrf.mxu0
      %v1665 = vadd.f32 0.0, %v1664
      %1666 = vmatmul.bf16.gmra.mxu0 %v964
      %v1667 = vpop.f32.mrf.mxu0
      %v1668 = vadd.f32 0.0, %v1667
      %v1669 = vpop.f32.mrf.mxu0
      %v1670 = vadd.f32 0.0, %v1669
      %1671 = vmatmul.bf16.gmra.mxu0 %v967
      %v1672 = vpop.f32.mrf.mxu0
      %v1673 = vadd.f32 0.0, %v1672
      %v1674 = vpop.f32.mrf.mxu0
      %v1675 = vadd.f32 0.0, %v1674
      %1676 = vmatmul.bf16.gmra.mxu0 %v970
      %v1677 = vpop.f32.mrf.mxu0
      %v1678 = vadd.f32 0.0, %v1677
      %v1679 = vpop.f32.mrf.mxu0
      %v1680 = vadd.f32 0.0, %v1679
      %1681 = vmatmul.bf16.gmra.mxu0 %v973
      %v1682 = vpop.f32.mrf.mxu0
      %v1683 = vadd.f32 0.0, %v1682
      %v1684 = vpop.f32.mrf.mxu0
      %v1685 = vadd.f32 0.0, %v1684
      %1686 = vmatmul.bf16.gmra.mxu0 %v976
      %v1687 = vpop.f32.mrf.mxu0
      %v1688 = vadd.f32 0.0, %v1687
      %v1689 = vpop.f32.mrf.mxu0
      %v1690 = vadd.f32 0.0, %v1689
      %1691 = vmatmul.bf16.gmra.mxu0 %v979
      %v1692 = vpop.f32.mrf.mxu0
      %v1693 = vadd.f32 0.0, %v1692
      %v1694 = vpop.f32.mrf.mxu0
      %v1695 = vadd.f32 0.0, %v1694
      %1696 = vmatmul.bf16.gmra.mxu0 %v982
      %v1697 = vpop.f32.mrf.mxu0
      %v1698 = vadd.f32 0.0, %v1697
      %v1699 = vpop.f32.mrf.mxu0
      %v1700 = vadd.f32 0.0, %v1699
      %1701 = vmatmul.bf16.gmra.mxu0 %v985
      %v1702 = vpop.f32.mrf.mxu0
      %v1703 = vadd.f32 0.0, %v1702
      %v1704 = vpop.f32.mrf.mxu0
      %v1705 = vadd.f32 0.0, %v1704
      %1706 = vmatmul.bf16.gmra.mxu0 %v988
      %v1707 = vpop.f32.mrf.mxu0
      %v1708 = vadd.f32 0.0, %v1707
      %v1709 = vpop.f32.mrf.mxu0
      %v1710 = vadd.f32 0.0, %v1709
      %1711 = vmatmul.bf16.gmra.mxu0 %v991
      %v1712 = vpop.f32.mrf.mxu0
      %v1713 = vadd.f32 0.0, %v1712
      %v1714 = vpop.f32.mrf.mxu0
      %v1715 = vadd.f32 0.0, %v1714
      %1716 = vmatmul.bf16.gmra.mxu0 %v994
      %v1717 = vpop.f32.mrf.mxu0
      %v1718 = vadd.f32 0.0, %v1717
      %v1719 = vpop.f32.mrf.mxu0
      %v1720 = vadd.f32 0.0, %v1719
      %1721 = vmatmul.bf16.gmra.mxu0 %v1261
      %v1722 = vpop.f32.mrf.mxu0
      %v1723 = vadd.f32 0.0, %v1722
      %v1724 = vpop.f32.mrf.mxu0
      %v1725 = vadd.f32 0.0, %v1724
      %1726 = vmatmul.bf16.gmra.mxu0 %v949
      %v1727 = vpop.f32.mrf.mxu0
      %v1728 = vadd.f32 0.0, %v1727
      %v1729 = vpop.f32.mrf.mxu0
      %v1730 = vadd.f32 0.0, %v1729
      %1731 = vdwg.mxu0
      %v1732 = vadd.f32 %v1608, %v1653
      %v1733 = vadd.f32 %v1609, %v1655
      %v1734 = vadd.f32 %v1610, %v1658
      %v1735 = vadd.f32 %v1611, %v1660
      %v1736 = vadd.f32 %v1612, %v1663
      %v1737 = vadd.f32 %v1613, %v1665
      %v1738 = vadd.f32 %v1614, %v1668
      %v1739 = vadd.f32 %v1615, %v1670
      %v1740 = vadd.f32 %v1616, %v1673
      %v1741 = vadd.f32 %v1617, %v1675
      %v1742 = vadd.f32 %v1618, %v1678
      %v1743 = vadd.f32 %v1619, %v1680
      %v1744 = vadd.f32 %v1620, %v1683
      %v1745 = vadd.f32 %v1621, %v1685
      %v1746 = vadd.f32 %v1622, %v1688
      %v1747 = vadd.f32 %v1623, %v1690
      %v1748 = vadd.f32 %v1624, %v1693
      %v1749 = vadd.f32 %v1625, %v1695
      %v1750 = vadd.f32 %v1626, %v1698
      %v1751 = vadd.f32 %v1627, %v1700
      %v1752 = vadd.f32 %v1628, %v1703
      %v1753 = vadd.f32 %v1629, %v1705
      %v1754 = vadd.f32 %v1630, %v1708
      %v1755 = vadd.f32 %v1631, %v1710
      %v1756 = vadd.f32 %v1632, %v1713
      %v1757 = vadd.f32 %v1633, %v1715
      %v1758 = vadd.f32 %v1634, %v1718
      %v1759 = vadd.f32 %v1635, %v1720
      %v1760 = vadd.f32 %v1636, %v1723
      %v1761 = vadd.f32 %v1637, %v1725
      %v1762 = vadd.f32 %v1638, %v1728
      %v1763 = vadd.f32 %v1639, %v1730
      %v1765 = vsel %vm855, %v481, 0
      %1767 = vmatpush.bf16.msra.mxu0 0
      %1768 = vmatpush.bf16.msra.mxu0 0
      %1769 = vmatpush.bf16.msra.mxu0 0
      %1770 = vmatpush.bf16.msra.mxu0 0
      %1771 = vmatpush.bf16.msra.mxu0 0
      %1772 = vmatpush.bf16.msra.mxu0 0
      %1773 = vmatpush.bf16.msra.mxu0 0
      %1774 = vmatpush.bf16.msra.mxu0 %v1765
      %1775 = vmatmul.bf16.gmra.mxu0 %v827
      %v1776 = vpop.f32.mrf.mxu0
      %v1777 = vadd.f32 0.0, %v1776
      %v1778 = vpop.f32.mrf.mxu0
      %v1779 = vadd.f32 0.0, %v1778
      %1780 = vmatmul.bf16.gmra.mxu0 %v829
      %v1781 = vpop.f32.mrf.mxu0
      %v1782 = vadd.f32 0.0, %v1781
      %v1783 = vpop.f32.mrf.mxu0
      %v1784 = vadd.f32 0.0, %v1783
      %1785 = vmatmul.bf16.gmra.mxu0 %v831
      %v1786 = vpop.f32.mrf.mxu0
      %v1787 = vadd.f32 0.0, %v1786
      %v1788 = vpop.f32.mrf.mxu0
      %v1789 = vadd.f32 0.0, %v1788
      %1790 = vmatmul.bf16.gmra.mxu0 %v833
      %v1791 = vpop.f32.mrf.mxu0
      %v1792 = vadd.f32 0.0, %v1791
      %v1793 = vpop.f32.mrf.mxu0
      %v1794 = vadd.f32 0.0, %v1793
      %1795 = vmatmul.bf16.gmra.mxu0 %v835
      %v1796 = vpop.f32.mrf.mxu0
      %v1797 = vadd.f32 0.0, %v1796
      %v1798 = vpop.f32.mrf.mxu0
      %v1799 = vadd.f32 0.0, %v1798
      %1800 = vmatmul.bf16.gmra.mxu0 %v837
      %v1801 = vpop.f32.mrf.mxu0
      %v1802 = vadd.f32 0.0, %v1801
      %v1803 = vpop.f32.mrf.mxu0
      %v1804 = vadd.f32 0.0, %v1803
      %1805 = vmatmul.bf16.gmra.mxu0 %v839
      %v1806 = vpop.f32.mrf.mxu0
      %v1807 = vadd.f32 0.0, %v1806
      %v1808 = vpop.f32.mrf.mxu0
      %v1809 = vadd.f32 0.0, %v1808
      %1810 = vmatmul.bf16.gmra.mxu0 %v841
      %v1811 = vpop.f32.mrf.mxu0
      %v1812 = vadd.f32 0.0, %v1811
      %v1813 = vpop.f32.mrf.mxu0
      %v1814 = vadd.f32 0.0, %v1813
      %1815 = vmatmul.bf16.gmra.mxu0 %v843
      %v1816 = vpop.f32.mrf.mxu0
      %v1817 = vadd.f32 0.0, %v1816
      %v1818 = vpop.f32.mrf.mxu0
      %v1819 = vadd.f32 0.0, %v1818
      %1820 = vmatmul.bf16.gmra.mxu0 %v845
      %v1821 = vpop.f32.mrf.mxu0
      %v1822 = vadd.f32 0.0, %v1821
      %v1823 = vpop.f32.mrf.mxu0
      %v1824 = vadd.f32 0.0, %v1823
      %1825 = vmatmul.bf16.gmra.mxu0 %v847
      %v1826 = vpop.f32.mrf.mxu0
      %v1827 = vadd.f32 0.0, %v1826
      %v1828 = vpop.f32.mrf.mxu0
      %v1829 = vadd.f32 0.0, %v1828
      %1830 = vmatmul.bf16.gmra.mxu0 %v849
      %v1831 = vpop.f32.mrf.mxu0
      %v1832 = vadd.f32 0.0, %v1831
      %v1833 = vpop.f32.mrf.mxu0
      %v1834 = vadd.f32 0.0, %v1833
      %1835 = vmatmul.bf16.gmra.mxu0 %v851
      %v1836 = vpop.f32.mrf.mxu0
      %v1837 = vadd.f32 0.0, %v1836
      %v1838 = vpop.f32.mrf.mxu0
      %v1839 = vadd.f32 0.0, %v1838
      %1840 = vmatmul.bf16.gmra.mxu0 %v853
      %v1841 = vpop.f32.mrf.mxu0
      %v1842 = vadd.f32 0.0, %v1841
      %v1843 = vpop.f32.mrf.mxu0
      %v1844 = vadd.f32 0.0, %v1843
      %1845 = vmatmul.bf16.gmra.mxu0 %v1387
      %v1846 = vpop.f32.mrf.mxu0
      %v1847 = vadd.f32 0.0, %v1846
      %v1848 = vpop.f32.mrf.mxu0
      %v1849 = vadd.f32 0.0, %v1848
      %1850 = vmatmul.bf16.gmra.mxu0 %v823
      %v1851 = vpop.f32.mrf.mxu0
      %v1852 = vadd.f32 0.0, %v1851
      %v1853 = vpop.f32.mrf.mxu0
      %v1854 = vadd.f32 0.0, %v1853
      %1855 = vdwg.mxu0
      %v1856 = vadd.f32 %v1732, %v1777
      %v1857 = vadd.f32 %v1733, %v1779
      %v1858 = vadd.f32 %v1734, %v1782
      %v1859 = vadd.f32 %v1735, %v1784
      %v1860 = vadd.f32 %v1736, %v1787
      %v1861 = vadd.f32 %v1737, %v1789
      %v1862 = vadd.f32 %v1738, %v1792
      %v1863 = vadd.f32 %v1739, %v1794
      %v1864 = vadd.f32 %v1740, %v1797
      %v1865 = vadd.f32 %v1741, %v1799
      %v1866 = vadd.f32 %v1742, %v1802
      %v1867 = vadd.f32 %v1743, %v1804
      %v1868 = vadd.f32 %v1744, %v1807
      %v1869 = vadd.f32 %v1745, %v1809
      %v1870 = vadd.f32 %v1746, %v1812
      %v1871 = vadd.f32 %v1747, %v1814
      %v1872 = vadd.f32 %v1748, %v1817
      %v1873 = vadd.f32 %v1749, %v1819
      %v1874 = vadd.f32 %v1750, %v1822
      %v1875 = vadd.f32 %v1751, %v1824
      %v1876 = vadd.f32 %v1752, %v1827
      %v1877 = vadd.f32 %v1753, %v1829
      %v1878 = vadd.f32 %v1754, %v1832
      %v1879 = vadd.f32 %v1755, %v1834
      %v1880 = vadd.f32 %v1756, %v1837
      %v1881 = vadd.f32 %v1757, %v1839
      %v1882 = vadd.f32 %v1758, %v1842
      %v1883 = vadd.f32 %v1759, %v1844
      %v1884 = vadd.f32 %v1760, %v1847
      %v1885 = vadd.f32 %v1761, %v1849
      %v1886 = vadd.f32 %v1762, %v1852
      %v1887 = vadd.f32 %v1763, %v1854
      %v1889 = vsel %vm855, %v482, 0
      %1891 = vmatpush.bf16.msra.mxu0 0
      %1892 = vmatpush.bf16.msra.mxu0 0
      %1893 = vmatpush.bf16.msra.mxu0 0
      %1894 = vmatpush.bf16.msra.mxu0 0
      %1895 = vmatpush.bf16.msra.mxu0 0
      %1896 = vmatpush.bf16.msra.mxu0 0
      %1897 = vmatpush.bf16.msra.mxu0 0
      %1898 = vmatpush.bf16.msra.mxu0 %v1889
      %1899 = vmatmul.bf16.gmra.mxu0 %v1095
      %v1900 = vpop.f32.mrf.mxu0
      %v1901 = vadd.f32 0.0, %v1900
      %v1902 = vpop.f32.mrf.mxu0
      %v1903 = vadd.f32 0.0, %v1902
      %1904 = vmatmul.bf16.gmra.mxu0 %v1098
      %v1905 = vpop.f32.mrf.mxu0
      %v1906 = vadd.f32 0.0, %v1905
      %v1907 = vpop.f32.mrf.mxu0
      %v1908 = vadd.f32 0.0, %v1907
      %1909 = vmatmul.bf16.gmra.mxu0 %v1101
      %v1910 = vpop.f32.mrf.mxu0
      %v1911 = vadd.f32 0.0, %v1910
      %v1912 = vpop.f32.mrf.mxu0
      %v1913 = vadd.f32 0.0, %v1912
      %1914 = vmatmul.bf16.gmra.mxu0 %v1104
      %v1915 = vpop.f32.mrf.mxu0
      %v1916 = vadd.f32 0.0, %v1915
      %v1917 = vpop.f32.mrf.mxu0
      %v1918 = vadd.f32 0.0, %v1917
      %1919 = vmatmul.bf16.gmra.mxu0 %v1107
      %v1920 = vpop.f32.mrf.mxu0
      %v1921 = vadd.f32 0.0, %v1920
      %v1922 = vpop.f32.mrf.mxu0
      %v1923 = vadd.f32 0.0, %v1922
      %1924 = vmatmul.bf16.gmra.mxu0 %v1110
      %v1925 = vpop.f32.mrf.mxu0
      %v1926 = vadd.f32 0.0, %v1925
      %v1927 = vpop.f32.mrf.mxu0
      %v1928 = vadd.f32 0.0, %v1927
      %1929 = vmatmul.bf16.gmra.mxu0 %v1113
      %v1930 = vpop.f32.mrf.mxu0
      %v1931 = vadd.f32 0.0, %v1930
      %v1932 = vpop.f32.mrf.mxu0
      %v1933 = vadd.f32 0.0, %v1932
      %1934 = vmatmul.bf16.gmra.mxu0 %v1116
      %v1935 = vpop.f32.mrf.mxu0
      %v1936 = vadd.f32 0.0, %v1935
      %v1937 = vpop.f32.mrf.mxu0
      %v1938 = vadd.f32 0.0, %v1937
      %1939 = vmatmul.bf16.gmra.mxu0 %v1119
      %v1940 = vpop.f32.mrf.mxu0
      %v1941 = vadd.f32 0.0, %v1940
      %v1942 = vpop.f32.mrf.mxu0
      %v1943 = vadd.f32 0.0, %v1942
      %1944 = vmatmul.bf16.gmra.mxu0 %v1122
      %v1945 = vpop.f32.mrf.mxu0
      %v1946 = vadd.f32 0.0, %v1945
      %v1947 = vpop.f32.mrf.mxu0
      %v1948 = vadd.f32 0.0, %v1947
      %1949 = vmatmul.bf16.gmra.mxu0 %v1125
      %v1950 = vpop.f32.mrf.mxu0
      %v1951 = vadd.f32 0.0, %v1950
      %v1952 = vpop.f32.mrf.mxu0
      %v1953 = vadd.f32 0.0, %v1952
      %1954 = vmatmul.bf16.gmra.mxu0 %v1128
      %v1955 = vpop.f32.mrf.mxu0
      %v1956 = vadd.f32 0.0, %v1955
      %v1957 = vpop.f32.mrf.mxu0
      %v1958 = vadd.f32 0.0, %v1957
      %1959 = vmatmul.bf16.gmra.mxu0 %v1131
      %v1960 = vpop.f32.mrf.mxu0
      %v1961 = vadd.f32 0.0, %v1960
      %v1962 = vpop.f32.mrf.mxu0
      %v1963 = vadd.f32 0.0, %v1962
      %1964 = vmatmul.bf16.gmra.mxu0 %v1134
      %v1965 = vpop.f32.mrf.mxu0
      %v1966 = vadd.f32 0.0, %v1965
      %v1967 = vpop.f32.mrf.mxu0
      %v1968 = vadd.f32 0.0, %v1967
      %1969 = vmatmul.bf16.gmra.mxu0 %v1514
      %v1970 = vpop.f32.mrf.mxu0
      %v1971 = vadd.f32 0.0, %v1970
      %v1972 = vpop.f32.mrf.mxu0
      %v1973 = vadd.f32 0.0, %v1972
      %1974 = vmatmul.bf16.gmra.mxu0 %v1089
      %v1975 = vpop.f32.mrf.mxu0
      %v1976 = vadd.f32 0.0, %v1975
      %v1977 = vpop.f32.mrf.mxu0
      %v1978 = vadd.f32 0.0, %v1977
      %1979 = vdwg.mxu0
      %v1980 = vadd.f32 %v1856, %v1901
      %v1981 = vadd.f32 %v1857, %v1903
      %v1982 = vadd.f32 %v1858, %v1906
      %v1983 = vadd.f32 %v1859, %v1908
      %v1984 = vadd.f32 %v1860, %v1911
      %v1985 = vadd.f32 %v1861, %v1913
      %v1986 = vadd.f32 %v1862, %v1916
      %v1987 = vadd.f32 %v1863, %v1918
      %v1988 = vadd.f32 %v1864, %v1921
      %v1989 = vadd.f32 %v1865, %v1923
      %v1990 = vadd.f32 %v1866, %v1926
      %v1991 = vadd.f32 %v1867, %v1928
      %v1992 = vadd.f32 %v1868, %v1931
      %v1993 = vadd.f32 %v1869, %v1933
      %v1994 = vadd.f32 %v1870, %v1936
      %v1995 = vadd.f32 %v1871, %v1938
      %v1996 = vadd.f32 %v1872, %v1941
      %v1997 = vadd.f32 %v1873, %v1943
      %v1998 = vadd.f32 %v1874, %v1946
      %v1999 = vadd.f32 %v1875, %v1948
      %v2000 = vadd.f32 %v1876, %v1951
      %v2001 = vadd.f32 %v1877, %v1953
      %v2002 = vadd.f32 %v1878, %v1956
      %v2003 = vadd.f32 %v1879, %v1958
      %v2004 = vadd.f32 %v1880, %v1961
      %v2005 = vadd.f32 %v1881, %v1963
      %v2006 = vadd.f32 %v1882, %v1966
      %v2007 = vadd.f32 %v1883, %v1968
      %v2008 = vadd.f32 %v1884, %v1971
      %v2009 = vadd.f32 %v1885, %v1973
      %v2010 = vadd.f32 %v1886, %v1976
      %v2011 = vadd.f32 %v1887, %v1978
      %v2012 = vld [vmem:[%s2] sm:$0x1]
      %v2014 = vperm.slane %v2012, 0
      %v2016 = vadd.f32 %v1980, %v2014
      %v2017 = vadd.f32 %v1981, %v2014
      %v2018 = vadd.f32 %v1982, %v2014
      %v2019 = vadd.f32 %v1983, %v2014
      %v2020 = vadd.f32 %v1984, %v2014
      %v2021 = vadd.f32 %v1985, %v2014
      %v2022 = vadd.f32 %v1986, %v2014
      %v2023 = vadd.f32 %v1987, %v2014
      %v2024 = vadd.f32 %v1988, %v2014
      %v2025 = vadd.f32 %v1989, %v2014
      %v2026 = vadd.f32 %v1990, %v2014
      %v2027 = vadd.f32 %v1991, %v2014
      %v2028 = vadd.f32 %v1992, %v2014
      %v2029 = vadd.f32 %v1993, %v2014
      %v2030 = vadd.f32 %v1994, %v2014
      %v2031 = vadd.f32 %v1995, %v2014
      %v2032 = vadd.f32 %v1996, %v2014
      %v2033 = vadd.f32 %v1997, %v2014
      %v2034 = vadd.f32 %v1998, %v2014
      %v2035 = vadd.f32 %v1999, %v2014
      %v2036 = vadd.f32 %v2000, %v2014
      %v2037 = vadd.f32 %v2001, %v2014
      %v2038 = vadd.f32 %v2002, %v2014
      %v2039 = vadd.f32 %v2003, %v2014
      %v2040 = vadd.f32 %v2004, %v2014
      %v2041 = vadd.f32 %v2005, %v2014
      %v2042 = vadd.f32 %v2006, %v2014
      %v2043 = vadd.f32 %v2007, %v2014
      %v2044 = vadd.f32 %v2008, %v2014
      %v2045 = vadd.f32 %v2009, %v2014
      %v2046 = vadd.f32 %v2010, %v2014
      %v2047 = vadd.f32 %v2011, %v2014
      %v2048 = vmax.f32 %v2016, 0.0
      %v2049 = vmax.f32 %v2017, 0.0
      %v2050 = vmax.f32 %v2018, 0.0
      %v2051 = vmax.f32 %v2019, 0.0
      %v2052 = vmax.f32 %v2020, 0.0
      %v2053 = vmax.f32 %v2021, 0.0
      %v2054 = vmax.f32 %v2022, 0.0
      %v2055 = vmax.f32 %v2023, 0.0
      %v2056 = vmax.f32 %v2024, 0.0
      %v2057 = vmax.f32 %v2025, 0.0
      %v2058 = vmax.f32 %v2026, 0.0
      %v2059 = vmax.f32 %v2027, 0.0
      %v2060 = vmax.f32 %v2028, 0.0
      %v2061 = vmax.f32 %v2029, 0.0
      %v2062 = vmax.f32 %v2030, 0.0
      %v2063 = vmax.f32 %v2031, 0.0
      %v2064 = vmax.f32 %v2032, 0.0
      %v2065 = vmax.f32 %v2033, 0.0
      %v2066 = vmax.f32 %v2034, 0.0
      %v2067 = vmax.f32 %v2035, 0.0
      %v2068 = vmax.f32 %v2036, 0.0
      %v2069 = vmax.f32 %v2037, 0.0
      %v2070 = vmax.f32 %v2038, 0.0
      %v2071 = vmax.f32 %v2039, 0.0
      %v2072 = vmax.f32 %v2040, 0.0
      %v2073 = vmax.f32 %v2041, 0.0
      %v2074 = vmax.f32 %v2042, 0.0
      %v2075 = vmax.f32 %v2043, 0.0
      %v2076 = vmax.f32 %v2044, 0.0
      %v2077 = vmax.f32 %v2045, 0.0
      %v2078 = vmax.f32 %v2046, 0.0
      %v2079 = vmax.f32 %v2047, 0.0
      %v2080 = vmax.f32 %v2048, %v2050
      %v2081 = vmax.f32 %v2049, %v2051
      %v2082 = vmax.f32 %v2052, %v2054
      %v2083 = vmax.f32 %v2053, %v2055
      %v2084 = vmax.f32 %v2056, %v2058
      %v2085 = vmax.f32 %v2057, %v2059
      %v2086 = vmax.f32 %v2060, %v2062
      %v2087 = vmax.f32 %v2061, %v2063
      %v2088 = vmax.f32 %v2064, %v2066
      %v2089 = vmax.f32 %v2065, %v2067
      %v2090 = vmax.f32 %v2068, %v2070
      %v2091 = vmax.f32 %v2069, %v2071
      %v2092 = vmax.f32 %v2072, %v2074
      %v2093 = vmax.f32 %v2073, %v2075
      %v2094 = vmax.f32 %v2076, %v2078
      %v2095 = vmax.f32 %v2077, %v2079
      %v2112 = vrot.slane %v2080, 2
      %v2113 = vrot.slane %v2080, 4
      %v2114 = vrot.slane %v2080, 6
      %v2115 = vrot.slane %v2081, 2
      %v2116 = vrot.slane %v2081, 4
      %v2117 = vrot.slane %v2081, 6
      %v2118 = vrot.slane %v2082, 2
      %v2119 = vrot.slane %v2082, 4
      %v2120 = vrot.slane %v2082, 6
      %v2121 = vrot.slane %v2083, 2
      %v2122 = vrot.slane %v2083, 4
      %v2123 = vrot.slane %v2083, 6
      %v2124 = vrot.slane %v2084, 2
      %v2125 = vrot.slane %v2084, 4
      %v2126 = vrot.slane %v2084, 6
      %v2127 = vrot.slane %v2085, 2
      %v2128 = vrot.slane %v2085, 4
      %v2129 = vrot.slane %v2085, 6
      %v2130 = vrot.slane %v2086, 2
      %v2131 = vrot.slane %v2086, 4
      %v2132 = vrot.slane %v2086, 6
      %v2133 = vrot.slane %v2087, 2
      %v2134 = vrot.slane %v2087, 4
      %v2135 = vrot.slane %v2087, 6
      %v2136 = vrot.slane %v2088, 2
      %v2137 = vrot.slane %v2088, 4
      %v2138 = vrot.slane %v2088, 6
      %v2139 = vrot.slane %v2089, 2
      %v2140 = vrot.slane %v2089, 4
      %v2141 = vrot.slane %v2089, 6
      %v2142 = vrot.slane %v2090, 2
      %v2143 = vrot.slane %v2090, 4
      %v2144 = vrot.slane %v2090, 6
      %v2145 = vrot.slane %v2091, 2
      %v2146 = vrot.slane %v2091, 4
      %v2147 = vrot.slane %v2091, 6
      %v2148 = vrot.slane %v2092, 2
      %v2149 = vrot.slane %v2092, 4
      %v2150 = vrot.slane %v2092, 6
      %v2151 = vrot.slane %v2093, 2
      %v2152 = vrot.slane %v2093, 4
      %v2153 = vrot.slane %v2093, 6
      %v2154 = vrot.slane %v2094, 2
      %v2155 = vrot.slane %v2094, 4
      %v2156 = vrot.slane %v2094, 6
      %v2157 = vrot.slane %v2095, 2
      %v2158 = vrot.slane %v2095, 4
      %v2159 = vrot.slane %v2095, 6
      %v2208 = vrot.slane %v2080, 7
      %v2209 = vrot.slane %v2208, 2
      %v2210 = vrot.slane %v2112, 7
      %v2211 = vrot.slane %v2210, 2
      %v2212 = vrot.slane %v2113, 7
      %v2213 = vrot.slane %v2212, 2
      %v2214 = vrot.slane %v2114, 7
      %v2215 = vrot.slane %v2214, 2
      %v2216 = vrot.slane %v2081, 7
      %v2217 = vrot.slane %v2216, 2
      %v2218 = vrot.slane %v2115, 7
      %v2219 = vrot.slane %v2218, 2
      %v2220 = vrot.slane %v2116, 7
      %v2221 = vrot.slane %v2220, 2
      %v2222 = vrot.slane %v2117, 7
      %v2223 = vrot.slane %v2222, 2
      %v2224 = vrot.slane %v2082, 7
      %v2225 = vrot.slane %v2224, 2
      %v2226 = vrot.slane %v2118, 7
      %v2227 = vrot.slane %v2226, 2
      %v2228 = vrot.slane %v2119, 7
      %v2229 = vrot.slane %v2228, 2
      %v2230 = vrot.slane %v2120, 7
      %v2231 = vrot.slane %v2230, 2
      %v2232 = vrot.slane %v2083, 7
      %v2233 = vrot.slane %v2232, 2
      %v2234 = vrot.slane %v2121, 7
      %v2235 = vrot.slane %v2234, 2
      %v2236 = vrot.slane %v2122, 7
      %v2237 = vrot.slane %v2236, 2
      %v2238 = vrot.slane %v2123, 7
      %v2239 = vrot.slane %v2238, 2
      %v2240 = vrot.slane %v2084, 7
      %v2241 = vrot.slane %v2240, 2
      %v2242 = vrot.slane %v2124, 7
      %v2243 = vrot.slane %v2242, 2
      %v2244 = vrot.slane %v2125, 7
      %v2245 = vrot.slane %v2244, 2
      %v2246 = vrot.slane %v2126, 7
      %v2247 = vrot.slane %v2246, 2
      %v2248 = vrot.slane %v2085, 7
      %v2249 = vrot.slane %v2248, 2
      %v2250 = vrot.slane %v2127, 7
      %v2251 = vrot.slane %v2250, 2
      %v2252 = vrot.slane %v2128, 7
      %v2253 = vrot.slane %v2252, 2
      %v2254 = vrot.slane %v2129, 7
      %v2255 = vrot.slane %v2254, 2
      %v2256 = vrot.slane %v2086, 7
      %v2257 = vrot.slane %v2256, 2
      %v2258 = vrot.slane %v2130, 7
      %v2259 = vrot.slane %v2258, 2
      %v2260 = vrot.slane %v2131, 7
      %v2261 = vrot.slane %v2260, 2
      %v2262 = vrot.slane %v2132, 7
      %v2263 = vrot.slane %v2262, 2
      %v2264 = vrot.slane %v2087, 7
      %v2265 = vrot.slane %v2264, 2
      %v2266 = vrot.slane %v2133, 7
      %v2267 = vrot.slane %v2266, 2
      %v2268 = vrot.slane %v2134, 7
      %v2269 = vrot.slane %v2268, 2
      %v2270 = vrot.slane %v2135, 7
      %v2271 = vrot.slane %v2270, 2
      %v2272 = vrot.slane %v2088, 7
      %v2273 = vrot.slane %v2272, 2
      %v2274 = vrot.slane %v2136, 7
      %v2275 = vrot.slane %v2274, 2
      %v2276 = vrot.slane %v2137, 7
      %v2277 = vrot.slane %v2276, 2
      %v2278 = vrot.slane %v2138, 7
      %v2279 = vrot.slane %v2278, 2
      %v2280 = vrot.slane %v2089, 7
      %v2281 = vrot.slane %v2280, 2
      %v2282 = vrot.slane %v2139, 7
      %v2283 = vrot.slane %v2282, 2
      %v2284 = vrot.slane %v2140, 7
      %v2285 = vrot.slane %v2284, 2
      %v2286 = vrot.slane %v2141, 7
      %v2287 = vrot.slane %v2286, 2
      %v2288 = vrot.slane %v2090, 7
      %v2289 = vrot.slane %v2288, 2
      %v2290 = vrot.slane %v2142, 7
      %v2291 = vrot.slane %v2290, 2
      %v2292 = vrot.slane %v2143, 7
      %v2293 = vrot.slane %v2292, 2
      %v2294 = vrot.slane %v2144, 7
      %v2295 = vrot.slane %v2294, 2
      %v2296 = vrot.slane %v2091, 7
      %v2297 = vrot.slane %v2296, 2
      %v2298 = vrot.slane %v2145, 7
      %v2299 = vrot.slane %v2298, 2
      %v2300 = vrot.slane %v2146, 7
      %v2301 = vrot.slane %v2300, 2
      %v2302 = vrot.slane %v2147, 7
      %v2303 = vrot.slane %v2302, 2
      %v2304 = vrot.slane %v2092, 7
      %v2305 = vrot.slane %v2304, 2
      %v2306 = vrot.slane %v2148, 7
      %v2307 = vrot.slane %v2306, 2
      %v2308 = vrot.slane %v2149, 7
      %v2309 = vrot.slane %v2308, 2
      %v2310 = vrot.slane %v2150, 7
      %v2311 = vrot.slane %v2310, 2
      %v2312 = vrot.slane %v2093, 7
      %v2313 = vrot.slane %v2312, 2
      %v2314 = vrot.slane %v2151, 7
      %v2315 = vrot.slane %v2314, 2
      %v2316 = vrot.slane %v2152, 7
      %v2317 = vrot.slane %v2316, 2
      %v2318 = vrot.slane %v2153, 7
      %v2319 = vrot.slane %v2318, 2
      %v2320 = vrot.slane %v2094, 7
      %v2321 = vrot.slane %v2320, 2
      %v2322 = vrot.slane %v2154, 7
      %v2323 = vrot.slane %v2322, 2
      %v2324 = vrot.slane %v2155, 7
      %v2325 = vrot.slane %v2324, 2
      %v2326 = vrot.slane %v2156, 7
      %v2327 = vrot.slane %v2326, 2
      %v2328 = vrot.slane %v2095, 7
      %v2329 = vrot.slane %v2328, 2
      %v2330 = vrot.slane %v2157, 7
      %v2331 = vrot.slane %v2330, 2
      %v2332 = vrot.slane %v2158, 7
      %v2333 = vrot.slane %v2332, 2
      %v2334 = vrot.slane %v2159, 7
      %v2335 = vrot.slane %v2334, 2
      %v2400 = vmax.f32 %v2080, %v2209
      %v2401 = vmax.f32 %v2112, %v2211
      %v2402 = vmax.f32 %v2113, %v2213
      %v2403 = vmax.f32 %v2114, %v2215
      %v2404 = vmax.f32 %v2081, %v2217
      %v2405 = vmax.f32 %v2115, %v2219
      %v2406 = vmax.f32 %v2116, %v2221
      %v2407 = vmax.f32 %v2117, %v2223
      %v2408 = vmax.f32 %v2082, %v2225
      %v2409 = vmax.f32 %v2118, %v2227
      %v2410 = vmax.f32 %v2119, %v2229
      %v2411 = vmax.f32 %v2120, %v2231
      %v2412 = vmax.f32 %v2083, %v2233
      %v2413 = vmax.f32 %v2121, %v2235
      %v2414 = vmax.f32 %v2122, %v2237
      %v2415 = vmax.f32 %v2123, %v2239
      %v2416 = vmax.f32 %v2084, %v2241
      %v2417 = vmax.f32 %v2124, %v2243
      %v2418 = vmax.f32 %v2125, %v2245
      %v2419 = vmax.f32 %v2126, %v2247
      %v2420 = vmax.f32 %v2085, %v2249
      %v2421 = vmax.f32 %v2127, %v2251
      %v2422 = vmax.f32 %v2128, %v2253
      %v2423 = vmax.f32 %v2129, %v2255
      %v2424 = vmax.f32 %v2086, %v2257
      %v2425 = vmax.f32 %v2130, %v2259
      %v2426 = vmax.f32 %v2131, %v2261
      %v2427 = vmax.f32 %v2132, %v2263
      %v2428 = vmax.f32 %v2087, %v2265
      %v2429 = vmax.f32 %v2133, %v2267
      %v2430 = vmax.f32 %v2134, %v2269
      %v2431 = vmax.f32 %v2135, %v2271
      %v2432 = vmax.f32 %v2088, %v2273
      %v2433 = vmax.f32 %v2136, %v2275
      %v2434 = vmax.f32 %v2137, %v2277
      %v2435 = vmax.f32 %v2138, %v2279
      %v2436 = vmax.f32 %v2089, %v2281
      %v2437 = vmax.f32 %v2139, %v2283
      %v2438 = vmax.f32 %v2140, %v2285
      %v2439 = vmax.f32 %v2141, %v2287
      %v2440 = vmax.f32 %v2090, %v2289
      %v2441 = vmax.f32 %v2142, %v2291
      %v2442 = vmax.f32 %v2143, %v2293
      %v2443 = vmax.f32 %v2144, %v2295
      %v2444 = vmax.f32 %v2091, %v2297
      %v2445 = vmax.f32 %v2145, %v2299
      %v2446 = vmax.f32 %v2146, %v2301
      %v2447 = vmax.f32 %v2147, %v2303
      %v2448 = vmax.f32 %v2092, %v2305
      %v2449 = vmax.f32 %v2148, %v2307
      %v2450 = vmax.f32 %v2149, %v2309
      %v2451 = vmax.f32 %v2150, %v2311
      %v2452 = vmax.f32 %v2093, %v2313
      %v2453 = vmax.f32 %v2151, %v2315
      %v2454 = vmax.f32 %v2152, %v2317
      %v2455 = vmax.f32 %v2153, %v2319
      %v2456 = vmax.f32 %v2094, %v2321
      %v2457 = vmax.f32 %v2154, %v2323
      %v2458 = vmax.f32 %v2155, %v2325
      %v2459 = vmax.f32 %v2156, %v2327
      %v2460 = vmax.f32 %v2095, %v2329
      %v2461 = vmax.f32 %v2157, %v2331
      %v2462 = vmax.f32 %v2158, %v2333
      %v2463 = vmax.f32 %v2159, %v2335
      %v2464 = vld [vmem:[%s3] sm:$0xf]
      %v2465 = vld [vmem:[%s3 + $0x4] sm:$0xf]
      %v2466 = vld [vmem:[%s3 + $0x8] sm:$0xf]
      %v2467 = vld [vmem:[%s3 + $0xc] sm:$0xf]
      %v2468 = vld [vmem:[%s3 + $0x10] sm:$0xf]
      %v2469 = vld [vmem:[%s3 + $0x14] sm:$0xf]
      %v2470 = vld [vmem:[%s3 + $0x18] sm:$0xf]
      %v2471 = vld [vmem:[%s3 + $0x1c] sm:$0xf]
      %v2472 = vld [vmem:[%s3 + $0x20] sm:$0xf]
      %v2473 = vld [vmem:[%s3 + $0x24] sm:$0xf]
      %v2474 = vld [vmem:[%s3 + $0x28] sm:$0xf]
      %v2475 = vld [vmem:[%s3 + $0x2c] sm:$0xf]
      %v2476 = vld [vmem:[%s3 + $0x30] sm:$0xf]
      %v2477 = vld [vmem:[%s3 + $0x34] sm:$0xf]
      %v2478 = vld [vmem:[%s3 + $0x38] sm:$0xf]
      %v2479 = vld [vmem:[%s3 + $0x3c] sm:$0xf]
      %v2480 = vld [vmem:[%s3 + $0x40] sm:$0xf]
      %v2481 = vld [vmem:[%s3 + $0x44] sm:$0xf]
      %v2482 = vpack.c.bf16 %v2400, %v2400
      %v2483 = vpack.c.bf16 %v2401, %v2401
      %v2484 = vpack.c.bf16 %v2402, %v2402
      %v2485 = vpack.c.bf16 %v2403, %v2403
      %v2486 = vpack.c.bf16 %v2404, %v2404
      %v2487 = vpack.c.bf16 %v2405, %v2405
      %v2488 = vpack.c.bf16 %v2406, %v2406
      %v2489 = vpack.c.bf16 %v2407, %v2407
      %v2490 = vpack.c.bf16 %v2408, %v2408
      %v2491 = vpack.c.bf16 %v2409, %v2409
      %v2492 = vpack.c.bf16 %v2410, %v2410
      %v2493 = vpack.c.bf16 %v2411, %v2411
      %v2494 = vpack.c.bf16 %v2412, %v2412
      %v2495 = vpack.c.bf16 %v2413, %v2413
      %v2496 = vpack.c.bf16 %v2414, %v2414
      %v2497 = vpack.c.bf16 %v2415, %v2415
      %v2498 = vpack.c.bf16 %v2416, %v2416
      %v2499 = vpack.c.bf16 %v2417, %v2417
      %v2500 = vpack.c.bf16 %v2418, %v2418
      %v2501 = vpack.c.bf16 %v2419, %v2419
      %v2502 = vpack.c.bf16 %v2420, %v2420
      %v2503 = vpack.c.bf16 %v2421, %v2421
      %v2504 = vpack.c.bf16 %v2422, %v2422
      %v2505 = vpack.c.bf16 %v2423, %v2423
      %v2506 = vpack.c.bf16 %v2424, %v2424
      %v2507 = vpack.c.bf16 %v2425, %v2425
      %v2508 = vpack.c.bf16 %v2426, %v2426
      %v2509 = vpack.c.bf16 %v2427, %v2427
      %v2510 = vpack.c.bf16 %v2428, %v2428
      %v2511 = vpack.c.bf16 %v2429, %v2429
      %v2512 = vpack.c.bf16 %v2430, %v2430
      %v2513 = vpack.c.bf16 %v2431, %v2431
      %v2514 = vpack.c.bf16 %v2432, %v2432
      %v2515 = vpack.c.bf16 %v2433, %v2433
      %v2516 = vpack.c.bf16 %v2434, %v2434
      %v2517 = vpack.c.bf16 %v2435, %v2435
      %v2518 = vpack.c.bf16 %v2436, %v2436
      %v2519 = vpack.c.bf16 %v2437, %v2437
      %v2520 = vpack.c.bf16 %v2438, %v2438
      %v2521 = vpack.c.bf16 %v2439, %v2439
      %v2522 = vpack.c.bf16 %v2440, %v2440
      %v2523 = vpack.c.bf16 %v2441, %v2441
      %v2524 = vpack.c.bf16 %v2442, %v2442
      %v2525 = vpack.c.bf16 %v2443, %v2443
      %v2526 = vpack.c.bf16 %v2444, %v2444
      %v2527 = vpack.c.bf16 %v2445, %v2445
      %v2528 = vpack.c.bf16 %v2446, %v2446
      %v2529 = vpack.c.bf16 %v2447, %v2447
      %v2530 = vpack.c.bf16 %v2448, %v2448
      %v2531 = vpack.c.bf16 %v2449, %v2449
      %v2532 = vpack.c.bf16 %v2450, %v2450
      %v2533 = vpack.c.bf16 %v2451, %v2451
      %v2534 = vpack.c.bf16 %v2452, %v2452
      %v2535 = vpack.c.bf16 %v2453, %v2453
      %v2536 = vpack.c.bf16 %v2454, %v2454
      %v2537 = vpack.c.bf16 %v2455, %v2455
      %v2538 = vpack.c.bf16 %v2456, %v2456
      %v2539 = vpack.c.bf16 %v2457, %v2457
      %v2540 = vpack.c.bf16 %v2458, %v2458
      %v2541 = vpack.c.bf16 %v2459, %v2459
      %v2542 = vpack.c.bf16 %v2460, %v2460
      %v2543 = vpack.c.bf16 %v2461, %v2461
      %v2544 = vpack.c.bf16 %v2462, %v2462
      %v2545 = vpack.c.bf16 %v2463, %v2463
      %v2610 = vunpack.c.l.b16 %v2482
      %v2611 = vunpack.c.l.b16 %v2483
      %v2612 = vunpack.c.l.b16 %v2484
      %v2613 = vunpack.c.l.b16 %v2485
      %v2614 = vunpack.c.l.b16 %v2486
      %v2615 = vunpack.c.l.b16 %v2487
      %v2616 = vunpack.c.l.b16 %v2488
      %v2617 = vunpack.c.l.b16 %v2489
      %v2618 = vunpack.c.l.b16 %v2490
      %v2619 = vunpack.c.l.b16 %v2491
      %v2620 = vunpack.c.l.b16 %v2492
      %v2621 = vunpack.c.l.b16 %v2493
      %v2622 = vunpack.c.l.b16 %v2494
      %v2623 = vunpack.c.l.b16 %v2495
      %v2624 = vunpack.c.l.b16 %v2496
      %v2625 = vunpack.c.l.b16 %v2497
      %v2626 = vunpack.c.l.b16 %v2498
      %v2627 = vunpack.c.l.b16 %v2499
      %v2628 = vunpack.c.l.b16 %v2500
      %v2629 = vunpack.c.l.b16 %v2501
      %v2630 = vunpack.c.l.b16 %v2502
      %v2631 = vunpack.c.l.b16 %v2503
      %v2632 = vunpack.c.l.b16 %v2504
      %v2633 = vunpack.c.l.b16 %v2505
      %v2634 = vunpack.c.l.b16 %v2506
      %v2635 = vunpack.c.l.b16 %v2507
      %v2636 = vunpack.c.l.b16 %v2508
      %v2637 = vunpack.c.l.b16 %v2509
      %v2638 = vunpack.c.l.b16 %v2510
      %v2639 = vunpack.c.l.b16 %v2511
      %v2640 = vunpack.c.l.b16 %v2512
      %v2641 = vunpack.c.l.b16 %v2513
      %v2642 = vunpack.c.l.b16 %v2514
      %v2643 = vunpack.c.l.b16 %v2515
      %v2644 = vunpack.c.l.b16 %v2516
      %v2645 = vunpack.c.l.b16 %v2517
      %v2646 = vunpack.c.l.b16 %v2518
      %v2647 = vunpack.c.l.b16 %v2519
      %v2648 = vunpack.c.l.b16 %v2520
      %v2649 = vunpack.c.l.b16 %v2521
      %v2650 = vunpack.c.l.b16 %v2522
      %v2651 = vunpack.c.l.b16 %v2523
      %v2652 = vunpack.c.l.b16 %v2524
      %v2653 = vunpack.c.l.b16 %v2525
      %v2654 = vunpack.c.l.b16 %v2526
      %v2655 = vunpack.c.l.b16 %v2527
      %v2656 = vunpack.c.l.b16 %v2528
      %v2657 = vunpack.c.l.b16 %v2529
      %v2658 = vunpack.c.l.b16 %v2530
      %v2659 = vunpack.c.l.b16 %v2531
      %v2660 = vunpack.c.l.b16 %v2532
      %v2661 = vunpack.c.l.b16 %v2533
      %v2662 = vunpack.c.l.b16 %v2534
      %v2663 = vunpack.c.l.b16 %v2535
      %v2664 = vunpack.c.l.b16 %v2536
      %v2665 = vunpack.c.l.b16 %v2537
      %v2666 = vunpack.c.l.b16 %v2538
      %v2667 = vunpack.c.l.b16 %v2539
      %v2668 = vunpack.c.l.b16 %v2540
      %v2669 = vunpack.c.l.b16 %v2541
      %v2670 = vunpack.c.l.b16 %v2542
      %v2671 = vunpack.c.l.b16 %v2543
      %v2672 = vunpack.c.l.b16 %v2544
      %v2673 = vunpack.c.l.b16 %v2545
      %v2674 = vpack.c.b16 %v2610, %v2610
      %v2675 = vpack.c.b16 %v2611, %v2611
      %v2676 = vpack.c.b16 %v2612, %v2612
      %v2677 = vpack.c.b16 %v2613, %v2613
      %v2678 = vpack.c.b16 %v2614, %v2614
      %v2679 = vpack.c.b16 %v2615, %v2615
      %v2680 = vpack.c.b16 %v2616, %v2616
      %v2681 = vpack.c.b16 %v2617, %v2617
      %v2682 = vpack.c.b16 %v2618, %v2618
      %v2683 = vpack.c.b16 %v2619, %v2619
      %v2684 = vpack.c.b16 %v2620, %v2620
      %v2685 = vpack.c.b16 %v2621, %v2621
      %v2686 = vpack.c.b16 %v2622, %v2622
      %v2687 = vpack.c.b16 %v2623, %v2623
      %v2688 = vpack.c.b16 %v2624, %v2624
      %v2689 = vpack.c.b16 %v2625, %v2625
      %v2690 = vpack.c.b16 %v2626, %v2626
      %v2691 = vpack.c.b16 %v2627, %v2627
      %v2692 = vpack.c.b16 %v2628, %v2628
      %v2693 = vpack.c.b16 %v2629, %v2629
      %v2694 = vpack.c.b16 %v2630, %v2630
      %v2695 = vpack.c.b16 %v2631, %v2631
      %v2696 = vpack.c.b16 %v2632, %v2632
      %v2697 = vpack.c.b16 %v2633, %v2633
      %v2698 = vpack.c.b16 %v2634, %v2634
      %v2699 = vpack.c.b16 %v2635, %v2635
      %v2700 = vpack.c.b16 %v2636, %v2636
      %v2701 = vpack.c.b16 %v2637, %v2637
      %v2702 = vpack.c.b16 %v2638, %v2638
      %v2703 = vpack.c.b16 %v2639, %v2639
      %v2704 = vpack.c.b16 %v2640, %v2640
      %v2705 = vpack.c.b16 %v2641, %v2641
      %v2706 = vpack.c.b16 %v2642, %v2642
      %v2707 = vpack.c.b16 %v2643, %v2643
      %v2708 = vpack.c.b16 %v2644, %v2644
      %v2709 = vpack.c.b16 %v2645, %v2645
      %v2710 = vpack.c.b16 %v2646, %v2646
      %v2711 = vpack.c.b16 %v2647, %v2647
      %v2712 = vpack.c.b16 %v2648, %v2648
      %v2713 = vpack.c.b16 %v2649, %v2649
      %v2714 = vpack.c.b16 %v2650, %v2650
      %v2715 = vpack.c.b16 %v2651, %v2651
      %v2716 = vpack.c.b16 %v2652, %v2652
      %v2717 = vpack.c.b16 %v2653, %v2653
      %v2718 = vpack.c.b16 %v2654, %v2654
      %v2719 = vpack.c.b16 %v2655, %v2655
      %v2720 = vpack.c.b16 %v2656, %v2656
      %v2721 = vpack.c.b16 %v2657, %v2657
      %v2722 = vpack.c.b16 %v2658, %v2658
      %v2723 = vpack.c.b16 %v2659, %v2659
      %v2724 = vpack.c.b16 %v2660, %v2660
      %v2725 = vpack.c.b16 %v2661, %v2661
      %v2726 = vpack.c.b16 %v2662, %v2662
      %v2727 = vpack.c.b16 %v2663, %v2663
      %v2728 = vpack.c.b16 %v2664, %v2664
      %v2729 = vpack.c.b16 %v2665, %v2665
      %v2730 = vpack.c.b16 %v2666, %v2666
      %v2731 = vpack.c.b16 %v2667, %v2667
      %v2732 = vpack.c.b16 %v2668, %v2668
      %v2733 = vpack.c.b16 %v2669, %v2669
      %v2734 = vpack.c.b16 %v2670, %v2670
      %v2735 = vpack.c.b16 %v2671, %v2671
      %v2736 = vpack.c.b16 %v2672, %v2672
      %v2737 = vpack.c.b16 %v2673, %v2673
      %v2738 = vunpack.c.l.b16 %v2674
      %v2739 = vunpack.c.l.b16 %v2675
      %v2740 = vunpack.c.l.b16 %v2676
      %v2741 = vunpack.c.l.b16 %v2677
      %v2742 = vunpack.c.l.b16 %v2678
      %v2743 = vunpack.c.l.b16 %v2679
      %v2744 = vunpack.c.l.b16 %v2680
      %v2745 = vunpack.c.l.b16 %v2681
      %v2746 = vunpack.c.l.b16 %v2682
      %v2747 = vunpack.c.l.b16 %v2683
      %v2748 = vunpack.c.l.b16 %v2684
      %v2749 = vunpack.c.l.b16 %v2685
      %v2750 = vunpack.c.l.b16 %v2686
      %v2751 = vunpack.c.l.b16 %v2687
      %v2752 = vunpack.c.l.b16 %v2688
      %v2753 = vunpack.c.l.b16 %v2689
      %v2754 = vunpack.c.l.b16 %v2690
      %v2755 = vunpack.c.l.b16 %v2691
      %v2756 = vunpack.c.l.b16 %v2692
      %v2757 = vunpack.c.l.b16 %v2693
      %v2758 = vunpack.c.l.b16 %v2694
      %v2759 = vunpack.c.l.b16 %v2695
      %v2760 = vunpack.c.l.b16 %v2696
      %v2761 = vunpack.c.l.b16 %v2697
      %v2762 = vunpack.c.l.b16 %v2698
      %v2763 = vunpack.c.l.b16 %v2699
      %v2764 = vunpack.c.l.b16 %v2700
      %v2765 = vunpack.c.l.b16 %v2701
      %v2766 = vunpack.c.l.b16 %v2702
      %v2767 = vunpack.c.l.b16 %v2703
      %v2768 = vunpack.c.l.b16 %v2704
      %v2769 = vunpack.c.l.b16 %v2705
      %v2770 = vunpack.c.l.b16 %v2706
      %v2771 = vunpack.c.l.b16 %v2707
      %v2772 = vunpack.c.l.b16 %v2708
      %v2773 = vunpack.c.l.b16 %v2709
      %v2774 = vunpack.c.l.b16 %v2710
      %v2775 = vunpack.c.l.b16 %v2711
      %v2776 = vunpack.c.l.b16 %v2712
      %v2777 = vunpack.c.l.b16 %v2713
      %v2778 = vunpack.c.l.b16 %v2714
      %v2779 = vunpack.c.l.b16 %v2715
      %v2780 = vunpack.c.l.b16 %v2716
      %v2781 = vunpack.c.l.b16 %v2717
      %v2782 = vunpack.c.l.b16 %v2718
      %v2783 = vunpack.c.l.b16 %v2719
      %v2784 = vunpack.c.l.b16 %v2720
      %v2785 = vunpack.c.l.b16 %v2721
      %v2786 = vunpack.c.l.b16 %v2722
      %v2787 = vunpack.c.l.b16 %v2723
      %v2788 = vunpack.c.l.b16 %v2724
      %v2789 = vunpack.c.l.b16 %v2725
      %v2790 = vunpack.c.l.b16 %v2726
      %v2791 = vunpack.c.l.b16 %v2727
      %v2792 = vunpack.c.l.b16 %v2728
      %v2793 = vunpack.c.l.b16 %v2729
      %v2794 = vunpack.c.l.b16 %v2730
      %v2795 = vunpack.c.l.b16 %v2731
      %v2796 = vunpack.c.l.b16 %v2732
      %v2797 = vunpack.c.l.b16 %v2733
      %v2798 = vunpack.c.l.b16 %v2734
      %v2799 = vunpack.c.l.b16 %v2735
      %v2800 = vunpack.c.l.b16 %v2736
      %v2801 = vunpack.c.l.b16 %v2737
      %v2802 = vrot.slane %v2739, 7
      %vm2803 = vcmask 1041409
      %v2804 = vsel %vm2803, %v2802, %v2738
      %v2805 = vrot.slane %v2740, 6
      %vm2806 = vcmask 1042434
      %v2807 = vsel %vm2806, %v2805, %v2804
      %v2808 = vrot.slane %v2741, 5
      %vm2809 = vcmask 1043459
      %v2810 = vsel %vm2809, %v2808, %v2807
      %v2811 = vrot.slane %v2742, 4
      %vm2812 = vcmask 1044484
      %v2813 = vsel %vm2812, %v2811, %v2810
      %v2814 = vrot.slane %v2743, 3
      %vm2815 = vcmask 1045509
      %v2816 = vsel %vm2815, %v2814, %v2813
      %v2817 = vrot.slane %v2744, 2
      %vm2818 = vcmask 1046534
      %v2819 = vsel %vm2818, %v2817, %v2816
      %v2820 = vrot.slane %v2745, 1
      %vm2821 = vcmask 1047559
      %v2822 = vsel %vm2821, %v2820, %v2819
      %v2823 = vrot.slane %v2747, 7
      %v2824 = vsel %vm2803, %v2823, %v2746
      %v2825 = vrot.slane %v2748, 6
      %v2826 = vsel %vm2806, %v2825, %v2824
      %v2827 = vrot.slane %v2749, 5
      %v2828 = vsel %vm2809, %v2827, %v2826
      %v2829 = vrot.slane %v2750, 4
      %v2830 = vsel %vm2812, %v2829, %v2828
      %v2831 = vrot.slane %v2751, 3
      %v2832 = vsel %vm2815, %v2831, %v2830
      %v2833 = vrot.slane %v2752, 2
      %v2834 = vsel %vm2818, %v2833, %v2832
      %v2835 = vrot.slane %v2753, 1
      %v2836 = vsel %vm2821, %v2835, %v2834
      %v2837 = vrot.slane %v2755, 7
      %v2838 = vsel %vm2803, %v2837, %v2754
      %v2839 = vrot.slane %v2756, 6
      %v2840 = vsel %vm2806, %v2839, %v2838
      %v2841 = vrot.slane %v2757, 5
      %v2842 = vsel %vm2809, %v2841, %v2840
      %v2843 = vrot.slane %v2758, 4
      %v2844 = vsel %vm2812, %v2843, %v2842
      %v2845 = vrot.slane %v2759, 3
      %v2846 = vsel %vm2815, %v2845, %v2844
      %v2847 = vrot.slane %v2760, 2
      %v2848 = vsel %vm2818, %v2847, %v2846
      %v2849 = vrot.slane %v2761, 1
      %v2850 = vsel %vm2821, %v2849, %v2848
      %v2851 = vrot.slane %v2763, 7
      %v2852 = vsel %vm2803, %v2851, %v2762
      %v2853 = vrot.slane %v2764, 6
      %v2854 = vsel %vm2806, %v2853, %v2852
      %v2855 = vrot.slane %v2765, 5
      %v2856 = vsel %vm2809, %v2855, %v2854
      %v2857 = vrot.slane %v2766, 4
      %v2858 = vsel %vm2812, %v2857, %v2856
      %v2859 = vrot.slane %v2767, 3
      %v2860 = vsel %vm2815, %v2859, %v2858
      %v2861 = vrot.slane %v2768, 2
      %v2862 = vsel %vm2818, %v2861, %v2860
      %v2863 = vrot.slane %v2769, 1
      %v2864 = vsel %vm2821, %v2863, %v2862
      %v2865 = vrot.slane %v2771, 7
      %v2866 = vsel %vm2803, %v2865, %v2770
      %v2867 = vrot.slane %v2772, 6
      %v2868 = vsel %vm2806, %v2867, %v2866
      %v2869 = vrot.slane %v2773, 5
      %v2870 = vsel %vm2809, %v2869, %v2868
      %v2871 = vrot.slane %v2774, 4
      %v2872 = vsel %vm2812, %v2871, %v2870
      %v2873 = vrot.slane %v2775, 3
      %v2874 = vsel %vm2815, %v2873, %v2872
      %v2875 = vrot.slane %v2776, 2
      %v2876 = vsel %vm2818, %v2875, %v2874
      %v2877 = vrot.slane %v2777, 1
      %v2878 = vsel %vm2821, %v2877, %v2876
      %v2879 = vrot.slane %v2779, 7
      %v2880 = vsel %vm2803, %v2879, %v2778
      %v2881 = vrot.slane %v2780, 6
      %v2882 = vsel %vm2806, %v2881, %v2880
      %v2883 = vrot.slane %v2781, 5
      %v2884 = vsel %vm2809, %v2883, %v2882
      %v2885 = vrot.slane %v2782, 4
      %v2886 = vsel %vm2812, %v2885, %v2884
      %v2887 = vrot.slane %v2783, 3
      %v2888 = vsel %vm2815, %v2887, %v2886
      %v2889 = vrot.slane %v2784, 2
      %v2890 = vsel %vm2818, %v2889, %v2888
      %v2891 = vrot.slane %v2785, 1
      %v2892 = vsel %vm2821, %v2891, %v2890
      %v2893 = vrot.slane %v2787, 7
      %v2894 = vsel %vm2803, %v2893, %v2786
      %v2895 = vrot.slane %v2788, 6
      %v2896 = vsel %vm2806, %v2895, %v2894
      %v2897 = vrot.slane %v2789, 5
      %v2898 = vsel %vm2809, %v2897, %v2896
      %v2899 = vrot.slane %v2790, 4
      %v2900 = vsel %vm2812, %v2899, %v2898
      %v2901 = vrot.slane %v2791, 3
      %v2902 = vsel %vm2815, %v2901, %v2900
      %v2903 = vrot.slane %v2792, 2
      %v2904 = vsel %vm2818, %v2903, %v2902
      %v2905 = vrot.slane %v2793, 1
      %v2906 = vsel %vm2821, %v2905, %v2904
      %v2907 = vrot.slane %v2795, 7
      %v2908 = vsel %vm2803, %v2907, %v2794
      %v2909 = vrot.slane %v2796, 6
      %v2910 = vsel %vm2806, %v2909, %v2908
      %v2911 = vrot.slane %v2797, 5
      %v2912 = vsel %vm2809, %v2911, %v2910
      %v2913 = vrot.slane %v2798, 4
      %v2914 = vsel %vm2812, %v2913, %v2912
      %v2915 = vrot.slane %v2799, 3
      %v2916 = vsel %vm2815, %v2915, %v2914
      %v2917 = vrot.slane %v2800, 2
      %v2918 = vsel %vm2818, %v2917, %v2916
      %v2919 = vrot.slane %v2801, 1
      %v2920 = vsel %vm2821, %v2919, %v2918
      %v2921 = vpack.c.b16 %v2822, %v2822
      %v2922 = vpack.c.b16 %v2836, %v2836
      %v2923 = vpack.c.b16 %v2850, %v2850
      %v2924 = vpack.c.b16 %v2864, %v2864
      %v2925 = vpack.c.b16 %v2878, %v2878
      %v2926 = vpack.c.b16 %v2892, %v2892
      %v2927 = vpack.c.b16 %v2906, %v2906
      %v2928 = vpack.c.b16 %v2920, %v2920
      %v2930 = vshrl.u32 %v2921, 16
      %v2932 = vrot.slane %v2930, 7
      %v2933 = vshll.u32 %v2921, 16
      %v2935 = vor.u32 %v2932, %v2933
      %v2937 = vshrl.u32 %v2922, 16
      %v2939 = vrot.slane %v2937, 7
      %v2940 = vshll.u32 %v2922, 16
      %v2942 = vor.u32 %v2939, %v2940
      %v2944 = vshrl.u32 %v2923, 16
      %v2946 = vrot.slane %v2944, 7
      %v2947 = vshll.u32 %v2923, 16
      %v2949 = vor.u32 %v2946, %v2947
      %v2951 = vshrl.u32 %v2924, 16
      %v2953 = vrot.slane %v2951, 7
      %v2954 = vshll.u32 %v2924, 16
      %v2956 = vor.u32 %v2953, %v2954
      %v2958 = vshrl.u32 %v2925, 16
      %v2960 = vrot.slane %v2958, 7
      %v2961 = vshll.u32 %v2925, 16
      %v2963 = vor.u32 %v2960, %v2961
      %v2965 = vshrl.u32 %v2926, 16
      %v2967 = vrot.slane %v2965, 7
      %v2968 = vshll.u32 %v2926, 16
      %v2970 = vor.u32 %v2967, %v2968
      %v2972 = vshrl.u32 %v2927, 16
      %v2974 = vrot.slane %v2972, 7
      %v2975 = vshll.u32 %v2927, 16
      %v2977 = vor.u32 %v2974, %v2975
      %v2979 = vshrl.u32 %v2928, 16
      %v2981 = vrot.slane %v2979, 7
      %v2982 = vshll.u32 %v2928, 16
      %v2984 = vor.u32 %v2981, %v2982
      %v2993 = vsel %vm733, 0, %v2935
      %v2994 = vsel %vm733, 0, %v2942
      %v2995 = vsel %vm733, 0, %v2949
      %v2996 = vsel %vm733, 0, %v2956
      %v2997 = vsel %vm733, 0, %v2963
      %v2998 = vsel %vm733, 0, %v2970
      %v2999 = vsel %vm733, 0, %v2977
      %v3000 = vsel %vm733, 0, %v2984
      %v3001 = vrot.slane %v2933, 1
      %v3002 = vor.u32 %v2930, %v3001
      %v3003 = vrot.slane %v2940, 1
      %v3004 = vor.u32 %v2937, %v3003
      %v3005 = vrot.slane %v2947, 1
      %v3006 = vor.u32 %v2944, %v3005
      %v3007 = vrot.slane %v2954, 1
      %v3008 = vor.u32 %v2951, %v3007
      %v3009 = vrot.slane %v2961, 1
      %v3010 = vor.u32 %v2958, %v3009
      %v3011 = vrot.slane %v2968, 1
      %v3012 = vor.u32 %v2965, %v3011
      %v3013 = vrot.slane %v2975, 1
      %v3014 = vor.u32 %v2972, %v3013
      %v3015 = vrot.slane %v2982, 1
      %v3016 = vor.u32 %v2979, %v3015
      %vm3025 = vcmask 1043456
      %vm3026 = vsmask.f32 3328
      %vm3027 = vmand %vm3025, %vm3026
      %v3028 = vsel %vm3027, %v752, 0
      %v3029 = vsel %vm3027, %v3002, 0
      %v3030 = vsel %vm3027, %v3004, 0
      %v3031 = vsel %vm3027, %v3006, 0
      %v3032 = vsel %vm3027, %v3008, 0
      %v3033 = vsel %vm3027, %v3010, 0
      %v3034 = vsel %vm3027, %v3012, 0
      %v3035 = vsel %vm3027, %v3014, 0
      %v3036 = vsel %vm3027, %v3016, 0
      %v3038 = vunpack.c.l.b16 0
      %v3039 = vpack.c.b16 %v2822, %v3038
      %v3040 = vpack.c.b16 %v2850, %v2836
      %v3041 = vpack.c.b16 %v2878, %v2864
      %v3042 = vpack.c.b16 %v2906, %v2892
      %v3045 = vunpack.c.l.b16 %v2466
      %v3046 = vunpack.c.l.b16 %v2467
      %v3047 = vpack.c.b16 %v3046, %v3045
      %vm3049 = vcmask 130048
      %v3051 = vsel %vm3049, %v3039, 0
      %v3054 = vsel %vm3049, %v3040, 0
      %v3057 = vsel %vm3049, %v3041, 0
      %v3060 = vsel %vm3049, %v3042, 0
      %3062 = vmatpush.bf16.msra.mxu0 0
      %3063 = vmatpush.bf16.msra.mxu0 0
      %3064 = vmatpush.bf16.msra.mxu0 0
      %3065 = vmatpush.bf16.msra.mxu0 0
      %3066 = vmatpush.bf16.msra.mxu0 0
      %3067 = vmatpush.bf16.msra.mxu0 0
      %3068 = vmatpush.bf16.msra.mxu0 0
      %3069 = vmatpush.bf16.msra.mxu0 %v3047
      %3070 = vmatmul.bf16.gmra.mxu0 %v3051
      %v3071 = vpop.f32.mrf.mxu0
      %v3072 = vadd.f32 0.0, %v3071
      %v3073 = vpop.f32.mrf.mxu0
      %v3074 = vadd.f32 0.0, %v3073
      %3075 = vmatmul.bf16.gmra.mxu0 %v3054
      %v3076 = vpop.f32.mrf.mxu0
      %v3077 = vadd.f32 0.0, %v3076
      %v3078 = vpop.f32.mrf.mxu0
      %v3079 = vadd.f32 0.0, %v3078
      %3080 = vmatmul.bf16.gmra.mxu0 %v3057
      %v3081 = vpop.f32.mrf.mxu0
      %v3082 = vadd.f32 0.0, %v3081
      %v3083 = vpop.f32.mrf.mxu0
      %v3084 = vadd.f32 0.0, %v3083
      %3085 = vmatmul.bf16.gmra.mxu0 %v3060
      %v3086 = vpop.f32.mrf.mxu0
      %v3087 = vadd.f32 0.0, %v3086
      %v3088 = vpop.f32.mrf.mxu0
      %v3089 = vadd.f32 0.0, %v3088
      %3090 = vdwg.mxu0
      %v3099 = vunpack.c.l.b16 %v734
      %v3100 = vunpack.c.l.b16 %v2993
      %v3101 = vunpack.c.l.b16 %v2994
      %v3102 = vunpack.c.l.b16 %v2995
      %v3103 = vunpack.c.l.b16 %v2996
      %v3104 = vunpack.c.l.b16 %v2997
      %v3105 = vunpack.c.l.b16 %v2998
      %v3106 = vunpack.c.l.b16 %v2999
      %v3107 = vpack.c.b16 %v3100, %v3099
      %v3108 = vpack.c.b16 %v3102, %v3101
      %v3109 = vpack.c.b16 %v3104, %v3103
      %v3110 = vpack.c.b16 %v3106, %v3105
      %v3113 = vunpack.c.l.b16 %v2464
      %v3114 = vunpack.c.l.b16 %v2465
      %v3115 = vpack.c.b16 %v3114, %v3113
      %v3118 = vsel %vm3049, %v3107, 0
      %v3121 = vsel %vm3049, %v3108, 0
      %v3124 = vsel %vm3049, %v3109, 0
      %v3127 = vsel %vm3049, %v3110, 0
      %3129 = vmatpush.bf16.msra.mxu0 0
      %3130 = vmatpush.bf16.msra.mxu0 0
      %3131 = vmatpush.bf16.msra.mxu0 0
      %3132 = vmatpush.bf16.msra.mxu0 0
      %3133 = vmatpush.bf16.msra.mxu0 0
      %3134 = vmatpush.bf16.msra.mxu0 0
      %3135 = vmatpush.bf16.msra.mxu0 0
      %3136 = vmatpush.bf16.msra.mxu0 %v3115
      %3137 = vmatmul.bf16.gmra.mxu0 %v3118
      %v3138 = vpop.f32.mrf.mxu0
      %v3139 = vadd.f32 %v3072, %v3138
      %v3140 = vpop.f32.mrf.mxu0
      %v3141 = vadd.f32 %v3074, %v3140
      %3142 = vmatmul.bf16.gmra.mxu0 %v3121
      %v3143 = vpop.f32.mrf.mxu0
      %v3144 = vadd.f32 %v3077, %v3143
      %v3145 = vpop.f32.mrf.mxu0
      %v3146 = vadd.f32 %v3079, %v3145
      %3147 = vmatmul.bf16.gmra.mxu0 %v3124
      %v3148 = vpop.f32.mrf.mxu0
      %v3149 = vadd.f32 %v3082, %v3148
      %v3150 = vpop.f32.mrf.mxu0
      %v3151 = vadd.f32 %v3084, %v3150
      %3152 = vmatmul.bf16.gmra.mxu0 %v3127
      %v3153 = vpop.f32.mrf.mxu0
      %v3154 = vadd.f32 %v3087, %v3153
      %v3155 = vpop.f32.mrf.mxu0
      %v3156 = vadd.f32 %v3089, %v3155
      %3157 = vdwg.mxu0
      %v3166 = vunpack.c.l.b16 %v3028
      %v3167 = vunpack.c.l.b16 %v3029
      %v3168 = vunpack.c.l.b16 %v3030
      %v3169 = vunpack.c.l.b16 %v3031
      %v3170 = vunpack.c.l.b16 %v3032
      %v3171 = vunpack.c.l.b16 %v3033
      %v3172 = vunpack.c.l.b16 %v3034
      %v3173 = vunpack.c.l.b16 %v3035
      %v3174 = vpack.c.b16 %v3167, %v3166
      %v3175 = vpack.c.b16 %v3169, %v3168
      %v3176 = vpack.c.b16 %v3171, %v3170
      %v3177 = vpack.c.b16 %v3173, %v3172
      %v3180 = vunpack.c.l.b16 %v2468
      %v3181 = vunpack.c.l.b16 %v2469
      %v3182 = vpack.c.b16 %v3181, %v3180
      %v3185 = vsel %vm3049, %v3174, 0
      %v3188 = vsel %vm3049, %v3175, 0
      %v3191 = vsel %vm3049, %v3176, 0
      %v3194 = vsel %vm3049, %v3177, 0
      %3196 = vmatpush.bf16.msra.mxu0 0
      %3197 = vmatpush.bf16.msra.mxu0 0
      %3198 = vmatpush.bf16.msra.mxu0 0
      %3199 = vmatpush.bf16.msra.mxu0 0
      %3200 = vmatpush.bf16.msra.mxu0 0
      %3201 = vmatpush.bf16.msra.mxu0 0
      %3202 = vmatpush.bf16.msra.mxu0 0
      %3203 = vmatpush.bf16.msra.mxu0 %v3182
      %3204 = vmatmul.bf16.gmra.mxu0 %v3185
      %v3205 = vpop.f32.mrf.mxu0
      %v3206 = vadd.f32 0.0, %v3205
      %v3207 = vpop.f32.mrf.mxu0
      %v3208 = vadd.f32 0.0, %v3207
      %3209 = vmatmul.bf16.gmra.mxu0 %v3188
      %v3210 = vpop.f32.mrf.mxu0
      %v3211 = vadd.f32 0.0, %v3210
      %v3212 = vpop.f32.mrf.mxu0
      %v3213 = vadd.f32 0.0, %v3212
      %3214 = vmatmul.bf16.gmra.mxu0 %v3191
      %v3215 = vpop.f32.mrf.mxu0
      %v3216 = vadd.f32 0.0, %v3215
      %v3217 = vpop.f32.mrf.mxu0
      %v3218 = vadd.f32 0.0, %v3217
      %3219 = vmatmul.bf16.gmra.mxu0 %v3194
      %v3220 = vpop.f32.mrf.mxu0
      %v3221 = vadd.f32 0.0, %v3220
      %v3222 = vpop.f32.mrf.mxu0
      %v3223 = vadd.f32 0.0, %v3222
      %3224 = vdwg.mxu0
      %v3225 = vadd.f32 %v3139, %v3206
      %v3226 = vadd.f32 %v3141, %v3208
      %v3227 = vadd.f32 %v3144, %v3211
      %v3228 = vadd.f32 %v3146, %v3213
      %v3229 = vadd.f32 %v3149, %v3216
      %v3230 = vadd.f32 %v3151, %v3218
      %v3231 = vadd.f32 %v3154, %v3221
      %v3232 = vadd.f32 %v3156, %v3223
      %v3234 = vunpack.c.l.b16 %v3000
      %v3235 = vpack.c.b16 %v3101, %v3100
      %v3236 = vpack.c.b16 %v3103, %v3102
      %v3237 = vpack.c.b16 %v3105, %v3104
      %v3238 = vpack.c.b16 %v3234, %v3106
      %v3241 = vunpack.c.l.b16 %v2470
      %v3242 = vunpack.c.l.b16 %v2471
      %v3243 = vpack.c.b16 %v3242, %v3241
      %v3246 = vsel %vm3049, %v3235, 0
      %v3249 = vsel %vm3049, %v3236, 0
      %v3252 = vsel %vm3049, %v3237, 0
      %v3255 = vsel %vm3049, %v3238, 0
      %3257 = vmatpush.bf16.msra.mxu0 0
      %3258 = vmatpush.bf16.msra.mxu0 0
      %3259 = vmatpush.bf16.msra.mxu0 0
      %3260 = vmatpush.bf16.msra.mxu0 0
      %3261 = vmatpush.bf16.msra.mxu0 0
      %3262 = vmatpush.bf16.msra.mxu0 0
      %3263 = vmatpush.bf16.msra.mxu0 0
      %3264 = vmatpush.bf16.msra.mxu0 %v3243
      %3265 = vmatmul.bf16.gmra.mxu0 %v3246
      %v3266 = vpop.f32.mrf.mxu0
      %v3267 = vadd.f32 0.0, %v3266
      %v3268 = vpop.f32.mrf.mxu0
      %v3269 = vadd.f32 0.0, %v3268
      %3270 = vmatmul.bf16.gmra.mxu0 %v3249
      %v3271 = vpop.f32.mrf.mxu0
      %v3272 = vadd.f32 0.0, %v3271
      %v3273 = vpop.f32.mrf.mxu0
      %v3274 = vadd.f32 0.0, %v3273
      %3275 = vmatmul.bf16.gmra.mxu0 %v3252
      %v3276 = vpop.f32.mrf.mxu0
      %v3277 = vadd.f32 0.0, %v3276
      %v3278 = vpop.f32.mrf.mxu0
      %v3279 = vadd.f32 0.0, %v3278
      %3280 = vmatmul.bf16.gmra.mxu0 %v3255
      %v3281 = vpop.f32.mrf.mxu0
      %v3282 = vadd.f32 0.0, %v3281
      %v3283 = vpop.f32.mrf.mxu0
      %v3284 = vadd.f32 0.0, %v3283
      %3285 = vdwg.mxu0
      %v3286 = vadd.f32 %v3225, %v3267
      %v3287 = vadd.f32 %v3226, %v3269
      %v3288 = vadd.f32 %v3227, %v3272
      %v3289 = vadd.f32 %v3228, %v3274
      %v3290 = vadd.f32 %v3229, %v3277
      %v3291 = vadd.f32 %v3230, %v3279
      %v3292 = vadd.f32 %v3231, %v3282
      %v3293 = vadd.f32 %v3232, %v3284
      %v3294 = vpack.c.b16 %v2836, %v2822
      %v3295 = vpack.c.b16 %v2864, %v2850
      %v3296 = vpack.c.b16 %v2892, %v2878
      %v3297 = vpack.c.b16 %v2920, %v2906
      %v3300 = vunpack.c.l.b16 %v2472
      %v3301 = vunpack.c.l.b16 %v2473
      %v3302 = vpack.c.b16 %v3301, %v3300
      %v3305 = vsel %vm3049, %v3294, 0
      %v3308 = vsel %vm3049, %v3295, 0
      %v3311 = vsel %vm3049, %v3296, 0
      %v3314 = vsel %vm3049, %v3297, 0
      %3316 = vmatpush.bf16.msra.mxu0 0
      %3317 = vmatpush.bf16.msra.mxu0 0
      %3318 = vmatpush.bf16.msra.mxu0 0
      %3319 = vmatpush.bf16.msra.mxu0 0
      %3320 = vmatpush.bf16.msra.mxu0 0
      %3321 = vmatpush.bf16.msra.mxu0 0
      %3322 = vmatpush.bf16.msra.mxu0 0
      %3323 = vmatpush.bf16.msra.mxu0 %v3302
      %3324 = vmatmul.bf16.gmra.mxu0 %v3305
      %v3325 = vpop.f32.mrf.mxu0
      %v3326 = vadd.f32 0.0, %v3325
      %v3327 = vpop.f32.mrf.mxu0
      %v3328 = vadd.f32 0.0, %v3327
      %3329 = vmatmul.bf16.gmra.mxu0 %v3308
      %v3330 = vpop.f32.mrf.mxu0
      %v3331 = vadd.f32 0.0, %v3330
      %v3332 = vpop.f32.mrf.mxu0
      %v3333 = vadd.f32 0.0, %v3332
      %3334 = vmatmul.bf16.gmra.mxu0 %v3311
      %v3335 = vpop.f32.mrf.mxu0
      %v3336 = vadd.f32 0.0, %v3335
      %v3337 = vpop.f32.mrf.mxu0
      %v3338 = vadd.f32 0.0, %v3337
      %3339 = vmatmul.bf16.gmra.mxu0 %v3314
      %v3340 = vpop.f32.mrf.mxu0
      %v3341 = vadd.f32 0.0, %v3340
      %v3342 = vpop.f32.mrf.mxu0
      %v3343 = vadd.f32 0.0, %v3342
      %3344 = vdwg.mxu0
      %v3345 = vadd.f32 %v3286, %v3326
      %v3346 = vadd.f32 %v3287, %v3328
      %v3347 = vadd.f32 %v3288, %v3331
      %v3348 = vadd.f32 %v3289, %v3333
      %v3349 = vadd.f32 %v3290, %v3336
      %v3350 = vadd.f32 %v3291, %v3338
      %v3351 = vadd.f32 %v3292, %v3341
      %v3352 = vadd.f32 %v3293, %v3343
      %v3354 = vunpack.c.l.b16 %v3036
      %v3355 = vpack.c.b16 %v3168, %v3167
      %v3356 = vpack.c.b16 %v3170, %v3169
      %v3357 = vpack.c.b16 %v3172, %v3171
      %v3358 = vpack.c.b16 %v3354, %v3173
      %v3361 = vunpack.c.l.b16 %v2474
      %v3362 = vunpack.c.l.b16 %v2475
      %v3363 = vpack.c.b16 %v3362, %v3361
      %v3366 = vsel %vm3049, %v3355, 0
      %v3369 = vsel %vm3049, %v3356, 0
      %v3372 = vsel %vm3049, %v3357, 0
      %v3375 = vsel %vm3049, %v3358, 0
      %3377 = vmatpush.bf16.msra.mxu0 0
      %3378 = vmatpush.bf16.msra.mxu0 0
      %3379 = vmatpush.bf16.msra.mxu0 0
      %3380 = vmatpush.bf16.msra.mxu0 0
      %3381 = vmatpush.bf16.msra.mxu0 0
      %3382 = vmatpush.bf16.msra.mxu0 0
      %3383 = vmatpush.bf16.msra.mxu0 0
      %3384 = vmatpush.bf16.msra.mxu0 %v3363
      %3385 = vmatmul.bf16.gmra.mxu0 %v3366
      %v3386 = vpop.f32.mrf.mxu0
      %v3387 = vadd.f32 0.0, %v3386
      %v3388 = vpop.f32.mrf.mxu0
      %v3389 = vadd.f32 0.0, %v3388
      %3390 = vmatmul.bf16.gmra.mxu0 %v3369
      %v3391 = vpop.f32.mrf.mxu0
      %v3392 = vadd.f32 0.0, %v3391
      %v3393 = vpop.f32.mrf.mxu0
      %v3394 = vadd.f32 0.0, %v3393
      %3395 = vmatmul.bf16.gmra.mxu0 %v3372
      %v3396 = vpop.f32.mrf.mxu0
      %v3397 = vadd.f32 0.0, %v3396
      %v3398 = vpop.f32.mrf.mxu0
      %v3399 = vadd.f32 0.0, %v3398
      %3400 = vmatmul.bf16.gmra.mxu0 %v3375
      %v3401 = vpop.f32.mrf.mxu0
      %v3402 = vadd.f32 0.0, %v3401
      %v3403 = vpop.f32.mrf.mxu0
      %v3404 = vadd.f32 0.0, %v3403
      %3405 = vdwg.mxu0
      %v3406 = vadd.f32 %v3345, %v3387
      %v3407 = vadd.f32 %v3346, %v3389
      %v3408 = vadd.f32 %v3347, %v3392
      %v3409 = vadd.f32 %v3348, %v3394
      %v3410 = vadd.f32 %v3349, %v3397
      %v3411 = vadd.f32 %v3350, %v3399
      %v3412 = vadd.f32 %v3351, %v3402
      %v3413 = vadd.f32 %v3352, %v3404
      %v3414 = vpack.c.b16 %v3099, %v3234
      %v3417 = vunpack.c.l.b16 %v2476
      %v3418 = vunpack.c.l.b16 %v2477
      %v3419 = vpack.c.b16 %v3418, %v3417
      %v3422 = vsel %vm3049, %v3414, 0
      %3424 = vmatpush.bf16.msra.mxu0 0
      %3425 = vmatpush.bf16.msra.mxu0 0
      %3426 = vmatpush.bf16.msra.mxu0 0
      %3427 = vmatpush.bf16.msra.mxu0 0
      %3428 = vmatpush.bf16.msra.mxu0 0
      %3429 = vmatpush.bf16.msra.mxu0 0
      %3430 = vmatpush.bf16.msra.mxu0 0
      %3431 = vmatpush.bf16.msra.mxu0 %v3419
      %3432 = vmatmul.bf16.gmra.mxu0 %v3121
      %v3433 = vpop.f32.mrf.mxu0
      %v3434 = vadd.f32 0.0, %v3433
      %v3435 = vpop.f32.mrf.mxu0
      %v3436 = vadd.f32 0.0, %v3435
      %3437 = vmatmul.bf16.gmra.mxu0 %v3124
      %v3438 = vpop.f32.mrf.mxu0
      %v3439 = vadd.f32 0.0, %v3438
      %v3440 = vpop.f32.mrf.mxu0
      %v3441 = vadd.f32 0.0, %v3440
      %3442 = vmatmul.bf16.gmra.mxu0 %v3127
      %v3443 = vpop.f32.mrf.mxu0
      %v3444 = vadd.f32 0.0, %v3443
      %v3445 = vpop.f32.mrf.mxu0
      %v3446 = vadd.f32 0.0, %v3445
      %3447 = vmatmul.bf16.gmra.mxu0 %v3422
      %v3448 = vpop.f32.mrf.mxu0
      %v3449 = vadd.f32 0.0, %v3448
      %v3450 = vpop.f32.mrf.mxu0
      %v3451 = vadd.f32 0.0, %v3450
      %3452 = vdwg.mxu0
      %v3453 = vadd.f32 %v3406, %v3434
      %v3454 = vadd.f32 %v3407, %v3436
      %v3455 = vadd.f32 %v3408, %v3439
      %v3456 = vadd.f32 %v3409, %v3441
      %v3457 = vadd.f32 %v3410, %v3444
      %v3458 = vadd.f32 %v3411, %v3446
      %v3459 = vadd.f32 %v3412, %v3449
      %v3460 = vadd.f32 %v3413, %v3451
      %v3461 = vpack.c.b16 %v3038, %v2920
      %v3464 = vunpack.c.l.b16 %v2478
      %v3465 = vunpack.c.l.b16 %v2479
      %v3466 = vpack.c.b16 %v3465, %v3464
      %v3469 = vsel %vm3049, %v3461, 0
      %3471 = vmatpush.bf16.msra.mxu0 0
      %3472 = vmatpush.bf16.msra.mxu0 0
      %3473 = vmatpush.bf16.msra.mxu0 0
      %3474 = vmatpush.bf16.msra.mxu0 0
      %3475 = vmatpush.bf16.msra.mxu0 0
      %3476 = vmatpush.bf16.msra.mxu0 0
      %3477 = vmatpush.bf16.msra.mxu0 0
      %3478 = vmatpush.bf16.msra.mxu0 %v3466
      %3479 = vmatmul.bf16.gmra.mxu0 %v3054
      %v3480 = vpop.f32.mrf.mxu0
      %v3481 = vadd.f32 0.0, %v3480
      %v3482 = vpop.f32.mrf.mxu0
      %v3483 = vadd.f32 0.0, %v3482
      %3484 = vmatmul.bf16.gmra.mxu0 %v3057
      %v3485 = vpop.f32.mrf.mxu0
      %v3486 = vadd.f32 0.0, %v3485
      %v3487 = vpop.f32.mrf.mxu0
      %v3488 = vadd.f32 0.0, %v3487
      %3489 = vmatmul.bf16.gmra.mxu0 %v3060
      %v3490 = vpop.f32.mrf.mxu0
      %v3491 = vadd.f32 0.0, %v3490
      %v3492 = vpop.f32.mrf.mxu0
      %v3493 = vadd.f32 0.0, %v3492
      %3494 = vmatmul.bf16.gmra.mxu0 %v3469
      %v3495 = vpop.f32.mrf.mxu0
      %v3496 = vadd.f32 0.0, %v3495
      %v3497 = vpop.f32.mrf.mxu0
      %v3498 = vadd.f32 0.0, %v3497
      %3499 = vdwg.mxu0
      %v3500 = vadd.f32 %v3453, %v3481
      %v3501 = vadd.f32 %v3454, %v3483
      %v3502 = vadd.f32 %v3455, %v3486
      %v3503 = vadd.f32 %v3456, %v3488
      %v3504 = vadd.f32 %v3457, %v3491
      %v3505 = vadd.f32 %v3458, %v3493
      %v3506 = vadd.f32 %v3459, %v3496
      %v3507 = vadd.f32 %v3460, %v3498
      %v3508 = vpack.c.b16 %v3166, %v3354
      %v3511 = vunpack.c.l.b16 %v2480
      %v3512 = vunpack.c.l.b16 %v2481
      %v3513 = vpack.c.b16 %v3512, %v3511
      %v3516 = vsel %vm3049, %v3508, 0
      %3518 = vmatpush.bf16.msra.mxu0 0
      %3519 = vmatpush.bf16.msra.mxu0 0
      %3520 = vmatpush.bf16.msra.mxu0 0
      %3521 = vmatpush.bf16.msra.mxu0 0
      %3522 = vmatpush.bf16.msra.mxu0 0
      %3523 = vmatpush.bf16.msra.mxu0 0
      %3524 = vmatpush.bf16.msra.mxu0 0
      %3525 = vmatpush.bf16.msra.mxu0 %v3513
      %3526 = vmatmul.bf16.gmra.mxu0 %v3188
      %v3527 = vpop.f32.mrf.mxu0
      %v3528 = vadd.f32 0.0, %v3527
      %v3529 = vpop.f32.mrf.mxu0
      %v3530 = vadd.f32 0.0, %v3529
      %3531 = vmatmul.bf16.gmra.mxu0 %v3191
      %v3532 = vpop.f32.mrf.mxu0
      %v3533 = vadd.f32 0.0, %v3532
      %v3534 = vpop.f32.mrf.mxu0
      %v3535 = vadd.f32 0.0, %v3534
      %3536 = vmatmul.bf16.gmra.mxu0 %v3194
      %v3537 = vpop.f32.mrf.mxu0
      %v3538 = vadd.f32 0.0, %v3537
      %v3539 = vpop.f32.mrf.mxu0
      %v3540 = vadd.f32 0.0, %v3539
      %3541 = vmatmul.bf16.gmra.mxu0 %v3516
      %v3542 = vpop.f32.mrf.mxu0
      %v3543 = vadd.f32 0.0, %v3542
      %v3544 = vpop.f32.mrf.mxu0
      %v3545 = vadd.f32 0.0, %v3544
      %3546 = vdwg.mxu0
      %v3547 = vadd.f32 %v3500, %v3528
      %v3548 = vadd.f32 %v3501, %v3530
      %v3549 = vadd.f32 %v3502, %v3533
      %v3550 = vadd.f32 %v3503, %v3535
      %v3551 = vadd.f32 %v3504, %v3538
      %v3552 = vadd.f32 %v3505, %v3540
      %v3553 = vadd.f32 %v3506, %v3543
      %v3554 = vadd.f32 %v3507, %v3545
      %v3555 = vld [vmem:[%s4] sm:$0x1]
      %v3557 = vperm.slane %v3555, 0
      %v3559 = vadd.f32 %v3547, %v3557
      %v3560 = vadd.f32 %v3548, %v3557
      %v3561 = vadd.f32 %v3549, %v3557
      %v3562 = vadd.f32 %v3550, %v3557
      %v3563 = vadd.f32 %v3551, %v3557
      %v3564 = vadd.f32 %v3552, %v3557
      %v3565 = vadd.f32 %v3553, %v3557
      %v3566 = vadd.f32 %v3554, %v3557
      %v3567 = vmax.f32 %v3559, 0.0
      %v3568 = vmax.f32 %v3560, 0.0
      %v3569 = vmax.f32 %v3561, 0.0
      %v3570 = vmax.f32 %v3562, 0.0
      %v3571 = vmax.f32 %v3563, 0.0
      %v3572 = vmax.f32 %v3564, 0.0
      %v3573 = vmax.f32 %v3565, 0.0
      %v3574 = vmax.f32 %v3566, 0.0
      %v3575 = vmax.f32 %v3567, %v3568
      %v3576 = vmax.f32 %v3569, %v3570
      %v3577 = vmax.f32 %v3571, %v3572
      %v3578 = vmax.f32 %v3573, %v3574
      %v3583 = vrot.slane %v3575, 2
      %v3584 = vrot.slane %v3575, 4
      %v3585 = vrot.slane %v3575, 6
      %v3586 = vrot.slane %v3576, 2
      %v3587 = vrot.slane %v3576, 4
      %v3588 = vrot.slane %v3576, 6
      %v3589 = vrot.slane %v3577, 2
      %v3590 = vrot.slane %v3577, 4
      %v3591 = vrot.slane %v3577, 6
      %v3592 = vrot.slane %v3578, 2
      %v3593 = vrot.slane %v3578, 4
      %v3594 = vrot.slane %v3578, 6
      %v3607 = vrot.slane %v3575, 7
      %v3608 = vrot.slane %v3607, 2
      %v3609 = vrot.slane %v3583, 7
      %v3610 = vrot.slane %v3609, 2
      %v3611 = vrot.slane %v3584, 7
      %v3612 = vrot.slane %v3611, 2
      %v3613 = vrot.slane %v3585, 7
      %v3614 = vrot.slane %v3613, 2
      %v3615 = vrot.slane %v3576, 7
      %v3616 = vrot.slane %v3615, 2
      %v3617 = vrot.slane %v3586, 7
      %v3618 = vrot.slane %v3617, 2
      %v3619 = vrot.slane %v3587, 7
      %v3620 = vrot.slane %v3619, 2
      %v3621 = vrot.slane %v3588, 7
      %v3622 = vrot.slane %v3621, 2
      %v3623 = vrot.slane %v3577, 7
      %v3624 = vrot.slane %v3623, 2
      %v3625 = vrot.slane %v3589, 7
      %v3626 = vrot.slane %v3625, 2
      %v3627 = vrot.slane %v3590, 7
      %v3628 = vrot.slane %v3627, 2
      %v3629 = vrot.slane %v3591, 7
      %v3630 = vrot.slane %v3629, 2
      %v3631 = vrot.slane %v3578, 7
      %v3632 = vrot.slane %v3631, 2
      %v3633 = vrot.slane %v3592, 7
      %v3634 = vrot.slane %v3633, 2
      %v3635 = vrot.slane %v3593, 7
      %v3636 = vrot.slane %v3635, 2
      %v3637 = vrot.slane %v3594, 7
      %v3638 = vrot.slane %v3637, 2
      %v3655 = vmax.f32 %v3575, %v3608
      %v3656 = vmax.f32 %v3583, %v3610
      %v3657 = vmax.f32 %v3584, %v3612
      %v3658 = vmax.f32 %v3585, %v3614
      %v3659 = vmax.f32 %v3576, %v3616
      %v3660 = vmax.f32 %v3586, %v3618
      %v3661 = vmax.f32 %v3587, %v3620
      %v3662 = vmax.f32 %v3588, %v3622
      %v3663 = vmax.f32 %v3577, %v3624
      %v3664 = vmax.f32 %v3589, %v3626
      %v3665 = vmax.f32 %v3590, %v3628
      %v3666 = vmax.f32 %v3591, %v3630
      %v3667 = vmax.f32 %v3578, %v3632
      %v3668 = vmax.f32 %v3592, %v3634
      %v3669 = vmax.f32 %v3593, %v3636
      %v3670 = vmax.f32 %v3594, %v3638
      %v3671 = vld [vmem:[%s5] sm:$0xf]
      %v3672 = vld [vmem:[%s5 + $0x4] sm:$0xf]
      %v3673 = vld [vmem:[%s5 + $0x8] sm:$0xf]
      %v3674 = vld [vmem:[%s5 + $0xc] sm:$0xf]
      %v3675 = vld [vmem:[%s5 + $0x10] sm:$0xf]
      %v3676 = vld [vmem:[%s5 + $0x14] sm:$0xf]
      %v3677 = vld [vmem:[%s5 + $0x18] sm:$0xf]
      %v3678 = vld [vmem:[%s5 + $0x1c] sm:$0xf]
      %v3679 = vld [vmem:[%s5 + $0x20] sm:$0xf]
      %v3680 = vld [vmem:[%s5 + $0x24] sm:$0xf]
      %v3681 = vld [vmem:[%s5 + $0x28] sm:$0xf]
      %v3682 = vld [vmem:[%s5 + $0x2c] sm:$0xf]
      %v3683 = vld [vmem:[%s5 + $0x30] sm:$0xf]
      %v3684 = vld [vmem:[%s5 + $0x34] sm:$0xf]
      %v3685 = vld [vmem:[%s5 + $0x38] sm:$0xf]
      %v3686 = vld [vmem:[%s5 + $0x3c] sm:$0xf]
      %v3687 = vld [vmem:[%s5 + $0x40] sm:$0xf]
      %v3688 = vld [vmem:[%s5 + $0x44] sm:$0xf]
      %v3689 = vld [vmem:[%s5 + $0x48] sm:$0xf]
      %v3690 = vld [vmem:[%s5 + $0x4c] sm:$0xf]
      %v3691 = vld [vmem:[%s5 + $0x50] sm:$0xf]
      %v3692 = vld [vmem:[%s5 + $0x54] sm:$0xf]
      %v3693 = vld [vmem:[%s5 + $0x58] sm:$0xf]
      %v3694 = vld [vmem:[%s5 + $0x5c] sm:$0xf]
      %v3695 = vld [vmem:[%s5 + $0x60] sm:$0xf]
      %v3696 = vld [vmem:[%s5 + $0x64] sm:$0xf]
      %v3697 = vld [vmem:[%s5 + $0x68] sm:$0xf]
      %v3698 = vld [vmem:[%s5 + $0x6c] sm:$0xf]
      %v3699 = vld [vmem:[%s5 + $0x70] sm:$0xf]
      %v3700 = vld [vmem:[%s5 + $0x74] sm:$0xf]
      %v3701 = vld [vmem:[%s5 + $0x78] sm:$0xf]
      %v3702 = vld [vmem:[%s5 + $0x7c] sm:$0xf]
      %v3703 = vld [vmem:[%s5 + $0x80] sm:$0xf]
      %v3704 = vld [vmem:[%s5 + $0x84] sm:$0xf]
      %v3705 = vld [vmem:[%s5 + $0x88] sm:$0xf]
      %v3706 = vld [vmem:[%s5 + $0x8c] sm:$0xf]
      %v3707 = vpack.c.bf16 %v3655, %v3655
      %v3708 = vpack.c.bf16 %v3656, %v3656
      %v3709 = vpack.c.bf16 %v3657, %v3657
      %v3710 = vpack.c.bf16 %v3658, %v3658
      %v3711 = vpack.c.bf16 %v3659, %v3659
      %v3712 = vpack.c.bf16 %v3660, %v3660
      %v3713 = vpack.c.bf16 %v3661, %v3661
      %v3714 = vpack.c.bf16 %v3662, %v3662
      %v3715 = vpack.c.bf16 %v3663, %v3663
      %v3716 = vpack.c.bf16 %v3664, %v3664
      %v3717 = vpack.c.bf16 %v3665, %v3665
      %v3718 = vpack.c.bf16 %v3666, %v3666
      %v3719 = vpack.c.bf16 %v3667, %v3667
      %v3720 = vpack.c.bf16 %v3668, %v3668
      %v3721 = vpack.c.bf16 %v3669, %v3669
      %v3722 = vpack.c.bf16 %v3670, %v3670
      %v3739 = vunpack.c.l.b16 %v3707
      %v3740 = vunpack.c.l.b16 %v3708
      %v3741 = vunpack.c.l.b16 %v3709
      %v3742 = vunpack.c.l.b16 %v3710
      %v3743 = vunpack.c.l.b16 %v3711
      %v3744 = vunpack.c.l.b16 %v3712
      %v3745 = vunpack.c.l.b16 %v3713
      %v3746 = vunpack.c.l.b16 %v3714
      %v3747 = vunpack.c.l.b16 %v3715
      %v3748 = vunpack.c.l.b16 %v3716
      %v3749 = vunpack.c.l.b16 %v3717
      %v3750 = vunpack.c.l.b16 %v3718
      %v3751 = vunpack.c.l.b16 %v3719
      %v3752 = vunpack.c.l.b16 %v3720
      %v3753 = vunpack.c.l.b16 %v3721
      %v3754 = vunpack.c.l.b16 %v3722
      %v3755 = vpack.c.b16 %v3739, %v3739
      %v3756 = vpack.c.b16 %v3740, %v3740
      %v3757 = vpack.c.b16 %v3741, %v3741
      %v3758 = vpack.c.b16 %v3742, %v3742
      %v3759 = vpack.c.b16 %v3743, %v3743
      %v3760 = vpack.c.b16 %v3744, %v3744
      %v3761 = vpack.c.b16 %v3745, %v3745
      %v3762 = vpack.c.b16 %v3746, %v3746
      %v3763 = vpack.c.b16 %v3747, %v3747
      %v3764 = vpack.c.b16 %v3748, %v3748
      %v3765 = vpack.c.b16 %v3749, %v3749
      %v3766 = vpack.c.b16 %v3750, %v3750
      %v3767 = vpack.c.b16 %v3751, %v3751
      %v3768 = vpack.c.b16 %v3752, %v3752
      %v3769 = vpack.c.b16 %v3753, %v3753
      %v3770 = vpack.c.b16 %v3754, %v3754
      %v3771 = vunpack.c.l.b16 %v3755
      %v3772 = vunpack.c.l.b16 %v3756
      %v3773 = vunpack.c.l.b16 %v3757
      %v3774 = vunpack.c.l.b16 %v3758
      %v3775 = vunpack.c.l.b16 %v3759
      %v3776 = vunpack.c.l.b16 %v3760
      %v3777 = vunpack.c.l.b16 %v3761
      %v3778 = vunpack.c.l.b16 %v3762
      %v3779 = vunpack.c.l.b16 %v3763
      %v3780 = vunpack.c.l.b16 %v3764
      %v3781 = vunpack.c.l.b16 %v3765
      %v3782 = vunpack.c.l.b16 %v3766
      %v3783 = vunpack.c.l.b16 %v3767
      %v3784 = vunpack.c.l.b16 %v3768
      %v3785 = vunpack.c.l.b16 %v3769
      %v3786 = vunpack.c.l.b16 %v3770
      %v3787 = vrot.slane %v3772, 7
      %v3788 = vsel %vm2803, %v3787, %v3771
      %v3789 = vrot.slane %v3773, 6
      %v3790 = vsel %vm2806, %v3789, %v3788
      %v3791 = vrot.slane %v3774, 5
      %v3792 = vsel %vm2809, %v3791, %v3790
      %v3793 = vrot.slane %v3776, 7
      %v3794 = vsel %vm2803, %v3793, %v3775
      %v3795 = vrot.slane %v3777, 6
      %v3796 = vsel %vm2806, %v3795, %v3794
      %v3797 = vrot.slane %v3778, 5
      %v3798 = vsel %vm2809, %v3797, %v3796
      %v3799 = vrot.slane %v3780, 7
      %v3800 = vsel %vm2803, %v3799, %v3779
      %v3801 = vrot.slane %v3781, 6
      %v3802 = vsel %vm2806, %v3801, %v3800
      %v3803 = vrot.slane %v3782, 5
      %v3804 = vsel %vm2809, %v3803, %v3802
      %v3805 = vrot.slane %v3784, 7
      %v3806 = vsel %vm2803, %v3805, %v3783
      %v3807 = vrot.slane %v3785, 6
      %v3808 = vsel %vm2806, %v3807, %v3806
      %v3809 = vrot.slane %v3786, 5
      %v3810 = vsel %vm2809, %v3809, %v3808
      %v3811 = vpack.c.b16 %v3792, %v3792
      %v3812 = vpack.c.b16 %v3798, %v3798
      %v3813 = vpack.c.b16 %v3804, %v3804
      %v3814 = vpack.c.b16 %v3810, %v3810
      %v3816 = vshrl.u32 %v3811, 16
      %v3818 = vrot.slane %v3816, 7
      %v3819 = vshll.u32 %v3811, 16
      %v3821 = vor.u32 %v3818, %v3819
      %v3823 = vshrl.u32 %v3812, 16
      %v3825 = vrot.slane %v3823, 7
      %v3826 = vshll.u32 %v3812, 16
      %v3828 = vor.u32 %v3825, %v3826
      %v3830 = vshrl.u32 %v3813, 16
      %v3832 = vrot.slane %v3830, 7
      %v3833 = vshll.u32 %v3813, 16
      %v3835 = vor.u32 %v3832, %v3833
      %v3837 = vshrl.u32 %v3814, 16
      %v3839 = vrot.slane %v3837, 7
      %v3840 = vshll.u32 %v3814, 16
      %v3842 = vor.u32 %v3839, %v3840
      %v3847 = vsel %vm733, 0, %v3821
      %v3848 = vsel %vm733, 0, %v3828
      %v3849 = vsel %vm733, 0, %v3835
      %v3850 = vsel %vm733, 0, %v3842
      %v3851 = vrot.slane %v3819, 1
      %v3852 = vor.u32 %v3816, %v3851
      %v3853 = vrot.slane %v3826, 1
      %v3854 = vor.u32 %v3823, %v3853
      %v3855 = vrot.slane %v3833, 1
      %v3856 = vor.u32 %v3830, %v3855
      %v3857 = vrot.slane %v3840, 1
      %v3858 = vor.u32 %v3837, %v3857
      %vm3863 = vcmask 1041408
      %vm3864 = vsmask.f32 1280
      %vm3865 = vmand %vm3863, %vm3864
      %v3866 = vsel %vm3865, %v752, 0
      %v3867 = vsel %vm3865, %v3852, 0
      %v3868 = vsel %vm3865, %v3854, 0
      %v3869 = vsel %vm3865, %v3856, 0
      %v3870 = vsel %vm3865, %v3858, 0
      %3871 = vst [vmem:[#allocation1] ss:$4 sm:$0xff] 0
      %s3872 = scalar_lea.vmem [#allocation1], 1
      %3873 = vst [vmem:[%s3872] ss:$4 sm:$0xff] %v3811
      %s3874 = scalar_lea.vmem [#allocation1], 2
      %3875 = vst [vmem:[%s3874] ss:$4 sm:$0xff] %v3812
      %s3876 = scalar_lea.vmem [#allocation1], 3
      %3877 = vst [vmem:[%s3876] ss:$4 sm:$0xff] %v3813
      %v3878 = vld.sshfl [vmem:[#allocation1] sm:$0xff pattern:$0x73625140]
      %v3883 = vunpack.c.l.b16 %v3675
      %v3884 = vunpack.c.l.b16 %v3676
      %v3885 = vunpack.c.l.b16 %v3677
      %v3886 = vunpack.c.l.b16 %v3678
      %v3887 = vpack.c.b16 %v3884, %v3883
      %v3888 = vpack.c.b16 %v3886, %v3885
      %vm3891 = vcmask 261120
      %v3892 = vsel %vm3891, %v3878, 0
      %3894 = vmatpush.bf16.msra.mxu0 0
      %3895 = vmatpush.bf16.msra.mxu0 0
      %3896 = vmatpush.bf16.msra.mxu0 0
      %3897 = vmatpush.bf16.msra.mxu0 0
      %3898 = vmatpush.bf16.msra.mxu0 0
      %3899 = vmatpush.bf16.msra.mxu0 0
      %3900 = vmatpush.bf16.msra.mxu0 %v3888
      %3901 = vmatpush.bf16.msra.mxu0 %v3887
      %3902 = vmatmul.bf16.gmra.mxu0 %v3892
      %v3903 = vpop.f32.mrf.mxu0
      %v3904 = vadd.f32 0.0, %v3903
      %v3905 = vpop.f32.mrf.mxu0
      %v3906 = vadd.f32 0.0, %v3905
      %3907 = vdwg.mxu0
      %3908 = vst [vmem:[#allocation1] ss:$4 sm:$0xff] %v734
      %s3910 = scalar_lea.vmem [#allocation1], 1
      %3911 = vst [vmem:[%s3910] ss:$4 sm:$0xff] %v3847
      %s3913 = scalar_lea.vmem [#allocation1], 2
      %3914 = vst [vmem:[%s3913] ss:$4 sm:$0xff] %v3848
      %s3916 = scalar_lea.vmem [#allocation1], 3
      %3917 = vst [vmem:[%s3916] ss:$4 sm:$0xff] %v3849
      %v3918 = vld.sshfl [vmem:[#allocation1] sm:$0xff pattern:$0x73625140]
      %v3923 = vunpack.c.l.b16 %v3671
      %v3924 = vunpack.c.l.b16 %v3672
      %v3925 = vunpack.c.l.b16 %v3673
      %v3926 = vunpack.c.l.b16 %v3674
      %v3927 = vpack.c.b16 %v3924, %v3923
      %v3928 = vpack.c.b16 %v3926, %v3925
      %v3931 = vsel %vm3891, %v3918, 0
      %3933 = vmatpush.bf16.msra.mxu0 0
      %3934 = vmatpush.bf16.msra.mxu0 0
      %3935 = vmatpush.bf16.msra.mxu0 0
      %3936 = vmatpush.bf16.msra.mxu0 0
      %3937 = vmatpush.bf16.msra.mxu0 0
      %3938 = vmatpush.bf16.msra.mxu0 0
      %3939 = vmatpush.bf16.msra.mxu0 %v3928
      %3940 = vmatpush.bf16.msra.mxu0 %v3927
      %3941 = vmatmul.bf16.gmra.mxu0 %v3931
      %v3942 = vpop.f32.mrf.mxu0
      %v3943 = vadd.f32 %v3904, %v3942
      %v3944 = vpop.f32.mrf.mxu0
      %v3945 = vadd.f32 %v3906, %v3944
      %3946 = vdwg.mxu0
      %3948 = vst [vmem:[#allocation1] ss:$4 sm:$0xff] %v3866
      %s3950 = scalar_lea.vmem [#allocation1], 1
      %3951 = vst [vmem:[%s3950] ss:$4 sm:$0xff] %v3867
      %s3953 = scalar_lea.vmem [#allocation1], 2
      %3954 = vst [vmem:[%s3953] ss:$4 sm:$0xff] %v3868
      %s3956 = scalar_lea.vmem [#allocation1], 3
      %3957 = vst [vmem:[%s3956] ss:$4 sm:$0xff] %v3869
      %v3958 = vld.sshfl [vmem:[#allocation1] sm:$0xff pattern:$0x73625140]
      %v3963 = vunpack.c.l.b16 %v3679
      %v3964 = vunpack.c.l.b16 %v3680
      %v3965 = vunpack.c.l.b16 %v3681
      %v3966 = vunpack.c.l.b16 %v3682
      %v3967 = vpack.c.b16 %v3964, %v3963
      %v3968 = vpack.c.b16 %v3966, %v3965
      %v3971 = vsel %vm3891, %v3958, 0
      %3973 = vmatpush.bf16.msra.mxu0 0
      %3974 = vmatpush.bf16.msra.mxu0 0
      %3975 = vmatpush.bf16.msra.mxu0 0
      %3976 = vmatpush.bf16.msra.mxu0 0
      %3977 = vmatpush.bf16.msra.mxu0 0
      %3978 = vmatpush.bf16.msra.mxu0 0
      %3979 = vmatpush.bf16.msra.mxu0 %v3968
      %3980 = vmatpush.bf16.msra.mxu0 %v3967
      %3981 = vmatmul.bf16.gmra.mxu0 %v3971
      %v3982 = vpop.f32.mrf.mxu0
      %v3983 = vadd.f32 0.0, %v3982
      %v3984 = vpop.f32.mrf.mxu0
      %v3985 = vadd.f32 0.0, %v3984
      %3986 = vdwg.mxu0
      %v3987 = vadd.f32 %v3943, %v3983
      %v3988 = vadd.f32 %v3945, %v3985
      %3989 = vst [vmem:[#allocation1] ss:$4 sm:$0xff] %v3847
      %s3990 = scalar_lea.vmem [#allocation1], 1
      %3991 = vst [vmem:[%s3990] ss:$4 sm:$0xff] %v3848
      %s3992 = scalar_lea.vmem [#allocation1], 2
      %3993 = vst [vmem:[%s3992] ss:$4 sm:$0xff] %v3849
      %s3995 = scalar_lea.vmem [#allocation1], 3
      %3996 = vst [vmem:[%s3995] ss:$4 sm:$0xff] %v3850
      %v3997 = vld.sshfl [vmem:[#allocation1] sm:$0xff pattern:$0x73625140]
      %v4002 = vunpack.c.l.b16 %v3683
      %v4003 = vunpack.c.l.b16 %v3684
      %v4004 = vunpack.c.l.b16 %v3685
      %v4005 = vunpack.c.l.b16 %v3686
      %v4006 = vpack.c.b16 %v4003, %v4002
      %v4007 = vpack.c.b16 %v4005, %v4004
      %v4010 = vsel %vm3891, %v3997, 0
      %4012 = vmatpush.bf16.msra.mxu0 0
      %4013 = vmatpush.bf16.msra.mxu0 0
      %4014 = vmatpush.bf16.msra.mxu0 0
      %4015 = vmatpush.bf16.msra.mxu0 0
      %4016 = vmatpush.bf16.msra.mxu0 0
      %4017 = vmatpush.bf16.msra.mxu0 0
      %4018 = vmatpush.bf16.msra.mxu0 %v4007
      %4019 = vmatpush.bf16.msra.mxu0 %v4006
      %4020 = vmatmul.bf16.gmra.mxu0 %v4010
      %v4021 = vpop.f32.mrf.mxu0
      %v4022 = vadd.f32 0.0, %v4021
      %v4023 = vpop.f32.mrf.mxu0
      %v4024 = vadd.f32 0.0, %v4023
      %4025 = vdwg.mxu0
      %v4026 = vadd.f32 %v3987, %v4022
      %v4027 = vadd.f32 %v3988, %v4024
      %4028 = vst [vmem:[#allocation1] ss:$4 sm:$0xff] %v3811
      %s4029 = scalar_lea.vmem [#allocation1], 1
      %4030 = vst [vmem:[%s4029] ss:$4 sm:$0xff] %v3812
      %s4031 = scalar_lea.vmem [#allocation1], 2
      %4032 = vst [vmem:[%s4031] ss:$4 sm:$0xff] %v3813
      %s4033 = scalar_lea.vmem [#allocation1], 3
      %4034 = vst [vmem:[%s4033] ss:$4 sm:$0xff] %v3814
      %v4035 = vld.sshfl [vmem:[#allocation1] sm:$0xff pattern:$0x73625140]
      %v4040 = vunpack.c.l.b16 %v3687
      %v4041 = vunpack.c.l.b16 %v3688
      %v4042 = vunpack.c.l.b16 %v3689
      %v4043 = vunpack.c.l.b16 %v3690
      %v4044 = vpack.c.b16 %v4041, %v4040
      %v4045 = vpack.c.b16 %v4043, %v4042
      %v4048 = vsel %vm3891, %v4035, 0
      %4050 = vmatpush.bf16.msra.mxu0 0
      %4051 = vmatpush.bf16.msra.mxu0 0
      %4052 = vmatpush.bf16.msra.mxu0 0
      %4053 = vmatpush.bf16.msra.mxu0 0
      %4054 = vmatpush.bf16.msra.mxu0 0
      %4055 = vmatpush.bf16.msra.mxu0 0
      %4056 = vmatpush.bf16.msra.mxu0 %v4045
      %4057 = vmatpush.bf16.msra.mxu0 %v4044
      %4058 = vmatmul.bf16.gmra.mxu0 %v4048
      %v4059 = vpop.f32.mrf.mxu0
      %v4060 = vadd.f32 0.0, %v4059
      %v4061 = vpop.f32.mrf.mxu0
      %v4062 = vadd.f32 0.0, %v4061
      %4063 = vdwg.mxu0
      %v4064 = vadd.f32 %v4026, %v4060
      %v4065 = vadd.f32 %v4027, %v4062
      %4066 = vst [vmem:[#allocation1] ss:$4 sm:$0xff] %v3867
      %s4067 = scalar_lea.vmem [#allocation1], 1
      %4068 = vst [vmem:[%s4067] ss:$4 sm:$0xff] %v3868
      %s4069 = scalar_lea.vmem [#allocation1], 2
      %4070 = vst [vmem:[%s4069] ss:$4 sm:$0xff] %v3869
      %s4072 = scalar_lea.vmem [#allocation1], 3
      %4073 = vst [vmem:[%s4072] ss:$4 sm:$0xff] %v3870
      %v4074 = vld.sshfl [vmem:[#allocation1] sm:$0xff pattern:$0x73625140]
      %v4079 = vunpack.c.l.b16 %v3691
      %v4080 = vunpack.c.l.b16 %v3692
      %v4081 = vunpack.c.l.b16 %v3693
      %v4082 = vunpack.c.l.b16 %v3694
      %v4083 = vpack.c.b16 %v4080, %v4079
      %v4084 = vpack.c.b16 %v4082, %v4081
      %v4087 = vsel %vm3891, %v4074, 0
      %4089 = vmatpush.bf16.msra.mxu0 0
      %4090 = vmatpush.bf16.msra.mxu0 0
      %4091 = vmatpush.bf16.msra.mxu0 0
      %4092 = vmatpush.bf16.msra.mxu0 0
      %4093 = vmatpush.bf16.msra.mxu0 0
      %4094 = vmatpush.bf16.msra.mxu0 0
      %4095 = vmatpush.bf16.msra.mxu0 %v4084
      %4096 = vmatpush.bf16.msra.mxu0 %v4083
      %4097 = vmatmul.bf16.gmra.mxu0 %v4087
      %v4098 = vpop.f32.mrf.mxu0
      %v4099 = vadd.f32 0.0, %v4098
      %v4100 = vpop.f32.mrf.mxu0
      %v4101 = vadd.f32 0.0, %v4100
      %4102 = vdwg.mxu0
      %v4103 = vadd.f32 %v4064, %v4099
      %v4104 = vadd.f32 %v4065, %v4101
      %4105 = vst [vmem:[#allocation1] ss:$4 sm:$0xff] %v3848
      %s4106 = scalar_lea.vmem [#allocation1], 1
      %4107 = vst [vmem:[%s4106] ss:$4 sm:$0xff] %v3849
      %s4108 = scalar_lea.vmem [#allocation1], 2
      %4109 = vst [vmem:[%s4108] ss:$4 sm:$0xff] %v3850
      %s4110 = scalar_lea.vmem [#allocation1], 3
      %4111 = vst [vmem:[%s4110] ss:$4 sm:$0xff] %v734
      %v4112 = vld.sshfl [vmem:[#allocation1] sm:$0xff pattern:$0x73625140]
      %v4117 = vunpack.c.l.b16 %v3695
      %v4118 = vunpack.c.l.b16 %v3696
      %v4119 = vunpack.c.l.b16 %v3697
      %v4120 = vunpack.c.l.b16 %v3698
      %v4121 = vpack.c.b16 %v4118, %v4117
      %v4122 = vpack.c.b16 %v4120, %v4119
      %v4125 = vsel %vm3891, %v4112, 0
      %4127 = vmatpush.bf16.msra.mxu0 0
      %4128 = vmatpush.bf16.msra.mxu0 0
      %4129 = vmatpush.bf16.msra.mxu0 0
      %4130 = vmatpush.bf16.msra.mxu0 0
      %4131 = vmatpush.bf16.msra.mxu0 0
      %4132 = vmatpush.bf16.msra.mxu0 0
      %4133 = vmatpush.bf16.msra.mxu0 %v4122
      %4134 = vmatpush.bf16.msra.mxu0 %v4121
      %4135 = vmatmul.bf16.gmra.mxu0 %v4125
      %v4136 = vpop.f32.mrf.mxu0
      %v4137 = vadd.f32 0.0, %v4136
      %v4138 = vpop.f32.mrf.mxu0
      %v4139 = vadd.f32 0.0, %v4138
      %4140 = vdwg.mxu0
      %v4141 = vadd.f32 %v4103, %v4137
      %v4142 = vadd.f32 %v4104, %v4139
      %4143 = vst [vmem:[#allocation1] ss:$4 sm:$0xff] %v3812
      %s4144 = scalar_lea.vmem [#allocation1], 1
      %4145 = vst [vmem:[%s4144] ss:$4 sm:$0xff] %v3813
      %s4146 = scalar_lea.vmem [#allocation1], 2
      %4147 = vst [vmem:[%s4146] ss:$4 sm:$0xff] %v3814
      %s4148 = scalar_lea.vmem [#allocation1], 3
      %4149 = vst [vmem:[%s4148] ss:$4 sm:$0xff] 0
      %v4150 = vld.sshfl [vmem:[#allocation1] sm:$0xff pattern:$0x73625140]
      %v4155 = vunpack.c.l.b16 %v3699
      %v4156 = vunpack.c.l.b16 %v3700
      %v4157 = vunpack.c.l.b16 %v3701
      %v4158 = vunpack.c.l.b16 %v3702
      %v4159 = vpack.c.b16 %v4156, %v4155
      %v4160 = vpack.c.b16 %v4158, %v4157
      %v4163 = vsel %vm3891, %v4150, 0
      %4165 = vmatpush.bf16.msra.mxu0 0
      %4166 = vmatpush.bf16.msra.mxu0 0
      %4167 = vmatpush.bf16.msra.mxu0 0
      %4168 = vmatpush.bf16.msra.mxu0 0
      %4169 = vmatpush.bf16.msra.mxu0 0
      %4170 = vmatpush.bf16.msra.mxu0 0
      %4171 = vmatpush.bf16.msra.mxu0 %v4160
      %4172 = vmatpush.bf16.msra.mxu0 %v4159
      %4173 = vmatmul.bf16.gmra.mxu0 %v4163
      %v4174 = vpop.f32.mrf.mxu0
      %v4175 = vadd.f32 0.0, %v4174
      %v4176 = vpop.f32.mrf.mxu0
      %v4177 = vadd.f32 0.0, %v4176
      %4178 = vdwg.mxu0
      %v4179 = vadd.f32 %v4141, %v4175
      %v4180 = vadd.f32 %v4142, %v4177
      %4181 = vst [vmem:[#allocation1] ss:$4 sm:$0xff] %v3868
      %s4182 = scalar_lea.vmem [#allocation1], 1
      %4183 = vst [vmem:[%s4182] ss:$4 sm:$0xff] %v3869
      %s4184 = scalar_lea.vmem [#allocation1], 2
      %4185 = vst [vmem:[%s4184] ss:$4 sm:$0xff] %v3870
      %s4186 = scalar_lea.vmem [#allocation1], 3
      %4187 = vst [vmem:[%s4186] ss:$4 sm:$0xff] %v3866
      %v4188 = vld.sshfl [vmem:[#allocation1] sm:$0xff pattern:$0x73625140]
      %v4193 = vunpack.c.l.b16 %v3703
      %v4194 = vunpack.c.l.b16 %v3704
      %v4195 = vunpack.c.l.b16 %v3705
      %v4196 = vunpack.c.l.b16 %v3706
      %v4197 = vpack.c.b16 %v4194, %v4193
      %v4198 = vpack.c.b16 %v4196, %v4195
      %v4201 = vsel %vm3891, %v4188, 0
      %4203 = vmatpush.bf16.msra.mxu0 0
      %4204 = vmatpush.bf16.msra.mxu0 0
      %4205 = vmatpush.bf16.msra.mxu0 0
      %4206 = vmatpush.bf16.msra.mxu0 0
      %4207 = vmatpush.bf16.msra.mxu0 0
      %4208 = vmatpush.bf16.msra.mxu0 0
      %4209 = vmatpush.bf16.msra.mxu0 %v4198
      %4210 = vmatpush.bf16.msra.mxu0 %v4197
      %4211 = vmatmul.bf16.gmra.mxu0 %v4201
      %v4212 = vpop.f32.mrf.mxu0
      %v4213 = vadd.f32 0.0, %v4212
      %v4214 = vpop.f32.mrf.mxu0
      %v4215 = vadd.f32 0.0, %v4214
      %4216 = vdwg.mxu0
      %v4217 = vadd.f32 %v4179, %v4213
      %v4218 = vadd.f32 %v4180, %v4215
      %v4219 = vld [vmem:[%s6] sm:$0x1]
      %v4221 = vperm.slane %v4219, 0
      %v4223 = vadd.f32 %v4217, %v4221
      %v4224 = vadd.f32 %v4218, %v4221
      %v4225 = vmax.f32 %v4223, 0.0
      %v4226 = vmax.f32 %v4224, 0.0
      %v4229 = vrot.slane %v4225, 4
      %v4230 = vrot.slane %v4226, 4
      %v4233 = vmul.f32 %v4225, 0.75
      %v4234 = vmul.f32 %v4229, 0.75
      %v4235 = vmul.f32 %v4226, 0.75
      %v4236 = vmul.f32 %v4230, 0.75
      %v4237 = vmul.f32 %v4225, 0.25
      %v4238 = vmul.f32 %v4229, 0.25
      %v4239 = vmul.f32 %v4226, 0.25
      %v4240 = vadd.f32 %v4233, %v4237
      %v4241 = vadd.f32 %v4234, %v4237
      %v4242 = vadd.f32 %v4235, %v4238
      %v4243 = vadd.f32 %v4236, %v4239
      %v4244 = vmul.f32 %v4230, 0.25
      %v4245 = vadd.f32 %v4233, %v4238
      %v4246 = vadd.f32 %v4234, %v4239
      %v4247 = vadd.f32 %v4235, %v4244
      %v4248 = vadd.f32 %v4236, %v4244
      %4257 = vst [vmem:[#allocation1] ss:$2 sm:$0xff] %v4240
      %v4258 = vld.sshfl [vmem:[#allocation1] sm:$0xff pattern:$0x75316420]
      %s4259 = scalar_lea.vmem [#allocation1], 16
      %4260 = vst [vmem:[%s4259] ss:$2 sm:$0xff] %v4245
      %v4261 = vld.sshfl [vmem:[#allocation1 + $0x10] sm:$0xff pattern:$0x75316420]
      %s4262 = scalar_lea.vmem [#allocation1], 32
      %4263 = vst [vmem:[%s4262] ss:$2 sm:$0xff] %v4241
      %v4264 = vld.sshfl [vmem:[#allocation1 + $0x20] sm:$0xff pattern:$0x75316420]
      %s4265 = scalar_lea.vmem [#allocation1], 48
      %4266 = vst [vmem:[%s4265] ss:$2 sm:$0xff] %v4246
      %v4267 = vld.sshfl [vmem:[#allocation1 + $0x30] sm:$0xff pattern:$0x75316420]
      %4268 = vst [vmem:[#allocation1] ss:$2 sm:$0xff] %v4242
      %v4269 = vld.sshfl [vmem:[#allocation1] sm:$0xff pattern:$0x75316420]
      %4270 = vst [vmem:[%s4259] ss:$2 sm:$0xff] %v4247
      %v4271 = vld.sshfl [vmem:[#allocation1 + $0x10] sm:$0xff pattern:$0x75316420]
      %4272 = vst [vmem:[%s4262] ss:$2 sm:$0xff] %v4243
      %v4273 = vld.sshfl [vmem:[#allocation1 + $0x20] sm:$0xff pattern:$0x75316420]
      %4274 = vst [vmem:[%s4265] ss:$2 sm:$0xff] %v4248
      %v4275 = vld.sshfl [vmem:[#allocation1 + $0x30] sm:$0xff pattern:$0x75316420]
      %v4276 = vrot.slane %v4258, 7
      %v4277 = vrot.slane %v4261, 7
      %v4278 = vrot.slane %v4264, 7
      %v4279 = vrot.slane %v4267, 7
      %v4280 = vrot.slane %v4269, 7
      %v4281 = vrot.slane %v4271, 7
      %v4282 = vrot.slane %v4273, 7
      %v4283 = vrot.slane %v4275, 7
      %vm4292 = vcmask 1040384
      %v4293 = vsel %vm4292, %v4240, %v4276
      %v4294 = vsel %vm4292, %v4245, %v4277
      %v4295 = vsel %vm4292, %v4241, %v4278
      %v4296 = vsel %vm4292, %v4246, %v4279
      %v4297 = vsel %vm4292, %v4242, %v4280
      %v4298 = vsel %vm4292, %v4247, %v4281
      %v4299 = vsel %vm4292, %v4243, %v4282
      %v4300 = vsel %vm4292, %v4248, %v4283
      %4301 = vst [vmem:[#allocation1] ss:$2 sm:$0xff] %v4240
      %v4302 = vld.sshfl [vmem:[#allocation1] sm:$0xff pattern:$0x75316420]
      %s4303 = scalar_lea.vmem [#allocation1], 16
      %4304 = vst [vmem:[%s4303] ss:$2 sm:$0xff] %v4245
      %v4305 = vld.sshfl [vmem:[#allocation1 + $0x10] sm:$0xff pattern:$0x75316420]
      %s4306 = scalar_lea.vmem [#allocation1], 32
      %4307 = vst [vmem:[%s4306] ss:$2 sm:$0xff] %v4241
      %v4308 = vld.sshfl [vmem:[#allocation1 + $0x20] sm:$0xff pattern:$0x75316420]
      %s4309 = scalar_lea.vmem [#allocation1], 48
      %4310 = vst [vmem:[%s4309] ss:$2 sm:$0xff] %v4246
      %v4311 = vld.sshfl [vmem:[#allocation1 + $0x30] sm:$0xff pattern:$0x75316420]
      %4312 = vst [vmem:[#allocation1] ss:$2 sm:$0xff] %v4242
      %v4313 = vld.sshfl [vmem:[#allocation1] sm:$0xff pattern:$0x75316420]
      %4314 = vst [vmem:[%s4303] ss:$2 sm:$0xff] %v4247
      %v4315 = vld.sshfl [vmem:[#allocation1 + $0x10] sm:$0xff pattern:$0x75316420]
      %4316 = vst [vmem:[%s4306] ss:$2 sm:$0xff] %v4243
      %v4317 = vld.sshfl [vmem:[#allocation1 + $0x20] sm:$0xff pattern:$0x75316420]
      %4318 = vst [vmem:[%s4309] ss:$2 sm:$0xff] %v4248
      %v4319 = vld.sshfl [vmem:[#allocation1 + $0x30] sm:$0xff pattern:$0x75316420]
      %v4320 = vrot.slane %v4302, 1
      %v4321 = vrot.slane %v4305, 1
      %v4322 = vrot.slane %v4308, 1
      %v4323 = vrot.slane %v4311, 1
      %v4324 = vrot.slane %v4313, 1
      %v4325 = vrot.slane %v4315, 1
      %v4326 = vrot.slane %v4317, 1
      %v4327 = vrot.slane %v4319, 1
      %v4336 = vsel %vm855, %v4320, %v4240
      %v4337 = vsel %vm855, %v4321, %v4245
      %v4338 = vsel %vm855, %v4322, %v4241
      %v4339 = vsel %vm855, %v4323, %v4246
      %v4340 = vsel %vm855, %v4324, %v4242
      %v4341 = vsel %vm855, %v4325, %v4247
      %v4342 = vsel %vm855, %v4326, %v4243
      %v4343 = vsel %vm855, %v4327, %v4248
      %v4344 = vmul.f32 %v4240, 0.75
      %v4345 = vmul.f32 %v4245, 0.75
      %v4346 = vmul.f32 %v4241, 0.75
      %v4347 = vmul.f32 %v4246, 0.75
      %v4348 = vmul.f32 %v4242, 0.75
      %v4349 = vmul.f32 %v4247, 0.75
      %v4350 = vmul.f32 %v4243, 0.75
      %v4351 = vmul.f32 %v4248, 0.75
      %v4352 = vmul.f32 %v4293, 0.25
      %v4353 = vmul.f32 %v4294, 0.25
      %v4354 = vmul.f32 %v4295, 0.25
      %v4355 = vmul.f32 %v4296, 0.25
      %v4356 = vmul.f32 %v4297, 0.25
      %v4357 = vmul.f32 %v4298, 0.25
      %v4358 = vmul.f32 %v4299, 0.25
      %v4359 = vmul.f32 %v4300, 0.25
      %v4360 = vadd.f32 %v4344, %v4352
      %v4361 = vadd.f32 %v4345, %v4353
      %v4362 = vadd.f32 %v4346, %v4354
      %v4363 = vadd.f32 %v4347, %v4355
      %v4364 = vadd.f32 %v4348, %v4356
      %v4365 = vadd.f32 %v4349, %v4357
      %v4366 = vadd.f32 %v4350, %v4358
      %v4367 = vadd.f32 %v4351, %v4359
      %v4368 = vmul.f32 %v4336, 0.25
      %v4369 = vmul.f32 %v4337, 0.25
      %v4370 = vmul.f32 %v4338, 0.25
      %v4371 = vmul.f32 %v4339, 0.25
      %v4372 = vmul.f32 %v4340, 0.25
      %v4373 = vmul.f32 %v4341, 0.25
      %v4374 = vmul.f32 %v4342, 0.25
      %v4375 = vmul.f32 %v4343, 0.25
      %v4376 = vadd.f32 %v4344, %v4368
      %v4377 = vadd.f32 %v4345, %v4369
      %v4378 = vadd.f32 %v4346, %v4370
      %v4379 = vadd.f32 %v4347, %v4371
      %v4380 = vadd.f32 %v4348, %v4372
      %v4381 = vadd.f32 %v4349, %v4373
      %v4382 = vadd.f32 %v4350, %v4374
      %v4383 = vadd.f32 %v4351, %v4375
      %v4392 = vrot.slane %v4360, 3
      %v4393 = vrot.slane %v4361, 3
      %v4394 = vrot.slane %v4362, 3
      %v4395 = vrot.slane %v4363, 3
      %v4396 = vrot.slane %v4364, 3
      %v4397 = vrot.slane %v4365, 3
      %v4398 = vrot.slane %v4366, 3
      %v4399 = vrot.slane %v4367, 3
      %v4400 = vsel %vm4292, %v4360, %v4392
      %v4401 = vsel %vm2803, %v4360, %v4392
      %v4402 = vrot.slane %v4401, 1
      %v4403 = vsel %vm2806, %v4360, %v4392
      %v4404 = vrot.slane %v4403, 2
      %v4405 = vsel %vm2809, %v4360, %v4392
      %v4406 = vrot.slane %v4405, 3
      %v4407 = vsel %vm4292, %v4361, %v4393
      %v4408 = vsel %vm2803, %v4361, %v4393
      %v4409 = vrot.slane %v4408, 1
      %v4410 = vsel %vm2806, %v4361, %v4393
      %v4411 = vrot.slane %v4410, 2
      %v4412 = vsel %vm2809, %v4361, %v4393
      %v4413 = vrot.slane %v4412, 3
      %v4414 = vsel %vm4292, %v4362, %v4394
      %v4415 = vsel %vm2803, %v4362, %v4394
      %v4416 = vrot.slane %v4415, 1
      %v4417 = vsel %vm2806, %v4362, %v4394
      %v4418 = vrot.slane %v4417, 2
      %v4419 = vsel %vm2809, %v4362, %v4394
      %v4420 = vrot.slane %v4419, 3
      %v4421 = vsel %vm4292, %v4363, %v4395
      %v4422 = vsel %vm2803, %v4363, %v4395
      %v4423 = vrot.slane %v4422, 1
      %v4424 = vsel %vm2806, %v4363, %v4395
      %v4425 = vrot.slane %v4424, 2
      %v4426 = vsel %vm2809, %v4363, %v4395
      %v4427 = vrot.slane %v4426, 3
      %v4428 = vsel %vm4292, %v4364, %v4396
      %v4429 = vsel %vm2803, %v4364, %v4396
      %v4430 = vrot.slane %v4429, 1
      %v4431 = vsel %vm2806, %v4364, %v4396
      %v4432 = vrot.slane %v4431, 2
      %v4433 = vsel %vm2809, %v4364, %v4396
      %v4434 = vrot.slane %v4433, 3
      %v4435 = vsel %vm4292, %v4365, %v4397
      %v4436 = vsel %vm2803, %v4365, %v4397
      %v4437 = vrot.slane %v4436, 1
      %v4438 = vsel %vm2806, %v4365, %v4397
      %v4439 = vrot.slane %v4438, 2
      %v4440 = vsel %vm2809, %v4365, %v4397
      %v4441 = vrot.slane %v4440, 3
      %v4442 = vsel %vm4292, %v4366, %v4398
      %v4443 = vsel %vm2803, %v4366, %v4398
      %v4444 = vrot.slane %v4443, 1
      %v4445 = vsel %vm2806, %v4366, %v4398
      %v4446 = vrot.slane %v4445, 2
      %v4447 = vsel %vm2809, %v4366, %v4398
      %v4448 = vrot.slane %v4447, 3
      %v4449 = vsel %vm4292, %v4367, %v4399
      %v4450 = vsel %vm2803, %v4367, %v4399
      %v4451 = vrot.slane %v4450, 1
      %v4452 = vsel %vm2806, %v4367, %v4399
      %v4453 = vrot.slane %v4452, 2
      %v4454 = vsel %vm2809, %v4367, %v4399
      %v4455 = vrot.slane %v4454, 3
      %v4496 = vrot.slane %v4376, 3
      %v4497 = vrot.slane %v4377, 3
      %v4498 = vrot.slane %v4378, 3
      %v4499 = vrot.slane %v4379, 3
      %v4500 = vrot.slane %v4380, 3
      %v4501 = vrot.slane %v4381, 3
      %v4502 = vrot.slane %v4382, 3
      %v4503 = vrot.slane %v4383, 3
      %v4504 = vsel %vm4292, %v4376, %v4496
      %v4505 = vsel %vm2803, %v4376, %v4496
      %v4506 = vrot.slane %v4505, 1
      %v4507 = vsel %vm2806, %v4376, %v4496
      %v4508 = vrot.slane %v4507, 2
      %v4509 = vsel %vm2809, %v4376, %v4496
      %v4510 = vrot.slane %v4509, 3
      %v4511 = vsel %vm4292, %v4377, %v4497
      %v4512 = vsel %vm2803, %v4377, %v4497
      %v4513 = vrot.slane %v4512, 1
      %v4514 = vsel %vm2806, %v4377, %v4497
      %v4515 = vrot.slane %v4514, 2
      %v4516 = vsel %vm2809, %v4377, %v4497
      %v4517 = vrot.slane %v4516, 3
      %v4518 = vsel %vm4292, %v4378, %v4498
      %v4519 = vsel %vm2803, %v4378, %v4498
      %v4520 = vrot.slane %v4519, 1
      %v4521 = vsel %vm2806, %v4378, %v4498
      %v4522 = vrot.slane %v4521, 2
      %v4523 = vsel %vm2809, %v4378, %v4498
      %v4524 = vrot.slane %v4523, 3
      %v4525 = vsel %vm4292, %v4379, %v4499
      %v4526 = vsel %vm2803, %v4379, %v4499
      %v4527 = vrot.slane %v4526, 1
      %v4528 = vsel %vm2806, %v4379, %v4499
      %v4529 = vrot.slane %v4528, 2
      %v4530 = vsel %vm2809, %v4379, %v4499
      %v4531 = vrot.slane %v4530, 3
      %v4532 = vsel %vm4292, %v4380, %v4500
      %v4533 = vsel %vm2803, %v4380, %v4500
      %v4534 = vrot.slane %v4533, 1
      %v4535 = vsel %vm2806, %v4380, %v4500
      %v4536 = vrot.slane %v4535, 2
      %v4537 = vsel %vm2809, %v4380, %v4500
      %v4538 = vrot.slane %v4537, 3
      %v4539 = vsel %vm4292, %v4381, %v4501
      %v4540 = vsel %vm2803, %v4381, %v4501
      %v4541 = vrot.slane %v4540, 1
      %v4542 = vsel %vm2806, %v4381, %v4501
      %v4543 = vrot.slane %v4542, 2
      %v4544 = vsel %vm2809, %v4381, %v4501
      %v4545 = vrot.slane %v4544, 3
      %v4546 = vsel %vm4292, %v4382, %v4502
      %v4547 = vsel %vm2803, %v4382, %v4502
      %v4548 = vrot.slane %v4547, 1
      %v4549 = vsel %vm2806, %v4382, %v4502
      %v4550 = vrot.slane %v4549, 2
      %v4551 = vsel %vm2809, %v4382, %v4502
      %v4552 = vrot.slane %v4551, 3
      %v4553 = vsel %vm4292, %v4383, %v4503
      %v4554 = vsel %vm2803, %v4383, %v4503
      %v4555 = vrot.slane %v4554, 1
      %v4556 = vsel %vm2806, %v4383, %v4503
      %v4557 = vrot.slane %v4556, 2
      %v4558 = vsel %vm2809, %v4383, %v4503
      %v4559 = vrot.slane %v4558, 3
      %v4560 = vperm.slane %v4504, 0
      %v4561 = vperm.slane %v4506, 0
      %v4562 = vperm.slane %v4508, 0
      %v4563 = vperm.slane %v4510, 0
      %v4564 = vperm.slane %v4511, 0
      %v4565 = vperm.slane %v4513, 0
      %v4566 = vperm.slane %v4515, 0
      %v4567 = vperm.slane %v4517, 0
      %v4568 = vperm.slane %v4518, 0
      %v4569 = vperm.slane %v4520, 0
      %v4570 = vperm.slane %v4522, 0
      %v4571 = vperm.slane %v4524, 0
      %v4572 = vperm.slane %v4525, 0
      %v4573 = vperm.slane %v4527, 0
      %v4574 = vperm.slane %v4529, 0
      %v4575 = vperm.slane %v4531, 0
      %v4576 = vperm.slane %v4532, 0
      %v4577 = vperm.slane %v4534, 0
      %v4578 = vperm.slane %v4536, 0
      %v4579 = vperm.slane %v4538, 0
      %v4580 = vperm.slane %v4539, 0
      %v4581 = vperm.slane %v4541, 0
      %v4582 = vperm.slane %v4543, 0
      %v4583 = vperm.slane %v4545, 0
      %v4584 = vperm.slane %v4546, 0
      %v4585 = vperm.slane %v4548, 0
      %v4586 = vperm.slane %v4550, 0
      %v4587 = vperm.slane %v4552, 0
      %v4588 = vperm.slane %v4553, 0
      %v4589 = vperm.slane %v4555, 0
      %v4590 = vperm.slane %v4557, 0
      %v4591 = vperm.slane %v4559, 0
      %v4624 = vsel %vm4292, %v4400, %v4560
      %v4625 = vsel %vm4292, %v4402, %v4561
      %v4626 = vsel %vm4292, %v4404, %v4562
      %v4627 = vsel %vm4292, %v4406, %v4563
      %v4628 = vsel %vm4292, %v4407, %v4564
      %v4629 = vsel %vm4292, %v4409, %v4565
      %v4630 = vsel %vm4292, %v4411, %v4566
      %v4631 = vsel %vm4292, %v4413, %v4567
      %v4632 = vsel %vm4292, %v4414, %v4568
      %v4633 = vsel %vm4292, %v4416, %v4569
      %v4634 = vsel %vm4292, %v4418, %v4570
      %v4635 = vsel %vm4292, %v4420, %v4571
      %v4636 = vsel %vm4292, %v4421, %v4572
      %v4637 = vsel %vm4292, %v4423, %v4573
      %v4638 = vsel %vm4292, %v4425, %v4574
      %v4639 = vsel %vm4292, %v4427, %v4575
      %v4640 = vsel %vm4292, %v4428, %v4576
      %v4641 = vsel %vm4292, %v4430, %v4577
      %v4642 = vsel %vm4292, %v4432, %v4578
      %v4643 = vsel %vm4292, %v4434, %v4579
      %v4644 = vsel %vm4292, %v4435, %v4580
      %v4645 = vsel %vm4292, %v4437, %v4581
      %v4646 = vsel %vm4292, %v4439, %v4582
      %v4647 = vsel %vm4292, %v4441, %v4583
      %v4648 = vsel %vm4292, %v4442, %v4584
      %v4649 = vsel %vm4292, %v4444, %v4585
      %v4650 = vsel %vm4292, %v4446, %v4586
      %v4651 = vsel %vm4292, %v4448, %v4587
      %v4652 = vsel %vm4292, %v4449, %v4588
      %v4653 = vsel %vm4292, %v4451, %v4589
      %v4654 = vsel %vm4292, %v4453, %v4590
      %v4655 = vsel %vm4292, %v4455, %v4591
      %v4656 = vld [vmem:[%s7] sm:$0xf]
      %v4657 = vld [vmem:[%s7 + $0x4] sm:$0xf]
      %v4658 = vld [vmem:[%s7 + $0x8] sm:$0xf]
      %v4659 = vld [vmem:[%s7 + $0xc] sm:$0xf]
      %v4660 = vld [vmem:[%s7 + $0x10] sm:$0xf]
      %v4661 = vld [vmem:[%s7 + $0x14] sm:$0xf]
      %v4662 = vld [vmem:[%s7 + $0x18] sm:$0xf]
      %v4663 = vld [vmem:[%s7 + $0x1c] sm:$0xf]
      %v4664 = vld [vmem:[%s7 + $0x20] sm:$0xf]
      %v4665 = vld [vmem:[%s7 + $0x24] sm:$0xf]
      %v4666 = vld [vmem:[%s7 + $0x28] sm:$0xf]
      %v4667 = vld [vmem:[%s7 + $0x2c] sm:$0xf]
      %v4668 = vld [vmem:[%s7 + $0x30] sm:$0xf]
      %v4669 = vld [vmem:[%s7 + $0x34] sm:$0xf]
      %v4670 = vld [vmem:[%s7 + $0x38] sm:$0xf]
      %v4671 = vld [vmem:[%s7 + $0x3c] sm:$0xf]
      %v4672 = vld [vmem:[%s7 + $0x40] sm:$0xf]
      %v4673 = vld [vmem:[%s7 + $0x44] sm:$0xf]
      %v4674 = vld [vmem:[%s7 + $0x48] sm:$0xf]
      %v4675 = vld [vmem:[%s7 + $0x4c] sm:$0xf]
      %v4676 = vld [vmem:[%s7 + $0x50] sm:$0xf]
      %v4677 = vld [vmem:[%s7 + $0x54] sm:$0xf]
      %v4678 = vld [vmem:[%s7 + $0x58] sm:$0xf]
      %v4679 = vld [vmem:[%s7 + $0x5c] sm:$0xf]
      %v4680 = vld [vmem:[%s7 + $0x60] sm:$0xf]
      %v4681 = vld [vmem:[%s7 + $0x64] sm:$0xf]
      %v4682 = vld [vmem:[%s7 + $0x68] sm:$0xf]
      %v4683 = vld [vmem:[%s7 + $0x6c] sm:$0xf]
      %v4684 = vld [vmem:[%s7 + $0x70] sm:$0xf]
      %v4685 = vld [vmem:[%s7 + $0x74] sm:$0xf]
      %v4686 = vld [vmem:[%s7 + $0x78] sm:$0xf]
      %v4687 = vld [vmem:[%s7 + $0x7c] sm:$0xf]
      %v4688 = vld [vmem:[%s7 + $0x80] sm:$0xf]
      %v4689 = vld [vmem:[%s7 + $0x84] sm:$0xf]
      %v4690 = vld [vmem:[%s7 + $0x88] sm:$0xf]
      %v4691 = vld [vmem:[%s7 + $0x8c] sm:$0xf]
      %v4692 = vld [vmem:[%s7 + $0x90] sm:$0xf]
      %v4693 = vld [vmem:[%s7 + $0x94] sm:$0xf]
      %v4694 = vld [vmem:[%s7 + $0x98] sm:$0xf]
      %v4695 = vld [vmem:[%s7 + $0x9c] sm:$0xf]
      %v4696 = vld [vmem:[%s7 + $0xa0] sm:$0xf]
      %v4697 = vld [vmem:[%s7 + $0xa4] sm:$0xf]
      %v4698 = vld [vmem:[%s7 + $0xa8] sm:$0xf]
      %v4699 = vld [vmem:[%s7 + $0xac] sm:$0xf]
      %v4700 = vld [vmem:[%s7 + $0xb0] sm:$0xf]
      %v4701 = vld [vmem:[%s7 + $0xb4] sm:$0xf]
      %v4702 = vld [vmem:[%s7 + $0xb8] sm:$0xf]
      %v4703 = vld [vmem:[%s7 + $0xbc] sm:$0xf]
      %v4704 = vld [vmem:[%s7 + $0xc0] sm:$0xf]
      %v4705 = vld [vmem:[%s7 + $0xc4] sm:$0xf]
      %v4706 = vld [vmem:[%s7 + $0xc8] sm:$0xf]
      %v4707 = vld [vmem:[%s7 + $0xcc] sm:$0xf]
      %v4708 = vld [vmem:[%s7 + $0xd0] sm:$0xf]
      %v4709 = vld [vmem:[%s7 + $0xd4] sm:$0xf]
      %v4710 = vld [vmem:[%s7 + $0xd8] sm:$0xf]
      %v4711 = vld [vmem:[%s7 + $0xdc] sm:$0xf]
      %v4712 = vld [vmem:[%s7 + $0xe0] sm:$0xf]
      %v4713 = vld [vmem:[%s7 + $0xe4] sm:$0xf]
      %v4714 = vld [vmem:[%s7 + $0xe8] sm:$0xf]
      %v4715 = vld [vmem:[%s7 + $0xec] sm:$0xf]
      %v4716 = vld [vmem:[%s7 + $0xf0] sm:$0xf]
      %v4717 = vld [vmem:[%s7 + $0xf4] sm:$0xf]
      %v4718 = vld [vmem:[%s7 + $0xf8] sm:$0xf]
      %v4719 = vld [vmem:[%s7 + $0xfc] sm:$0xf]
      %v4720 = vld [vmem:[%s7 + $0x100] sm:$0xf]
      %v4721 = vld [vmem:[%s7 + $0x104] sm:$0xf]
      %v4722 = vld [vmem:[%s7 + $0x108] sm:$0xf]
      %v4723 = vld [vmem:[%s7 + $0x10c] sm:$0xf]
      %v4724 = vld [vmem:[%s7 + $0x110] sm:$0xf]
      %v4725 = vld [vmem:[%s7 + $0x114] sm:$0xf]
      %v4726 = vld [vmem:[%s7 + $0x118] sm:$0xf]
      %v4727 = vld [vmem:[%s7 + $0x11c] sm:$0xf]
      %4760 = vst [vmem:[#allocation1] ss:$4 sm:$0xff] %v4624
      %s4761 = scalar_lea.vmem [#allocation1], 1
      %4762 = vst [vmem:[%s4761] ss:$4 sm:$0xff] %v4625
      %s4763 = scalar_lea.vmem [#allocation1], 2
      %4764 = vst [vmem:[%s4763] ss:$4 sm:$0xff] %v4626
      %s4765 = scalar_lea.vmem [#allocation1], 3
      %4766 = vst [vmem:[%s4765] ss:$4 sm:$0xff] %v4627
      %v4767 = vld.sshfl [vmem:[#allocation1] sm:$0xff pattern:$0x73625140]
      %s4768 = scalar_lea.vmem [#allocation1], 32
      %4769 = vst [vmem:[%s4768] ss:$4 sm:$0xff] %v4628
      %s4770 = scalar_lea.vmem [#allocation1], 33
      %4771 = vst [vmem:[%s4770] ss:$4 sm:$0xff] %v4629
      %s4772 = scalar_lea.vmem [#allocation1], 34
      %4773 = vst [vmem:[%s4772] ss:$4 sm:$0xff] %v4630
      %s4774 = scalar_lea.vmem [#allocation1], 35
      %4775 = vst [vmem:[%s4774] ss:$4 sm:$0xff] %v4631
      %v4776 = vld.sshfl [vmem:[#allocation1 + $0x20] sm:$0xff pattern:$0x73625140]
      %4777 = vst [vmem:[#allocation1] ss:$4 sm:$0xff] %v4632
      %4778 = vst [vmem:[%s4761] ss:$4 sm:$0xff] %v4633
      %4779 = vst [vmem:[%s4763] ss:$4 sm:$0xff] %v4634
      %4780 = vst [vmem:[%s4765] ss:$4 sm:$0xff] %v4635
      %v4781 = vld.sshfl [vmem:[#allocation1] sm:$0xff pattern:$0x73625140]
      %4782 = vst [vmem:[%s4768] ss:$4 sm:$0xff] %v4636
      %4783 = vst [vmem:[%s4770] ss:$4 sm:$0xff] %v4637
      %4784 = vst [vmem:[%s4772] ss:$4 sm:$0xff] %v4638
      %4785 = vst [vmem:[%s4774] ss:$4 sm:$0xff] %v4639
      %v4786 = vld.sshfl [vmem:[#allocation1 + $0x20] sm:$0xff pattern:$0x73625140]
      %4787 = vst [vmem:[#allocation1] ss:$4 sm:$0xff] %v4640
      %4788 = vst [vmem:[%s4761] ss:$4 sm:$0xff] %v4641
      %4789 = vst [vmem:[%s4763] ss:$4 sm:$0xff] %v4642
      %4790 = vst [vmem:[%s4765] ss:$4 sm:$0xff] %v4643
      %v4791 = vld.sshfl [vmem:[#allocation1] sm:$0xff pattern:$0x73625140]
      %4792 = vst [vmem:[%s4768] ss:$4 sm:$0xff] %v4644
      %4793 = vst [vmem:[%s4770] ss:$4 sm:$0xff] %v4645
      %4794 = vst [vmem:[%s4772] ss:$4 sm:$0xff] %v4646
      %4795 = vst [vmem:[%s4774] ss:$4 sm:$0xff] %v4647
      %v4796 = vld.sshfl [vmem:[#allocation1 + $0x20] sm:$0xff pattern:$0x73625140]
      %4797 = vst [vmem:[#allocation1] ss:$4 sm:$0xff] %v4648
      %4798 = vst [vmem:[%s4761] ss:$4 sm:$0xff] %v4649
      %4799 = vst [vmem:[%s4763] ss:$4 sm:$0xff] %v4650
      %4800 = vst [vmem:[%s4765] ss:$4 sm:$0xff] %v4651
      %v4801 = vld.sshfl [vmem:[#allocation1] sm:$0xff pattern:$0x73625140]
      %4802 = vst [vmem:[%s4768] ss:$4 sm:$0xff] %v4652
      %4803 = vst [vmem:[%s4770] ss:$4 sm:$0xff] %v4653
      %4804 = vst [vmem:[%s4772] ss:$4 sm:$0xff] %v4654
      %4805 = vst [vmem:[%s4774] ss:$4 sm:$0xff] %v4655
      %v4806 = vld.sshfl [vmem:[#allocation1 + $0x20] sm:$0xff pattern:$0x73625140]
      %v4815 = vpack.c.bf16 %v4767, %v4767
      %v4816 = vpack.c.bf16 %v4776, %v4776
      %v4817 = vpack.c.bf16 %v4781, %v4781
      %v4818 = vpack.c.bf16 %v4786, %v4786
      %v4819 = vpack.c.bf16 %v4791, %v4791
      %v4820 = vpack.c.bf16 %v4796, %v4796
      %v4821 = vpack.c.bf16 %v4801, %v4801
      %v4822 = vpack.c.bf16 %v4806, %v4806
      %v4824 = vshrl.u32 %v4815, 16
      %v4826 = vrot.slane %v4824, 7
      %v4827 = vshll.u32 %v4815, 16
      %v4829 = vor.u32 %v4826, %v4827
      %v4831 = vshrl.u32 %v4816, 16
      %v4833 = vrot.slane %v4831, 7
      %v4834 = vshll.u32 %v4816, 16
      %v4836 = vor.u32 %v4833, %v4834
      %v4838 = vshrl.u32 %v4817, 16
      %v4840 = vrot.slane %v4838, 7
      %v4841 = vshll.u32 %v4817, 16
      %v4843 = vor.u32 %v4840, %v4841
      %v4845 = vshrl.u32 %v4818, 16
      %v4847 = vrot.slane %v4845, 7
      %v4848 = vshll.u32 %v4818, 16
      %v4850 = vor.u32 %v4847, %v4848
      %v4852 = vshrl.u32 %v4819, 16
      %v4854 = vrot.slane %v4852, 7
      %v4855 = vshll.u32 %v4819, 16
      %v4857 = vor.u32 %v4854, %v4855
      %v4859 = vshrl.u32 %v4820, 16
      %v4861 = vrot.slane %v4859, 7
      %v4862 = vshll.u32 %v4820, 16
      %v4864 = vor.u32 %v4861, %v4862
      %v4866 = vshrl.u32 %v4821, 16
      %v4868 = vrot.slane %v4866, 7
      %v4869 = vshll.u32 %v4821, 16
      %v4871 = vor.u32 %v4868, %v4869
      %v4873 = vshrl.u32 %v4822, 16
      %v4875 = vrot.slane %v4873, 7
      %v4876 = vshll.u32 %v4822, 16
      %v4878 = vor.u32 %v4875, %v4876
      %v4887 = vsel %vm733, 0, %v4829
      %v4888 = vsel %vm733, 0, %v4836
      %v4889 = vsel %vm733, 0, %v4843
      %v4890 = vsel %vm733, 0, %v4850
      %v4891 = vsel %vm733, 0, %v4857
      %v4892 = vsel %vm733, 0, %v4864
      %v4893 = vsel %vm733, 0, %v4871
      %v4894 = vsel %vm733, 0, %v4878
      %v4895 = vrot.slane %v4827, 1
      %v4896 = vor.u32 %v4824, %v4895
      %v4897 = vrot.slane %v4834, 1
      %v4898 = vor.u32 %v4831, %v4897
      %v4899 = vrot.slane %v4841, 1
      %v4900 = vor.u32 %v4838, %v4899
      %v4901 = vrot.slane %v4848, 1
      %v4902 = vor.u32 %v4845, %v4901
      %v4903 = vrot.slane %v4855, 1
      %v4904 = vor.u32 %v4852, %v4903
      %v4905 = vrot.slane %v4862, 1
      %v4906 = vor.u32 %v4859, %v4905
      %v4907 = vrot.slane %v4869, 1
      %v4908 = vor.u32 %v4866, %v4907
      %v4909 = vrot.slane %v4876, 1
      %v4910 = vor.u32 %v4873, %v4909
      %v4919 = vsel %vm3027, %v4896, 0
      %v4920 = vsel %vm3027, %v4898, 0
      %v4921 = vsel %vm3027, %v4900, 0
      %v4922 = vsel %vm3027, %v4902, 0
      %v4923 = vsel %vm3027, %v4904, 0
      %v4924 = vsel %vm3027, %v4906, 0
      %v4925 = vsel %vm3027, %v4908, 0
      %v4926 = vsel %vm3027, %v4910, 0
      %v4934 = vunpack.c.l.b16 %v4815
      %v4935 = vunpack.c.l.b16 %v4816
      %v4936 = vunpack.c.l.b16 %v4817
      %v4937 = vunpack.c.l.b16 %v4818
      %v4938 = vunpack.c.l.b16 %v4819
      %v4939 = vunpack.c.l.b16 %v4820
      %v4940 = vunpack.c.l.b16 %v4821
      %v4941 = vpack.c.b16 %v4934, %v3038
      %v4942 = vpack.c.b16 %v4936, %v4935
      %v4943 = vpack.c.b16 %v4938, %v4937
      %v4944 = vpack.c.b16 %v4940, %v4939
      %v4953 = vunpack.c.l.b16 %v4664
      %v4954 = vunpack.c.l.b16 %v4665
      %v4955 = vunpack.c.l.b16 %v4666
      %v4956 = vunpack.c.l.b16 %v4667
      %v4957 = vunpack.c.l.b16 %v4668
      %v4958 = vunpack.c.l.b16 %v4669
      %v4959 = vunpack.c.l.b16 %v4670
      %v4960 = vunpack.c.l.b16 %v4671
      %v4961 = vpack.c.b16 %v4954, %v4953
      %v4962 = vpack.c.b16 %v4956, %v4955
      %v4963 = vpack.c.b16 %v4958, %v4957
      %v4964 = vpack.c.b16 %v4960, %v4959
      %vm4969 = vcmask 523264
      %v4971 = vsel %vm4969, %v4941, 0
      %v4974 = vsel %vm4969, %v4942, 0
      %v4977 = vsel %vm4969, %v4943, 0
      %v4980 = vsel %vm4969, %v4944, 0
      %4982 = vmatpush.bf16.msra.mxu0 0
      %4983 = vmatpush.bf16.msra.mxu0 0
      %4984 = vmatpush.bf16.msra.mxu0 0
      %4985 = vmatpush.bf16.msra.mxu0 0
      %4986 = vmatpush.bf16.msra.mxu0 %v4964
      %4987 = vmatpush.bf16.msra.mxu0 %v4963
      %4988 = vmatpush.bf16.msra.mxu0 %v4962
      %4989 = vmatpush.bf16.msra.mxu0 %v4961
      %4990 = vmatmul.bf16.gmra.mxu0 %v4971
      %v4991 = vpop.f32.mrf.mxu0
      %v4992 = vadd.f32 0.0, %v4991
      %v4993 = vpop.f32.mrf.mxu0
      %v4994 = vadd.f32 0.0, %v4993
      %4995 = vmatmul.bf16.gmra.mxu0 %v4974
      %v4996 = vpop.f32.mrf.mxu0
      %v4997 = vadd.f32 0.0, %v4996
      %v4998 = vpop.f32.mrf.mxu0
      %v4999 = vadd.f32 0.0, %v4998
      %5000 = vmatmul.bf16.gmra.mxu0 %v4977
      %v5001 = vpop.f32.mrf.mxu0
      %v5002 = vadd.f32 0.0, %v5001
      %v5003 = vpop.f32.mrf.mxu0
      %v5004 = vadd.f32 0.0, %v5003
      %5005 = vmatmul.bf16.gmra.mxu0 %v4980
      %v5006 = vpop.f32.mrf.mxu0
      %v5007 = vadd.f32 0.0, %v5006
      %v5008 = vpop.f32.mrf.mxu0
      %v5009 = vadd.f32 0.0, %v5008
      %5010 = vdwg.mxu0
      %v5018 = vunpack.c.l.b16 %v4887
      %v5019 = vunpack.c.l.b16 %v4888
      %v5020 = vunpack.c.l.b16 %v4889
      %v5021 = vunpack.c.l.b16 %v4890
      %v5022 = vunpack.c.l.b16 %v4891
      %v5023 = vunpack.c.l.b16 %v4892
      %v5024 = vunpack.c.l.b16 %v4893
      %v5025 = vpack.c.b16 %v5018, %v3099
      %v5026 = vpack.c.b16 %v5020, %v5019
      %v5027 = vpack.c.b16 %v5022, %v5021
      %v5028 = vpack.c.b16 %v5024, %v5023
      %v5037 = vunpack.c.l.b16 %v4656
      %v5038 = vunpack.c.l.b16 %v4657
      %v5039 = vunpack.c.l.b16 %v4658
      %v5040 = vunpack.c.l.b16 %v4659
      %v5041 = vunpack.c.l.b16 %v4660
      %v5042 = vunpack.c.l.b16 %v4661
      %v5043 = vunpack.c.l.b16 %v4662
      %v5044 = vunpack.c.l.b16 %v4663
      %v5045 = vpack.c.b16 %v5038, %v5037
      %v5046 = vpack.c.b16 %v5040, %v5039
      %v5047 = vpack.c.b16 %v5042, %v5041
      %v5048 = vpack.c.b16 %v5044, %v5043
      %v5054 = vsel %vm4969, %v5025, 0
      %v5057 = vsel %vm4969, %v5026, 0
      %v5060 = vsel %vm4969, %v5027, 0
      %v5063 = vsel %vm4969, %v5028, 0
      %5065 = vmatpush.bf16.msra.mxu0 0
      %5066 = vmatpush.bf16.msra.mxu0 0
      %5067 = vmatpush.bf16.msra.mxu0 0
      %5068 = vmatpush.bf16.msra.mxu0 0
      %5069 = vmatpush.bf16.msra.mxu0 %v5048
      %5070 = vmatpush.bf16.msra.mxu0 %v5047
      %5071 = vmatpush.bf16.msra.mxu0 %v5046
      %5072 = vmatpush.bf16.msra.mxu0 %v5045
      %5073 = vmatmul.bf16.gmra.mxu0 %v5054
      %v5074 = vpop.f32.mrf.mxu0
      %v5075 = vadd.f32 %v4992, %v5074
      %v5076 = vpop.f32.mrf.mxu0
      %v5077 = vadd.f32 %v4994, %v5076
      %5078 = vmatmul.bf16.gmra.mxu0 %v5057
      %v5079 = vpop.f32.mrf.mxu0
      %v5080 = vadd.f32 %v4997, %v5079
      %v5081 = vpop.f32.mrf.mxu0
      %v5082 = vadd.f32 %v4999, %v5081
      %5083 = vmatmul.bf16.gmra.mxu0 %v5060
      %v5084 = vpop.f32.mrf.mxu0
      %v5085 = vadd.f32 %v5002, %v5084
      %v5086 = vpop.f32.mrf.mxu0
      %v5087 = vadd.f32 %v5004, %v5086
      %5088 = vmatmul.bf16.gmra.mxu0 %v5063
      %v5089 = vpop.f32.mrf.mxu0
      %v5090 = vadd.f32 %v5007, %v5089
      %v5091 = vpop.f32.mrf.mxu0
      %v5092 = vadd.f32 %v5009, %v5091
      %5093 = vdwg.mxu0
      %v5101 = vunpack.c.l.b16 %v4919
      %v5102 = vunpack.c.l.b16 %v4920
      %v5103 = vunpack.c.l.b16 %v4921
      %v5104 = vunpack.c.l.b16 %v4922
      %v5105 = vunpack.c.l.b16 %v4923
      %v5106 = vunpack.c.l.b16 %v4924
      %v5107 = vunpack.c.l.b16 %v4925
      %v5108 = vpack.c.b16 %v5101, %v3166
      %v5109 = vpack.c.b16 %v5103, %v5102
      %v5110 = vpack.c.b16 %v5105, %v5104
      %v5111 = vpack.c.b16 %v5107, %v5106
      %v5120 = vunpack.c.l.b16 %v4672
      %v5121 = vunpack.c.l.b16 %v4673
      %v5122 = vunpack.c.l.b16 %v4674
      %v5123 = vunpack.c.l.b16 %v4675
      %v5124 = vunpack.c.l.b16 %v4676
      %v5125 = vunpack.c.l.b16 %v4677
      %v5126 = vunpack.c.l.b16 %v4678
      %v5127 = vunpack.c.l.b16 %v4679
      %v5128 = vpack.c.b16 %v5121, %v5120
      %v5129 = vpack.c.b16 %v5123, %v5122
      %v5130 = vpack.c.b16 %v5125, %v5124
      %v5131 = vpack.c.b16 %v5127, %v5126
      %v5137 = vsel %vm4969, %v5108, 0
      %v5140 = vsel %vm4969, %v5109, 0
      %v5143 = vsel %vm4969, %v5110, 0
      %v5146 = vsel %vm4969, %v5111, 0
      %5148 = vmatpush.bf16.msra.mxu0 0
      %5149 = vmatpush.bf16.msra.mxu0 0
      %5150 = vmatpush.bf16.msra.mxu0 0
      %5151 = vmatpush.bf16.msra.mxu0 0
      %5152 = vmatpush.bf16.msra.mxu0 %v5131
      %5153 = vmatpush.bf16.msra.mxu0 %v5130
      %5154 = vmatpush.bf16.msra.mxu0 %v5129
      %5155 = vmatpush.bf16.msra.mxu0 %v5128
      %5156 = vmatmul.bf16.gmra.mxu0 %v5137
      %v5157 = vpop.f32.mrf.mxu0
      %v5158 = vadd.f32 0.0, %v5157
      %v5159 = vpop.f32.mrf.mxu0
      %v5160 = vadd.f32 0.0, %v5159
      %5161 = vmatmul.bf16.gmra.mxu0 %v5140
      %v5162 = vpop.f32.mrf.mxu0
      %v5163 = vadd.f32 0.0, %v5162
      %v5164 = vpop.f32.mrf.mxu0
      %v5165 = vadd.f32 0.0, %v5164
      %5166 = vmatmul.bf16.gmra.mxu0 %v5143
      %v5167 = vpop.f32.mrf.mxu0
      %v5168 = vadd.f32 0.0, %v5167
      %v5169 = vpop.f32.mrf.mxu0
      %v5170 = vadd.f32 0.0, %v5169
      %5171 = vmatmul.bf16.gmra.mxu0 %v5146
      %v5172 = vpop.f32.mrf.mxu0
      %v5173 = vadd.f32 0.0, %v5172
      %v5174 = vpop.f32.mrf.mxu0
      %v5175 = vadd.f32 0.0, %v5174
      %5176 = vdwg.mxu0
      %v5177 = vadd.f32 %v5075, %v5158
      %v5178 = vadd.f32 %v5077, %v5160
      %v5179 = vadd.f32 %v5080, %v5163
      %v5180 = vadd.f32 %v5082, %v5165
      %v5181 = vadd.f32 %v5085, %v5168
      %v5182 = vadd.f32 %v5087, %v5170
      %v5183 = vadd.f32 %v5090, %v5173
      %v5184 = vadd.f32 %v5092, %v5175
      %v5186 = vunpack.c.l.b16 %v4894
      %v5187 = vpack.c.b16 %v5019, %v5018
      %v5188 = vpack.c.b16 %v5021, %v5020
      %v5189 = vpack.c.b16 %v5023, %v5022
      %v5190 = vpack.c.b16 %v5186, %v5024
      %v5199 = vunpack.c.l.b16 %v4680
      %v5200 = vunpack.c.l.b16 %v4681
      %v5201 = vunpack.c.l.b16 %v4682
      %v5202 = vunpack.c.l.b16 %v4683
      %v5203 = vunpack.c.l.b16 %v4684
      %v5204 = vunpack.c.l.b16 %v4685
      %v5205 = vunpack.c.l.b16 %v4686
      %v5206 = vunpack.c.l.b16 %v4687
      %v5207 = vpack.c.b16 %v5200, %v5199
      %v5208 = vpack.c.b16 %v5202, %v5201
      %v5209 = vpack.c.b16 %v5204, %v5203
      %v5210 = vpack.c.b16 %v5206, %v5205
      %v5216 = vsel %vm4969, %v5187, 0
      %v5219 = vsel %vm4969, %v5188, 0
      %v5222 = vsel %vm4969, %v5189, 0
      %v5225 = vsel %vm4969, %v5190, 0
      %5227 = vmatpush.bf16.msra.mxu0 0
      %5228 = vmatpush.bf16.msra.mxu0 0
      %5229 = vmatpush.bf16.msra.mxu0 0
      %5230 = vmatpush.bf16.msra.mxu0 0
      %5231 = vmatpush.bf16.msra.mxu0 %v5210
      %5232 = vmatpush.bf16.msra.mxu0 %v5209
      %5233 = vmatpush.bf16.msra.mxu0 %v5208
      %5234 = vmatpush.bf16.msra.mxu0 %v5207
      %5235 = vmatmul.bf16.gmra.mxu0 %v5216
      %v5236 = vpop.f32.mrf.mxu0
      %v5237 = vadd.f32 0.0, %v5236
      %v5238 = vpop.f32.mrf.mxu0
      %v5239 = vadd.f32 0.0, %v5238
      %5240 = vmatmul.bf16.gmra.mxu0 %v5219
      %v5241 = vpop.f32.mrf.mxu0
      %v5242 = vadd.f32 0.0, %v5241
      %v5243 = vpop.f32.mrf.mxu0
      %v5244 = vadd.f32 0.0, %v5243
      %5245 = vmatmul.bf16.gmra.mxu0 %v5222
      %v5246 = vpop.f32.mrf.mxu0
      %v5247 = vadd.f32 0.0, %v5246
      %v5248 = vpop.f32.mrf.mxu0
      %v5249 = vadd.f32 0.0, %v5248
      %5250 = vmatmul.bf16.gmra.mxu0 %v5225
      %v5251 = vpop.f32.mrf.mxu0
      %v5252 = vadd.f32 0.0, %v5251
      %v5253 = vpop.f32.mrf.mxu0
      %v5254 = vadd.f32 0.0, %v5253
      %5255 = vdwg.mxu0
      %v5256 = vadd.f32 %v5177, %v5237
      %v5257 = vadd.f32 %v5178, %v5239
      %v5258 = vadd.f32 %v5179, %v5242
      %v5259 = vadd.f32 %v5180, %v5244
      %v5260 = vadd.f32 %v5181, %v5247
      %v5261 = vadd.f32 %v5182, %v5249
      %v5262 = vadd.f32 %v5183, %v5252
      %v5263 = vadd.f32 %v5184, %v5254
      %v5265 = vunpack.c.l.b16 %v4822
      %v5266 = vpack.c.b16 %v4935, %v4934
      %v5267 = vpack.c.b16 %v4937, %v4936
      %v5268 = vpack.c.b16 %v4939, %v4938
      %v5269 = vpack.c.b16 %v5265, %v4940
      %v5278 = vunpack.c.l.b16 %v4688
      %v5279 = vunpack.c.l.b16 %v4689
      %v5280 = vunpack.c.l.b16 %v4690
      %v5281 = vunpack.c.l.b16 %v4691
      %v5282 = vunpack.c.l.b16 %v4692
      %v5283 = vunpack.c.l.b16 %v4693
      %v5284 = vunpack.c.l.b16 %v4694
      %v5285 = vunpack.c.l.b16 %v4695
      %v5286 = vpack.c.b16 %v5279, %v5278
      %v5287 = vpack.c.b16 %v5281, %v5280
      %v5288 = vpack.c.b16 %v5283, %v5282
      %v5289 = vpack.c.b16 %v5285, %v5284
      %v5295 = vsel %vm4969, %v5266, 0
      %v5298 = vsel %vm4969, %v5267, 0
      %v5301 = vsel %vm4969, %v5268, 0
      %v5304 = vsel %vm4969, %v5269, 0
      %5306 = vmatpush.bf16.msra.mxu0 0
      %5307 = vmatpush.bf16.msra.mxu0 0
      %5308 = vmatpush.bf16.msra.mxu0 0
      %5309 = vmatpush.bf16.msra.mxu0 0
      %5310 = vmatpush.bf16.msra.mxu0 %v5289
      %5311 = vmatpush.bf16.msra.mxu0 %v5288
      %5312 = vmatpush.bf16.msra.mxu0 %v5287
      %5313 = vmatpush.bf16.msra.mxu0 %v5286
      %5314 = vmatmul.bf16.gmra.mxu0 %v5295
      %v5315 = vpop.f32.mrf.mxu0
      %v5316 = vadd.f32 0.0, %v5315
      %v5317 = vpop.f32.mrf.mxu0
      %v5318 = vadd.f32 0.0, %v5317
      %5319 = vmatmul.bf16.gmra.mxu0 %v5298
      %v5320 = vpop.f32.mrf.mxu0
      %v5321 = vadd.f32 0.0, %v5320
      %v5322 = vpop.f32.mrf.mxu0
      %v5323 = vadd.f32 0.0, %v5322
      %5324 = vmatmul.bf16.gmra.mxu0 %v5301
      %v5325 = vpop.f32.mrf.mxu0
      %v5326 = vadd.f32 0.0, %v5325
      %v5327 = vpop.f32.mrf.mxu0
      %v5328 = vadd.f32 0.0, %v5327
      %5329 = vmatmul.bf16.gmra.mxu0 %v5304
      %v5330 = vpop.f32.mrf.mxu0
      %v5331 = vadd.f32 0.0, %v5330
      %v5332 = vpop.f32.mrf.mxu0
      %v5333 = vadd.f32 0.0, %v5332
      %5334 = vdwg.mxu0
      %v5335 = vadd.f32 %v5256, %v5316
      %v5336 = vadd.f32 %v5257, %v5318
      %v5337 = vadd.f32 %v5258, %v5321
      %v5338 = vadd.f32 %v5259, %v5323
      %v5339 = vadd.f32 %v5260, %v5326
      %v5340 = vadd.f32 %v5261, %v5328
      %v5341 = vadd.f32 %v5262, %v5331
      %v5342 = vadd.f32 %v5263, %v5333
      %v5344 = vunpack.c.l.b16 %v4926
      %v5345 = vpack.c.b16 %v5102, %v5101
      %v5346 = vpack.c.b16 %v5104, %v5103
      %v5347 = vpack.c.b16 %v5106, %v5105
      %v5348 = vpack.c.b16 %v5344, %v5107
      %v5357 = vunpack.c.l.b16 %v4696
      %v5358 = vunpack.c.l.b16 %v4697
      %v5359 = vunpack.c.l.b16 %v4698
      %v5360 = vunpack.c.l.b16 %v4699
      %v5361 = vunpack.c.l.b16 %v4700
      %v5362 = vunpack.c.l.b16 %v4701
      %v5363 = vunpack.c.l.b16 %v4702
      %v5364 = vunpack.c.l.b16 %v4703
      %v5365 = vpack.c.b16 %v5358, %v5357
      %v5366 = vpack.c.b16 %v5360, %v5359
      %v5367 = vpack.c.b16 %v5362, %v5361
      %v5368 = vpack.c.b16 %v5364, %v5363
      %v5374 = vsel %vm4969, %v5345, 0
      %v5377 = vsel %vm4969, %v5346, 0
      %v5380 = vsel %vm4969, %v5347, 0
      %v5383 = vsel %vm4969, %v5348, 0
      %5385 = vmatpush.bf16.msra.mxu0 0
      %5386 = vmatpush.bf16.msra.mxu0 0
      %5387 = vmatpush.bf16.msra.mxu0 0
      %5388 = vmatpush.bf16.msra.mxu0 0
      %5389 = vmatpush.bf16.msra.mxu0 %v5368
      %5390 = vmatpush.bf16.msra.mxu0 %v5367
      %5391 = vmatpush.bf16.msra.mxu0 %v5366
      %5392 = vmatpush.bf16.msra.mxu0 %v5365
      %5393 = vmatmul.bf16.gmra.mxu0 %v5374
      %v5394 = vpop.f32.mrf.mxu0
      %v5395 = vadd.f32 0.0, %v5394
      %v5396 = vpop.f32.mrf.mxu0
      %v5397 = vadd.f32 0.0, %v5396
      %5398 = vmatmul.bf16.gmra.mxu0 %v5377
      %v5399 = vpop.f32.mrf.mxu0
      %v5400 = vadd.f32 0.0, %v5399
      %v5401 = vpop.f32.mrf.mxu0
      %v5402 = vadd.f32 0.0, %v5401
      %5403 = vmatmul.bf16.gmra.mxu0 %v5380
      %v5404 = vpop.f32.mrf.mxu0
      %v5405 = vadd.f32 0.0, %v5404
      %v5406 = vpop.f32.mrf.mxu0
      %v5407 = vadd.f32 0.0, %v5406
      %5408 = vmatmul.bf16.gmra.mxu0 %v5383
      %v5409 = vpop.f32.mrf.mxu0
      %v5410 = vadd.f32 0.0, %v5409
      %v5411 = vpop.f32.mrf.mxu0
      %v5412 = vadd.f32 0.0, %v5411
      %5413 = vdwg.mxu0
      %v5414 = vadd.f32 %v5335, %v5395
      %v5415 = vadd.f32 %v5336, %v5397
      %v5416 = vadd.f32 %v5337, %v5400
      %v5417 = vadd.f32 %v5338, %v5402
      %v5418 = vadd.f32 %v5339, %v5405
      %v5419 = vadd.f32 %v5340, %v5407
      %v5420 = vadd.f32 %v5341, %v5410
      %v5421 = vadd.f32 %v5342, %v5412
      %v5422 = vpack.c.b16 %v3099, %v5186
      %v5431 = vunpack.c.l.b16 %v4704
      %v5432 = vunpack.c.l.b16 %v4705
      %v5433 = vunpack.c.l.b16 %v4706
      %v5434 = vunpack.c.l.b16 %v4707
      %v5435 = vunpack.c.l.b16 %v4708
      %v5436 = vunpack.c.l.b16 %v4709
      %v5437 = vunpack.c.l.b16 %v4710
      %v5438 = vunpack.c.l.b16 %v4711
      %v5439 = vpack.c.b16 %v5432, %v5431
      %v5440 = vpack.c.b16 %v5434, %v5433
      %v5441 = vpack.c.b16 %v5436, %v5435
      %v5442 = vpack.c.b16 %v5438, %v5437
      %v5448 = vsel %vm4969, %v5422, 0
      %5450 = vmatpush.bf16.msra.mxu0 0
      %5451 = vmatpush.bf16.msra.mxu0 0
      %5452 = vmatpush.bf16.msra.mxu0 0
      %5453 = vmatpush.bf16.msra.mxu0 0
      %5454 = vmatpush.bf16.msra.mxu0 %v5442
      %5455 = vmatpush.bf16.msra.mxu0 %v5441
      %5456 = vmatpush.bf16.msra.mxu0 %v5440
      %5457 = vmatpush.bf16.msra.mxu0 %v5439
      %5458 = vmatmul.bf16.gmra.mxu0 %v5057
      %v5459 = vpop.f32.mrf.mxu0
      %v5460 = vadd.f32 0.0, %v5459
      %v5461 = vpop.f32.mrf.mxu0
      %v5462 = vadd.f32 0.0, %v5461
      %5463 = vmatmul.bf16.gmra.mxu0 %v5060
      %v5464 = vpop.f32.mrf.mxu0
      %v5465 = vadd.f32 0.0, %v5464
      %v5466 = vpop.f32.mrf.mxu0
      %v5467 = vadd.f32 0.0, %v5466
      %5468 = vmatmul.bf16.gmra.mxu0 %v5063
      %v5469 = vpop.f32.mrf.mxu0
      %v5470 = vadd.f32 0.0, %v5469
      %v5471 = vpop.f32.mrf.mxu0
      %v5472 = vadd.f32 0.0, %v5471
      %5473 = vmatmul.bf16.gmra.mxu0 %v5448
      %v5474 = vpop.f32.mrf.mxu0
      %v5475 = vadd.f32 0.0, %v5474
      %v5476 = vpop.f32.mrf.mxu0
      %v5477 = vadd.f32 0.0, %v5476
      %5478 = vdwg.mxu0
      %v5479 = vadd.f32 %v5414, %v5460
      %v5480 = vadd.f32 %v5415, %v5462
      %v5481 = vadd.f32 %v5416, %v5465
      %v5482 = vadd.f32 %v5417, %v5467
      %v5483 = vadd.f32 %v5418, %v5470
      %v5484 = vadd.f32 %v5419, %v5472
      %v5485 = vadd.f32 %v5420, %v5475
      %v5486 = vadd.f32 %v5421, %v5477
      %v5487 = vpack.c.b16 %v3038, %v5265
      %v5496 = vunpack.c.l.b16 %v4712
      %v5497 = vunpack.c.l.b16 %v4713
      %v5498 = vunpack.c.l.b16 %v4714
      %v5499 = vunpack.c.l.b16 %v4715
      %v5500 = vunpack.c.l.b16 %v4716
      %v5501 = vunpack.c.l.b16 %v4717
      %v5502 = vunpack.c.l.b16 %v4718
      %v5503 = vunpack.c.l.b16 %v4719
      %v5504 = vpack.c.b16 %v5497, %v5496
      %v5505 = vpack.c.b16 %v5499, %v5498
      %v5506 = vpack.c.b16 %v5501, %v5500
      %v5507 = vpack.c.b16 %v5503, %v5502
      %v5513 = vsel %vm4969, %v5487, 0
      %5515 = vmatpush.bf16.msra.mxu0 0
      %5516 = vmatpush.bf16.msra.mxu0 0
      %5517 = vmatpush.bf16.msra.mxu0 0
      %5518 = vmatpush.bf16.msra.mxu0 0
      %5519 = vmatpush.bf16.msra.mxu0 %v5507
      %5520 = vmatpush.bf16.msra.mxu0 %v5506
      %5521 = vmatpush.bf16.msra.mxu0 %v5505
      %5522 = vmatpush.bf16.msra.mxu0 %v5504
      %5523 = vmatmul.bf16.gmra.mxu0 %v4974
      %v5524 = vpop.f32.mrf.mxu0
      %v5525 = vadd.f32 0.0, %v5524
      %v5526 = vpop.f32.mrf.mxu0
      %v5527 = vadd.f32 0.0, %v5526
      %5528 = vmatmul.bf16.gmra.mxu0 %v4977
      %v5529 = vpop.f32.mrf.mxu0
      %v5530 = vadd.f32 0.0, %v5529
      %v5531 = vpop.f32.mrf.mxu0
      %v5532 = vadd.f32 0.0, %v5531
      %5533 = vmatmul.bf16.gmra.mxu0 %v4980
      %v5534 = vpop.f32.mrf.mxu0
      %v5535 = vadd.f32 0.0, %v5534
      %v5536 = vpop.f32.mrf.mxu0
      %v5537 = vadd.f32 0.0, %v5536
      %5538 = vmatmul.bf16.gmra.mxu0 %v5513
      %v5539 = vpop.f32.mrf.mxu0
      %v5540 = vadd.f32 0.0, %v5539
      %v5541 = vpop.f32.mrf.mxu0
      %v5542 = vadd.f32 0.0, %v5541
      %5543 = vdwg.mxu0
      %v5544 = vadd.f32 %v5479, %v5525
      %v5545 = vadd.f32 %v5480, %v5527
      %v5546 = vadd.f32 %v5481, %v5530
      %v5547 = vadd.f32 %v5482, %v5532
      %v5548 = vadd.f32 %v5483, %v5535
      %v5549 = vadd.f32 %v5484, %v5537
      %v5550 = vadd.f32 %v5485, %v5540
      %v5551 = vadd.f32 %v5486, %v5542
      %v5552 = vpack.c.b16 %v3166, %v5344
      %v5561 = vunpack.c.l.b16 %v4720
      %v5562 = vunpack.c.l.b16 %v4721
      %v5563 = vunpack.c.l.b16 %v4722
      %v5564 = vunpack.c.l.b16 %v4723
      %v5565 = vunpack.c.l.b16 %v4724
      %v5566 = vunpack.c.l.b16 %v4725
      %v5567 = vunpack.c.l.b16 %v4726
      %v5568 = vunpack.c.l.b16 %v4727
      %v5569 = vpack.c.b16 %v5562, %v5561
      %v5570 = vpack.c.b16 %v5564, %v5563
      %v5571 = vpack.c.b16 %v5566, %v5565
      %v5572 = vpack.c.b16 %v5568, %v5567
      %v5578 = vsel %vm4969, %v5552, 0
      %5580 = vmatpush.bf16.msra.mxu0 0
      %5581 = vmatpush.bf16.msra.mxu0 0
      %5582 = vmatpush.bf16.msra.mxu0 0
      %5583 = vmatpush.bf16.msra.mxu0 0
      %5584 = vmatpush.bf16.msra.mxu0 %v5572
      %5585 = vmatpush.bf16.msra.mxu0 %v5571
      %5586 = vmatpush.bf16.msra.mxu0 %v5570
      %5587 = vmatpush.bf16.msra.mxu0 %v5569
      %5588 = vmatmul.bf16.gmra.mxu0 %v5140
      %v5589 = vpop.f32.mrf.mxu0
      %v5590 = vadd.f32 0.0, %v5589
      %v5591 = vpop.f32.mrf.mxu0
      %v5592 = vadd.f32 0.0, %v5591
      %5593 = vmatmul.bf16.gmra.mxu0 %v5143
      %v5594 = vpop.f32.mrf.mxu0
      %v5595 = vadd.f32 0.0, %v5594
      %v5596 = vpop.f32.mrf.mxu0
      %v5597 = vadd.f32 0.0, %v5596
      %5598 = vmatmul.bf16.gmra.mxu0 %v5146
      %v5599 = vpop.f32.mrf.mxu0
      %v5600 = vadd.f32 0.0, %v5599
      %v5601 = vpop.f32.mrf.mxu0
      %v5602 = vadd.f32 0.0, %v5601
      %5603 = vmatmul.bf16.gmra.mxu0 %v5578
      %v5604 = vpop.f32.mrf.mxu0
      %v5605 = vadd.f32 0.0, %v5604
      %v5606 = vpop.f32.mrf.mxu0
      %v5607 = vadd.f32 0.0, %v5606
      %5608 = vdwg.mxu0
      %v5609 = vadd.f32 %v5544, %v5590
      %v5610 = vadd.f32 %v5545, %v5592
      %v5611 = vadd.f32 %v5546, %v5595
      %v5612 = vadd.f32 %v5547, %v5597
      %v5613 = vadd.f32 %v5548, %v5600
      %v5614 = vadd.f32 %v5549, %v5602
      %v5615 = vadd.f32 %v5550, %v5605
      %v5616 = vadd.f32 %v5551, %v5607
      %v5617 = vld [vmem:[%s8] sm:$0x1]
      %v5619 = vperm.slane %v5617, 0
      %v5621 = vadd.f32 %v5609, %v5619
      %v5622 = vadd.f32 %v5610, %v5619
      %v5623 = vadd.f32 %v5611, %v5619
      %v5624 = vadd.f32 %v5612, %v5619
      %v5625 = vadd.f32 %v5613, %v5619
      %v5626 = vadd.f32 %v5614, %v5619
      %v5627 = vadd.f32 %v5615, %v5619
      %v5628 = vadd.f32 %v5616, %v5619
      %v5629 = vmax.f32 %v5621, 0.0
      %v5630 = vmax.f32 %v5622, 0.0
      %v5631 = vmax.f32 %v5623, 0.0
      %v5632 = vmax.f32 %v5624, 0.0
      %v5633 = vmax.f32 %v5625, 0.0
      %v5634 = vmax.f32 %v5626, 0.0
      %v5635 = vmax.f32 %v5627, 0.0
      %v5636 = vmax.f32 %v5628, 0.0
      %v5637 = vmul.f32 %v5629, 0.75
      %v5638 = vmul.f32 %v5630, 0.75
      %v5639 = vmul.f32 %v5631, 0.75
      %v5640 = vmul.f32 %v5632, 0.75
      %v5641 = vmul.f32 %v5633, 0.75
      %v5642 = vmul.f32 %v5634, 0.75
      %v5643 = vmul.f32 %v5635, 0.75
      %v5644 = vmul.f32 %v5636, 0.75
      %v5645 = vmul.f32 %v5629, 0.25
      %v5646 = vmul.f32 %v5630, 0.25
      %v5647 = vmul.f32 %v5631, 0.25
      %v5648 = vmul.f32 %v5632, 0.25
      %v5649 = vmul.f32 %v5633, 0.25
      %v5650 = vmul.f32 %v5634, 0.25
      %v5651 = vmul.f32 %v5635, 0.25
      %v5652 = vadd.f32 %v5637, %v5645
      %v5653 = vadd.f32 %v5638, %v5645
      %v5654 = vadd.f32 %v5639, %v5646
      %v5655 = vadd.f32 %v5640, %v5647
      %v5656 = vadd.f32 %v5641, %v5648
      %v5657 = vadd.f32 %v5642, %v5649
      %v5658 = vadd.f32 %v5643, %v5650
      %v5659 = vadd.f32 %v5644, %v5651
      %v5660 = vmul.f32 %v5636, 0.25
      %v5661 = vadd.f32 %v5637, %v5646
      %v5662 = vadd.f32 %v5638, %v5647
      %v5663 = vadd.f32 %v5639, %v5648
      %v5664 = vadd.f32 %v5640, %v5649
      %v5665 = vadd.f32 %v5641, %v5650
      %v5666 = vadd.f32 %v5642, %v5651
      %v5667 = vadd.f32 %v5643, %v5660
      %v5668 = vadd.f32 %v5644, %v5660
      %v5685 = vrot.slane %v5652, 7
      %v5686 = vrot.slane %v5661, 7
      %v5687 = vrot.slane %v5653, 7
      %v5688 = vrot.slane %v5662, 7
      %v5689 = vrot.slane %v5654, 7
      %v5690 = vrot.slane %v5663, 7
      %v5691 = vrot.slane %v5655, 7
      %v5692 = vrot.slane %v5664, 7
      %v5693 = vrot.slane %v5656, 7
      %v5694 = vrot.slane %v5665, 7
      %v5695 = vrot.slane %v5657, 7
      %v5696 = vrot.slane %v5666, 7
      %v5697 = vrot.slane %v5658, 7
      %v5698 = vrot.slane %v5667, 7
      %v5699 = vrot.slane %v5659, 7
      %v5700 = vrot.slane %v5668, 7
      %v5717 = vsel %vm4292, %v5652, %v5685
      %v5718 = vsel %vm4292, %v5661, %v5686
      %v5719 = vsel %vm4292, %v5653, %v5687
      %v5720 = vsel %vm4292, %v5662, %v5688
      %v5721 = vsel %vm4292, %v5654, %v5689
      %v5722 = vsel %vm4292, %v5663, %v5690
      %v5723 = vsel %vm4292, %v5655, %v5691
      %v5724 = vsel %vm4292, %v5664, %v5692
      %v5725 = vsel %vm4292, %v5656, %v5693
      %v5726 = vsel %vm4292, %v5665, %v5694
      %v5727 = vsel %vm4292, %v5657, %v5695
      %v5728 = vsel %vm4292, %v5666, %v5696
      %v5729 = vsel %vm4292, %v5658, %v5697
      %v5730 = vsel %vm4292, %v5667, %v5698
      %v5731 = vsel %vm4292, %v5659, %v5699
      %v5732 = vsel %vm4292, %v5668, %v5700
      %v5733 = vrot.slane %v5652, 1
      %v5734 = vrot.slane %v5661, 1
      %v5735 = vrot.slane %v5653, 1
      %v5736 = vrot.slane %v5662, 1
      %v5737 = vrot.slane %v5654, 1
      %v5738 = vrot.slane %v5663, 1
      %v5739 = vrot.slane %v5655, 1
      %v5740 = vrot.slane %v5664, 1
      %v5741 = vrot.slane %v5656, 1
      %v5742 = vrot.slane %v5665, 1
      %v5743 = vrot.slane %v5657, 1
      %v5744 = vrot.slane %v5666, 1
      %v5745 = vrot.slane %v5658, 1
      %v5746 = vrot.slane %v5667, 1
      %v5747 = vrot.slane %v5659, 1
      %v5748 = vrot.slane %v5668, 1
      %vm5765 = vcmask 1046528
      %v5766 = vsel %vm5765, %v5733, %v5652
      %v5767 = vsel %vm5765, %v5734, %v5661
      %v5768 = vsel %vm5765, %v5735, %v5653
      %v5769 = vsel %vm5765, %v5736, %v5662
      %v5770 = vsel %vm5765, %v5737, %v5654
      %v5771 = vsel %vm5765, %v5738, %v5663
      %v5772 = vsel %vm5765, %v5739, %v5655
      %v5773 = vsel %vm5765, %v5740, %v5664
      %v5774 = vsel %vm5765, %v5741, %v5656
      %v5775 = vsel %vm5765, %v5742, %v5665
      %v5776 = vsel %vm5765, %v5743, %v5657
      %v5777 = vsel %vm5765, %v5744, %v5666
      %v5778 = vsel %vm5765, %v5745, %v5658
      %v5779 = vsel %vm5765, %v5746, %v5667
      %v5780 = vsel %vm5765, %v5747, %v5659
      %v5781 = vsel %vm5765, %v5748, %v5668
      %v5782 = vmul.f32 %v5652, 0.75
      %v5783 = vmul.f32 %v5661, 0.75
      %v5784 = vmul.f32 %v5653, 0.75
      %v5785 = vmul.f32 %v5662, 0.75
      %v5786 = vmul.f32 %v5654, 0.75
      %v5787 = vmul.f32 %v5663, 0.75
      %v5788 = vmul.f32 %v5655, 0.75
      %v5789 = vmul.f32 %v5664, 0.75
      %v5790 = vmul.f32 %v5656, 0.75
      %v5791 = vmul.f32 %v5665, 0.75
      %v5792 = vmul.f32 %v5657, 0.75
      %v5793 = vmul.f32 %v5666, 0.75
      %v5794 = vmul.f32 %v5658, 0.75
      %v5795 = vmul.f32 %v5667, 0.75
      %v5796 = vmul.f32 %v5659, 0.75
      %v5797 = vmul.f32 %v5668, 0.75
      %v5798 = vmul.f32 %v5717, 0.25
      %v5799 = vmul.f32 %v5718, 0.25
      %v5800 = vmul.f32 %v5719, 0.25
      %v5801 = vmul.f32 %v5720, 0.25
      %v5802 = vmul.f32 %v5721, 0.25
      %v5803 = vmul.f32 %v5722, 0.25
      %v5804 = vmul.f32 %v5723, 0.25
      %v5805 = vmul.f32 %v5724, 0.25
      %v5806 = vmul.f32 %v5725, 0.25
      %v5807 = vmul.f32 %v5726, 0.25
      %v5808 = vmul.f32 %v5727, 0.25
      %v5809 = vmul.f32 %v5728, 0.25
      %v5810 = vmul.f32 %v5729, 0.25
      %v5811 = vmul.f32 %v5730, 0.25
      %v5812 = vmul.f32 %v5731, 0.25
      %v5813 = vmul.f32 %v5732, 0.25
      %v5814 = vadd.f32 %v5782, %v5798
      %v5815 = vadd.f32 %v5783, %v5799
      %v5816 = vadd.f32 %v5784, %v5800
      %v5817 = vadd.f32 %v5785, %v5801
      %v5818 = vadd.f32 %v5786, %v5802
      %v5819 = vadd.f32 %v5787, %v5803
      %v5820 = vadd.f32 %v5788, %v5804
      %v5821 = vadd.f32 %v5789, %v5805
      %v5822 = vadd.f32 %v5790, %v5806
      %v5823 = vadd.f32 %v5791, %v5807
      %v5824 = vadd.f32 %v5792, %v5808
      %v5825 = vadd.f32 %v5793, %v5809
      %v5826 = vadd.f32 %v5794, %v5810
      %v5827 = vadd.f32 %v5795, %v5811
      %v5828 = vadd.f32 %v5796, %v5812
      %v5829 = vadd.f32 %v5797, %v5813
      %v5830 = vmul.f32 %v5766, 0.25
      %v5831 = vmul.f32 %v5767, 0.25
      %v5832 = vmul.f32 %v5768, 0.25
      %v5833 = vmul.f32 %v5769, 0.25
      %v5834 = vmul.f32 %v5770, 0.25
      %v5835 = vmul.f32 %v5771, 0.25
      %v5836 = vmul.f32 %v5772, 0.25
      %v5837 = vmul.f32 %v5773, 0.25
      %v5838 = vmul.f32 %v5774, 0.25
      %v5839 = vmul.f32 %v5775, 0.25
      %v5840 = vmul.f32 %v5776, 0.25
      %v5841 = vmul.f32 %v5777, 0.25
      %v5842 = vmul.f32 %v5778, 0.25
      %v5843 = vmul.f32 %v5779, 0.25
      %v5844 = vmul.f32 %v5780, 0.25
      %v5845 = vmul.f32 %v5781, 0.25
      %v5846 = vadd.f32 %v5782, %v5830
      %v5847 = vadd.f32 %v5783, %v5831
      %v5848 = vadd.f32 %v5784, %v5832
      %v5849 = vadd.f32 %v5785, %v5833
      %v5850 = vadd.f32 %v5786, %v5834
      %v5851 = vadd.f32 %v5787, %v5835
      %v5852 = vadd.f32 %v5788, %v5836
      %v5853 = vadd.f32 %v5789, %v5837
      %v5854 = vadd.f32 %v5790, %v5838
      %v5855 = vadd.f32 %v5791, %v5839
      %v5856 = vadd.f32 %v5792, %v5840
      %v5857 = vadd.f32 %v5793, %v5841
      %v5858 = vadd.f32 %v5794, %v5842
      %v5859 = vadd.f32 %v5795, %v5843
      %v5860 = vadd.f32 %v5796, %v5844
      %v5861 = vadd.f32 %v5797, %v5845
      %v5878 = vrot.slane %v5814, 1
      %v5879 = vrot.slane %v5814, 2
      %v5880 = vrot.slane %v5814, 3
      %v5881 = vrot.slane %v5814, 4
      %v5882 = vrot.slane %v5814, 5
      %v5883 = vrot.slane %v5814, 6
      %v5884 = vrot.slane %v5814, 7
      %v5885 = vrot.slane %v5815, 1
      %v5886 = vrot.slane %v5815, 2
      %v5887 = vrot.slane %v5815, 3
      %v5888 = vrot.slane %v5815, 4
      %v5889 = vrot.slane %v5815, 5
      %v5890 = vrot.slane %v5815, 6
      %v5891 = vrot.slane %v5815, 7
      %v5892 = vrot.slane %v5816, 1
      %v5893 = vrot.slane %v5816, 2
      %v5894 = vrot.slane %v5816, 3
      %v5895 = vrot.slane %v5816, 4
      %v5896 = vrot.slane %v5816, 5
      %v5897 = vrot.slane %v5816, 6
      %v5898 = vrot.slane %v5816, 7
      %v5899 = vrot.slane %v5817, 1
      %v5900 = vrot.slane %v5817, 2
      %v5901 = vrot.slane %v5817, 3
      %v5902 = vrot.slane %v5817, 4
      %v5903 = vrot.slane %v5817, 5
      %v5904 = vrot.slane %v5817, 6
      %v5905 = vrot.slane %v5817, 7
      %v5906 = vrot.slane %v5818, 1
      %v5907 = vrot.slane %v5818, 2
      %v5908 = vrot.slane %v5818, 3
      %v5909 = vrot.slane %v5818, 4
      %v5910 = vrot.slane %v5818, 5
      %v5911 = vrot.slane %v5818, 6
      %v5912 = vrot.slane %v5818, 7
      %v5913 = vrot.slane %v5819, 1
      %v5914 = vrot.slane %v5819, 2
      %v5915 = vrot.slane %v5819, 3
      %v5916 = vrot.slane %v5819, 4
      %v5917 = vrot.slane %v5819, 5
      %v5918 = vrot.slane %v5819, 6
      %v5919 = vrot.slane %v5819, 7
      %v5920 = vrot.slane %v5820, 1
      %v5921 = vrot.slane %v5820, 2
      %v5922 = vrot.slane %v5820, 3
      %v5923 = vrot.slane %v5820, 4
      %v5924 = vrot.slane %v5820, 5
      %v5925 = vrot.slane %v5820, 6
      %v5926 = vrot.slane %v5820, 7
      %v5927 = vrot.slane %v5821, 1
      %v5928 = vrot.slane %v5821, 2
      %v5929 = vrot.slane %v5821, 3
      %v5930 = vrot.slane %v5821, 4
      %v5931 = vrot.slane %v5821, 5
      %v5932 = vrot.slane %v5821, 6
      %v5933 = vrot.slane %v5821, 7
      %v5934 = vrot.slane %v5822, 1
      %v5935 = vrot.slane %v5822, 2
      %v5936 = vrot.slane %v5822, 3
      %v5937 = vrot.slane %v5822, 4
      %v5938 = vrot.slane %v5822, 5
      %v5939 = vrot.slane %v5822, 6
      %v5940 = vrot.slane %v5822, 7
      %v5941 = vrot.slane %v5823, 1
      %v5942 = vrot.slane %v5823, 2
      %v5943 = vrot.slane %v5823, 3
      %v5944 = vrot.slane %v5823, 4
      %v5945 = vrot.slane %v5823, 5
      %v5946 = vrot.slane %v5823, 6
      %v5947 = vrot.slane %v5823, 7
      %v5948 = vrot.slane %v5824, 1
      %v5949 = vrot.slane %v5824, 2
      %v5950 = vrot.slane %v5824, 3
      %v5951 = vrot.slane %v5824, 4
      %v5952 = vrot.slane %v5824, 5
      %v5953 = vrot.slane %v5824, 6
      %v5954 = vrot.slane %v5824, 7
      %v5955 = vrot.slane %v5825, 1
      %v5956 = vrot.slane %v5825, 2
      %v5957 = vrot.slane %v5825, 3
      %v5958 = vrot.slane %v5825, 4
      %v5959 = vrot.slane %v5825, 5
      %v5960 = vrot.slane %v5825, 6
      %v5961 = vrot.slane %v5825, 7
      %v5962 = vrot.slane %v5826, 1
      %v5963 = vrot.slane %v5826, 2
      %v5964 = vrot.slane %v5826, 3
      %v5965 = vrot.slane %v5826, 4
      %v5966 = vrot.slane %v5826, 5
      %v5967 = vrot.slane %v5826, 6
      %v5968 = vrot.slane %v5826, 7
      %v5969 = vrot.slane %v5827, 1
      %v5970 = vrot.slane %v5827, 2
      %v5971 = vrot.slane %v5827, 3
      %v5972 = vrot.slane %v5827, 4
      %v5973 = vrot.slane %v5827, 5
      %v5974 = vrot.slane %v5827, 6
      %v5975 = vrot.slane %v5827, 7
      %v5976 = vrot.slane %v5828, 1
      %v5977 = vrot.slane %v5828, 2
      %v5978 = vrot.slane %v5828, 3
      %v5979 = vrot.slane %v5828, 4
      %v5980 = vrot.slane %v5828, 5
      %v5981 = vrot.slane %v5828, 6
      %v5982 = vrot.slane %v5828, 7
      %v5983 = vrot.slane %v5829, 1
      %v5984 = vrot.slane %v5829, 2
      %v5985 = vrot.slane %v5829, 3
      %v5986 = vrot.slane %v5829, 4
      %v5987 = vrot.slane %v5829, 5
      %v5988 = vrot.slane %v5829, 6
      %v5989 = vrot.slane %v5829, 7
      %v6118 = vrot.slane %v5846, 1
      %v6119 = vrot.slane %v5846, 2
      %v6120 = vrot.slane %v5846, 3
      %v6121 = vrot.slane %v5846, 4
      %v6122 = vrot.slane %v5846, 5
      %v6123 = vrot.slane %v5846, 6
      %v6124 = vrot.slane %v5846, 7
      %v6125 = vrot.slane %v5847, 1
      %v6126 = vrot.slane %v5847, 2
      %v6127 = vrot.slane %v5847, 3
      %v6128 = vrot.slane %v5847, 4
      %v6129 = vrot.slane %v5847, 5
      %v6130 = vrot.slane %v5847, 6
      %v6131 = vrot.slane %v5847, 7
      %v6132 = vrot.slane %v5848, 1
      %v6133 = vrot.slane %v5848, 2
      %v6134 = vrot.slane %v5848, 3
      %v6135 = vrot.slane %v5848, 4
      %v6136 = vrot.slane %v5848, 5
      %v6137 = vrot.slane %v5848, 6
      %v6138 = vrot.slane %v5848, 7
      %v6139 = vrot.slane %v5849, 1
      %v6140 = vrot.slane %v5849, 2
      %v6141 = vrot.slane %v5849, 3
      %v6142 = vrot.slane %v5849, 4
      %v6143 = vrot.slane %v5849, 5
      %v6144 = vrot.slane %v5849, 6
      %v6145 = vrot.slane %v5849, 7
      %v6146 = vrot.slane %v5850, 1
      %v6147 = vrot.slane %v5850, 2
      %v6148 = vrot.slane %v5850, 3
      %v6149 = vrot.slane %v5850, 4
      %v6150 = vrot.slane %v5850, 5
      %v6151 = vrot.slane %v5850, 6
      %v6152 = vrot.slane %v5850, 7
      %v6153 = vrot.slane %v5851, 1
      %v6154 = vrot.slane %v5851, 2
      %v6155 = vrot.slane %v5851, 3
      %v6156 = vrot.slane %v5851, 4
      %v6157 = vrot.slane %v5851, 5
      %v6158 = vrot.slane %v5851, 6
      %v6159 = vrot.slane %v5851, 7
      %v6160 = vrot.slane %v5852, 1
      %v6161 = vrot.slane %v5852, 2
      %v6162 = vrot.slane %v5852, 3
      %v6163 = vrot.slane %v5852, 4
      %v6164 = vrot.slane %v5852, 5
      %v6165 = vrot.slane %v5852, 6
      %v6166 = vrot.slane %v5852, 7
      %v6167 = vrot.slane %v5853, 1
      %v6168 = vrot.slane %v5853, 2
      %v6169 = vrot.slane %v5853, 3
      %v6170 = vrot.slane %v5853, 4
      %v6171 = vrot.slane %v5853, 5
      %v6172 = vrot.slane %v5853, 6
      %v6173 = vrot.slane %v5853, 7
      %v6174 = vrot.slane %v5854, 1
      %v6175 = vrot.slane %v5854, 2
      %v6176 = vrot.slane %v5854, 3
      %v6177 = vrot.slane %v5854, 4
      %v6178 = vrot.slane %v5854, 5
      %v6179 = vrot.slane %v5854, 6
      %v6180 = vrot.slane %v5854, 7
      %v6181 = vrot.slane %v5855, 1
      %v6182 = vrot.slane %v5855, 2
      %v6183 = vrot.slane %v5855, 3
      %v6184 = vrot.slane %v5855, 4
      %v6185 = vrot.slane %v5855, 5
      %v6186 = vrot.slane %v5855, 6
      %v6187 = vrot.slane %v5855, 7
      %v6188 = vrot.slane %v5856, 1
      %v6189 = vrot.slane %v5856, 2
      %v6190 = vrot.slane %v5856, 3
      %v6191 = vrot.slane %v5856, 4
      %v6192 = vrot.slane %v5856, 5
      %v6193 = vrot.slane %v5856, 6
      %v6194 = vrot.slane %v5856, 7
      %v6195 = vrot.slane %v5857, 1
      %v6196 = vrot.slane %v5857, 2
      %v6197 = vrot.slane %v5857, 3
      %v6198 = vrot.slane %v5857, 4
      %v6199 = vrot.slane %v5857, 5
      %v6200 = vrot.slane %v5857, 6
      %v6201 = vrot.slane %v5857, 7
      %v6202 = vrot.slane %v5858, 1
      %v6203 = vrot.slane %v5858, 2
      %v6204 = vrot.slane %v5858, 3
      %v6205 = vrot.slane %v5858, 4
      %v6206 = vrot.slane %v5858, 5
      %v6207 = vrot.slane %v5858, 6
      %v6208 = vrot.slane %v5858, 7
      %v6209 = vrot.slane %v5859, 1
      %v6210 = vrot.slane %v5859, 2
      %v6211 = vrot.slane %v5859, 3
      %v6212 = vrot.slane %v5859, 4
      %v6213 = vrot.slane %v5859, 5
      %v6214 = vrot.slane %v5859, 6
      %v6215 = vrot.slane %v5859, 7
      %v6216 = vrot.slane %v5860, 1
      %v6217 = vrot.slane %v5860, 2
      %v6218 = vrot.slane %v5860, 3
      %v6219 = vrot.slane %v5860, 4
      %v6220 = vrot.slane %v5860, 5
      %v6221 = vrot.slane %v5860, 6
      %v6222 = vrot.slane %v5860, 7
      %v6223 = vrot.slane %v5861, 1
      %v6224 = vrot.slane %v5861, 2
      %v6225 = vrot.slane %v5861, 3
      %v6226 = vrot.slane %v5861, 4
      %v6227 = vrot.slane %v5861, 5
      %v6228 = vrot.slane %v5861, 6
      %v6229 = vrot.slane %v5861, 7
      %v6230 = vperm.slane %v5846, 0
      %v6231 = vperm.slane %v6118, 0
      %v6232 = vperm.slane %v6119, 0
      %v6233 = vperm.slane %v6120, 0
      %v6234 = vperm.slane %v6121, 0
      %v6235 = vperm.slane %v6122, 0
      %v6236 = vperm.slane %v6123, 0
      %v6237 = vperm.slane %v6124, 0
      %v6238 = vperm.slane %v5847, 0
      %v6239 = vperm.slane %v6125, 0
      %v6240 = vperm.slane %v6126, 0
      %v6241 = vperm.slane %v6127, 0
      %v6242 = vperm.slane %v6128, 0
      %v6243 = vperm.slane %v6129, 0
      %v6244 = vperm.slane %v6130, 0
      %v6245 = vperm.slane %v6131, 0
      %v6246 = vperm.slane %v5848, 0
      %v6247 = vperm.slane %v6132, 0
      %v6248 = vperm.slane %v6133, 0
      %v6249 = vperm.slane %v6134, 0
      %v6250 = vperm.slane %v6135, 0
      %v6251 = vperm.slane %v6136, 0
      %v6252 = vperm.slane %v6137, 0
      %v6253 = vperm.slane %v6138, 0
      %v6254 = vperm.slane %v5849, 0
      %v6255 = vperm.slane %v6139, 0
      %v6256 = vperm.slane %v6140, 0
      %v6257 = vperm.slane %v6141, 0
      %v6258 = vperm.slane %v6142, 0
      %v6259 = vperm.slane %v6143, 0
      %v6260 = vperm.slane %v6144, 0
      %v6261 = vperm.slane %v6145, 0
      %v6262 = vperm.slane %v5850, 0
      %v6263 = vperm.slane %v6146, 0
      %v6264 = vperm.slane %v6147, 0
      %v6265 = vperm.slane %v6148, 0
      %v6266 = vperm.slane %v6149, 0
      %v6267 = vperm.slane %v6150, 0
      %v6268 = vperm.slane %v6151, 0
      %v6269 = vperm.slane %v6152, 0
      %v6270 = vperm.slane %v5851, 0
      %v6271 = vperm.slane %v6153, 0
      %v6272 = vperm.slane %v6154, 0
      %v6273 = vperm.slane %v6155, 0
      %v6274 = vperm.slane %v6156, 0
      %v6275 = vperm.slane %v6157, 0
      %v6276 = vperm.slane %v6158, 0
      %v6277 = vperm.slane %v6159, 0
      %v6278 = vperm.slane %v5852, 0
      %v6279 = vperm.slane %v6160, 0
      %v6280 = vperm.slane %v6161, 0
      %v6281 = vperm.slane %v6162, 0
      %v6282 = vperm.slane %v6163, 0
      %v6283 = vperm.slane %v6164, 0
      %v6284 = vperm.slane %v6165, 0
      %v6285 = vperm.slane %v6166, 0
      %v6286 = vperm.slane %v5853, 0
      %v6287 = vperm.slane %v6167, 0
      %v6288 = vperm.slane %v6168, 0
      %v6289 = vperm.slane %v6169, 0
      %v6290 = vperm.slane %v6170, 0
      %v6291 = vperm.slane %v6171, 0
      %v6292 = vperm.slane %v6172, 0
      %v6293 = vperm.slane %v6173, 0
      %v6294 = vperm.slane %v5854, 0
      %v6295 = vperm.slane %v6174, 0
      %v6296 = vperm.slane %v6175, 0
      %v6297 = vperm.slane %v6176, 0
      %v6298 = vperm.slane %v6177, 0
      %v6299 = vperm.slane %v6178, 0
      %v6300 = vperm.slane %v6179, 0
      %v6301 = vperm.slane %v6180, 0
      %v6302 = vperm.slane %v5855, 0
      %v6303 = vperm.slane %v6181, 0
      %v6304 = vperm.slane %v6182, 0
      %v6305 = vperm.slane %v6183, 0
      %v6306 = vperm.slane %v6184, 0
      %v6307 = vperm.slane %v6185, 0
      %v6308 = vperm.slane %v6186, 0
      %v6309 = vperm.slane %v6187, 0
      %v6310 = vperm.slane %v5856, 0
      %v6311 = vperm.slane %v6188, 0
      %v6312 = vperm.slane %v6189, 0
      %v6313 = vperm.slane %v6190, 0
      %v6314 = vperm.slane %v6191, 0
      %v6315 = vperm.slane %v6192, 0
      %v6316 = vperm.slane %v6193, 0
      %v6317 = vperm.slane %v6194, 0
      %v6318 = vperm.slane %v5857, 0
      %v6319 = vperm.slane %v6195, 0
      %v6320 = vperm.slane %v6196, 0
      %v6321 = vperm.slane %v6197, 0
      %v6322 = vperm.slane %v6198, 0
      %v6323 = vperm.slane %v6199, 0
      %v6324 = vperm.slane %v6200, 0
      %v6325 = vperm.slane %v6201, 0
      %v6326 = vperm.slane %v5858, 0
      %v6327 = vperm.slane %v6202, 0
      %v6328 = vperm.slane %v6203, 0
      %v6329 = vperm.slane %v6204, 0
      %v6330 = vperm.slane %v6205, 0
      %v6331 = vperm.slane %v6206, 0
      %v6332 = vperm.slane %v6207, 0
      %v6333 = vperm.slane %v6208, 0
      %v6334 = vperm.slane %v5859, 0
      %v6335 = vperm.slane %v6209, 0
      %v6336 = vperm.slane %v6210, 0
      %v6337 = vperm.slane %v6211, 0
      %v6338 = vperm.slane %v6212, 0
      %v6339 = vperm.slane %v6213, 0
      %v6340 = vperm.slane %v6214, 0
      %v6341 = vperm.slane %v6215, 0
      %v6342 = vperm.slane %v5860, 0
      %v6343 = vperm.slane %v6216, 0
      %v6344 = vperm.slane %v6217, 0
      %v6345 = vperm.slane %v6218, 0
      %v6346 = vperm.slane %v6219, 0
      %v6347 = vperm.slane %v6220, 0
      %v6348 = vperm.slane %v6221, 0
      %v6349 = vperm.slane %v6222, 0
      %v6350 = vperm.slane %v5861, 0
      %v6351 = vperm.slane %v6223, 0
      %v6352 = vperm.slane %v6224, 0
      %v6353 = vperm.slane %v6225, 0
      %v6354 = vperm.slane %v6226, 0
      %v6355 = vperm.slane %v6227, 0
      %v6356 = vperm.slane %v6228, 0
      %v6357 = vperm.slane %v6229, 0
      %v6486 = vsel %vm4292, %v5814, %v6230
      %v6487 = vsel %vm4292, %v5878, %v6231
      %v6488 = vsel %vm4292, %v5879, %v6232
      %v6489 = vsel %vm4292, %v5880, %v6233
      %v6490 = vsel %vm4292, %v5881, %v6234
      %v6491 = vsel %vm4292, %v5882, %v6235
      %v6492 = vsel %vm4292, %v5883, %v6236
      %v6493 = vsel %vm4292, %v5884, %v6237
      %v6494 = vsel %vm4292, %v5815, %v6238
      %v6495 = vsel %vm4292, %v5885, %v6239
      %v6496 = vsel %vm4292, %v5886, %v6240
      %v6497 = vsel %vm4292, %v5887, %v6241
      %v6498 = vsel %vm4292, %v5888, %v6242
      %v6499 = vsel %vm4292, %v5889, %v6243
      %v6500 = vsel %vm4292, %v5890, %v6244
      %v6501 = vsel %vm4292, %v5891, %v6245
      %v6502 = vsel %vm4292, %v5816, %v6246
      %v6503 = vsel %vm4292, %v5892, %v6247
      %v6504 = vsel %vm4292, %v5893, %v6248
      %v6505 = vsel %vm4292, %v5894, %v6249
      %v6506 = vsel %vm4292, %v5895, %v6250
      %v6507 = vsel %vm4292, %v5896, %v6251
      %v6508 = vsel %vm4292, %v5897, %v6252
      %v6509 = vsel %vm4292, %v5898, %v6253
      %v6510 = vsel %vm4292, %v5817, %v6254
      %v6511 = vsel %vm4292, %v5899, %v6255
      %v6512 = vsel %vm4292, %v5900, %v6256
      %v6513 = vsel %vm4292, %v5901, %v6257
      %v6514 = vsel %vm4292, %v5902, %v6258
      %v6515 = vsel %vm4292, %v5903, %v6259
      %v6516 = vsel %vm4292, %v5904, %v6260
      %v6517 = vsel %vm4292, %v5905, %v6261
      %v6518 = vsel %vm4292, %v5818, %v6262
      %v6519 = vsel %vm4292, %v5906, %v6263
      %v6520 = vsel %vm4292, %v5907, %v6264
      %v6521 = vsel %vm4292, %v5908, %v6265
      %v6522 = vsel %vm4292, %v5909, %v6266
      %v6523 = vsel %vm4292, %v5910, %v6267
      %v6524 = vsel %vm4292, %v5911, %v6268
      %v6525 = vsel %vm4292, %v5912, %v6269
      %v6526 = vsel %vm4292, %v5819, %v6270
      %v6527 = vsel %vm4292, %v5913, %v6271
      %v6528 = vsel %vm4292, %v5914, %v6272
      %v6529 = vsel %vm4292, %v5915, %v6273
      %v6530 = vsel %vm4292, %v5916, %v6274
      %v6531 = vsel %vm4292, %v5917, %v6275
      %v6532 = vsel %vm4292, %v5918, %v6276
      %v6533 = vsel %vm4292, %v5919, %v6277
      %v6534 = vsel %vm4292, %v5820, %v6278
      %v6535 = vsel %vm4292, %v5920, %v6279
      %v6536 = vsel %vm4292, %v5921, %v6280
      %v6537 = vsel %vm4292, %v5922, %v6281
      %v6538 = vsel %vm4292, %v5923, %v6282
      %v6539 = vsel %vm4292, %v5924, %v6283
      %v6540 = vsel %vm4292, %v5925, %v6284
      %v6541 = vsel %vm4292, %v5926, %v6285
      %v6542 = vsel %vm4292, %v5821, %v6286
      %v6543 = vsel %vm4292, %v5927, %v6287
      %v6544 = vsel %vm4292, %v5928, %v6288
      %v6545 = vsel %vm4292, %v5929, %v6289
      %v6546 = vsel %vm4292, %v5930, %v6290
      %v6547 = vsel %vm4292, %v5931, %v6291
      %v6548 = vsel %vm4292, %v5932, %v6292
      %v6549 = vsel %vm4292, %v5933, %v6293
      %v6550 = vsel %vm4292, %v5822, %v6294
      %v6551 = vsel %vm4292, %v5934, %v6295
      %v6552 = vsel %vm4292, %v5935, %v6296
      %v6553 = vsel %vm4292, %v5936, %v6297
      %v6554 = vsel %vm4292, %v5937, %v6298
      %v6555 = vsel %vm4292, %v5938, %v6299
      %v6556 = vsel %vm4292, %v5939, %v6300
      %v6557 = vsel %vm4292, %v5940, %v6301
      %v6558 = vsel %vm4292, %v5823, %v6302
      %v6559 = vsel %vm4292, %v5941, %v6303
      %v6560 = vsel %vm4292, %v5942, %v6304
      %v6561 = vsel %vm4292, %v5943, %v6305
      %v6562 = vsel %vm4292, %v5944, %v6306
      %v6563 = vsel %vm4292, %v5945, %v6307
      %v6564 = vsel %vm4292, %v5946, %v6308
      %v6565 = vsel %vm4292, %v5947, %v6309
      %v6566 = vsel %vm4292, %v5824, %v6310
      %v6567 = vsel %vm4292, %v5948, %v6311
      %v6568 = vsel %vm4292, %v5949, %v6312
      %v6569 = vsel %vm4292, %v5950, %v6313
      %v6570 = vsel %vm4292, %v5951, %v6314
      %v6571 = vsel %vm4292, %v5952, %v6315
      %v6572 = vsel %vm4292, %v5953, %v6316
      %v6573 = vsel %vm4292, %v5954, %v6317
      %v6574 = vsel %vm4292, %v5825, %v6318
      %v6575 = vsel %vm4292, %v5955, %v6319
      %v6576 = vsel %vm4292, %v5956, %v6320
      %v6577 = vsel %vm4292, %v5957, %v6321
      %v6578 = vsel %vm4292, %v5958, %v6322
      %v6579 = vsel %vm4292, %v5959, %v6323
      %v6580 = vsel %vm4292, %v5960, %v6324
      %v6581 = vsel %vm4292, %v5961, %v6325
      %v6582 = vsel %vm4292, %v5826, %v6326
      %v6583 = vsel %vm4292, %v5962, %v6327
      %v6584 = vsel %vm4292, %v5963, %v6328
      %v6585 = vsel %vm4292, %v5964, %v6329
      %v6586 = vsel %vm4292, %v5965, %v6330
      %v6587 = vsel %vm4292, %v5966, %v6331
      %v6588 = vsel %vm4292, %v5967, %v6332
      %v6589 = vsel %vm4292, %v5968, %v6333
      %v6590 = vsel %vm4292, %v5827, %v6334
      %v6591 = vsel %vm4292, %v5969, %v6335
      %v6592 = vsel %vm4292, %v5970, %v6336
      %v6593 = vsel %vm4292, %v5971, %v6337
      %v6594 = vsel %vm4292, %v5972, %v6338
      %v6595 = vsel %vm4292, %v5973, %v6339
      %v6596 = vsel %vm4292, %v5974, %v6340
      %v6597 = vsel %vm4292, %v5975, %v6341
      %v6598 = vsel %vm4292, %v5828, %v6342
      %v6599 = vsel %vm4292, %v5976, %v6343
      %v6600 = vsel %vm4292, %v5977, %v6344
      %v6601 = vsel %vm4292, %v5978, %v6345
      %v6602 = vsel %vm4292, %v5979, %v6346
      %v6603 = vsel %vm4292, %v5980, %v6347
      %v6604 = vsel %vm4292, %v5981, %v6348
      %v6605 = vsel %vm4292, %v5982, %v6349
      %v6606 = vsel %vm4292, %v5829, %v6350
      %v6607 = vsel %vm4292, %v5983, %v6351
      %v6608 = vsel %vm4292, %v5984, %v6352
      %v6609 = vsel %vm4292, %v5985, %v6353
      %v6610 = vsel %vm4292, %v5986, %v6354
      %v6611 = vsel %vm4292, %v5987, %v6355
      %v6612 = vsel %vm4292, %v5988, %v6356
      %v6613 = vsel %vm4292, %v5989, %v6357
      %v6614 = vld [vmem:[%s9] sm:$0xf]
      %v6615 = vld [vmem:[%s9 + $0x4] sm:$0xf]
      %v6616 = vld [vmem:[%s9 + $0x8] sm:$0xf]
      %v6617 = vld [vmem:[%s9 + $0xc] sm:$0xf]
      %v6618 = vld [vmem:[%s9 + $0x10] sm:$0xf]
      %v6619 = vld [vmem:[%s9 + $0x14] sm:$0xf]
      %v6620 = vld [vmem:[%s9 + $0x18] sm:$0xf]
      %v6621 = vld [vmem:[%s9 + $0x1c] sm:$0xf]
      %v6622 = vld [vmem:[%s9 + $0x20] sm:$0xf]
      %v6623 = vld [vmem:[%s9 + $0x24] sm:$0xf]
      %v6624 = vld [vmem:[%s9 + $0x28] sm:$0xf]
      %v6625 = vld [vmem:[%s9 + $0x2c] sm:$0xf]
      %v6626 = vld [vmem:[%s9 + $0x30] sm:$0xf]
      %v6627 = vld [vmem:[%s9 + $0x34] sm:$0xf]
      %v6628 = vld [vmem:[%s9 + $0x38] sm:$0xf]
      %v6629 = vld [vmem:[%s9 + $0x3c] sm:$0xf]
      %v6630 = vld [vmem:[%s9 + $0x40] sm:$0xf]
      %v6631 = vld [vmem:[%s9 + $0x44] sm:$0xf]
      %v6632 = vld [vmem:[%s9 + $0x48] sm:$0xf]
      %v6633 = vld [vmem:[%s9 + $0x4c] sm:$0xf]
      %v6634 = vld [vmem:[%s9 + $0x50] sm:$0xf]
      %v6635 = vld [vmem:[%s9 + $0x54] sm:$0xf]
      %v6636 = vld [vmem:[%s9 + $0x58] sm:$0xf]
      %v6637 = vld [vmem:[%s9 + $0x5c] sm:$0xf]
      %v6638 = vld [vmem:[%s9 + $0x60] sm:$0xf]
      %v6639 = vld [vmem:[%s9 + $0x64] sm:$0xf]
      %v6640 = vld [vmem:[%s9 + $0x68] sm:$0xf]
      %v6641 = vld [vmem:[%s9 + $0x6c] sm:$0xf]
      %v6642 = vld [vmem:[%s9 + $0x70] sm:$0xf]
      %v6643 = vld [vmem:[%s9 + $0x74] sm:$0xf]
      %v6644 = vld [vmem:[%s9 + $0x78] sm:$0xf]
      %v6645 = vld [vmem:[%s9 + $0x7c] sm:$0xf]
      %v6646 = vld [vmem:[%s9 + $0x80] sm:$0xf]
      %v6647 = vld [vmem:[%s9 + $0x84] sm:$0xf]
      %v6648 = vld [vmem:[%s9 + $0x88] sm:$0xf]
      %v6649 = vld [vmem:[%s9 + $0x8c] sm:$0xf]
      %6778 = vst [vmem:[#allocation1] ss:$4 sm:$0xff] %v6486
      %s6779 = scalar_lea.vmem [#allocation1], 1
      %6780 = vst [vmem:[%s6779] ss:$4 sm:$0xff] %v6487
      %s6781 = scalar_lea.vmem [#allocation1], 2
      %6782 = vst [vmem:[%s6781] ss:$4 sm:$0xff] %v6488
      %s6783 = scalar_lea.vmem [#allocation1], 3
      %6784 = vst [vmem:[%s6783] ss:$4 sm:$0xff] %v6489
      %s6785 = scalar_lea.vmem [#allocation1], 32
      %6786 = vst [vmem:[%s6785] ss:$4 sm:$0xff] %v6490
      %s6787 = scalar_lea.vmem [#allocation1], 33
      %6788 = vst [vmem:[%s6787] ss:$4 sm:$0xff] %v6491
      %s6789 = scalar_lea.vmem [#allocation1], 34
      %6790 = vst [vmem:[%s6789] ss:$4 sm:$0xff] %v6492
      %s6791 = scalar_lea.vmem [#allocation1], 35
      %6792 = vst [vmem:[%s6791] ss:$4 sm:$0xff] %v6493
      %v6793 = vld.sshfl [vmem:[#allocation1] sm:$0xff pattern:$0x73625140]
      %v6794 = vld.sshfl [vmem:[#allocation1 + $0x20] sm:$0xff pattern:$0x73625140]
      %6795 = vst [vmem:[#allocation1] ss:$4 sm:$0xff] %v6494
      %6796 = vst [vmem:[%s6779] ss:$4 sm:$0xff] %v6495
      %6797 = vst [vmem:[%s6781] ss:$4 sm:$0xff] %v6496
      %6798 = vst [vmem:[%s6783] ss:$4 sm:$0xff] %v6497
      %6799 = vst [vmem:[%s6785] ss:$4 sm:$0xff] %v6498
      %6800 = vst [vmem:[%s6787] ss:$4 sm:$0xff] %v6499
      %6801 = vst [vmem:[%s6789] ss:$4 sm:$0xff] %v6500
      %6802 = vst [vmem:[%s6791] ss:$4 sm:$0xff] %v6501
      %v6803 = vld.sshfl [vmem:[#allocation1] sm:$0xff pattern:$0x73625140]
      %v6804 = vld.sshfl [vmem:[#allocation1 + $0x20] sm:$0xff pattern:$0x73625140]
      %6805 = vst [vmem:[#allocation1] ss:$4 sm:$0xff] %v6502
      %6806 = vst [vmem:[%s6779] ss:$4 sm:$0xff] %v6503
      %6807 = vst [vmem:[%s6781] ss:$4 sm:$0xff] %v6504
      %6808 = vst [vmem:[%s6783] ss:$4 sm:$0xff] %v6505
      %6809 = vst [vmem:[%s6785] ss:$4 sm:$0xff] %v6506
      %6810 = vst [vmem:[%s6787] ss:$4 sm:$0xff] %v6507
      %6811 = vst [vmem:[%s6789] ss:$4 sm:$0xff] %v6508
      %6812 = vst [vmem:[%s6791] ss:$4 sm:$0xff] %v6509
      %v6813 = vld.sshfl [vmem:[#allocation1] sm:$0xff pattern:$0x73625140]
      %v6814 = vld.sshfl [vmem:[#allocation1 + $0x20] sm:$0xff pattern:$0x73625140]
      %6815 = vst [vmem:[#allocation1] ss:$4 sm:$0xff] %v6510
      %6816 = vst [vmem:[%s6779] ss:$4 sm:$0xff] %v6511
      %6817 = vst [vmem:[%s6781] ss:$4 sm:$0xff] %v6512
      %6818 = vst [vmem:[%s6783] ss:$4 sm:$0xff] %v6513
      %6819 = vst [vmem:[%s6785] ss:$4 sm:$0xff] %v6514
      %6820 = vst [vmem:[%s6787] ss:$4 sm:$0xff] %v6515
      %6821 = vst [vmem:[%s6789] ss:$4 sm:$0xff] %v6516
      %6822 = vst [vmem:[%s6791] ss:$4 sm:$0xff] %v6517
      %v6823 = vld.sshfl [vmem:[#allocation1] sm:$0xff pattern:$0x73625140]
      %v6824 = vld.sshfl [vmem:[#allocation1 + $0x20] sm:$0xff pattern:$0x73625140]
      %6825 = vst [vmem:[#allocation1] ss:$4 sm:$0xff] %v6518
      %6826 = vst [vmem:[%s6779] ss:$4 sm:$0xff] %v6519
      %6827 = vst [vmem:[%s6781] ss:$4 sm:$0xff] %v6520
      %6828 = vst [vmem:[%s6783] ss:$4 sm:$0xff] %v6521
      %6829 = vst [vmem:[%s6785] ss:$4 sm:$0xff] %v6522
      %6830 = vst [vmem:[%s6787] ss:$4 sm:$0xff] %v6523
      %6831 = vst [vmem:[%s6789] ss:$4 sm:$0xff] %v6524
      %6832 = vst [vmem:[%s6791] ss:$4 sm:$0xff] %v6525
      %v6833 = vld.sshfl [vmem:[#allocation1] sm:$0xff pattern:$0x73625140]
      %v6834 = vld.sshfl [vmem:[#allocation1 + $0x20] sm:$0xff pattern:$0x73625140]
      %6835 = vst [vmem:[#allocation1] ss:$4 sm:$0xff] %v6526
      %6836 = vst [vmem:[%s6779] ss:$4 sm:$0xff] %v6527
      %6837 = vst [vmem:[%s6781] ss:$4 sm:$0xff] %v6528
      %6838 = vst [vmem:[%s6783] ss:$4 sm:$0xff] %v6529
      %6839 = vst [vmem:[%s6785] ss:$4 sm:$0xff] %v6530
      %6840 = vst [vmem:[%s6787] ss:$4 sm:$0xff] %v6531
      %6841 = vst [vmem:[%s6789] ss:$4 sm:$0xff] %v6532
      %6842 = vst [vmem:[%s6791] ss:$4 sm:$0xff] %v6533
      %v6843 = vld.sshfl [vmem:[#allocation1] sm:$0xff pattern:$0x73625140]
      %v6844 = vld.sshfl [vmem:[#allocation1 + $0x20] sm:$0xff pattern:$0x73625140]
      %6845 = vst [vmem:[#allocation1] ss:$4 sm:$0xff] %v6534
      %6846 = vst [vmem:[%s6779] ss:$4 sm:$0xff] %v6535
      %6847 = vst [vmem:[%s6781] ss:$4 sm:$0xff] %v6536
      %6848 = vst [vmem:[%s6783] ss:$4 sm:$0xff] %v6537
      %6849 = vst [vmem:[%s6785] ss:$4 sm:$0xff] %v6538
      %6850 = vst [vmem:[%s6787] ss:$4 sm:$0xff] %v6539
      %6851 = vst [vmem:[%s6789] ss:$4 sm:$0xff] %v6540
      %6852 = vst [vmem:[%s6791] ss:$4 sm:$0xff] %v6541
      %v6853 = vld.sshfl [vmem:[#allocation1] sm:$0xff pattern:$0x73625140]
      %v6854 = vld.sshfl [vmem:[#allocation1 + $0x20] sm:$0xff pattern:$0x73625140]
      %6855 = vst [vmem:[#allocation1] ss:$4 sm:$0xff] %v6542
      %6856 = vst [vmem:[%s6779] ss:$4 sm:$0xff] %v6543
      %6857 = vst [vmem:[%s6781] ss:$4 sm:$0xff] %v6544
      %6858 = vst [vmem:[%s6783] ss:$4 sm:$0xff] %v6545
      %6859 = vst [vmem:[%s6785] ss:$4 sm:$0xff] %v6546
      %6860 = vst [vmem:[%s6787] ss:$4 sm:$0xff] %v6547
      %6861 = vst [vmem:[%s6789] ss:$4 sm:$0xff] %v6548
      %6862 = vst [vmem:[%s6791] ss:$4 sm:$0xff] %v6549
      %v6863 = vld.sshfl [vmem:[#allocation1] sm:$0xff pattern:$0x73625140]
      %v6864 = vld.sshfl [vmem:[#allocation1 + $0x20] sm:$0xff pattern:$0x73625140]
      %6865 = vst [vmem:[#allocation1] ss:$4 sm:$0xff] %v6550
      %6866 = vst [vmem:[%s6779] ss:$4 sm:$0xff] %v6551
      %6867 = vst [vmem:[%s6781] ss:$4 sm:$0xff] %v6552
      %6868 = vst [vmem:[%s6783] ss:$4 sm:$0xff] %v6553
      %6869 = vst [vmem:[%s6785] ss:$4 sm:$0xff] %v6554
      %6870 = vst [vmem:[%s6787] ss:$4 sm:$0xff] %v6555
      %6871 = vst [vmem:[%s6789] ss:$4 sm:$0xff] %v6556
      %6872 = vst [vmem:[%s6791] ss:$4 sm:$0xff] %v6557
      %v6873 = vld.sshfl [vmem:[#allocation1] sm:$0xff pattern:$0x73625140]
      %v6874 = vld.sshfl [vmem:[#allocation1 + $0x20] sm:$0xff pattern:$0x73625140]
      %6875 = vst [vmem:[#allocation1] ss:$4 sm:$0xff] %v6558
      %6876 = vst [vmem:[%s6779] ss:$4 sm:$0xff] %v6559
      %6877 = vst [vmem:[%s6781] ss:$4 sm:$0xff] %v6560
      %6878 = vst [vmem:[%s6783] ss:$4 sm:$0xff] %v6561
      %6879 = vst [vmem:[%s6785] ss:$4 sm:$0xff] %v6562
      %6880 = vst [vmem:[%s6787] ss:$4 sm:$0xff] %v6563
      %6881 = vst [vmem:[%s6789] ss:$4 sm:$0xff] %v6564
      %6882 = vst [vmem:[%s6791] ss:$4 sm:$0xff] %v6565
      %v6883 = vld.sshfl [vmem:[#allocation1] sm:$0xff pattern:$0x73625140]
      %v6884 = vld.sshfl [vmem:[#allocation1 + $0x20] sm:$0xff pattern:$0x73625140]
      %6885 = vst [vmem:[#allocation1] ss:$4 sm:$0xff] %v6566
      %6886 = vst [vmem:[%s6779] ss:$4 sm:$0xff] %v6567
      %6887 = vst [vmem:[%s6781] ss:$4 sm:$0xff] %v6568
      %6888 = vst [vmem:[%s6783] ss:$4 sm:$0xff] %v6569
      %6889 = vst [vmem:[%s6785] ss:$4 sm:$0xff] %v6570
      %6890 = vst [vmem:[%s6787] ss:$4 sm:$0xff] %v6571
      %6891 = vst [vmem:[%s6789] ss:$4 sm:$0xff] %v6572
      %6892 = vst [vmem:[%s6791] ss:$4 sm:$0xff] %v6573
      %v6893 = vld.sshfl [vmem:[#allocation1] sm:$0xff pattern:$0x73625140]
      %v6894 = vld.sshfl [vmem:[#allocation1 + $0x20] sm:$0xff pattern:$0x73625140]
      %6895 = vst [vmem:[#allocation1] ss:$4 sm:$0xff] %v6574
      %6896 = vst [vmem:[%s6779] ss:$4 sm:$0xff] %v6575
      %6897 = vst [vmem:[%s6781] ss:$4 sm:$0xff] %v6576
      %6898 = vst [vmem:[%s6783] ss:$4 sm:$0xff] %v6577
      %6899 = vst [vmem:[%s6785] ss:$4 sm:$0xff] %v6578
      %6900 = vst [vmem:[%s6787] ss:$4 sm:$0xff] %v6579
      %6901 = vst [vmem:[%s6789] ss:$4 sm:$0xff] %v6580
      %6902 = vst [vmem:[%s6791] ss:$4 sm:$0xff] %v6581
      %v6903 = vld.sshfl [vmem:[#allocation1] sm:$0xff pattern:$0x73625140]
      %v6904 = vld.sshfl [vmem:[#allocation1 + $0x20] sm:$0xff pattern:$0x73625140]
      %6905 = vst [vmem:[#allocation1] ss:$4 sm:$0xff] %v6582
      %6906 = vst [vmem:[%s6779] ss:$4 sm:$0xff] %v6583
      %6907 = vst [vmem:[%s6781] ss:$4 sm:$0xff] %v6584
      %6908 = vst [vmem:[%s6783] ss:$4 sm:$0xff] %v6585
      %6909 = vst [vmem:[%s6785] ss:$4 sm:$0xff] %v6586
      %6910 = vst [vmem:[%s6787] ss:$4 sm:$0xff] %v6587
      %6911 = vst [vmem:[%s6789] ss:$4 sm:$0xff] %v6588
      %6912 = vst [vmem:[%s6791] ss:$4 sm:$0xff] %v6589
      %v6913 = vld.sshfl [vmem:[#allocation1] sm:$0xff pattern:$0x73625140]
      %v6914 = vld.sshfl [vmem:[#allocation1 + $0x20] sm:$0xff pattern:$0x73625140]
      %6915 = vst [vmem:[#allocation1] ss:$4 sm:$0xff] %v6590
      %6916 = vst [vmem:[%s6779] ss:$4 sm:$0xff] %v6591
      %6917 = vst [vmem:[%s6781] ss:$4 sm:$0xff] %v6592
      %6918 = vst [vmem:[%s6783] ss:$4 sm:$0xff] %v6593
      %6919 = vst [vmem:[%s6785] ss:$4 sm:$0xff] %v6594
      %6920 = vst [vmem:[%s6787] ss:$4 sm:$0xff] %v6595
      %6921 = vst [vmem:[%s6789] ss:$4 sm:$0xff] %v6596
      %6922 = vst [vmem:[%s6791] ss:$4 sm:$0xff] %v6597
      %v6923 = vld.sshfl [vmem:[#allocation1] sm:$0xff pattern:$0x73625140]
      %v6924 = vld.sshfl [vmem:[#allocation1 + $0x20] sm:$0xff pattern:$0x73625140]
      %6925 = vst [vmem:[#allocation1] ss:$4 sm:$0xff] %v6598
      %6926 = vst [vmem:[%s6779] ss:$4 sm:$0xff] %v6599
      %6927 = vst [vmem:[%s6781] ss:$4 sm:$0xff] %v6600
      %6928 = vst [vmem:[%s6783] ss:$4 sm:$0xff] %v6601
      %6929 = vst [vmem:[%s6785] ss:$4 sm:$0xff] %v6602
      %6930 = vst [vmem:[%s6787] ss:$4 sm:$0xff] %v6603
      %6931 = vst [vmem:[%s6789] ss:$4 sm:$0xff] %v6604
      %6932 = vst [vmem:[%s6791] ss:$4 sm:$0xff] %v6605
      %v6933 = vld.sshfl [vmem:[#allocation1] sm:$0xff pattern:$0x73625140]
      %v6934 = vld.sshfl [vmem:[#allocation1 + $0x20] sm:$0xff pattern:$0x73625140]
      %6935 = vst [vmem:[#allocation1] ss:$4 sm:$0xff] %v6606
      %6936 = vst [vmem:[%s6779] ss:$4 sm:$0xff] %v6607
      %6937 = vst [vmem:[%s6781] ss:$4 sm:$0xff] %v6608
      %6938 = vst [vmem:[%s6783] ss:$4 sm:$0xff] %v6609
      %6939 = vst [vmem:[%s6785] ss:$4 sm:$0xff] %v6610
      %6940 = vst [vmem:[%s6787] ss:$4 sm:$0xff] %v6611
      %6941 = vst [vmem:[%s6789] ss:$4 sm:$0xff] %v6612
      %6942 = vst [vmem:[%s6791] ss:$4 sm:$0xff] %v6613
      %v6943 = vld.sshfl [vmem:[#allocation1] sm:$0xff pattern:$0x73625140]
      %v6944 = vld.sshfl [vmem:[#allocation1 + $0x20] sm:$0xff pattern:$0x73625140]
      %v6977 = vpack.c.bf16 %v6793, %v6793
      %v6978 = vpack.c.bf16 %v6794, %v6794
      %v6979 = vpack.c.bf16 %v6803, %v6803
      %v6980 = vpack.c.bf16 %v6804, %v6804
      %v6981 = vpack.c.bf16 %v6813, %v6813
      %v6982 = vpack.c.bf16 %v6814, %v6814
      %v6983 = vpack.c.bf16 %v6823, %v6823
      %v6984 = vpack.c.bf16 %v6824, %v6824
      %v6985 = vpack.c.bf16 %v6833, %v6833
      %v6986 = vpack.c.bf16 %v6834, %v6834
      %v6987 = vpack.c.bf16 %v6843, %v6843
      %v6988 = vpack.c.bf16 %v6844, %v6844
      %v6989 = vpack.c.bf16 %v6853, %v6853
      %v6990 = vpack.c.bf16 %v6854, %v6854
      %v6991 = vpack.c.bf16 %v6863, %v6863
      %v6992 = vpack.c.bf16 %v6864, %v6864
      %v6993 = vpack.c.bf16 %v6873, %v6873
      %v6994 = vpack.c.bf16 %v6874, %v6874
      %v6995 = vpack.c.bf16 %v6883, %v6883
      %v6996 = vpack.c.bf16 %v6884, %v6884
      %v6997 = vpack.c.bf16 %v6893, %v6893
      %v6998 = vpack.c.bf16 %v6894, %v6894
      %v6999 = vpack.c.bf16 %v6903, %v6903
      %v7000 = vpack.c.bf16 %v6904, %v6904
      %v7001 = vpack.c.bf16 %v6913, %v6913
      %v7002 = vpack.c.bf16 %v6914, %v6914
      %v7003 = vpack.c.bf16 %v6923, %v6923
      %v7004 = vpack.c.bf16 %v6924, %v6924
      %v7005 = vpack.c.bf16 %v6933, %v6933
      %v7006 = vpack.c.bf16 %v6934, %v6934
      %v7007 = vpack.c.bf16 %v6943, %v6943
      %v7008 = vpack.c.bf16 %v6944, %v6944
      %v7041 = vunpack.c.l.b16 %v6977
      %v7042 = vunpack.c.l.b16 %v6978
      %v7043 = vunpack.c.l.b16 %v6979
      %v7044 = vunpack.c.l.b16 %v6980
      %v7045 = vunpack.c.l.b16 %v6981
      %v7046 = vunpack.c.l.b16 %v6982
      %v7047 = vunpack.c.l.b16 %v6983
      %v7048 = vunpack.c.l.b16 %v6984
      %v7049 = vunpack.c.l.b16 %v6985
      %v7050 = vunpack.c.l.b16 %v6986
      %v7051 = vunpack.c.l.b16 %v6987
      %v7052 = vunpack.c.l.b16 %v6988
      %v7053 = vunpack.c.l.b16 %v6989
      %v7054 = vunpack.c.l.b16 %v6990
      %v7055 = vunpack.c.l.b16 %v6991
      %v7056 = vunpack.c.l.b16 %v6992
      %v7057 = vunpack.c.l.b16 %v6993
      %v7058 = vunpack.c.l.b16 %v6994
      %v7059 = vunpack.c.l.b16 %v6995
      %v7060 = vunpack.c.l.b16 %v6996
      %v7061 = vunpack.c.l.b16 %v6997
      %v7062 = vunpack.c.l.b16 %v6998
      %v7063 = vunpack.c.l.b16 %v6999
      %v7064 = vunpack.c.l.b16 %v7000
      %v7065 = vunpack.c.l.b16 %v7001
      %v7066 = vunpack.c.l.b16 %v7002
      %v7067 = vunpack.c.l.b16 %v7003
      %v7068 = vunpack.c.l.b16 %v7004
      %v7069 = vunpack.c.l.b16 %v7005
      %v7070 = vunpack.c.l.b16 %v7006
      %v7071 = vunpack.c.l.b16 %v7007
      %v7072 = vunpack.c.l.b16 %v7008
      %v7073 = vpack.c.b16 %v7042, %v7041
      %v7074 = vpack.c.b16 %v7044, %v7043
      %v7075 = vpack.c.b16 %v7046, %v7045
      %v7076 = vpack.c.b16 %v7048, %v7047
      %v7077 = vpack.c.b16 %v7050, %v7049
      %v7078 = vpack.c.b16 %v7052, %v7051
      %v7079 = vpack.c.b16 %v7054, %v7053
      %v7080 = vpack.c.b16 %v7056, %v7055
      %v7081 = vpack.c.b16 %v7058, %v7057
      %v7082 = vpack.c.b16 %v7060, %v7059
      %v7083 = vpack.c.b16 %v7062, %v7061
      %v7084 = vpack.c.b16 %v7064, %v7063
      %v7085 = vpack.c.b16 %v7066, %v7065
      %v7086 = vpack.c.b16 %v7068, %v7067
      %v7087 = vpack.c.b16 %v7070, %v7069
      %v7088 = vpack.c.b16 %v7072, %v7071
      %v7090 = vshrl.u32 %v7073, 16
      %v7092 = vrot.slane %v7090, 7
      %v7093 = vshll.u32 %v7073, 16
      %v7095 = vor.u32 %v7092, %v7093
      %v7097 = vshrl.u32 %v7074, 16
      %v7099 = vrot.slane %v7097, 7
      %v7100 = vshll.u32 %v7074, 16
      %v7102 = vor.u32 %v7099, %v7100
      %v7104 = vshrl.u32 %v7075, 16
      %v7106 = vrot.slane %v7104, 7
      %v7107 = vshll.u32 %v7075, 16
      %v7109 = vor.u32 %v7106, %v7107
      %v7111 = vshrl.u32 %v7076, 16
      %v7113 = vrot.slane %v7111, 7
      %v7114 = vshll.u32 %v7076, 16
      %v7116 = vor.u32 %v7113, %v7114
      %v7118 = vshrl.u32 %v7077, 16
      %v7120 = vrot.slane %v7118, 7
      %v7121 = vshll.u32 %v7077, 16
      %v7123 = vor.u32 %v7120, %v7121
      %v7125 = vshrl.u32 %v7078, 16
      %v7127 = vrot.slane %v7125, 7
      %v7128 = vshll.u32 %v7078, 16
      %v7130 = vor.u32 %v7127, %v7128
      %v7132 = vshrl.u32 %v7079, 16
      %v7134 = vrot.slane %v7132, 7
      %v7135 = vshll.u32 %v7079, 16
      %v7137 = vor.u32 %v7134, %v7135
      %v7139 = vshrl.u32 %v7080, 16
      %v7141 = vrot.slane %v7139, 7
      %v7142 = vshll.u32 %v7080, 16
      %v7144 = vor.u32 %v7141, %v7142
      %v7146 = vshrl.u32 %v7081, 16
      %v7148 = vrot.slane %v7146, 7
      %v7149 = vshll.u32 %v7081, 16
      %v7151 = vor.u32 %v7148, %v7149
      %v7153 = vshrl.u32 %v7082, 16
      %v7155 = vrot.slane %v7153, 7
      %v7156 = vshll.u32 %v7082, 16
      %v7158 = vor.u32 %v7155, %v7156
      %v7160 = vshrl.u32 %v7083, 16
      %v7162 = vrot.slane %v7160, 7
      %v7163 = vshll.u32 %v7083, 16
      %v7165 = vor.u32 %v7162, %v7163
      %v7167 = vshrl.u32 %v7084, 16
      %v7169 = vrot.slane %v7167, 7
      %v7170 = vshll.u32 %v7084, 16
      %v7172 = vor.u32 %v7169, %v7170
      %v7174 = vshrl.u32 %v7085, 16
      %v7176 = vrot.slane %v7174, 7
      %v7177 = vshll.u32 %v7085, 16
      %v7179 = vor.u32 %v7176, %v7177
      %v7181 = vshrl.u32 %v7086, 16
      %v7183 = vrot.slane %v7181, 7
      %v7184 = vshll.u32 %v7086, 16
      %v7186 = vor.u32 %v7183, %v7184
      %v7188 = vshrl.u32 %v7087, 16
      %v7190 = vrot.slane %v7188, 7
      %v7191 = vshll.u32 %v7087, 16
      %v7193 = vor.u32 %v7190, %v7191
      %v7195 = vshrl.u32 %v7088, 16
      %v7197 = vrot.slane %v7195, 7
      %v7198 = vshll.u32 %v7088, 16
      %v7200 = vor.u32 %v7197, %v7198
      %v7217 = vsel %vm733, 0, %v7095
      %v7218 = vsel %vm733, 0, %v7102
      %v7219 = vsel %vm733, 0, %v7109
      %v7220 = vsel %vm733, 0, %v7116
      %v7221 = vsel %vm733, 0, %v7123
      %v7222 = vsel %vm733, 0, %v7130
      %v7223 = vsel %vm733, 0, %v7137
      %v7224 = vsel %vm733, 0, %v7144
      %v7225 = vsel %vm733, 0, %v7151
      %v7226 = vsel %vm733, 0, %v7158
      %v7227 = vsel %vm733, 0, %v7165
      %v7228 = vsel %vm733, 0, %v7172
      %v7229 = vsel %vm733, 0, %v7179
      %v7230 = vsel %vm733, 0, %v7186
      %v7231 = vsel %vm733, 0, %v7193
      %v7232 = vsel %vm733, 0, %v7200
      %v7233 = vrot.slane %v7093, 1
      %v7234 = vor.u32 %v7090, %v7233
      %v7235 = vrot.slane %v7100, 1
      %v7236 = vor.u32 %v7097, %v7235
      %v7237 = vrot.slane %v7107, 1
      %v7238 = vor.u32 %v7104, %v7237
      %v7239 = vrot.slane %v7114, 1
      %v7240 = vor.u32 %v7111, %v7239
      %v7241 = vrot.slane %v7121, 1
      %v7242 = vor.u32 %v7118, %v7241
      %v7243 = vrot.slane %v7128, 1
      %v7244 = vor.u32 %v7125, %v7243
      %v7245 = vrot.slane %v7135, 1
      %v7246 = vor.u32 %v7132, %v7245
      %v7247 = vrot.slane %v7142, 1
      %v7248 = vor.u32 %v7139, %v7247
      %v7249 = vrot.slane %v7149, 1
      %v7250 = vor.u32 %v7146, %v7249
      %v7251 = vrot.slane %v7156, 1
      %v7252 = vor.u32 %v7153, %v7251
      %v7253 = vrot.slane %v7163, 1
      %v7254 = vor.u32 %v7160, %v7253
      %v7255 = vrot.slane %v7170, 1
      %v7256 = vor.u32 %v7167, %v7255
      %v7257 = vrot.slane %v7177, 1
      %v7258 = vor.u32 %v7174, %v7257
      %v7259 = vrot.slane %v7184, 1
      %v7260 = vor.u32 %v7181, %v7259
      %v7261 = vrot.slane %v7191, 1
      %v7262 = vor.u32 %v7188, %v7261
      %v7263 = vrot.slane %v7198, 1
      %v7264 = vor.u32 %v7195, %v7263
      %v7281 = vsel %vm804, %v7234, 0
      %v7282 = vsel %vm804, %v7236, 0
      %v7283 = vsel %vm804, %v7238, 0
      %v7284 = vsel %vm804, %v7240, 0
      %v7285 = vsel %vm804, %v7242, 0
      %v7286 = vsel %vm804, %v7244, 0
      %v7287 = vsel %vm804, %v7246, 0
      %v7288 = vsel %vm804, %v7248, 0
      %v7289 = vsel %vm804, %v7250, 0
      %v7290 = vsel %vm804, %v7252, 0
      %v7291 = vsel %vm804, %v7254, 0
      %v7292 = vsel %vm804, %v7256, 0
      %v7293 = vsel %vm804, %v7258, 0
      %v7294 = vsel %vm804, %v7260, 0
      %v7295 = vsel %vm804, %v7262, 0
      %v7296 = vsel %vm804, %v7264, 0
      %v7301 = vunpack.c.l.b16 %v6618
      %v7302 = vunpack.c.l.b16 %v6619
      %v7303 = vunpack.c.l.b16 %v6620
      %v7304 = vunpack.c.l.b16 %v6621
      %v7305 = vpack.c.b16 %v7302, %v7301
      %v7306 = vpack.c.b16 %v7304, %v7303
      %v7309 = vsel %vm3891, 0, 0
      %v7311 = vsel %vm3891, %v7073, 0
      %v7313 = vsel %vm3891, %v7074, 0
      %v7315 = vsel %vm3891, %v7075, 0
      %v7317 = vsel %vm3891, %v7076, 0
      %v7319 = vsel %vm3891, %v7077, 0
      %v7321 = vsel %vm3891, %v7078, 0
      %v7323 = vsel %vm3891, %v7079, 0
      %v7325 = vsel %vm3891, %v7080, 0
      %v7327 = vsel %vm3891, %v7081, 0
      %v7329 = vsel %vm3891, %v7082, 0
      %v7331 = vsel %vm3891, %v7083, 0
      %v7333 = vsel %vm3891, %v7084, 0
      %v7335 = vsel %vm3891, %v7085, 0
      %v7337 = vsel %vm3891, %v7086, 0
      %v7339 = vsel %vm3891, %v7087, 0
      %7341 = vmatpush.bf16.msra.mxu0 0
      %7342 = vmatpush.bf16.msra.mxu0 0
      %7343 = vmatpush.bf16.msra.mxu0 0
      %7344 = vmatpush.bf16.msra.mxu0 0
      %7345 = vmatpush.bf16.msra.mxu0 0
      %7346 = vmatpush.bf16.msra.mxu0 0
      %7347 = vmatpush.bf16.msra.mxu0 %v7306
      %7348 = vmatpush.bf16.msra.mxu0 %v7305
      %7349 = vmatmul.bf16.gmra.mxu0 %v7309
      %v7350 = vpop.f32.mrf.mxu0
      %v7351 = vadd.f32 0.0, %v7350
      %v7352 = vpop.f32.mrf.mxu0
      %v7353 = vadd.f32 0.0, %v7352
      %7354 = vmatmul.bf16.gmra.mxu0 %v7311
      %v7355 = vpop.f32.mrf.mxu0
      %v7356 = vadd.f32 0.0, %v7355
      %v7357 = vpop.f32.mrf.mxu0
      %v7358 = vadd.f32 0.0, %v7357
      %7359 = vmatmul.bf16.gmra.mxu0 %v7313
      %v7360 = vpop.f32.mrf.mxu0
      %v7361 = vadd.f32 0.0, %v7360
      %v7362 = vpop.f32.mrf.mxu0
      %v7363 = vadd.f32 0.0, %v7362
      %7364 = vmatmul.bf16.gmra.mxu0 %v7315
      %v7365 = vpop.f32.mrf.mxu0
      %v7366 = vadd.f32 0.0, %v7365
      %v7367 = vpop.f32.mrf.mxu0
      %v7368 = vadd.f32 0.0, %v7367
      %7369 = vmatmul.bf16.gmra.mxu0 %v7317
      %v7370 = vpop.f32.mrf.mxu0
      %v7371 = vadd.f32 0.0, %v7370
      %v7372 = vpop.f32.mrf.mxu0
      %v7373 = vadd.f32 0.0, %v7372
      %7374 = vmatmul.bf16.gmra.mxu0 %v7319
      %v7375 = vpop.f32.mrf.mxu0
      %v7376 = vadd.f32 0.0, %v7375
      %v7377 = vpop.f32.mrf.mxu0
      %v7378 = vadd.f32 0.0, %v7377
      %7379 = vmatmul.bf16.gmra.mxu0 %v7321
      %v7380 = vpop.f32.mrf.mxu0
      %v7381 = vadd.f32 0.0, %v7380
      %v7382 = vpop.f32.mrf.mxu0
      %v7383 = vadd.f32 0.0, %v7382
      %7384 = vmatmul.bf16.gmra.mxu0 %v7323
      %v7385 = vpop.f32.mrf.mxu0
      %v7386 = vadd.f32 0.0, %v7385
      %v7387 = vpop.f32.mrf.mxu0
      %v7388 = vadd.f32 0.0, %v7387
      %7389 = vmatmul.bf16.gmra.mxu0 %v7325
      %v7390 = vpop.f32.mrf.mxu0
      %v7391 = vadd.f32 0.0, %v7390
      %v7392 = vpop.f32.mrf.mxu0
      %v7393 = vadd.f32 0.0, %v7392
      %7394 = vmatmul.bf16.gmra.mxu0 %v7327
      %v7395 = vpop.f32.mrf.mxu0
      %v7396 = vadd.f32 0.0, %v7395
      %v7397 = vpop.f32.mrf.mxu0
      %v7398 = vadd.f32 0.0, %v7397
      %7399 = vmatmul.bf16.gmra.mxu0 %v7329
      %v7400 = vpop.f32.mrf.mxu0
      %v7401 = vadd.f32 0.0, %v7400
      %v7402 = vpop.f32.mrf.mxu0
      %v7403 = vadd.f32 0.0, %v7402
      %7404 = vmatmul.bf16.gmra.mxu0 %v7331
      %v7405 = vpop.f32.mrf.mxu0
      %v7406 = vadd.f32 0.0, %v7405
      %v7407 = vpop.f32.mrf.mxu0
      %v7408 = vadd.f32 0.0, %v7407
      %7409 = vmatmul.bf16.gmra.mxu0 %v7333
      %v7410 = vpop.f32.mrf.mxu0
      %v7411 = vadd.f32 0.0, %v7410
      %v7412 = vpop.f32.mrf.mxu0
      %v7413 = vadd.f32 0.0, %v7412
      %7414 = vmatmul.bf16.gmra.mxu0 %v7335
      %v7415 = vpop.f32.mrf.mxu0
      %v7416 = vadd.f32 0.0, %v7415
      %v7417 = vpop.f32.mrf.mxu0
      %v7418 = vadd.f32 0.0, %v7417
      %7419 = vmatmul.bf16.gmra.mxu0 %v7337
      %v7420 = vpop.f32.mrf.mxu0
      %v7421 = vadd.f32 0.0, %v7420
      %v7422 = vpop.f32.mrf.mxu0
      %v7423 = vadd.f32 0.0, %v7422
      %7424 = vmatmul.bf16.gmra.mxu0 %v7339
      %v7425 = vpop.f32.mrf.mxu0
      %v7426 = vadd.f32 0.0, %v7425
      %v7427 = vpop.f32.mrf.mxu0
      %v7428 = vadd.f32 0.0, %v7427
      %7429 = vdwg.mxu0
      %v7434 = vunpack.c.l.b16 %v6614
      %v7435 = vunpack.c.l.b16 %v6615
      %v7436 = vunpack.c.l.b16 %v6616
      %v7437 = vunpack.c.l.b16 %v6617
      %v7438 = vpack.c.b16 %v7435, %v7434
      %v7439 = vpack.c.b16 %v7437, %v7436
      %v7442 = vsel %vm3891, %v734, 0
      %v7445 = vsel %vm3891, %v7217, 0
      %v7448 = vsel %vm3891, %v7218, 0
      %v7451 = vsel %vm3891, %v7219, 0
      %v7454 = vsel %vm3891, %v7220, 0
      %v7457 = vsel %vm3891, %v7221, 0
      %v7460 = vsel %vm3891, %v7222, 0
      %v7463 = vsel %vm3891, %v7223, 0
      %v7466 = vsel %vm3891, %v7224, 0
      %v7469 = vsel %vm3891, %v7225, 0
      %v7472 = vsel %vm3891, %v7226, 0
      %v7475 = vsel %vm3891, %v7227, 0
      %v7478 = vsel %vm3891, %v7228, 0
      %v7481 = vsel %vm3891, %v7229, 0
      %v7484 = vsel %vm3891, %v7230, 0
      %v7487 = vsel %vm3891, %v7231, 0
      %7489 = vmatpush.bf16.msra.mxu0 0
      %7490 = vmatpush.bf16.msra.mxu0 0
      %7491 = vmatpush.bf16.msra.mxu0 0
      %7492 = vmatpush.bf16.msra.mxu0 0
      %7493 = vmatpush.bf16.msra.mxu0 0
      %7494 = vmatpush.bf16.msra.mxu0 0
      %7495 = vmatpush.bf16.msra.mxu0 %v7439
      %7496 = vmatpush.bf16.msra.mxu0 %v7438
      %7497 = vmatmul.bf16.gmra.mxu0 %v7442
      %v7498 = vpop.f32.mrf.mxu0
      %v7499 = vadd.f32 %v7351, %v7498
      %v7500 = vpop.f32.mrf.mxu0
      %v7501 = vadd.f32 %v7353, %v7500
      %7502 = vmatmul.bf16.gmra.mxu0 %v7445
      %v7503 = vpop.f32.mrf.mxu0
      %v7504 = vadd.f32 %v7356, %v7503
      %v7505 = vpop.f32.mrf.mxu0
      %v7506 = vadd.f32 %v7358, %v7505
      %7507 = vmatmul.bf16.gmra.mxu0 %v7448
      %v7508 = vpop.f32.mrf.mxu0
      %v7509 = vadd.f32 %v7361, %v7508
      %v7510 = vpop.f32.mrf.mxu0
      %v7511 = vadd.f32 %v7363, %v7510
      %7512 = vmatmul.bf16.gmra.mxu0 %v7451
      %v7513 = vpop.f32.mrf.mxu0
      %v7514 = vadd.f32 %v7366, %v7513
      %v7515 = vpop.f32.mrf.mxu0
      %v7516 = vadd.f32 %v7368, %v7515
      %7517 = vmatmul.bf16.gmra.mxu0 %v7454
      %v7518 = vpop.f32.mrf.mxu0
      %v7519 = vadd.f32 %v7371, %v7518
      %v7520 = vpop.f32.mrf.mxu0
      %v7521 = vadd.f32 %v7373, %v7520
      %7522 = vmatmul.bf16.gmra.mxu0 %v7457
      %v7523 = vpop.f32.mrf.mxu0
      %v7524 = vadd.f32 %v7376, %v7523
      %v7525 = vpop.f32.mrf.mxu0
      %v7526 = vadd.f32 %v7378, %v7525
      %7527 = vmatmul.bf16.gmra.mxu0 %v7460
      %v7528 = vpop.f32.mrf.mxu0
      %v7529 = vadd.f32 %v7381, %v7528
      %v7530 = vpop.f32.mrf.mxu0
      %v7531 = vadd.f32 %v7383, %v7530
      %7532 = vmatmul.bf16.gmra.mxu0 %v7463
      %v7533 = vpop.f32.mrf.mxu0
      %v7534 = vadd.f32 %v7386, %v7533
      %v7535 = vpop.f32.mrf.mxu0
      %v7536 = vadd.f32 %v7388, %v7535
      %7537 = vmatmul.bf16.gmra.mxu0 %v7466
      %v7538 = vpop.f32.mrf.mxu0
      %v7539 = vadd.f32 %v7391, %v7538
      %v7540 = vpop.f32.mrf.mxu0
      %v7541 = vadd.f32 %v7393, %v7540
      %7542 = vmatmul.bf16.gmra.mxu0 %v7469
      %v7543 = vpop.f32.mrf.mxu0
      %v7544 = vadd.f32 %v7396, %v7543
      %v7545 = vpop.f32.mrf.mxu0
      %v7546 = vadd.f32 %v7398, %v7545
      %7547 = vmatmul.bf16.gmra.mxu0 %v7472
      %v7548 = vpop.f32.mrf.mxu0
      %v7549 = vadd.f32 %v7401, %v7548
      %v7550 = vpop.f32.mrf.mxu0
      %v7551 = vadd.f32 %v7403, %v7550
      %7552 = vmatmul.bf16.gmra.mxu0 %v7475
      %v7553 = vpop.f32.mrf.mxu0
      %v7554 = vadd.f32 %v7406, %v7553
      %v7555 = vpop.f32.mrf.mxu0
      %v7556 = vadd.f32 %v7408, %v7555
      %7557 = vmatmul.bf16.gmra.mxu0 %v7478
      %v7558 = vpop.f32.mrf.mxu0
      %v7559 = vadd.f32 %v7411, %v7558
      %v7560 = vpop.f32.mrf.mxu0
      %v7561 = vadd.f32 %v7413, %v7560
      %7562 = vmatmul.bf16.gmra.mxu0 %v7481
      %v7563 = vpop.f32.mrf.mxu0
      %v7564 = vadd.f32 %v7416, %v7563
      %v7565 = vpop.f32.mrf.mxu0
      %v7566 = vadd.f32 %v7418, %v7565
      %7567 = vmatmul.bf16.gmra.mxu0 %v7484
      %v7568 = vpop.f32.mrf.mxu0
      %v7569 = vadd.f32 %v7421, %v7568
      %v7570 = vpop.f32.mrf.mxu0
      %v7571 = vadd.f32 %v7423, %v7570
      %7572 = vmatmul.bf16.gmra.mxu0 %v7487
      %v7573 = vpop.f32.mrf.mxu0
      %v7574 = vadd.f32 %v7426, %v7573
      %v7575 = vpop.f32.mrf.mxu0
      %v7576 = vadd.f32 %v7428, %v7575
      %7577 = vdwg.mxu0
      %v7582 = vunpack.c.l.b16 %v6622
      %v7583 = vunpack.c.l.b16 %v6623
      %v7584 = vunpack.c.l.b16 %v6624
      %v7585 = vunpack.c.l.b16 %v6625
      %v7586 = vpack.c.b16 %v7583, %v7582
      %v7587 = vpack.c.b16 %v7585, %v7584
      %v7590 = vsel %vm3891, %v805, 0
      %v7593 = vsel %vm3891, %v7281, 0
      %v7596 = vsel %vm3891, %v7282, 0
      %v7599 = vsel %vm3891, %v7283, 0
      %v7602 = vsel %vm3891, %v7284, 0
      %v7605 = vsel %vm3891, %v7285, 0
      %v7608 = vsel %vm3891, %v7286, 0
      %v7611 = vsel %vm3891, %v7287, 0
      %v7614 = vsel %vm3891, %v7288, 0
      %v7617 = vsel %vm3891, %v7289, 0
      %v7620 = vsel %vm3891, %v7290, 0
      %v7623 = vsel %vm3891, %v7291, 0
      %v7626 = vsel %vm3891, %v7292, 0
      %v7629 = vsel %vm3891, %v7293, 0
      %v7632 = vsel %vm3891, %v7294, 0
      %v7635 = vsel %vm3891, %v7295, 0
      %7637 = vmatpush.bf16.msra.mxu0 0
      %7638 = vmatpush.bf16.msra.mxu0 0
      %7639 = vmatpush.bf16.msra.mxu0 0
      %7640 = vmatpush.bf16.msra.mxu0 0
      %7641 = vmatpush.bf16.msra.mxu0 0
      %7642 = vmatpush.bf16.msra.mxu0 0
      %7643 = vmatpush.bf16.msra.mxu0 %v7587
      %7644 = vmatpush.bf16.msra.mxu0 %v7586
      %7645 = vmatmul.bf16.gmra.mxu0 %v7590
      %v7646 = vpop.f32.mrf.mxu0
      %v7647 = vadd.f32 0.0, %v7646
      %v7648 = vpop.f32.mrf.mxu0
      %v7649 = vadd.f32 0.0, %v7648
      %7650 = vmatmul.bf16.gmra.mxu0 %v7593
      %v7651 = vpop.f32.mrf.mxu0
      %v7652 = vadd.f32 0.0, %v7651
      %v7653 = vpop.f32.mrf.mxu0
      %v7654 = vadd.f32 0.0, %v7653
      %7655 = vmatmul.bf16.gmra.mxu0 %v7596
      %v7656 = vpop.f32.mrf.mxu0
      %v7657 = vadd.f32 0.0, %v7656
      %v7658 = vpop.f32.mrf.mxu0
      %v7659 = vadd.f32 0.0, %v7658
      %7660 = vmatmul.bf16.gmra.mxu0 %v7599
      %v7661 = vpop.f32.mrf.mxu0
      %v7662 = vadd.f32 0.0, %v7661
      %v7663 = vpop.f32.mrf.mxu0
      %v7664 = vadd.f32 0.0, %v7663
      %7665 = vmatmul.bf16.gmra.mxu0 %v7602
      %v7666 = vpop.f32.mrf.mxu0
      %v7667 = vadd.f32 0.0, %v7666
      %v7668 = vpop.f32.mrf.mxu0
      %v7669 = vadd.f32 0.0, %v7668
      %7670 = vmatmul.bf16.gmra.mxu0 %v7605
      %v7671 = vpop.f32.mrf.mxu0
      %v7672 = vadd.f32 0.0, %v7671
      %v7673 = vpop.f32.mrf.mxu0
      %v7674 = vadd.f32 0.0, %v7673
      %7675 = vmatmul.bf16.gmra.mxu0 %v7608
      %v7676 = vpop.f32.mrf.mxu0
      %v7677 = vadd.f32 0.0, %v7676
      %v7678 = vpop.f32.mrf.mxu0
      %v7679 = vadd.f32 0.0, %v7678
      %7680 = vmatmul.bf16.gmra.mxu0 %v7611
      %v7681 = vpop.f32.mrf.mxu0
      %v7682 = vadd.f32 0.0, %v7681
      %v7683 = vpop.f32.mrf.mxu0
      %v7684 = vadd.f32 0.0, %v7683
      %7685 = vmatmul.bf16.gmra.mxu0 %v7614
      %v7686 = vpop.f32.mrf.mxu0
      %v7687 = vadd.f32 0.0, %v7686
      %v7688 = vpop.f32.mrf.mxu0
      %v7689 = vadd.f32 0.0, %v7688
      %7690 = vmatmul.bf16.gmra.mxu0 %v7617
      %v7691 = vpop.f32.mrf.mxu0
      %v7692 = vadd.f32 0.0, %v7691
      %v7693 = vpop.f32.mrf.mxu0
      %v7694 = vadd.f32 0.0, %v7693
      %7695 = vmatmul.bf16.gmra.mxu0 %v7620
      %v7696 = vpop.f32.mrf.mxu0
      %v7697 = vadd.f32 0.0, %v7696
      %v7698 = vpop.f32.mrf.mxu0
      %v7699 = vadd.f32 0.0, %v7698
      %7700 = vmatmul.bf16.gmra.mxu0 %v7623
      %v7701 = vpop.f32.mrf.mxu0
      %v7702 = vadd.f32 0.0, %v7701
      %v7703 = vpop.f32.mrf.mxu0
      %v7704 = vadd.f32 0.0, %v7703
      %7705 = vmatmul.bf16.gmra.mxu0 %v7626
      %v7706 = vpop.f32.mrf.mxu0
      %v7707 = vadd.f32 0.0, %v7706
      %v7708 = vpop.f32.mrf.mxu0
      %v7709 = vadd.f32 0.0, %v7708
      %7710 = vmatmul.bf16.gmra.mxu0 %v7629
      %v7711 = vpop.f32.mrf.mxu0
      %v7712 = vadd.f32 0.0, %v7711
      %v7713 = vpop.f32.mrf.mxu0
      %v7714 = vadd.f32 0.0, %v7713
      %7715 = vmatmul.bf16.gmra.mxu0 %v7632
      %v7716 = vpop.f32.mrf.mxu0
      %v7717 = vadd.f32 0.0, %v7716
      %v7718 = vpop.f32.mrf.mxu0
      %v7719 = vadd.f32 0.0, %v7718
      %7720 = vmatmul.bf16.gmra.mxu0 %v7635
      %v7721 = vpop.f32.mrf.mxu0
      %v7722 = vadd.f32 0.0, %v7721
      %v7723 = vpop.f32.mrf.mxu0
      %v7724 = vadd.f32 0.0, %v7723
      %7725 = vdwg.mxu0
      %v7726 = vadd.f32 %v7499, %v7647
      %v7727 = vadd.f32 %v7501, %v7649
      %v7728 = vadd.f32 %v7504, %v7652
      %v7729 = vadd.f32 %v7506, %v7654
      %v7730 = vadd.f32 %v7509, %v7657
      %v7731 = vadd.f32 %v7511, %v7659
      %v7732 = vadd.f32 %v7514, %v7662
      %v7733 = vadd.f32 %v7516, %v7664
      %v7734 = vadd.f32 %v7519, %v7667
      %v7735 = vadd.f32 %v7521, %v7669
      %v7736 = vadd.f32 %v7524, %v7672
      %v7737 = vadd.f32 %v7526, %v7674
      %v7738 = vadd.f32 %v7529, %v7677
      %v7739 = vadd.f32 %v7531, %v7679
      %v7740 = vadd.f32 %v7534, %v7682
      %v7741 = vadd.f32 %v7536, %v7684
      %v7742 = vadd.f32 %v7539, %v7687
      %v7743 = vadd.f32 %v7541, %v7689
      %v7744 = vadd.f32 %v7544, %v7692
      %v7745 = vadd.f32 %v7546, %v7694
      %v7746 = vadd.f32 %v7549, %v7697
      %v7747 = vadd.f32 %v7551, %v7699
      %v7748 = vadd.f32 %v7554, %v7702
      %v7749 = vadd.f32 %v7556, %v7704
      %v7750 = vadd.f32 %v7559, %v7707
      %v7751 = vadd.f32 %v7561, %v7709
      %v7752 = vadd.f32 %v7564, %v7712
      %v7753 = vadd.f32 %v7566, %v7714
      %v7754 = vadd.f32 %v7569, %v7717
      %v7755 = vadd.f32 %v7571, %v7719
      %v7756 = vadd.f32 %v7574, %v7722
      %v7757 = vadd.f32 %v7576, %v7724
      %v7762 = vunpack.c.l.b16 %v6626
      %v7763 = vunpack.c.l.b16 %v6627
      %v7764 = vunpack.c.l.b16 %v6628
      %v7765 = vunpack.c.l.b16 %v6629
      %v7766 = vpack.c.b16 %v7763, %v7762
      %v7767 = vpack.c.b16 %v7765, %v7764
      %v7771 = vsel %vm3891, %v7232, 0
      %7773 = vmatpush.bf16.msra.mxu0 0
      %7774 = vmatpush.bf16.msra.mxu0 0
      %7775 = vmatpush.bf16.msra.mxu0 0
      %7776 = vmatpush.bf16.msra.mxu0 0
      %7777 = vmatpush.bf16.msra.mxu0 0
      %7778 = vmatpush.bf16.msra.mxu0 0
      %7779 = vmatpush.bf16.msra.mxu0 %v7767
      %7780 = vmatpush.bf16.msra.mxu0 %v7766
      %7781 = vmatmul.bf16.gmra.mxu0 %v7445
      %v7782 = vpop.f32.mrf.mxu0
      %v7783 = vadd.f32 0.0, %v7782
      %v7784 = vpop.f32.mrf.mxu0
      %v7785 = vadd.f32 0.0, %v7784
      %7786 = vmatmul.bf16.gmra.mxu0 %v7448
      %v7787 = vpop.f32.mrf.mxu0
      %v7788 = vadd.f32 0.0, %v7787
      %v7789 = vpop.f32.mrf.mxu0
      %v7790 = vadd.f32 0.0, %v7789
      %7791 = vmatmul.bf16.gmra.mxu0 %v7451
      %v7792 = vpop.f32.mrf.mxu0
      %v7793 = vadd.f32 0.0, %v7792
      %v7794 = vpop.f32.mrf.mxu0
      %v7795 = vadd.f32 0.0, %v7794
      %7796 = vmatmul.bf16.gmra.mxu0 %v7454
      %v7797 = vpop.f32.mrf.mxu0
      %v7798 = vadd.f32 0.0, %v7797
      %v7799 = vpop.f32.mrf.mxu0
      %v7800 = vadd.f32 0.0, %v7799
      %7801 = vmatmul.bf16.gmra.mxu0 %v7457
      %v7802 = vpop.f32.mrf.mxu0
      %v7803 = vadd.f32 0.0, %v7802
      %v7804 = vpop.f32.mrf.mxu0
      %v7805 = vadd.f32 0.0, %v7804
      %7806 = vmatmul.bf16.gmra.mxu0 %v7460
      %v7807 = vpop.f32.mrf.mxu0
      %v7808 = vadd.f32 0.0, %v7807
      %v7809 = vpop.f32.mrf.mxu0
      %v7810 = vadd.f32 0.0, %v7809
      %7811 = vmatmul.bf16.gmra.mxu0 %v7463
      %v7812 = vpop.f32.mrf.mxu0
      %v7813 = vadd.f32 0.0, %v7812
      %v7814 = vpop.f32.mrf.mxu0
      %v7815 = vadd.f32 0.0, %v7814
      %7816 = vmatmul.bf16.gmra.mxu0 %v7466
      %v7817 = vpop.f32.mrf.mxu0
      %v7818 = vadd.f32 0.0, %v7817
      %v7819 = vpop.f32.mrf.mxu0
      %v7820 = vadd.f32 0.0, %v7819
      %7821 = vmatmul.bf16.gmra.mxu0 %v7469
      %v7822 = vpop.f32.mrf.mxu0
      %v7823 = vadd.f32 0.0, %v7822
      %v7824 = vpop.f32.mrf.mxu0
      %v7825 = vadd.f32 0.0, %v7824
      %7826 = vmatmul.bf16.gmra.mxu0 %v7472
      %v7827 = vpop.f32.mrf.mxu0
      %v7828 = vadd.f32 0.0, %v7827
      %v7829 = vpop.f32.mrf.mxu0
      %v7830 = vadd.f32 0.0, %v7829
      %7831 = vmatmul.bf16.gmra.mxu0 %v7475
      %v7832 = vpop.f32.mrf.mxu0
      %v7833 = vadd.f32 0.0, %v7832
      %v7834 = vpop.f32.mrf.mxu0
      %v7835 = vadd.f32 0.0, %v7834
      %7836 = vmatmul.bf16.gmra.mxu0 %v7478
      %v7837 = vpop.f32.mrf.mxu0
      %v7838 = vadd.f32 0.0, %v7837
      %v7839 = vpop.f32.mrf.mxu0
      %v7840 = vadd.f32 0.0, %v7839
      %7841 = vmatmul.bf16.gmra.mxu0 %v7481
      %v7842 = vpop.f32.mrf.mxu0
      %v7843 = vadd.f32 0.0, %v7842
      %v7844 = vpop.f32.mrf.mxu0
      %v7845 = vadd.f32 0.0, %v7844
      %7846 = vmatmul.bf16.gmra.mxu0 %v7484
      %v7847 = vpop.f32.mrf.mxu0
      %v7848 = vadd.f32 0.0, %v7847
      %v7849 = vpop.f32.mrf.mxu0
      %v7850 = vadd.f32 0.0, %v7849
      %7851 = vmatmul.bf16.gmra.mxu0 %v7487
      %v7852 = vpop.f32.mrf.mxu0
      %v7853 = vadd.f32 0.0, %v7852
      %v7854 = vpop.f32.mrf.mxu0
      %v7855 = vadd.f32 0.0, %v7854
      %7856 = vmatmul.bf16.gmra.mxu0 %v7771
      %v7857 = vpop.f32.mrf.mxu0
      %v7858 = vadd.f32 0.0, %v7857
      %v7859 = vpop.f32.mrf.mxu0
      %v7860 = vadd.f32 0.0, %v7859
      %7861 = vdwg.mxu0
      %v7862 = vadd.f32 %v7726, %v7783
      %v7863 = vadd.f32 %v7727, %v7785
      %v7864 = vadd.f32 %v7728, %v7788
      %v7865 = vadd.f32 %v7729, %v7790
      %v7866 = vadd.f32 %v7730, %v7793
      %v7867 = vadd.f32 %v7731, %v7795
      %v7868 = vadd.f32 %v7732, %v7798
      %v7869 = vadd.f32 %v7733, %v7800
      %v7870 = vadd.f32 %v7734, %v7803
      %v7871 = vadd.f32 %v7735, %v7805
      %v7872 = vadd.f32 %v7736, %v7808
      %v7873 = vadd.f32 %v7737, %v7810
      %v7874 = vadd.f32 %v7738, %v7813
      %v7875 = vadd.f32 %v7739, %v7815
      %v7876 = vadd.f32 %v7740, %v7818
      %v7877 = vadd.f32 %v7741, %v7820
      %v7878 = vadd.f32 %v7742, %v7823
      %v7879 = vadd.f32 %v7743, %v7825
      %v7880 = vadd.f32 %v7744, %v7828
      %v7881 = vadd.f32 %v7745, %v7830
      %v7882 = vadd.f32 %v7746, %v7833
      %v7883 = vadd.f32 %v7747, %v7835
      %v7884 = vadd.f32 %v7748, %v7838
      %v7885 = vadd.f32 %v7749, %v7840
      %v7886 = vadd.f32 %v7750, %v7843
      %v7887 = vadd.f32 %v7751, %v7845
      %v7888 = vadd.f32 %v7752, %v7848
      %v7889 = vadd.f32 %v7753, %v7850
      %v7890 = vadd.f32 %v7754, %v7853
      %v7891 = vadd.f32 %v7755, %v7855
      %v7892 = vadd.f32 %v7756, %v7858
      %v7893 = vadd.f32 %v7757, %v7860
      %v7898 = vunpack.c.l.b16 %v6630
      %v7899 = vunpack.c.l.b16 %v6631
      %v7900 = vunpack.c.l.b16 %v6632
      %v7901 = vunpack.c.l.b16 %v6633
      %v7902 = vpack.c.b16 %v7899, %v7898
      %v7903 = vpack.c.b16 %v7901, %v7900
      %v7906 = vsel %vm3891, %v7088, 0
      %7908 = vmatpush.bf16.msra.mxu0 0
      %7909 = vmatpush.bf16.msra.mxu0 0
      %7910 = vmatpush.bf16.msra.mxu0 0
      %7911 = vmatpush.bf16.msra.mxu0 0
      %7912 = vmatpush.bf16.msra.mxu0 0
      %7913 = vmatpush.bf16.msra.mxu0 0
      %7914 = vmatpush.bf16.msra.mxu0 %v7903
      %7915 = vmatpush.bf16.msra.mxu0 %v7902
      %7916 = vmatmul.bf16.gmra.mxu0 %v7311
      %v7917 = vpop.f32.mrf.mxu0
      %v7918 = vadd.f32 0.0, %v7917
      %v7919 = vpop.f32.mrf.mxu0
      %v7920 = vadd.f32 0.0, %v7919
      %7921 = vmatmul.bf16.gmra.mxu0 %v7313
      %v7922 = vpop.f32.mrf.mxu0
      %v7923 = vadd.f32 0.0, %v7922
      %v7924 = vpop.f32.mrf.mxu0
      %v7925 = vadd.f32 0.0, %v7924
      %7926 = vmatmul.bf16.gmra.mxu0 %v7315
      %v7927 = vpop.f32.mrf.mxu0
      %v7928 = vadd.f32 0.0, %v7927
      %v7929 = vpop.f32.mrf.mxu0
      %v7930 = vadd.f32 0.0, %v7929
      %7931 = vmatmul.bf16.gmra.mxu0 %v7317
      %v7932 = vpop.f32.mrf.mxu0
      %v7933 = vadd.f32 0.0, %v7932
      %v7934 = vpop.f32.mrf.mxu0
      %v7935 = vadd.f32 0.0, %v7934
      %7936 = vmatmul.bf16.gmra.mxu0 %v7319
      %v7937 = vpop.f32.mrf.mxu0
      %v7938 = vadd.f32 0.0, %v7937
      %v7939 = vpop.f32.mrf.mxu0
      %v7940 = vadd.f32 0.0, %v7939
      %7941 = vmatmul.bf16.gmra.mxu0 %v7321
      %v7942 = vpop.f32.mrf.mxu0
      %v7943 = vadd.f32 0.0, %v7942
      %v7944 = vpop.f32.mrf.mxu0
      %v7945 = vadd.f32 0.0, %v7944
      %7946 = vmatmul.bf16.gmra.mxu0 %v7323
      %v7947 = vpop.f32.mrf.mxu0
      %v7948 = vadd.f32 0.0, %v7947
      %v7949 = vpop.f32.mrf.mxu0
      %v7950 = vadd.f32 0.0, %v7949
      %7951 = vmatmul.bf16.gmra.mxu0 %v7325
      %v7952 = vpop.f32.mrf.mxu0
      %v7953 = vadd.f32 0.0, %v7952
      %v7954 = vpop.f32.mrf.mxu0
      %v7955 = vadd.f32 0.0, %v7954
      %7956 = vmatmul.bf16.gmra.mxu0 %v7327
      %v7957 = vpop.f32.mrf.mxu0
      %v7958 = vadd.f32 0.0, %v7957
      %v7959 = vpop.f32.mrf.mxu0
      %v7960 = vadd.f32 0.0, %v7959
      %7961 = vmatmul.bf16.gmra.mxu0 %v7329
      %v7962 = vpop.f32.mrf.mxu0
      %v7963 = vadd.f32 0.0, %v7962
      %v7964 = vpop.f32.mrf.mxu0
      %v7965 = vadd.f32 0.0, %v7964
      %7966 = vmatmul.bf16.gmra.mxu0 %v7331
      %v7967 = vpop.f32.mrf.mxu0
      %v7968 = vadd.f32 0.0, %v7967
      %v7969 = vpop.f32.mrf.mxu0
      %v7970 = vadd.f32 0.0, %v7969
      %7971 = vmatmul.bf16.gmra.mxu0 %v7333
      %v7972 = vpop.f32.mrf.mxu0
      %v7973 = vadd.f32 0.0, %v7972
      %v7974 = vpop.f32.mrf.mxu0
      %v7975 = vadd.f32 0.0, %v7974
      %7976 = vmatmul.bf16.gmra.mxu0 %v7335
      %v7977 = vpop.f32.mrf.mxu0
      %v7978 = vadd.f32 0.0, %v7977
      %v7979 = vpop.f32.mrf.mxu0
      %v7980 = vadd.f32 0.0, %v7979
      %7981 = vmatmul.bf16.gmra.mxu0 %v7337
      %v7982 = vpop.f32.mrf.mxu0
      %v7983 = vadd.f32 0.0, %v7982
      %v7984 = vpop.f32.mrf.mxu0
      %v7985 = vadd.f32 0.0, %v7984
      %7986 = vmatmul.bf16.gmra.mxu0 %v7339
      %v7987 = vpop.f32.mrf.mxu0
      %v7988 = vadd.f32 0.0, %v7987
      %v7989 = vpop.f32.mrf.mxu0
      %v7990 = vadd.f32 0.0, %v7989
      %7991 = vmatmul.bf16.gmra.mxu0 %v7906
      %v7992 = vpop.f32.mrf.mxu0
      %v7993 = vadd.f32 0.0, %v7992
      %v7994 = vpop.f32.mrf.mxu0
      %v7995 = vadd.f32 0.0, %v7994
      %7996 = vdwg.mxu0
      %v7997 = vadd.f32 %v7862, %v7918
      %v7998 = vadd.f32 %v7863, %v7920
      %v7999 = vadd.f32 %v7864, %v7923
      %v8000 = vadd.f32 %v7865, %v7925
      %v8001 = vadd.f32 %v7866, %v7928
      %v8002 = vadd.f32 %v7867, %v7930
      %v8003 = vadd.f32 %v7868, %v7933
      %v8004 = vadd.f32 %v7869, %v7935
      %v8005 = vadd.f32 %v7870, %v7938
      %v8006 = vadd.f32 %v7871, %v7940
      %v8007 = vadd.f32 %v7872, %v7943
      %v8008 = vadd.f32 %v7873, %v7945
      %v8009 = vadd.f32 %v7874, %v7948
      %v8010 = vadd.f32 %v7875, %v7950
      %v8011 = vadd.f32 %v7876, %v7953
      %v8012 = vadd.f32 %v7877, %v7955
      %v8013 = vadd.f32 %v7878, %v7958
      %v8014 = vadd.f32 %v7879, %v7960
      %v8015 = vadd.f32 %v7880, %v7963
      %v8016 = vadd.f32 %v7881, %v7965
      %v8017 = vadd.f32 %v7882, %v7968
      %v8018 = vadd.f32 %v7883, %v7970
      %v8019 = vadd.f32 %v7884, %v7973
      %v8020 = vadd.f32 %v7885, %v7975
      %v8021 = vadd.f32 %v7886, %v7978
      %v8022 = vadd.f32 %v7887, %v7980
      %v8023 = vadd.f32 %v7888, %v7983
      %v8024 = vadd.f32 %v7889, %v7985
      %v8025 = vadd.f32 %v7890, %v7988
      %v8026 = vadd.f32 %v7891, %v7990
      %v8027 = vadd.f32 %v7892, %v7993
      %v8028 = vadd.f32 %v7893, %v7995
      %v8033 = vunpack.c.l.b16 %v6634
      %v8034 = vunpack.c.l.b16 %v6635
      %v8035 = vunpack.c.l.b16 %v6636
      %v8036 = vunpack.c.l.b16 %v6637
      %v8037 = vpack.c.b16 %v8034, %v8033
      %v8038 = vpack.c.b16 %v8036, %v8035
      %v8042 = vsel %vm3891, %v7296, 0
      %8044 = vmatpush.bf16.msra.mxu0 0
      %8045 = vmatpush.bf16.msra.mxu0 0
      %8046 = vmatpush.bf16.msra.mxu0 0
      %8047 = vmatpush.bf16.msra.mxu0 0
      %8048 = vmatpush.bf16.msra.mxu0 0
      %8049 = vmatpush.bf16.msra.mxu0 0
      %8050 = vmatpush.bf16.msra.mxu0 %v8038
      %8051 = vmatpush.bf16.msra.mxu0 %v8037
      %8052 = vmatmul.bf16.gmra.mxu0 %v7593
      %v8053 = vpop.f32.mrf.mxu0
      %v8054 = vadd.f32 0.0, %v8053
      %v8055 = vpop.f32.mrf.mxu0
      %v8056 = vadd.f32 0.0, %v8055
      %8057 = vmatmul.bf16.gmra.mxu0 %v7596
      %v8058 = vpop.f32.mrf.mxu0
      %v8059 = vadd.f32 0.0, %v8058
      %v8060 = vpop.f32.mrf.mxu0
      %v8061 = vadd.f32 0.0, %v8060
      %8062 = vmatmul.bf16.gmra.mxu0 %v7599
      %v8063 = vpop.f32.mrf.mxu0
      %v8064 = vadd.f32 0.0, %v8063
      %v8065 = vpop.f32.mrf.mxu0
      %v8066 = vadd.f32 0.0, %v8065
      %8067 = vmatmul.bf16.gmra.mxu0 %v7602
      %v8068 = vpop.f32.mrf.mxu0
      %v8069 = vadd.f32 0.0, %v8068
      %v8070 = vpop.f32.mrf.mxu0
      %v8071 = vadd.f32 0.0, %v8070
      %8072 = vmatmul.bf16.gmra.mxu0 %v7605
      %v8073 = vpop.f32.mrf.mxu0
      %v8074 = vadd.f32 0.0, %v8073
      %v8075 = vpop.f32.mrf.mxu0
      %v8076 = vadd.f32 0.0, %v8075
      %8077 = vmatmul.bf16.gmra.mxu0 %v7608
      %v8078 = vpop.f32.mrf.mxu0
      %v8079 = vadd.f32 0.0, %v8078
      %v8080 = vpop.f32.mrf.mxu0
      %v8081 = vadd.f32 0.0, %v8080
      %8082 = vmatmul.bf16.gmra.mxu0 %v7611
      %v8083 = vpop.f32.mrf.mxu0
      %v8084 = vadd.f32 0.0, %v8083
      %v8085 = vpop.f32.mrf.mxu0
      %v8086 = vadd.f32 0.0, %v8085
      %8087 = vmatmul.bf16.gmra.mxu0 %v7614
      %v8088 = vpop.f32.mrf.mxu0
      %v8089 = vadd.f32 0.0, %v8088
      %v8090 = vpop.f32.mrf.mxu0
      %v8091 = vadd.f32 0.0, %v8090
      %8092 = vmatmul.bf16.gmra.mxu0 %v7617
      %v8093 = vpop.f32.mrf.mxu0
      %v8094 = vadd.f32 0.0, %v8093
      %v8095 = vpop.f32.mrf.mxu0
      %v8096 = vadd.f32 0.0, %v8095
      %8097 = vmatmul.bf16.gmra.mxu0 %v7620
      %v8098 = vpop.f32.mrf.mxu0
      %v8099 = vadd.f32 0.0, %v8098
      %v8100 = vpop.f32.mrf.mxu0
      %v8101 = vadd.f32 0.0, %v8100
      %8102 = vmatmul.bf16.gmra.mxu0 %v7623
      %v8103 = vpop.f32.mrf.mxu0
      %v8104 = vadd.f32 0.0, %v8103
      %v8105 = vpop.f32.mrf.mxu0
      %v8106 = vadd.f32 0.0, %v8105
      %8107 = vmatmul.bf16.gmra.mxu0 %v7626
      %v8108 = vpop.f32.mrf.mxu0
      %v8109 = vadd.f32 0.0, %v8108
      %v8110 = vpop.f32.mrf.mxu0
      %v8111 = vadd.f32 0.0, %v8110
      %8112 = vmatmul.bf16.gmra.mxu0 %v7629
      %v8113 = vpop.f32.mrf.mxu0
      %v8114 = vadd.f32 0.0, %v8113
      %v8115 = vpop.f32.mrf.mxu0
      %v8116 = vadd.f32 0.0, %v8115
      %8117 = vmatmul.bf16.gmra.mxu0 %v7632
      %v8118 = vpop.f32.mrf.mxu0
      %v8119 = vadd.f32 0.0, %v8118
      %v8120 = vpop.f32.mrf.mxu0
      %v8121 = vadd.f32 0.0, %v8120
      %8122 = vmatmul.bf16.gmra.mxu0 %v7635
      %v8123 = vpop.f32.mrf.mxu0
      %v8124 = vadd.f32 0.0, %v8123
      %v8125 = vpop.f32.mrf.mxu0
      %v8126 = vadd.f32 0.0, %v8125
      %8127 = vmatmul.bf16.gmra.mxu0 %v8042
      %v8128 = vpop.f32.mrf.mxu0
      %v8129 = vadd.f32 0.0, %v8128
      %v8130 = vpop.f32.mrf.mxu0
      %v8131 = vadd.f32 0.0, %v8130
      %8132 = vdwg.mxu0
      %v8133 = vadd.f32 %v7997, %v8054
      %v8134 = vadd.f32 %v7998, %v8056
      %v8135 = vadd.f32 %v7999, %v8059
      %v8136 = vadd.f32 %v8000, %v8061
      %v8137 = vadd.f32 %v8001, %v8064
      %v8138 = vadd.f32 %v8002, %v8066
      %v8139 = vadd.f32 %v8003, %v8069
      %v8140 = vadd.f32 %v8004, %v8071
      %v8141 = vadd.f32 %v8005, %v8074
      %v8142 = vadd.f32 %v8006, %v8076
      %v8143 = vadd.f32 %v8007, %v8079
      %v8144 = vadd.f32 %v8008, %v8081
      %v8145 = vadd.f32 %v8009, %v8084
      %v8146 = vadd.f32 %v8010, %v8086
      %v8147 = vadd.f32 %v8011, %v8089
      %v8148 = vadd.f32 %v8012, %v8091
      %v8149 = vadd.f32 %v8013, %v8094
      %v8150 = vadd.f32 %v8014, %v8096
      %v8151 = vadd.f32 %v8015, %v8099
      %v8152 = vadd.f32 %v8016, %v8101
      %v8153 = vadd.f32 %v8017, %v8104
      %v8154 = vadd.f32 %v8018, %v8106
      %v8155 = vadd.f32 %v8019, %v8109
      %v8156 = vadd.f32 %v8020, %v8111
      %v8157 = vadd.f32 %v8021, %v8114
      %v8158 = vadd.f32 %v8022, %v8116
      %v8159 = vadd.f32 %v8023, %v8119
      %v8160 = vadd.f32 %v8024, %v8121
      %v8161 = vadd.f32 %v8025, %v8124
      %v8162 = vadd.f32 %v8026, %v8126
      %v8163 = vadd.f32 %v8027, %v8129
      %v8164 = vadd.f32 %v8028, %v8131
      %v8169 = vunpack.c.l.b16 %v6638
      %v8170 = vunpack.c.l.b16 %v6639
      %v8171 = vunpack.c.l.b16 %v6640
      %v8172 = vunpack.c.l.b16 %v6641
      %v8173 = vpack.c.b16 %v8170, %v8169
      %v8174 = vpack.c.b16 %v8172, %v8171
      %8177 = vmatpush.bf16.msra.mxu0 0
      %8178 = vmatpush.bf16.msra.mxu0 0
      %8179 = vmatpush.bf16.msra.mxu0 0
      %8180 = vmatpush.bf16.msra.mxu0 0
      %8181 = vmatpush.bf16.msra.mxu0 0
      %8182 = vmatpush.bf16.msra.mxu0 0
      %8183 = vmatpush.bf16.msra.mxu0 %v8174
      %8184 = vmatpush.bf16.msra.mxu0 %v8173
      %8185 = vmatmul.bf16.gmra.mxu0 %v7448
      %v8186 = vpop.f32.mrf.mxu0
      %v8187 = vadd.f32 0.0, %v8186
      %v8188 = vpop.f32.mrf.mxu0
      %v8189 = vadd.f32 0.0, %v8188
      %8190 = vmatmul.bf16.gmra.mxu0 %v7451
      %v8191 = vpop.f32.mrf.mxu0
      %v8192 = vadd.f32 0.0, %v8191
      %v8193 = vpop.f32.mrf.mxu0
      %v8194 = vadd.f32 0.0, %v8193
      %8195 = vmatmul.bf16.gmra.mxu0 %v7454
      %v8196 = vpop.f32.mrf.mxu0
      %v8197 = vadd.f32 0.0, %v8196
      %v8198 = vpop.f32.mrf.mxu0
      %v8199 = vadd.f32 0.0, %v8198
      %8200 = vmatmul.bf16.gmra.mxu0 %v7457
      %v8201 = vpop.f32.mrf.mxu0
      %v8202 = vadd.f32 0.0, %v8201
      %v8203 = vpop.f32.mrf.mxu0
      %v8204 = vadd.f32 0.0, %v8203
      %8205 = vmatmul.bf16.gmra.mxu0 %v7460
      %v8206 = vpop.f32.mrf.mxu0
      %v8207 = vadd.f32 0.0, %v8206
      %v8208 = vpop.f32.mrf.mxu0
      %v8209 = vadd.f32 0.0, %v8208
      %8210 = vmatmul.bf16.gmra.mxu0 %v7463
      %v8211 = vpop.f32.mrf.mxu0
      %v8212 = vadd.f32 0.0, %v8211
      %v8213 = vpop.f32.mrf.mxu0
      %v8214 = vadd.f32 0.0, %v8213
      %8215 = vmatmul.bf16.gmra.mxu0 %v7466
      %v8216 = vpop.f32.mrf.mxu0
      %v8217 = vadd.f32 0.0, %v8216
      %v8218 = vpop.f32.mrf.mxu0
      %v8219 = vadd.f32 0.0, %v8218
      %8220 = vmatmul.bf16.gmra.mxu0 %v7469
      %v8221 = vpop.f32.mrf.mxu0
      %v8222 = vadd.f32 0.0, %v8221
      %v8223 = vpop.f32.mrf.mxu0
      %v8224 = vadd.f32 0.0, %v8223
      %8225 = vmatmul.bf16.gmra.mxu0 %v7472
      %v8226 = vpop.f32.mrf.mxu0
      %v8227 = vadd.f32 0.0, %v8226
      %v8228 = vpop.f32.mrf.mxu0
      %v8229 = vadd.f32 0.0, %v8228
      %8230 = vmatmul.bf16.gmra.mxu0 %v7475
      %v8231 = vpop.f32.mrf.mxu0
      %v8232 = vadd.f32 0.0, %v8231
      %v8233 = vpop.f32.mrf.mxu0
      %v8234 = vadd.f32 0.0, %v8233
      %8235 = vmatmul.bf16.gmra.mxu0 %v7478
      %v8236 = vpop.f32.mrf.mxu0
      %v8237 = vadd.f32 0.0, %v8236
      %v8238 = vpop.f32.mrf.mxu0
      %v8239 = vadd.f32 0.0, %v8238
      %8240 = vmatmul.bf16.gmra.mxu0 %v7481
      %v8241 = vpop.f32.mrf.mxu0
      %v8242 = vadd.f32 0.0, %v8241
      %v8243 = vpop.f32.mrf.mxu0
      %v8244 = vadd.f32 0.0, %v8243
      %8245 = vmatmul.bf16.gmra.mxu0 %v7484
      %v8246 = vpop.f32.mrf.mxu0
      %v8247 = vadd.f32 0.0, %v8246
      %v8248 = vpop.f32.mrf.mxu0
      %v8249 = vadd.f32 0.0, %v8248
      %8250 = vmatmul.bf16.gmra.mxu0 %v7487
      %v8251 = vpop.f32.mrf.mxu0
      %v8252 = vadd.f32 0.0, %v8251
      %v8253 = vpop.f32.mrf.mxu0
      %v8254 = vadd.f32 0.0, %v8253
      %8255 = vmatmul.bf16.gmra.mxu0 %v7771
      %v8256 = vpop.f32.mrf.mxu0
      %v8257 = vadd.f32 0.0, %v8256
      %v8258 = vpop.f32.mrf.mxu0
      %v8259 = vadd.f32 0.0, %v8258
      %8260 = vmatmul.bf16.gmra.mxu0 %v7442
      %v8261 = vpop.f32.mrf.mxu0
      %v8262 = vadd.f32 0.0, %v8261
      %v8263 = vpop.f32.mrf.mxu0
      %v8264 = vadd.f32 0.0, %v8263
      %8265 = vdwg.mxu0
      %v8266 = vadd.f32 %v8133, %v8187
      %v8267 = vadd.f32 %v8134, %v8189
      %v8268 = vadd.f32 %v8135, %v8192
      %v8269 = vadd.f32 %v8136, %v8194
      %v8270 = vadd.f32 %v8137, %v8197
      %v8271 = vadd.f32 %v8138, %v8199
      %v8272 = vadd.f32 %v8139, %v8202
      %v8273 = vadd.f32 %v8140, %v8204
      %v8274 = vadd.f32 %v8141, %v8207
      %v8275 = vadd.f32 %v8142, %v8209
      %v8276 = vadd.f32 %v8143, %v8212
      %v8277 = vadd.f32 %v8144, %v8214
      %v8278 = vadd.f32 %v8145, %v8217
      %v8279 = vadd.f32 %v8146, %v8219
      %v8280 = vadd.f32 %v8147, %v8222
      %v8281 = vadd.f32 %v8148, %v8224
      %v8282 = vadd.f32 %v8149, %v8227
      %v8283 = vadd.f32 %v8150, %v8229
      %v8284 = vadd.f32 %v8151, %v8232
      %v8285 = vadd.f32 %v8152, %v8234
      %v8286 = vadd.f32 %v8153, %v8237
      %v8287 = vadd.f32 %v8154, %v8239
      %v8288 = vadd.f32 %v8155, %v8242
      %v8289 = vadd.f32 %v8156, %v8244
      %v8290 = vadd.f32 %v8157, %v8247
      %v8291 = vadd.f32 %v8158, %v8249
      %v8292 = vadd.f32 %v8159, %v8252
      %v8293 = vadd.f32 %v8160, %v8254
      %v8294 = vadd.f32 %v8161, %v8257
      %v8295 = vadd.f32 %v8162, %v8259
      %v8296 = vadd.f32 %v8163, %v8262
      %v8297 = vadd.f32 %v8164, %v8264
      %v8302 = vunpack.c.l.b16 %v6642
      %v8303 = vunpack.c.l.b16 %v6643
      %v8304 = vunpack.c.l.b16 %v6644
      %v8305 = vunpack.c.l.b16 %v6645
      %v8306 = vpack.c.b16 %v8303, %v8302
      %v8307 = vpack.c.b16 %v8305, %v8304
      %8310 = vmatpush.bf16.msra.mxu0 0
      %8311 = vmatpush.bf16.msra.mxu0 0
      %8312 = vmatpush.bf16.msra.mxu0 0
      %8313 = vmatpush.bf16.msra.mxu0 0
      %8314 = vmatpush.bf16.msra.mxu0 0
      %8315 = vmatpush.bf16.msra.mxu0 0
      %8316 = vmatpush.bf16.msra.mxu0 %v8307
      %8317 = vmatpush.bf16.msra.mxu0 %v8306
      %8318 = vmatmul.bf16.gmra.mxu0 %v7313
      %v8319 = vpop.f32.mrf.mxu0
      %v8320 = vadd.f32 0.0, %v8319
      %v8321 = vpop.f32.mrf.mxu0
      %v8322 = vadd.f32 0.0, %v8321
      %8323 = vmatmul.bf16.gmra.mxu0 %v7315
      %v8324 = vpop.f32.mrf.mxu0
      %v8325 = vadd.f32 0.0, %v8324
      %v8326 = vpop.f32.mrf.mxu0
      %v8327 = vadd.f32 0.0, %v8326
      %8328 = vmatmul.bf16.gmra.mxu0 %v7317
      %v8329 = vpop.f32.mrf.mxu0
      %v8330 = vadd.f32 0.0, %v8329
      %v8331 = vpop.f32.mrf.mxu0
      %v8332 = vadd.f32 0.0, %v8331
      %8333 = vmatmul.bf16.gmra.mxu0 %v7319
      %v8334 = vpop.f32.mrf.mxu0
      %v8335 = vadd.f32 0.0, %v8334
      %v8336 = vpop.f32.mrf.mxu0
      %v8337 = vadd.f32 0.0, %v8336
      %8338 = vmatmul.bf16.gmra.mxu0 %v7321
      %v8339 = vpop.f32.mrf.mxu0
      %v8340 = vadd.f32 0.0, %v8339
      %v8341 = vpop.f32.mrf.mxu0
      %v8342 = vadd.f32 0.0, %v8341
      %8343 = vmatmul.bf16.gmra.mxu0 %v7323
      %v8344 = vpop.f32.mrf.mxu0
      %v8345 = vadd.f32 0.0, %v8344
      %v8346 = vpop.f32.mrf.mxu0
      %v8347 = vadd.f32 0.0, %v8346
      %8348 = vmatmul.bf16.gmra.mxu0 %v7325
      %v8349 = vpop.f32.mrf.mxu0
      %v8350 = vadd.f32 0.0, %v8349
      %v8351 = vpop.f32.mrf.mxu0
      %v8352 = vadd.f32 0.0, %v8351
      %8353 = vmatmul.bf16.gmra.mxu0 %v7327
      %v8354 = vpop.f32.mrf.mxu0
      %v8355 = vadd.f32 0.0, %v8354
      %v8356 = vpop.f32.mrf.mxu0
      %v8357 = vadd.f32 0.0, %v8356
      %8358 = vmatmul.bf16.gmra.mxu0 %v7329
      %v8359 = vpop.f32.mrf.mxu0
      %v8360 = vadd.f32 0.0, %v8359
      %v8361 = vpop.f32.mrf.mxu0
      %v8362 = vadd.f32 0.0, %v8361
      %8363 = vmatmul.bf16.gmra.mxu0 %v7331
      %v8364 = vpop.f32.mrf.mxu0
      %v8365 = vadd.f32 0.0, %v8364
      %v8366 = vpop.f32.mrf.mxu0
      %v8367 = vadd.f32 0.0, %v8366
      %8368 = vmatmul.bf16.gmra.mxu0 %v7333
      %v8369 = vpop.f32.mrf.mxu0
      %v8370 = vadd.f32 0.0, %v8369
      %v8371 = vpop.f32.mrf.mxu0
      %v8372 = vadd.f32 0.0, %v8371
      %8373 = vmatmul.bf16.gmra.mxu0 %v7335
      %v8374 = vpop.f32.mrf.mxu0
      %v8375 = vadd.f32 0.0, %v8374
      %v8376 = vpop.f32.mrf.mxu0
      %v8377 = vadd.f32 0.0, %v8376
      %8378 = vmatmul.bf16.gmra.mxu0 %v7337
      %v8379 = vpop.f32.mrf.mxu0
      %v8380 = vadd.f32 0.0, %v8379
      %v8381 = vpop.f32.mrf.mxu0
      %v8382 = vadd.f32 0.0, %v8381
      %8383 = vmatmul.bf16.gmra.mxu0 %v7339
      %v8384 = vpop.f32.mrf.mxu0
      %v8385 = vadd.f32 0.0, %v8384
      %v8386 = vpop.f32.mrf.mxu0
      %v8387 = vadd.f32 0.0, %v8386
      %8388 = vmatmul.bf16.gmra.mxu0 %v7906
      %v8389 = vpop.f32.mrf.mxu0
      %v8390 = vadd.f32 0.0, %v8389
      %v8391 = vpop.f32.mrf.mxu0
      %v8392 = vadd.f32 0.0, %v8391
      %8393 = vmatmul.bf16.gmra.mxu0 %v7309
      %v8394 = vpop.f32.mrf.mxu0
      %v8395 = vadd.f32 0.0, %v8394
      %v8396 = vpop.f32.mrf.mxu0
      %v8397 = vadd.f32 0.0, %v8396
      %8398 = vdwg.mxu0
      %v8399 = vadd.f32 %v8266, %v8320
      %v8400 = vadd.f32 %v8267, %v8322
      %v8401 = vadd.f32 %v8268, %v8325
      %v8402 = vadd.f32 %v8269, %v8327
      %v8403 = vadd.f32 %v8270, %v8330
      %v8404 = vadd.f32 %v8271, %v8332
      %v8405 = vadd.f32 %v8272, %v8335
      %v8406 = vadd.f32 %v8273, %v8337
      %v8407 = vadd.f32 %v8274, %v8340
      %v8408 = vadd.f32 %v8275, %v8342
      %v8409 = vadd.f32 %v8276, %v8345
      %v8410 = vadd.f32 %v8277, %v8347
      %v8411 = vadd.f32 %v8278, %v8350
      %v8412 = vadd.f32 %v8279, %v8352
      %v8413 = vadd.f32 %v8280, %v8355
      %v8414 = vadd.f32 %v8281, %v8357
      %v8415 = vadd.f32 %v8282, %v8360
      %v8416 = vadd.f32 %v8283, %v8362
      %v8417 = vadd.f32 %v8284, %v8365
      %v8418 = vadd.f32 %v8285, %v8367
      %v8419 = vadd.f32 %v8286, %v8370
      %v8420 = vadd.f32 %v8287, %v8372
      %v8421 = vadd.f32 %v8288, %v8375
      %v8422 = vadd.f32 %v8289, %v8377
      %v8423 = vadd.f32 %v8290, %v8380
      %v8424 = vadd.f32 %v8291, %v8382
      %v8425 = vadd.f32 %v8292, %v8385
      %v8426 = vadd.f32 %v8293, %v8387
      %v8427 = vadd.f32 %v8294, %v8390
      %v8428 = vadd.f32 %v8295, %v8392
      %v8429 = vadd.f32 %v8296, %v8395
      %v8430 = vadd.f32 %v8297, %v8397
      %v8435 = vunpack.c.l.b16 %v6646
      %v8436 = vunpack.c.l.b16 %v6647
      %v8437 = vunpack.c.l.b16 %v6648
      %v8438 = vunpack.c.l.b16 %v6649
      %v8439 = vpack.c.b16 %v8436, %v8435
      %v8440 = vpack.c.b16 %v8438, %v8437
      %8443 = vmatpush.bf16.msra.mxu0 0
      %8444 = vmatpush.bf16.msra.mxu0 0
      %8445 = vmatpush.bf16.msra.mxu0 0
      %8446 = vmatpush.bf16.msra.mxu0 0
      %8447 = vmatpush.bf16.msra.mxu0 0
      %8448 = vmatpush.bf16.msra.mxu0 0
      %8449 = vmatpush.bf16.msra.mxu0 %v8440
      %8450 = vmatpush.bf16.msra.mxu0 %v8439
      %8451 = vmatmul.bf16.gmra.mxu0 %v7596
      %v8452 = vpop.f32.mrf.mxu0
      %v8453 = vadd.f32 0.0, %v8452
      %v8454 = vpop.f32.mrf.mxu0
      %v8455 = vadd.f32 0.0, %v8454
      %8456 = vmatmul.bf16.gmra.mxu0 %v7599
      %v8457 = vpop.f32.mrf.mxu0
      %v8458 = vadd.f32 0.0, %v8457
      %v8459 = vpop.f32.mrf.mxu0
      %v8460 = vadd.f32 0.0, %v8459
      %8461 = vmatmul.bf16.gmra.mxu0 %v7602
      %v8462 = vpop.f32.mrf.mxu0
      %v8463 = vadd.f32 0.0, %v8462
      %v8464 = vpop.f32.mrf.mxu0
      %v8465 = vadd.f32 0.0, %v8464
      %8466 = vmatmul.bf16.gmra.mxu0 %v7605
      %v8467 = vpop.f32.mrf.mxu0
      %v8468 = vadd.f32 0.0, %v8467
      %v8469 = vpop.f32.mrf.mxu0
      %v8470 = vadd.f32 0.0, %v8469
      %8471 = vmatmul.bf16.gmra.mxu0 %v7608
      %v8472 = vpop.f32.mrf.mxu0
      %v8473 = vadd.f32 0.0, %v8472
      %v8474 = vpop.f32.mrf.mxu0
      %v8475 = vadd.f32 0.0, %v8474
      %8476 = vmatmul.bf16.gmra.mxu0 %v7611
      %v8477 = vpop.f32.mrf.mxu0
      %v8478 = vadd.f32 0.0, %v8477
      %v8479 = vpop.f32.mrf.mxu0
      %v8480 = vadd.f32 0.0, %v8479
      %8481 = vmatmul.bf16.gmra.mxu0 %v7614
      %v8482 = vpop.f32.mrf.mxu0
      %v8483 = vadd.f32 0.0, %v8482
      %v8484 = vpop.f32.mrf.mxu0
      %v8485 = vadd.f32 0.0, %v8484
      %8486 = vmatmul.bf16.gmra.mxu0 %v7617
      %v8487 = vpop.f32.mrf.mxu0
      %v8488 = vadd.f32 0.0, %v8487
      %v8489 = vpop.f32.mrf.mxu0
      %v8490 = vadd.f32 0.0, %v8489
      %8491 = vmatmul.bf16.gmra.mxu0 %v7620
      %v8492 = vpop.f32.mrf.mxu0
      %v8493 = vadd.f32 0.0, %v8492
      %v8494 = vpop.f32.mrf.mxu0
      %v8495 = vadd.f32 0.0, %v8494
      %8496 = vmatmul.bf16.gmra.mxu0 %v7623
      %v8497 = vpop.f32.mrf.mxu0
      %v8498 = vadd.f32 0.0, %v8497
      %v8499 = vpop.f32.mrf.mxu0
      %v8500 = vadd.f32 0.0, %v8499
      %8501 = vmatmul.bf16.gmra.mxu0 %v7626
      %v8502 = vpop.f32.mrf.mxu0
      %v8503 = vadd.f32 0.0, %v8502
      %v8504 = vpop.f32.mrf.mxu0
      %v8505 = vadd.f32 0.0, %v8504
      %8506 = vmatmul.bf16.gmra.mxu0 %v7629
      %v8507 = vpop.f32.mrf.mxu0
      %v8508 = vadd.f32 0.0, %v8507
      %v8509 = vpop.f32.mrf.mxu0
      %v8510 = vadd.f32 0.0, %v8509
      %8511 = vmatmul.bf16.gmra.mxu0 %v7632
      %v8512 = vpop.f32.mrf.mxu0
      %v8513 = vadd.f32 0.0, %v8512
      %v8514 = vpop.f32.mrf.mxu0
      %v8515 = vadd.f32 0.0, %v8514
      %8516 = vmatmul.bf16.gmra.mxu0 %v7635
      %v8517 = vpop.f32.mrf.mxu0
      %v8518 = vadd.f32 0.0, %v8517
      %v8519 = vpop.f32.mrf.mxu0
      %v8520 = vadd.f32 0.0, %v8519
      %8521 = vmatmul.bf16.gmra.mxu0 %v8042
      %v8522 = vpop.f32.mrf.mxu0
      %v8523 = vadd.f32 0.0, %v8522
      %v8524 = vpop.f32.mrf.mxu0
      %v8525 = vadd.f32 0.0, %v8524
      %8526 = vmatmul.bf16.gmra.mxu0 %v7590
      %v8527 = vpop.f32.mrf.mxu0
      %v8528 = vadd.f32 0.0, %v8527
      %v8529 = vpop.f32.mrf.mxu0
      %v8530 = vadd.f32 0.0, %v8529
      %8531 = vdwg.mxu0
      %v8532 = vadd.f32 %v8399, %v8453
      %v8533 = vadd.f32 %v8400, %v8455
      %v8534 = vadd.f32 %v8401, %v8458
      %v8535 = vadd.f32 %v8402, %v8460
      %v8536 = vadd.f32 %v8403, %v8463
      %v8537 = vadd.f32 %v8404, %v8465
      %v8538 = vadd.f32 %v8405, %v8468
      %v8539 = vadd.f32 %v8406, %v8470
      %v8540 = vadd.f32 %v8407, %v8473
      %v8541 = vadd.f32 %v8408, %v8475
      %v8542 = vadd.f32 %v8409, %v8478
      %v8543 = vadd.f32 %v8410, %v8480
      %v8544 = vadd.f32 %v8411, %v8483
      %v8545 = vadd.f32 %v8412, %v8485
      %v8546 = vadd.f32 %v8413, %v8488
      %v8547 = vadd.f32 %v8414, %v8490
      %v8548 = vadd.f32 %v8415, %v8493
      %v8549 = vadd.f32 %v8416, %v8495
      %v8550 = vadd.f32 %v8417, %v8498
      %v8551 = vadd.f32 %v8418, %v8500
      %v8552 = vadd.f32 %v8419, %v8503
      %v8553 = vadd.f32 %v8420, %v8505
      %v8554 = vadd.f32 %v8421, %v8508
      %v8555 = vadd.f32 %v8422, %v8510
      %v8556 = vadd.f32 %v8423, %v8513
      %v8557 = vadd.f32 %v8424, %v8515
      %v8558 = vadd.f32 %v8425, %v8518
      %v8559 = vadd.f32 %v8426, %v8520
      %v8560 = vadd.f32 %v8427, %v8523
      %v8561 = vadd.f32 %v8428, %v8525
      %v8562 = vadd.f32 %v8429, %v8528
      %v8563 = vadd.f32 %v8430, %v8530
      %v8564 = vld [vmem:[%s10] sm:$0x1]
      %v8566 = vperm.slane %v8564, 0
      %v8568 = vadd.f32 %v8532, %v8566
      %v8569 = vadd.f32 %v8533, %v8566
      %v8570 = vadd.f32 %v8534, %v8566
      %v8571 = vadd.f32 %v8535, %v8566
      %v8572 = vadd.f32 %v8536, %v8566
      %v8573 = vadd.f32 %v8537, %v8566
      %v8574 = vadd.f32 %v8538, %v8566
      %v8575 = vadd.f32 %v8539, %v8566
      %v8576 = vadd.f32 %v8540, %v8566
      %v8577 = vadd.f32 %v8541, %v8566
      %v8578 = vadd.f32 %v8542, %v8566
      %v8579 = vadd.f32 %v8543, %v8566
      %v8580 = vadd.f32 %v8544, %v8566
      %v8581 = vadd.f32 %v8545, %v8566
      %v8582 = vadd.f32 %v8546, %v8566
      %v8583 = vadd.f32 %v8547, %v8566
      %v8584 = vadd.f32 %v8548, %v8566
      %v8585 = vadd.f32 %v8549, %v8566
      %v8586 = vadd.f32 %v8550, %v8566
      %v8587 = vadd.f32 %v8551, %v8566
      %v8588 = vadd.f32 %v8552, %v8566
      %v8589 = vadd.f32 %v8553, %v8566
      %v8590 = vadd.f32 %v8554, %v8566
      %v8591 = vadd.f32 %v8555, %v8566
      %v8592 = vadd.f32 %v8556, %v8566
      %v8593 = vadd.f32 %v8557, %v8566
      %v8594 = vadd.f32 %v8558, %v8566
      %v8595 = vadd.f32 %v8559, %v8566
      %v8596 = vadd.f32 %v8560, %v8566
      %v8597 = vadd.f32 %v8561, %v8566
      %v8598 = vadd.f32 %v8562, %v8566
      %v8599 = vadd.f32 %v8563, %v8566
      %v8600 = vmax.f32 %v8568, 0.0
      %v8601 = vmax.f32 %v8569, 0.0
      %v8602 = vmax.f32 %v8570, 0.0
      %v8603 = vmax.f32 %v8571, 0.0
      %v8604 = vmax.f32 %v8572, 0.0
      %v8605 = vmax.f32 %v8573, 0.0
      %v8606 = vmax.f32 %v8574, 0.0
      %v8607 = vmax.f32 %v8575, 0.0
      %v8608 = vmax.f32 %v8576, 0.0
      %v8609 = vmax.f32 %v8577, 0.0
      %v8610 = vmax.f32 %v8578, 0.0
      %v8611 = vmax.f32 %v8579, 0.0
      %v8612 = vmax.f32 %v8580, 0.0
      %v8613 = vmax.f32 %v8581, 0.0
      %v8614 = vmax.f32 %v8582, 0.0
      %v8615 = vmax.f32 %v8583, 0.0
      %v8616 = vmax.f32 %v8584, 0.0
      %v8617 = vmax.f32 %v8585, 0.0
      %v8618 = vmax.f32 %v8586, 0.0
      %v8619 = vmax.f32 %v8587, 0.0
      %v8620 = vmax.f32 %v8588, 0.0
      %v8621 = vmax.f32 %v8589, 0.0
      %v8622 = vmax.f32 %v8590, 0.0
      %v8623 = vmax.f32 %v8591, 0.0
      %v8624 = vmax.f32 %v8592, 0.0
      %v8625 = vmax.f32 %v8593, 0.0
      %v8626 = vmax.f32 %v8594, 0.0
      %v8627 = vmax.f32 %v8595, 0.0
      %v8628 = vmax.f32 %v8596, 0.0
      %v8629 = vmax.f32 %v8597, 0.0
      %v8630 = vmax.f32 %v8598, 0.0
      %v8631 = vmax.f32 %v8599, 0.0
      %v8665 = vrot.slane 0.0, 7
      %v8666 = vsel %vm4292, %v8665, %v8665
      %v8667 = vrot.slane %v8600, 7
      %v8668 = vrot.slane %v8601, 7
      %v8669 = vsel %vm4292, %v8667, %v8668
      %v8670 = vrot.slane %v8602, 7
      %v8671 = vrot.slane %v8603, 7
      %v8672 = vsel %vm4292, %v8670, %v8671
      %v8673 = vrot.slane %v8604, 7
      %v8674 = vrot.slane %v8605, 7
      %v8675 = vsel %vm4292, %v8673, %v8674
      %v8676 = vrot.slane %v8606, 7
      %v8677 = vrot.slane %v8607, 7
      %v8678 = vsel %vm4292, %v8676, %v8677
      %v8679 = vrot.slane %v8608, 7
      %v8680 = vrot.slane %v8609, 7
      %v8681 = vsel %vm4292, %v8679, %v8680
      %v8682 = vrot.slane %v8610, 7
      %v8683 = vrot.slane %v8611, 7
      %v8684 = vsel %vm4292, %v8682, %v8683
      %v8685 = vrot.slane %v8612, 7
      %v8686 = vrot.slane %v8613, 7
      %v8687 = vsel %vm4292, %v8685, %v8686
      %v8688 = vrot.slane %v8614, 7
      %v8689 = vrot.slane %v8615, 7
      %v8690 = vsel %vm4292, %v8688, %v8689
      %v8691 = vrot.slane %v8616, 7
      %v8692 = vrot.slane %v8617, 7
      %v8693 = vsel %vm4292, %v8691, %v8692
      %v8694 = vrot.slane %v8618, 7
      %v8695 = vrot.slane %v8619, 7
      %v8696 = vsel %vm4292, %v8694, %v8695
      %v8697 = vrot.slane %v8620, 7
      %v8698 = vrot.slane %v8621, 7
      %v8699 = vsel %vm4292, %v8697, %v8698
      %v8700 = vrot.slane %v8622, 7
      %v8701 = vrot.slane %v8623, 7
      %v8702 = vsel %vm4292, %v8700, %v8701
      %v8703 = vrot.slane %v8624, 7
      %v8704 = vrot.slane %v8625, 7
      %v8705 = vsel %vm4292, %v8703, %v8704
      %v8706 = vrot.slane %v8626, 7
      %v8707 = vrot.slane %v8627, 7
      %v8708 = vsel %vm4292, %v8706, %v8707
      %v8709 = vrot.slane %v8628, 7
      %v8710 = vrot.slane %v8629, 7
      %v8711 = vsel %vm4292, %v8709, %v8710
      %v8712 = vrot.slane %v8630, 7
      %v8713 = vrot.slane %v8631, 7
      %v8714 = vsel %vm4292, %v8712, %v8713
      %v8748 = vsel %vm4292, 0.0, %v8665
      %v8749 = vsel %vm4292, 0.0, %v8667
      %v8750 = vsel %vm4292, 0.0, %v8670
      %v8751 = vsel %vm4292, 0.0, %v8673
      %v8752 = vsel %vm4292, 0.0, %v8676
      %v8753 = vsel %vm4292, 0.0, %v8679
      %v8754 = vsel %vm4292, 0.0, %v8682
      %v8755 = vsel %vm4292, 0.0, %v8685
      %v8756 = vsel %vm4292, 0.0, %v8688
      %v8757 = vsel %vm4292, 0.0, %v8691
      %v8758 = vsel %vm4292, 0.0, %v8694
      %v8759 = vsel %vm4292, 0.0, %v8697
      %v8760 = vsel %vm4292, 0.0, %v8700
      %v8761 = vsel %vm4292, 0.0, %v8703
      %v8762 = vsel %vm4292, 0.0, %v8706
      %v8763 = vsel %vm4292, 0.0, %v8709
      %v8764 = vsel %vm4292, 0.0, %v8712
      %v8765 = vrot.slane 0.0, 1
      %v8766 = vsel %vm5765, %v8765, %v8765
      %v8767 = vrot.slane %v8600, 1
      %v8768 = vrot.slane %v8601, 1
      %v8769 = vsel %vm5765, %v8767, %v8768
      %v8770 = vrot.slane %v8602, 1
      %v8771 = vrot.slane %v8603, 1
      %v8772 = vsel %vm5765, %v8770, %v8771
      %v8773 = vrot.slane %v8604, 1
      %v8774 = vrot.slane %v8605, 1
      %v8775 = vsel %vm5765, %v8773, %v8774
      %v8776 = vrot.slane %v8606, 1
      %v8777 = vrot.slane %v8607, 1
      %v8778 = vsel %vm5765, %v8776, %v8777
      %v8779 = vrot.slane %v8608, 1
      %v8780 = vrot.slane %v8609, 1
      %v8781 = vsel %vm5765, %v8779, %v8780
      %v8782 = vrot.slane %v8610, 1
      %v8783 = vrot.slane %v8611, 1
      %v8784 = vsel %vm5765, %v8782, %v8783
      %v8785 = vrot.slane %v8612, 1
      %v8786 = vrot.slane %v8613, 1
      %v8787 = vsel %vm5765, %v8785, %v8786
      %v8788 = vrot.slane %v8614, 1
      %v8789 = vrot.slane %v8615, 1
      %v8790 = vsel %vm5765, %v8788, %v8789
      %v8791 = vrot.slane %v8616, 1
      %v8792 = vrot.slane %v8617, 1
      %v8793 = vsel %vm5765, %v8791, %v8792
      %v8794 = vrot.slane %v8618, 1
      %v8795 = vrot.slane %v8619, 1
      %v8796 = vsel %vm5765, %v8794, %v8795
      %v8797 = vrot.slane %v8620, 1
      %v8798 = vrot.slane %v8621, 1
      %v8799 = vsel %vm5765, %v8797, %v8798
      %v8800 = vrot.slane %v8622, 1
      %v8801 = vrot.slane %v8623, 1
      %v8802 = vsel %vm5765, %v8800, %v8801
      %v8803 = vrot.slane %v8624, 1
      %v8804 = vrot.slane %v8625, 1
      %v8805 = vsel %vm5765, %v8803, %v8804
      %v8806 = vrot.slane %v8626, 1
      %v8807 = vrot.slane %v8627, 1
      %v8808 = vsel %vm5765, %v8806, %v8807
      %v8809 = vrot.slane %v8628, 1
      %v8810 = vrot.slane %v8629, 1
      %v8811 = vsel %vm5765, %v8809, %v8810
      %v8812 = vrot.slane %v8630, 1
      %v8813 = vrot.slane %v8631, 1
      %v8814 = vsel %vm5765, %v8812, %v8813
      %v8848 = vsel %vm5765, %v8765, 0.0
      %v8849 = vsel %vm5765, %v8768, 0.0
      %v8850 = vsel %vm5765, %v8771, 0.0
      %v8851 = vsel %vm5765, %v8774, 0.0
      %v8852 = vsel %vm5765, %v8777, 0.0
      %v8853 = vsel %vm5765, %v8780, 0.0
      %v8854 = vsel %vm5765, %v8783, 0.0
      %v8855 = vsel %vm5765, %v8786, 0.0
      %v8856 = vsel %vm5765, %v8789, 0.0
      %v8857 = vsel %vm5765, %v8792, 0.0
      %v8858 = vsel %vm5765, %v8795, 0.0
      %v8859 = vsel %vm5765, %v8798, 0.0
      %v8860 = vsel %vm5765, %v8801, 0.0
      %v8861 = vsel %vm5765, %v8804, 0.0
      %v8862 = vsel %vm5765, %v8807, 0.0
      %v8863 = vsel %vm5765, %v8810, 0.0
      %v8864 = vsel %vm5765, %v8813, 0.0
      %8865 = vrot.lane.b32.xlu0 0.0, 16
      %v8866 = vpop.permute.xlu0 %8865
      %8867 = vrot.lane.b32.xlu0 %v8600, 16
      %v8868 = vpop.permute.xlu0 %8867
      %8869 = vrot.lane.b32.xlu0 %v8601, 16
      %v8870 = vpop.permute.xlu0 %8869
      %8871 = vrot.lane.b32.xlu0 %v8602, 16
      %v8872 = vpop.permute.xlu0 %8871
      %8873 = vrot.lane.b32.xlu0 %v8603, 16
      %v8874 = vpop.permute.xlu0 %8873
      %8875 = vrot.lane.b32.xlu0 %v8604, 16
      %v8876 = vpop.permute.xlu0 %8875
      %8877 = vrot.lane.b32.xlu0 %v8605, 16
      %v8878 = vpop.permute.xlu0 %8877
      %8879 = vrot.lane.b32.xlu0 %v8606, 16
      %v8880 = vpop.permute.xlu0 %8879
      %8881 = vrot.lane.b32.xlu0 %v8607, 16
      %v8882 = vpop.permute.xlu0 %8881
      %8883 = vrot.lane.b32.xlu0 %v8608, 16
      %v8884 = vpop.permute.xlu0 %8883
      %8885 = vrot.lane.b32.xlu0 %v8609, 16
      %v8886 = vpop.permute.xlu0 %8885
      %8887 = vrot.lane.b32.xlu0 %v8610, 16
      %v8888 = vpop.permute.xlu0 %8887
      %8889 = vrot.lane.b32.xlu0 %v8611, 16
      %v8890 = vpop.permute.xlu0 %8889
      %8891 = vrot.lane.b32.xlu0 %v8612, 16
      %v8892 = vpop.permute.xlu0 %8891
      %8893 = vrot.lane.b32.xlu0 %v8613, 16
      %v8894 = vpop.permute.xlu0 %8893
      %8895 = vrot.lane.b32.xlu0 %v8614, 16
      %v8896 = vpop.permute.xlu0 %8895
      %8897 = vrot.lane.b32.xlu0 %v8615, 16
      %v8898 = vpop.permute.xlu0 %8897
      %8899 = vrot.lane.b32.xlu0 %v8616, 16
      %v8900 = vpop.permute.xlu0 %8899
      %8901 = vrot.lane.b32.xlu0 %v8617, 16
      %v8902 = vpop.permute.xlu0 %8901
      %8903 = vrot.lane.b32.xlu0 %v8618, 16
      %v8904 = vpop.permute.xlu0 %8903
      %8905 = vrot.lane.b32.xlu0 %v8619, 16
      %v8906 = vpop.permute.xlu0 %8905
      %8907 = vrot.lane.b32.xlu0 %v8620, 16
      %v8908 = vpop.permute.xlu0 %8907
      %8909 = vrot.lane.b32.xlu0 %v8621, 16
      %v8910 = vpop.permute.xlu0 %8909
      %8911 = vrot.lane.b32.xlu0 %v8622, 16
      %v8912 = vpop.permute.xlu0 %8911
      %8913 = vrot.lane.b32.xlu0 %v8623, 16
      %v8914 = vpop.permute.xlu0 %8913
      %8915 = vrot.lane.b32.xlu0 %v8624, 16
      %v8916 = vpop.permute.xlu0 %8915
      %8917 = vrot.lane.b32.xlu0 %v8625, 16
      %v8918 = vpop.permute.xlu0 %8917
      %8919 = vrot.lane.b32.xlu0 %v8626, 16
      %v8920 = vpop.permute.xlu0 %8919
      %8921 = vrot.lane.b32.xlu0 %v8627, 16
      %v8922 = vpop.permute.xlu0 %8921
      %8923 = vrot.lane.b32.xlu0 %v8628, 16
      %v8924 = vpop.permute.xlu0 %8923
      %8925 = vrot.lane.b32.xlu0 %v8629, 16
      %v8926 = vpop.permute.xlu0 %8925
      %8974 = vrot.lane.b32.xlu0 %v8766, 32
      %v8975 = vpop.permute.xlu0 %8974
      %8976 = vrot.lane.b32.xlu0 %v8848, 32
      %v8977 = vpop.permute.xlu0 %8976
      %8978 = vrot.lane.b32.xlu0 %v8769, 32
      %v8979 = vpop.permute.xlu0 %8978
      %8980 = vrot.lane.b32.xlu0 %v8849, 32
      %v8981 = vpop.permute.xlu0 %8980
      %8982 = vrot.lane.b32.xlu0 %v8772, 32
      %v8983 = vpop.permute.xlu0 %8982
      %8984 = vrot.lane.b32.xlu0 %v8850, 32
      %v8985 = vpop.permute.xlu0 %8984
      %8986 = vrot.lane.b32.xlu0 %v8775, 32
      %v8987 = vpop.permute.xlu0 %8986
      %8988 = vrot.lane.b32.xlu0 %v8851, 32
      %v8989 = vpop.permute.xlu0 %8988
      %8990 = vrot.lane.b32.xlu0 %v8778, 32
      %v8991 = vpop.permute.xlu0 %8990
      %8992 = vrot.lane.b32.xlu0 %v8852, 32
      %v8993 = vpop.permute.xlu0 %8992
      %8994 = vrot.lane.b32.xlu0 %v8781, 32
      %v8995 = vpop.permute.xlu0 %8994
      %8996 = vrot.lane.b32.xlu0 %v8853, 32
      %v8997 = vpop.permute.xlu0 %8996
      %8998 = vrot.lane.b32.xlu0 %v8784, 32
      %v8999 = vpop.permute.xlu0 %8998
      %9000 = vrot.lane.b32.xlu0 %v8854, 32
      %v9001 = vpop.permute.xlu0 %9000
      %9002 = vrot.lane.b32.xlu0 %v8787, 32
      %v9003 = vpop.permute.xlu0 %9002
      %9004 = vrot.lane.b32.xlu0 %v8855, 32
      %v9005 = vpop.permute.xlu0 %9004
      %9006 = vrot.lane.b32.xlu0 %v8790, 32
      %v9007 = vpop.permute.xlu0 %9006
      %9008 = vrot.lane.b32.xlu0 %v8856, 32
      %v9009 = vpop.permute.xlu0 %9008
      %9010 = vrot.lane.b32.xlu0 %v8793, 32
      %v9011 = vpop.permute.xlu0 %9010
      %9012 = vrot.lane.b32.xlu0 %v8857, 32
      %v9013 = vpop.permute.xlu0 %9012
      %9014 = vrot.lane.b32.xlu0 %v8796, 32
      %v9015 = vpop.permute.xlu0 %9014
      %9016 = vrot.lane.b32.xlu0 %v8858, 32
      %v9017 = vpop.permute.xlu0 %9016
      %9018 = vrot.lane.b32.xlu0 %v8799, 32
      %v9019 = vpop.permute.xlu0 %9018
      %9020 = vrot.lane.b32.xlu0 %v8859, 32
      %v9021 = vpop.permute.xlu0 %9020
      %9022 = vrot.lane.b32.xlu0 %v8802, 32
      %v9023 = vpop.permute.xlu0 %9022
      %9024 = vrot.lane.b32.xlu0 %v8860, 32
      %v9025 = vpop.permute.xlu0 %9024
      %9026 = vrot.lane.b32.xlu0 %v8805, 32
      %v9027 = vpop.permute.xlu0 %9026
      %9028 = vrot.lane.b32.xlu0 %v8861, 32
      %v9029 = vpop.permute.xlu0 %9028
      %9030 = vrot.lane.b32.xlu0 %v8808, 32
      %v9031 = vpop.permute.xlu0 %9030
      %9032 = vrot.lane.b32.xlu0 %v8862, 32
      %v9033 = vpop.permute.xlu0 %9032
      %9034 = vrot.lane.b32.xlu0 %v8811, 32
      %v9035 = vpop.permute.xlu0 %9034
      %9036 = vrot.lane.b32.xlu0 %v8863, 32
      %v9037 = vpop.permute.xlu0 %9036
      %9086 = vrot.lane.b32.xlu0 %v8749, 48
      %v9087 = vpop.permute.xlu0 %9086
      %9088 = vrot.lane.b32.xlu0 %v8669, 48
      %v9089 = vpop.permute.xlu0 %9088
      %9090 = vrot.lane.b32.xlu0 %v8750, 48
      %v9091 = vpop.permute.xlu0 %9090
      %9092 = vrot.lane.b32.xlu0 %v8672, 48
      %v9093 = vpop.permute.xlu0 %9092
      %9094 = vrot.lane.b32.xlu0 %v8751, 48
      %v9095 = vpop.permute.xlu0 %9094
      %9096 = vrot.lane.b32.xlu0 %v8675, 48
      %v9097 = vpop.permute.xlu0 %9096
      %9098 = vrot.lane.b32.xlu0 %v8752, 48
      %v9099 = vpop.permute.xlu0 %9098
      %9100 = vrot.lane.b32.xlu0 %v8678, 48
      %v9101 = vpop.permute.xlu0 %9100
      %9102 = vrot.lane.b32.xlu0 %v8753, 48
      %v9103 = vpop.permute.xlu0 %9102
      %9104 = vrot.lane.b32.xlu0 %v8681, 48
      %v9105 = vpop.permute.xlu0 %9104
      %9106 = vrot.lane.b32.xlu0 %v8754, 48
      %v9107 = vpop.permute.xlu0 %9106
      %9108 = vrot.lane.b32.xlu0 %v8684, 48
      %v9109 = vpop.permute.xlu0 %9108
      %9110 = vrot.lane.b32.xlu0 %v8755, 48
      %v9111 = vpop.permute.xlu0 %9110
      %9112 = vrot.lane.b32.xlu0 %v8687, 48
      %v9113 = vpop.permute.xlu0 %9112
      %9114 = vrot.lane.b32.xlu0 %v8756, 48
      %v9115 = vpop.permute.xlu0 %9114
      %9116 = vrot.lane.b32.xlu0 %v8690, 48
      %v9117 = vpop.permute.xlu0 %9116
      %9118 = vrot.lane.b32.xlu0 %v8757, 48
      %v9119 = vpop.permute.xlu0 %9118
      %9120 = vrot.lane.b32.xlu0 %v8693, 48
      %v9121 = vpop.permute.xlu0 %9120
      %9122 = vrot.lane.b32.xlu0 %v8758, 48
      %v9123 = vpop.permute.xlu0 %9122
      %9124 = vrot.lane.b32.xlu0 %v8696, 48
      %v9125 = vpop.permute.xlu0 %9124
      %9126 = vrot.lane.b32.xlu0 %v8759, 48
      %v9127 = vpop.permute.xlu0 %9126
      %9128 = vrot.lane.b32.xlu0 %v8699, 48
      %v9129 = vpop.permute.xlu0 %9128
      %9130 = vrot.lane.b32.xlu0 %v8760, 48
      %v9131 = vpop.permute.xlu0 %9130
      %9132 = vrot.lane.b32.xlu0 %v8702, 48
      %v9133 = vpop.permute.xlu0 %9132
      %9134 = vrot.lane.b32.xlu0 %v8761, 48
      %v9135 = vpop.permute.xlu0 %9134
      %9136 = vrot.lane.b32.xlu0 %v8705, 48
      %v9137 = vpop.permute.xlu0 %9136
      %9138 = vrot.lane.b32.xlu0 %v8762, 48
      %v9139 = vpop.permute.xlu0 %9138
      %9140 = vrot.lane.b32.xlu0 %v8708, 48
      %v9141 = vpop.permute.xlu0 %9140
      %9142 = vrot.lane.b32.xlu0 %v8763, 48
      %v9143 = vpop.permute.xlu0 %9142
      %9144 = vrot.lane.b32.xlu0 %v8711, 48
      %v9145 = vpop.permute.xlu0 %9144
      %9146 = vrot.lane.b32.xlu0 %v8764, 48
      %v9147 = vpop.permute.xlu0 %9146
      %9148 = vrot.lane.b32.xlu0 %v8714, 48
      %v9149 = vpop.permute.xlu0 %9148
      %9182 = vrot.lane.b32.xlu0 %v8600, 64
      %v9183 = vpop.permute.xlu0 %9182
      %9184 = vrot.lane.b32.xlu0 %v8601, 64
      %v9185 = vpop.permute.xlu0 %9184
      %9186 = vrot.lane.b32.xlu0 %v8602, 64
      %v9187 = vpop.permute.xlu0 %9186
      %9188 = vrot.lane.b32.xlu0 %v8603, 64
      %v9189 = vpop.permute.xlu0 %9188
      %9190 = vrot.lane.b32.xlu0 %v8604, 64
      %v9191 = vpop.permute.xlu0 %9190
      %9192 = vrot.lane.b32.xlu0 %v8605, 64
      %v9193 = vpop.permute.xlu0 %9192
      %9194 = vrot.lane.b32.xlu0 %v8606, 64
      %v9195 = vpop.permute.xlu0 %9194
      %9196 = vrot.lane.b32.xlu0 %v8607, 64
      %v9197 = vpop.permute.xlu0 %9196
      %9198 = vrot.lane.b32.xlu0 %v8608, 64
      %v9199 = vpop.permute.xlu0 %9198
      %9200 = vrot.lane.b32.xlu0 %v8609, 64
      %v9201 = vpop.permute.xlu0 %9200
      %9202 = vrot.lane.b32.xlu0 %v8610, 64
      %v9203 = vpop.permute.xlu0 %9202
      %9204 = vrot.lane.b32.xlu0 %v8611, 64
      %v9205 = vpop.permute.xlu0 %9204
      %9206 = vrot.lane.b32.xlu0 %v8612, 64
      %v9207 = vpop.permute.xlu0 %9206
      %9208 = vrot.lane.b32.xlu0 %v8613, 64
      %v9209 = vpop.permute.xlu0 %9208
      %9210 = vrot.lane.b32.xlu0 %v8614, 64
      %v9211 = vpop.permute.xlu0 %9210
      %9212 = vrot.lane.b32.xlu0 %v8615, 64
      %v9213 = vpop.permute.xlu0 %9212
      %9214 = vrot.lane.b32.xlu0 %v8616, 64
      %v9215 = vpop.permute.xlu0 %9214
      %9216 = vrot.lane.b32.xlu0 %v8617, 64
      %v9217 = vpop.permute.xlu0 %9216
      %9218 = vrot.lane.b32.xlu0 %v8618, 64
      %v9219 = vpop.permute.xlu0 %9218
      %9220 = vrot.lane.b32.xlu0 %v8619, 64
      %v9221 = vpop.permute.xlu0 %9220
      %9222 = vrot.lane.b32.xlu0 %v8620, 64
      %v9223 = vpop.permute.xlu0 %9222
      %9224 = vrot.lane.b32.xlu0 %v8621, 64
      %v9225 = vpop.permute.xlu0 %9224
      %9226 = vrot.lane.b32.xlu0 %v8622, 64
      %v9227 = vpop.permute.xlu0 %9226
      %9228 = vrot.lane.b32.xlu0 %v8623, 64
      %v9229 = vpop.permute.xlu0 %9228
      %9230 = vrot.lane.b32.xlu0 %v8624, 64
      %v9231 = vpop.permute.xlu0 %9230
      %9232 = vrot.lane.b32.xlu0 %v8625, 64
      %v9233 = vpop.permute.xlu0 %9232
      %9234 = vrot.lane.b32.xlu0 %v8626, 64
      %v9235 = vpop.permute.xlu0 %9234
      %9236 = vrot.lane.b32.xlu0 %v8627, 64
      %v9237 = vpop.permute.xlu0 %9236
      %9238 = vrot.lane.b32.xlu0 %v8628, 64
      %v9239 = vpop.permute.xlu0 %9238
      %9240 = vrot.lane.b32.xlu0 %v8629, 64
      %v9241 = vpop.permute.xlu0 %9240
      %9242 = vrot.lane.b32.xlu0 %v8630, 64
      %v9243 = vpop.permute.xlu0 %9242
      %9244 = vrot.lane.b32.xlu0 %v8631, 64
      %v9245 = vpop.permute.xlu0 %9244
      %9279 = vrot.lane.b32.xlu0 %v8769, 80
      %v9280 = vpop.permute.xlu0 %9279
      %9281 = vrot.lane.b32.xlu0 %v8849, 80
      %v9282 = vpop.permute.xlu0 %9281
      %9283 = vrot.lane.b32.xlu0 %v8772, 80
      %v9284 = vpop.permute.xlu0 %9283
      %9285 = vrot.lane.b32.xlu0 %v8850, 80
      %v9286 = vpop.permute.xlu0 %9285
      %9287 = vrot.lane.b32.xlu0 %v8775, 80
      %v9288 = vpop.permute.xlu0 %9287
      %9289 = vrot.lane.b32.xlu0 %v8851, 80
      %v9290 = vpop.permute.xlu0 %9289
      %9291 = vrot.lane.b32.xlu0 %v8778, 80
      %v9292 = vpop.permute.xlu0 %9291
      %9293 = vrot.lane.b32.xlu0 %v8852, 80
      %v9294 = vpop.permute.xlu0 %9293
      %9295 = vrot.lane.b32.xlu0 %v8781, 80
      %v9296 = vpop.permute.xlu0 %9295
      %9297 = vrot.lane.b32.xlu0 %v8853, 80
      %v9298 = vpop.permute.xlu0 %9297
      %9299 = vrot.lane.b32.xlu0 %v8784, 80
      %v9300 = vpop.permute.xlu0 %9299
      %9301 = vrot.lane.b32.xlu0 %v8854, 80
      %v9302 = vpop.permute.xlu0 %9301
      %9303 = vrot.lane.b32.xlu0 %v8787, 80
      %v9304 = vpop.permute.xlu0 %9303
      %9305 = vrot.lane.b32.xlu0 %v8855, 80
      %v9306 = vpop.permute.xlu0 %9305
      %9307 = vrot.lane.b32.xlu0 %v8790, 80
      %v9308 = vpop.permute.xlu0 %9307
      %9309 = vrot.lane.b32.xlu0 %v8856, 80
      %v9310 = vpop.permute.xlu0 %9309
      %9311 = vrot.lane.b32.xlu0 %v8793, 80
      %v9312 = vpop.permute.xlu0 %9311
      %9313 = vrot.lane.b32.xlu0 %v8857, 80
      %v9314 = vpop.permute.xlu0 %9313
      %9315 = vrot.lane.b32.xlu0 %v8796, 80
      %v9316 = vpop.permute.xlu0 %9315
      %9317 = vrot.lane.b32.xlu0 %v8858, 80
      %v9318 = vpop.permute.xlu0 %9317
      %9319 = vrot.lane.b32.xlu0 %v8799, 80
      %v9320 = vpop.permute.xlu0 %9319
      %9321 = vrot.lane.b32.xlu0 %v8859, 80
      %v9322 = vpop.permute.xlu0 %9321
      %9323 = vrot.lane.b32.xlu0 %v8802, 80
      %v9324 = vpop.permute.xlu0 %9323
      %9325 = vrot.lane.b32.xlu0 %v8860, 80
      %v9326 = vpop.permute.xlu0 %9325
      %9327 = vrot.lane.b32.xlu0 %v8805, 80
      %v9328 = vpop.permute.xlu0 %9327
      %9329 = vrot.lane.b32.xlu0 %v8861, 80
      %v9330 = vpop.permute.xlu0 %9329
      %9331 = vrot.lane.b32.xlu0 %v8808, 80
      %v9332 = vpop.permute.xlu0 %9331
      %9333 = vrot.lane.b32.xlu0 %v8862, 80
      %v9334 = vpop.permute.xlu0 %9333
      %9335 = vrot.lane.b32.xlu0 %v8811, 80
      %v9336 = vpop.permute.xlu0 %9335
      %9337 = vrot.lane.b32.xlu0 %v8863, 80
      %v9338 = vpop.permute.xlu0 %9337
      %9339 = vrot.lane.b32.xlu0 %v8814, 80
      %v9340 = vpop.permute.xlu0 %9339
      %9341 = vrot.lane.b32.xlu0 %v8864, 80
      %v9342 = vpop.permute.xlu0 %9341
      %9376 = vrot.lane.b32.xlu0 %v8750, 96
      %v9377 = vpop.permute.xlu0 %9376
      %9378 = vrot.lane.b32.xlu0 %v8672, 96
      %v9379 = vpop.permute.xlu0 %9378
      %9380 = vrot.lane.b32.xlu0 %v8751, 96
      %v9381 = vpop.permute.xlu0 %9380
      %9382 = vrot.lane.b32.xlu0 %v8675, 96
      %v9383 = vpop.permute.xlu0 %9382
      %9384 = vrot.lane.b32.xlu0 %v8752, 96
      %v9385 = vpop.permute.xlu0 %9384
      %9386 = vrot.lane.b32.xlu0 %v8678, 96
      %v9387 = vpop.permute.xlu0 %9386
      %9388 = vrot.lane.b32.xlu0 %v8753, 96
      %v9389 = vpop.permute.xlu0 %9388
      %9390 = vrot.lane.b32.xlu0 %v8681, 96
      %v9391 = vpop.permute.xlu0 %9390
      %9392 = vrot.lane.b32.xlu0 %v8754, 96
      %v9393 = vpop.permute.xlu0 %9392
      %9394 = vrot.lane.b32.xlu0 %v8684, 96
      %v9395 = vpop.permute.xlu0 %9394
      %9396 = vrot.lane.b32.xlu0 %v8755, 96
      %v9397 = vpop.permute.xlu0 %9396
      %9398 = vrot.lane.b32.xlu0 %v8687, 96
      %v9399 = vpop.permute.xlu0 %9398
      %9400 = vrot.lane.b32.xlu0 %v8756, 96
      %v9401 = vpop.permute.xlu0 %9400
      %9402 = vrot.lane.b32.xlu0 %v8690, 96
      %v9403 = vpop.permute.xlu0 %9402
      %9404 = vrot.lane.b32.xlu0 %v8757, 96
      %v9405 = vpop.permute.xlu0 %9404
      %9406 = vrot.lane.b32.xlu0 %v8693, 96
      %v9407 = vpop.permute.xlu0 %9406
      %9408 = vrot.lane.b32.xlu0 %v8758, 96
      %v9409 = vpop.permute.xlu0 %9408
      %9410 = vrot.lane.b32.xlu0 %v8696, 96
      %v9411 = vpop.permute.xlu0 %9410
      %9412 = vrot.lane.b32.xlu0 %v8759, 96
      %v9413 = vpop.permute.xlu0 %9412
      %9414 = vrot.lane.b32.xlu0 %v8699, 96
      %v9415 = vpop.permute.xlu0 %9414
      %9416 = vrot.lane.b32.xlu0 %v8760, 96
      %v9417 = vpop.permute.xlu0 %9416
      %9418 = vrot.lane.b32.xlu0 %v8702, 96
      %v9419 = vpop.permute.xlu0 %9418
      %9420 = vrot.lane.b32.xlu0 %v8761, 96
      %v9421 = vpop.permute.xlu0 %9420
      %9422 = vrot.lane.b32.xlu0 %v8705, 96
      %v9423 = vpop.permute.xlu0 %9422
      %9424 = vrot.lane.b32.xlu0 %v8762, 96
      %v9425 = vpop.permute.xlu0 %9424
      %9426 = vrot.lane.b32.xlu0 %v8708, 96
      %v9427 = vpop.permute.xlu0 %9426
      %9428 = vrot.lane.b32.xlu0 %v8763, 96
      %v9429 = vpop.permute.xlu0 %9428
      %9430 = vrot.lane.b32.xlu0 %v8711, 96
      %v9431 = vpop.permute.xlu0 %9430
      %9432 = vrot.lane.b32.xlu0 %v8764, 96
      %v9433 = vpop.permute.xlu0 %9432
      %9434 = vrot.lane.b32.xlu0 %v8714, 96
      %v9435 = vpop.permute.xlu0 %9434
      %9436 = vrot.lane.b32.xlu0 %v8748, 96
      %v9437 = vpop.permute.xlu0 %9436
      %9438 = vrot.lane.b32.xlu0 %v8666, 96
      %v9439 = vpop.permute.xlu0 %9438
      %9472 = vrot.lane.b32.xlu0 %v8602, 112
      %v9473 = vpop.permute.xlu0 %9472
      %9474 = vrot.lane.b32.xlu0 %v8603, 112
      %v9475 = vpop.permute.xlu0 %9474
      %9476 = vrot.lane.b32.xlu0 %v8604, 112
      %v9477 = vpop.permute.xlu0 %9476
      %9478 = vrot.lane.b32.xlu0 %v8605, 112
      %v9479 = vpop.permute.xlu0 %9478
      %9480 = vrot.lane.b32.xlu0 %v8606, 112
      %v9481 = vpop.permute.xlu0 %9480
      %9482 = vrot.lane.b32.xlu0 %v8607, 112
      %v9483 = vpop.permute.xlu0 %9482
      %9484 = vrot.lane.b32.xlu0 %v8608, 112
      %v9485 = vpop.permute.xlu0 %9484
      %9486 = vrot.lane.b32.xlu0 %v8609, 112
      %v9487 = vpop.permute.xlu0 %9486
      %9488 = vrot.lane.b32.xlu0 %v8610, 112
      %v9489 = vpop.permute.xlu0 %9488
      %9490 = vrot.lane.b32.xlu0 %v8611, 112
      %v9491 = vpop.permute.xlu0 %9490
      %9492 = vrot.lane.b32.xlu0 %v8612, 112
      %v9493 = vpop.permute.xlu0 %9492
      %9494 = vrot.lane.b32.xlu0 %v8613, 112
      %v9495 = vpop.permute.xlu0 %9494
      %9496 = vrot.lane.b32.xlu0 %v8614, 112
      %v9497 = vpop.permute.xlu0 %9496
      %9498 = vrot.lane.b32.xlu0 %v8615, 112
      %v9499 = vpop.permute.xlu0 %9498
      %9500 = vrot.lane.b32.xlu0 %v8616, 112
      %v9501 = vpop.permute.xlu0 %9500
      %9502 = vrot.lane.b32.xlu0 %v8617, 112
      %v9503 = vpop.permute.xlu0 %9502
      %9504 = vrot.lane.b32.xlu0 %v8618, 112
      %v9505 = vpop.permute.xlu0 %9504
      %9506 = vrot.lane.b32.xlu0 %v8619, 112
      %v9507 = vpop.permute.xlu0 %9506
      %9508 = vrot.lane.b32.xlu0 %v8620, 112
      %v9509 = vpop.permute.xlu0 %9508
      %9510 = vrot.lane.b32.xlu0 %v8621, 112
      %v9511 = vpop.permute.xlu0 %9510
      %9512 = vrot.lane.b32.xlu0 %v8622, 112
      %v9513 = vpop.permute.xlu0 %9512
      %9514 = vrot.lane.b32.xlu0 %v8623, 112
      %v9515 = vpop.permute.xlu0 %9514
      %9516 = vrot.lane.b32.xlu0 %v8624, 112
      %v9517 = vpop.permute.xlu0 %9516
      %9518 = vrot.lane.b32.xlu0 %v8625, 112
      %v9519 = vpop.permute.xlu0 %9518
      %9520 = vrot.lane.b32.xlu0 %v8626, 112
      %v9521 = vpop.permute.xlu0 %9520
      %9522 = vrot.lane.b32.xlu0 %v8627, 112
      %v9523 = vpop.permute.xlu0 %9522
      %9524 = vrot.lane.b32.xlu0 %v8628, 112
      %v9525 = vpop.permute.xlu0 %9524
      %9526 = vrot.lane.b32.xlu0 %v8629, 112
      %v9527 = vpop.permute.xlu0 %9526
      %9528 = vrot.lane.b32.xlu0 %v8630, 112
      %v9529 = vpop.permute.xlu0 %9528
      %9530 = vrot.lane.b32.xlu0 %v8631, 112
      %v9531 = vpop.permute.xlu0 %9530
      %9532 = vrot.lane.b32.xlu0 0.0, 112
      %v9533 = vpop.permute.xlu0 %9532
      %v9565 = vsel %vm3049, %v8748, %v8866
      %v9566 = vsel %vm3049, %v8666, %v8866
      %v9567 = vsel %vm3049, %v8749, %v8868
      %v9568 = vsel %vm3049, %v8669, %v8870
      %v9569 = vsel %vm3049, %v8750, %v8872
      %v9570 = vsel %vm3049, %v8672, %v8874
      %v9571 = vsel %vm3049, %v8751, %v8876
      %v9572 = vsel %vm3049, %v8675, %v8878
      %v9573 = vsel %vm3049, %v8752, %v8880
      %v9574 = vsel %vm3049, %v8678, %v8882
      %v9575 = vsel %vm3049, %v8753, %v8884
      %v9576 = vsel %vm3049, %v8681, %v8886
      %v9577 = vsel %vm3049, %v8754, %v8888
      %v9578 = vsel %vm3049, %v8684, %v8890
      %v9579 = vsel %vm3049, %v8755, %v8892
      %v9580 = vsel %vm3049, %v8687, %v8894
      %v9581 = vsel %vm3049, %v8756, %v8896
      %v9582 = vsel %vm3049, %v8690, %v8898
      %v9583 = vsel %vm3049, %v8757, %v8900
      %v9584 = vsel %vm3049, %v8693, %v8902
      %v9585 = vsel %vm3049, %v8758, %v8904
      %v9586 = vsel %vm3049, %v8696, %v8906
      %v9587 = vsel %vm3049, %v8759, %v8908
      %v9588 = vsel %vm3049, %v8699, %v8910
      %v9589 = vsel %vm3049, %v8760, %v8912
      %v9590 = vsel %vm3049, %v8702, %v8914
      %v9591 = vsel %vm3049, %v8761, %v8916
      %v9592 = vsel %vm3049, %v8705, %v8918
      %v9593 = vsel %vm3049, %v8762, %v8920
      %v9594 = vsel %vm3049, %v8708, %v8922
      %v9595 = vsel %vm3049, %v8763, %v8924
      %v9596 = vsel %vm3049, %v8711, %v8926
      %v9597 = vsel %vm3891, %v9565, %v8975
      %v9598 = vsel %vm3891, %v9566, %v8977
      %v9599 = vsel %vm3891, %v9567, %v8979
      %v9600 = vsel %vm3891, %v9568, %v8981
      %v9601 = vsel %vm3891, %v9569, %v8983
      %v9602 = vsel %vm3891, %v9570, %v8985
      %v9603 = vsel %vm3891, %v9571, %v8987
      %v9604 = vsel %vm3891, %v9572, %v8989
      %v9605 = vsel %vm3891, %v9573, %v8991
      %v9606 = vsel %vm3891, %v9574, %v8993
      %v9607 = vsel %vm3891, %v9575, %v8995
      %v9608 = vsel %vm3891, %v9576, %v8997
      %v9609 = vsel %vm3891, %v9577, %v8999
      %v9610 = vsel %vm3891, %v9578, %v9001
      %v9611 = vsel %vm3891, %v9579, %v9003
      %v9612 = vsel %vm3891, %v9580, %v9005
      %v9613 = vsel %vm3891, %v9581, %v9007
      %v9614 = vsel %vm3891, %v9582, %v9009
      %v9615 = vsel %vm3891, %v9583, %v9011
      %v9616 = vsel %vm3891, %v9584, %v9013
      %v9617 = vsel %vm3891, %v9585, %v9015
      %v9618 = vsel %vm3891, %v9586, %v9017
      %v9619 = vsel %vm3891, %v9587, %v9019
      %v9620 = vsel %vm3891, %v9588, %v9021
      %v9621 = vsel %vm3891, %v9589, %v9023
      %v9622 = vsel %vm3891, %v9590, %v9025
      %v9623 = vsel %vm3891, %v9591, %v9027
      %v9624 = vsel %vm3891, %v9592, %v9029
      %v9625 = vsel %vm3891, %v9593, %v9031
      %v9626 = vsel %vm3891, %v9594, %v9033
      %v9627 = vsel %vm3891, %v9595, %v9035
      %v9628 = vsel %vm3891, %v9596, %v9037
      %vm9629 = vcmask 392192
      %v9630 = vsel %vm9629, %v9597, %v9087
      %v9631 = vsel %vm9629, %v9598, %v9089
      %v9632 = vsel %vm9629, %v9599, %v9091
      %v9633 = vsel %vm9629, %v9600, %v9093
      %v9634 = vsel %vm9629, %v9601, %v9095
      %v9635 = vsel %vm9629, %v9602, %v9097
      %v9636 = vsel %vm9629, %v9603, %v9099
      %v9637 = vsel %vm9629, %v9604, %v9101
      %v9638 = vsel %vm9629, %v9605, %v9103
      %v9639 = vsel %vm9629, %v9606, %v9105
      %v9640 = vsel %vm9629, %v9607, %v9107
      %v9641 = vsel %vm9629, %v9608, %v9109
      %v9642 = vsel %vm9629, %v9609, %v9111
      %v9643 = vsel %vm9629, %v9610, %v9113
      %v9644 = vsel %vm9629, %v9611, %v9115
      %v9645 = vsel %vm9629, %v9612, %v9117
      %v9646 = vsel %vm9629, %v9613, %v9119
      %v9647 = vsel %vm9629, %v9614, %v9121
      %v9648 = vsel %vm9629, %v9615, %v9123
      %v9649 = vsel %vm9629, %v9616, %v9125
      %v9650 = vsel %vm9629, %v9617, %v9127
      %v9651 = vsel %vm9629, %v9618, %v9129
      %v9652 = vsel %vm9629, %v9619, %v9131
      %v9653 = vsel %vm9629, %v9620, %v9133
      %v9654 = vsel %vm9629, %v9621, %v9135
      %v9655 = vsel %vm9629, %v9622, %v9137
      %v9656 = vsel %vm9629, %v9623, %v9139
      %v9657 = vsel %vm9629, %v9624, %v9141
      %v9658 = vsel %vm9629, %v9625, %v9143
      %v9659 = vsel %vm9629, %v9626, %v9145
      %v9660 = vsel %vm9629, %v9627, %v9147
      %v9661 = vsel %vm9629, %v9628, %v9149
      %v9662 = vsel %vm4969, %v9630, %v9183
      %v9663 = vsel %vm4969, %v9631, %v9185
      %v9664 = vsel %vm4969, %v9632, %v9187
      %v9665 = vsel %vm4969, %v9633, %v9189
      %v9666 = vsel %vm4969, %v9634, %v9191
      %v9667 = vsel %vm4969, %v9635, %v9193
      %v9668 = vsel %vm4969, %v9636, %v9195
      %v9669 = vsel %vm4969, %v9637, %v9197
      %v9670 = vsel %vm4969, %v9638, %v9199
      %v9671 = vsel %vm4969, %v9639, %v9201
      %v9672 = vsel %vm4969, %v9640, %v9203
      %v9673 = vsel %vm4969, %v9641, %v9205
      %v9674 = vsel %vm4969, %v9642, %v9207
      %v9675 = vsel %vm4969, %v9643, %v9209
      %v9676 = vsel %vm4969, %v9644, %v9211
      %v9677 = vsel %vm4969, %v9645, %v9213
      %v9678 = vsel %vm4969, %v9646, %v9215
      %v9679 = vsel %vm4969, %v9647, %v9217
      %v9680 = vsel %vm4969, %v9648, %v9219
      %v9681 = vsel %vm4969, %v9649, %v9221
      %v9682 = vsel %vm4969, %v9650, %v9223
      %v9683 = vsel %vm4969, %v9651, %v9225
      %v9684 = vsel %vm4969, %v9652, %v9227
      %v9685 = vsel %vm4969, %v9653, %v9229
      %v9686 = vsel %vm4969, %v9654, %v9231
      %v9687 = vsel %vm4969, %v9655, %v9233
      %v9688 = vsel %vm4969, %v9656, %v9235
      %v9689 = vsel %vm4969, %v9657, %v9237
      %v9690 = vsel %vm4969, %v9658, %v9239
      %v9691 = vsel %vm4969, %v9659, %v9241
      %v9692 = vsel %vm4969, %v9660, %v9243
      %v9693 = vsel %vm4969, %v9661, %v9245
      %vm9694 = vcmask 654336
      %v9695 = vsel %vm9694, %v9662, %v9280
      %v9696 = vsel %vm9694, %v9663, %v9282
      %v9697 = vsel %vm9694, %v9664, %v9284
      %v9698 = vsel %vm9694, %v9665, %v9286
      %v9699 = vsel %vm9694, %v9666, %v9288
      %v9700 = vsel %vm9694, %v9667, %v9290
      %v9701 = vsel %vm9694, %v9668, %v9292
      %v9702 = vsel %vm9694, %v9669, %v9294
      %v9703 = vsel %vm9694, %v9670, %v9296
      %v9704 = vsel %vm9694, %v9671, %v9298
      %v9705 = vsel %vm9694, %v9672, %v9300
      %v9706 = vsel %vm9694, %v9673, %v9302
      %v9707 = vsel %vm9694, %v9674, %v9304
      %v9708 = vsel %vm9694, %v9675, %v9306
      %v9709 = vsel %vm9694, %v9676, %v9308
      %v9710 = vsel %vm9694, %v9677, %v9310
      %v9711 = vsel %vm9694, %v9678, %v9312
      %v9712 = vsel %vm9694, %v9679, %v9314
      %v9713 = vsel %vm9694, %v9680, %v9316
      %v9714 = vsel %vm9694, %v9681, %v9318
      %v9715 = vsel %vm9694, %v9682, %v9320
      %v9716 = vsel %vm9694, %v9683, %v9322
      %v9717 = vsel %vm9694, %v9684, %v9324
      %v9718 = vsel %vm9694, %v9685, %v9326
      %v9719 = vsel %vm9694, %v9686, %v9328
      %v9720 = vsel %vm9694, %v9687, %v9330
      %v9721 = vsel %vm9694, %v9688, %v9332
      %v9722 = vsel %vm9694, %v9689, %v9334
      %v9723 = vsel %vm9694, %v9690, %v9336
      %v9724 = vsel %vm9694, %v9691, %v9338
      %v9725 = vsel %vm9694, %v9692, %v9340
      %v9726 = vsel %vm9694, %v9693, %v9342
      %vm9727 = vcmask 785408
      %v9728 = vsel %vm9727, %v9695, %v9377
      %v9729 = vsel %vm9727, %v9696, %v9379
      %v9730 = vsel %vm9727, %v9697, %v9381
      %v9731 = vsel %vm9727, %v9698, %v9383
      %v9732 = vsel %vm9727, %v9699, %v9385
      %v9733 = vsel %vm9727, %v9700, %v9387
      %v9734 = vsel %vm9727, %v9701, %v9389
      %v9735 = vsel %vm9727, %v9702, %v9391
      %v9736 = vsel %vm9727, %v9703, %v9393
      %v9737 = vsel %vm9727, %v9704, %v9395
      %v9738 = vsel %vm9727, %v9705, %v9397
      %v9739 = vsel %vm9727, %v9706, %v9399
      %v9740 = vsel %vm9727, %v9707, %v9401
      %v9741 = vsel %vm9727, %v9708, %v9403
      %v9742 = vsel %vm9727, %v9709, %v9405
      %v9743 = vsel %vm9727, %v9710, %v9407
      %v9744 = vsel %vm9727, %v9711, %v9409
      %v9745 = vsel %vm9727, %v9712, %v9411
      %v9746 = vsel %vm9727, %v9713, %v9413
      %v9747 = vsel %vm9727, %v9714, %v9415
      %v9748 = vsel %vm9727, %v9715, %v9417
      %v9749 = vsel %vm9727, %v9716, %v9419
      %v9750 = vsel %vm9727, %v9717, %v9421
      %v9751 = vsel %vm9727, %v9718, %v9423
      %v9752 = vsel %vm9727, %v9719, %v9425
      %v9753 = vsel %vm9727, %v9720, %v9427
      %v9754 = vsel %vm9727, %v9721, %v9429
      %v9755 = vsel %vm9727, %v9722, %v9431
      %v9756 = vsel %vm9727, %v9723, %v9433
      %v9757 = vsel %vm9727, %v9724, %v9435
      %v9758 = vsel %vm9727, %v9725, %v9437
      %v9759 = vsel %vm9727, %v9726, %v9439
      %vm9760 = vcmask 916480
      %v9761 = vsel %vm9760, %v9728, %v9473
      %v9762 = vsel %vm9760, %v9729, %v9475
      %v9763 = vsel %vm9760, %v9730, %v9477
      %v9764 = vsel %vm9760, %v9731, %v9479
      %v9765 = vsel %vm9760, %v9732, %v9481
      %v9766 = vsel %vm9760, %v9733, %v9483
      %v9767 = vsel %vm9760, %v9734, %v9485
      %v9768 = vsel %vm9760, %v9735, %v9487
      %v9769 = vsel %vm9760, %v9736, %v9489
      %v9770 = vsel %vm9760, %v9737, %v9491
      %v9771 = vsel %vm9760, %v9738, %v9493
      %v9772 = vsel %vm9760, %v9739, %v9495
      %v9773 = vsel %vm9760, %v9740, %v9497
      %v9774 = vsel %vm9760, %v9741, %v9499
      %v9775 = vsel %vm9760, %v9742, %v9501
      %v9776 = vsel %vm9760, %v9743, %v9503
      %v9777 = vsel %vm9760, %v9744, %v9505
      %v9778 = vsel %vm9760, %v9745, %v9507
      %v9779 = vsel %vm9760, %v9746, %v9509
      %v9780 = vsel %vm9760, %v9747, %v9511
      %v9781 = vsel %vm9760, %v9748, %v9513
      %v9782 = vsel %vm9760, %v9749, %v9515
      %v9783 = vsel %vm9760, %v9750, %v9517
      %v9784 = vsel %vm9760, %v9751, %v9519
      %v9785 = vsel %vm9760, %v9752, %v9521
      %v9786 = vsel %vm9760, %v9753, %v9523
      %v9787 = vsel %vm9760, %v9754, %v9525
      %v9788 = vsel %vm9760, %v9755, %v9527
      %v9789 = vsel %vm9760, %v9756, %v9529
      %v9790 = vsel %vm9760, %v9757, %v9531
      %v9791 = vsel %vm9760, %v9758, %v9533
      %v9792 = vsel %vm9760, %v9759, %v9533
      %v9793 = vld [vmem:[%s11] sm:$0x3]
      %v9795 = vperm.slane %v9793, 0
      %v9796 = vperm.slane %v9793, 1
      %v9799 = vmul.f32 %v9761, %v9795
      %v9800 = vmul.f32 %v8772, %v9796
      %v9801 = vmul.f32 %v9762, %v9795
      %v9802 = vmul.f32 %v8850, %v9796
      %v9803 = vmul.f32 %v9763, %v9795
      %v9804 = vmul.f32 %v8775, %v9796
      %v9805 = vmul.f32 %v9764, %v9795
      %v9806 = vmul.f32 %v8851, %v9796
      %v9807 = vmul.f32 %v9765, %v9795
      %v9808 = vmul.f32 %v8778, %v9796
      %v9809 = vmul.f32 %v9766, %v9795
      %v9810 = vmul.f32 %v8852, %v9796
      %v9811 = vmul.f32 %v9767, %v9795
      %v9812 = vmul.f32 %v8781, %v9796
      %v9813 = vmul.f32 %v9768, %v9795
      %v9814 = vmul.f32 %v8853, %v9796
      %v9815 = vmul.f32 %v9769, %v9795
      %v9816 = vmul.f32 %v8784, %v9796
      %v9817 = vmul.f32 %v9770, %v9795
      %v9818 = vmul.f32 %v8854, %v9796
      %v9819 = vmul.f32 %v9771, %v9795
      %v9820 = vmul.f32 %v8787, %v9796
      %v9821 = vmul.f32 %v9772, %v9795
      %v9822 = vmul.f32 %v8855, %v9796
      %v9823 = vmul.f32 %v9773, %v9795
      %v9824 = vmul.f32 %v8790, %v9796
      %v9825 = vmul.f32 %v9774, %v9795
      %v9826 = vmul.f32 %v8856, %v9796
      %v9827 = vmul.f32 %v9775, %v9795
      %v9828 = vmul.f32 %v8793, %v9796
      %v9829 = vmul.f32 %v9776, %v9795
      %v9830 = vmul.f32 %v8857, %v9796
      %v9831 = vmul.f32 %v9777, %v9795
      %v9832 = vmul.f32 %v8796, %v9796
      %v9833 = vmul.f32 %v9778, %v9795
      %v9834 = vmul.f32 %v8858, %v9796
      %v9835 = vmul.f32 %v9779, %v9795
      %v9836 = vmul.f32 %v8799, %v9796
      %v9837 = vmul.f32 %v9780, %v9795
      %v9838 = vmul.f32 %v8859, %v9796
      %v9839 = vmul.f32 %v9781, %v9795
      %v9840 = vmul.f32 %v8802, %v9796
      %v9841 = vmul.f32 %v9782, %v9795
      %v9842 = vmul.f32 %v8860, %v9796
      %v9843 = vmul.f32 %v9783, %v9795
      %v9844 = vmul.f32 %v8805, %v9796
      %v9845 = vmul.f32 %v9784, %v9795
      %v9846 = vmul.f32 %v8861, %v9796
      %v9847 = vmul.f32 %v9785, %v9795
      %v9848 = vmul.f32 %v8808, %v9796
      %v9849 = vmul.f32 %v9786, %v9795
      %v9850 = vmul.f32 %v8862, %v9796
      %v9851 = vmul.f32 %v9787, %v9795
      %v9852 = vmul.f32 %v8811, %v9796
      %v9853 = vmul.f32 %v9788, %v9795
      %v9854 = vmul.f32 %v8863, %v9796
      %v9855 = vmul.f32 %v9789, %v9795
      %v9856 = vmul.f32 %v8814, %v9796
      %v9857 = vmul.f32 %v9790, %v9795
      %v9858 = vmul.f32 %v8864, %v9796
      %v9859 = vmul.f32 %v9791, %v9795
      %v9860 = vmul.f32 %v8766, %v9796
      %v9861 = vmul.f32 %v9792, %v9795
      %v9862 = vmul.f32 %v8848, %v9796
      %v9863 = vsel %vm3049, %v9800, 0.0
      %v9864 = vadd.f32 %v9799, %v9863
      %9865 = vadd.xlane.f32.xlu0 %v9864
      %v9866 = vpop.xlane.xlu0 %9865
      %v9867 = vsel %vm3049, %v9802, 0.0
      %v9868 = vadd.f32 %v9801, %v9867
      %9869 = vadd.xlane.f32.xlu0 %v9868
      %v9870 = vpop.xlane.xlu0 %9869
      %v9871 = vsel %vm3049, %v9804, 0.0
      %v9872 = vadd.f32 %v9803, %v9871
      %9873 = vadd.xlane.f32.xlu0 %v9872
      %v9874 = vpop.xlane.xlu0 %9873
      %v9875 = vsel %vm3049, %v9806, 0.0
      %v9876 = vadd.f32 %v9805, %v9875
      %9877 = vadd.xlane.f32.xlu0 %v9876
      %v9878 = vpop.xlane.xlu0 %9877
      %v9879 = vsel %vm3049, %v9808, 0.0
      %v9880 = vadd.f32 %v9807, %v9879
      %9881 = vadd.xlane.f32.xlu0 %v9880
      %v9882 = vpop.xlane.xlu0 %9881
      %v9883 = vsel %vm3049, %v9810, 0.0
      %v9884 = vadd.f32 %v9809, %v9883
      %9885 = vadd.xlane.f32.xlu0 %v9884
      %v9886 = vpop.xlane.xlu0 %9885
      %v9887 = vsel %vm3049, %v9812, 0.0
      %v9888 = vadd.f32 %v9811, %v9887
      %9889 = vadd.xlane.f32.xlu0 %v9888
      %v9890 = vpop.xlane.xlu0 %9889
      %v9891 = vsel %vm3049, %v9814, 0.0
      %v9892 = vadd.f32 %v9813, %v9891
      %9893 = vadd.xlane.f32.xlu0 %v9892
      %v9894 = vpop.xlane.xlu0 %9893
      %v9895 = vsel %vm3049, %v9816, 0.0
      %v9896 = vadd.f32 %v9815, %v9895
      %9897 = vadd.xlane.f32.xlu0 %v9896
      %v9898 = vpop.xlane.xlu0 %9897
      %v9899 = vsel %vm3049, %v9818, 0.0
      %v9900 = vadd.f32 %v9817, %v9899
      %9901 = vadd.xlane.f32.xlu0 %v9900
      %v9902 = vpop.xlane.xlu0 %9901
      %v9903 = vsel %vm3049, %v9820, 0.0
      %v9904 = vadd.f32 %v9819, %v9903
      %9905 = vadd.xlane.f32.xlu0 %v9904
      %v9906 = vpop.xlane.xlu0 %9905
      %v9907 = vsel %vm3049, %v9822, 0.0
      %v9908 = vadd.f32 %v9821, %v9907
      %9909 = vadd.xlane.f32.xlu0 %v9908
      %v9910 = vpop.xlane.xlu0 %9909
      %v9911 = vsel %vm3049, %v9824, 0.0
      %v9912 = vadd.f32 %v9823, %v9911
      %9913 = vadd.xlane.f32.xlu0 %v9912
      %v9914 = vpop.xlane.xlu0 %9913
      %v9915 = vsel %vm3049, %v9826, 0.0
      %v9916 = vadd.f32 %v9825, %v9915
      %9917 = vadd.xlane.f32.xlu0 %v9916
      %v9918 = vpop.xlane.xlu0 %9917
      %v9919 = vsel %vm3049, %v9828, 0.0
      %v9920 = vadd.f32 %v9827, %v9919
      %9921 = vadd.xlane.f32.xlu0 %v9920
      %v9922 = vpop.xlane.xlu0 %9921
      %v9923 = vsel %vm3049, %v9830, 0.0
      %v9924 = vadd.f32 %v9829, %v9923
      %9925 = vadd.xlane.f32.xlu0 %v9924
      %v9926 = vpop.xlane.xlu0 %9925
      %v9927 = vsel %vm3049, %v9832, 0.0
      %v9928 = vadd.f32 %v9831, %v9927
      %9929 = vadd.xlane.f32.xlu0 %v9928
      %v9930 = vpop.xlane.xlu0 %9929
      %v9931 = vsel %vm3049, %v9834, 0.0
      %v9932 = vadd.f32 %v9833, %v9931
      %9933 = vadd.xlane.f32.xlu0 %v9932
      %v9934 = vpop.xlane.xlu0 %9933
      %v9935 = vsel %vm3049, %v9836, 0.0
      %v9936 = vadd.f32 %v9835, %v9935
      %9937 = vadd.xlane.f32.xlu0 %v9936
      %v9938 = vpop.xlane.xlu0 %9937
      %v9939 = vsel %vm3049, %v9838, 0.0
      %v9940 = vadd.f32 %v9837, %v9939
      %9941 = vadd.xlane.f32.xlu0 %v9940
      %v9942 = vpop.xlane.xlu0 %9941
      %v9943 = vsel %vm3049, %v9840, 0.0
      %v9944 = vadd.f32 %v9839, %v9943
      %9945 = vadd.xlane.f32.xlu0 %v9944
      %v9946 = vpop.xlane.xlu0 %9945
      %v9947 = vsel %vm3049, %v9842, 0.0
      %v9948 = vadd.f32 %v9841, %v9947
      %9949 = vadd.xlane.f32.xlu0 %v9948
      %v9950 = vpop.xlane.xlu0 %9949
      %v9951 = vsel %vm3049, %v9844, 0.0
      %v9952 = vadd.f32 %v9843, %v9951
      %9953 = vadd.xlane.f32.xlu0 %v9952
      %v9954 = vpop.xlane.xlu0 %9953
      %v9955 = vsel %vm3049, %v9846, 0.0
      %v9956 = vadd.f32 %v9845, %v9955
      %9957 = vadd.xlane.f32.xlu0 %v9956
      %v9958 = vpop.xlane.xlu0 %9957
      %v9959 = vsel %vm3049, %v9848, 0.0
      %v9960 = vadd.f32 %v9847, %v9959
      %9961 = vadd.xlane.f32.xlu0 %v9960
      %v9962 = vpop.xlane.xlu0 %9961
      %v9963 = vsel %vm3049, %v9850, 0.0
      %v9964 = vadd.f32 %v9849, %v9963
      %9965 = vadd.xlane.f32.xlu0 %v9964
      %v9966 = vpop.xlane.xlu0 %9965
      %v9967 = vsel %vm3049, %v9852, 0.0
      %v9968 = vadd.f32 %v9851, %v9967
      %9969 = vadd.xlane.f32.xlu0 %v9968
      %v9970 = vpop.xlane.xlu0 %9969
      %v9971 = vsel %vm3049, %v9854, 0.0
      %v9972 = vadd.f32 %v9853, %v9971
      %9973 = vadd.xlane.f32.xlu0 %v9972
      %v9974 = vpop.xlane.xlu0 %9973
      %v9975 = vsel %vm3049, %v9856, 0.0
      %v9976 = vadd.f32 %v9855, %v9975
      %9977 = vadd.xlane.f32.xlu0 %v9976
      %v9978 = vpop.xlane.xlu0 %9977
      %v9979 = vsel %vm3049, %v9858, 0.0
      %v9980 = vadd.f32 %v9857, %v9979
      %9981 = vadd.xlane.f32.xlu0 %v9980
      %v9982 = vpop.xlane.xlu0 %9981
      %v9983 = vsel %vm3049, %v9860, 0.0
      %v9984 = vadd.f32 %v9859, %v9983
      %9985 = vadd.xlane.f32.xlu0 %v9984
      %v9986 = vpop.xlane.xlu0 %9985
      %v9987 = vsel %vm3049, %v9862, 0.0
      %v9988 = vadd.f32 %v9861, %v9987
      %9989 = vadd.xlane.f32.xlu0 %v9988
      %v9990 = vpop.xlane.xlu0 %9989
      %v9991 = vld [vmem:[#allocation2] sm:$0x1]
      %9993 = vset.pattern.permute.xlu0 0
      %9994 = vperm.xlu0 %9993, %v9991
      %v9995 = vpop.permute.xlu0 %9994
      %v9997 = vperm.slane %v9995, 0
      %v9998 = vadd.f32 %v9866, %v9997
      %v9999 = vadd.f32 %v9870, %v9997
      %v10000 = vadd.f32 %v9874, %v9997
      %v10001 = vadd.f32 %v9878, %v9997
      %v10002 = vadd.f32 %v9882, %v9997
      %v10003 = vadd.f32 %v9886, %v9997
      %v10004 = vadd.f32 %v9890, %v9997
      %v10005 = vadd.f32 %v9894, %v9997
      %v10006 = vadd.f32 %v9898, %v9997
      %v10007 = vadd.f32 %v9902, %v9997
      %v10008 = vadd.f32 %v9906, %v9997
      %v10009 = vadd.f32 %v9910, %v9997
      %v10010 = vadd.f32 %v9914, %v9997
      %v10011 = vadd.f32 %v9918, %v9997
      %v10012 = vadd.f32 %v9922, %v9997
      %v10013 = vadd.f32 %v9926, %v9997
      %v10014 = vadd.f32 %v9930, %v9997
      %v10015 = vadd.f32 %v9934, %v9997
      %v10016 = vadd.f32 %v9938, %v9997
      %v10017 = vadd.f32 %v9942, %v9997
      %v10018 = vadd.f32 %v9946, %v9997
      %v10019 = vadd.f32 %v9950, %v9997
      %v10020 = vadd.f32 %v9954, %v9997
      %v10021 = vadd.f32 %v9958, %v9997
      %v10022 = vadd.f32 %v9962, %v9997
      %v10023 = vadd.f32 %v9966, %v9997
      %v10024 = vadd.f32 %v9970, %v9997
      %v10025 = vadd.f32 %v9974, %v9997
      %v10026 = vadd.f32 %v9978, %v9997
      %v10027 = vadd.f32 %v9982, %v9997
      %v10028 = vadd.f32 %v9986, %v9997
      %v10029 = vadd.f32 %v9990, %v9997
      %v10030 = vxor.u32 %v9998, 2147483648
      %v10031 = vxor.u32 %v9999, 2147483648
      %v10032 = vxor.u32 %v10000, 2147483648
      %v10033 = vxor.u32 %v10001, 2147483648
      %v10034 = vxor.u32 %v10002, 2147483648
      %v10035 = vxor.u32 %v10003, 2147483648
      %v10036 = vxor.u32 %v10004, 2147483648
      %v10037 = vxor.u32 %v10005, 2147483648
      %v10038 = vxor.u32 %v10006, 2147483648
      %v10039 = vxor.u32 %v10007, 2147483648
      %v10040 = vxor.u32 %v10008, 2147483648
      %v10041 = vxor.u32 %v10009, 2147483648
      %v10042 = vxor.u32 %v10010, 2147483648
      %v10043 = vxor.u32 %v10011, 2147483648
      %v10044 = vxor.u32 %v10012, 2147483648
      %v10045 = vxor.u32 %v10013, 2147483648
      %v10046 = vxor.u32 %v10014, 2147483648
      %v10047 = vxor.u32 %v10015, 2147483648
      %v10048 = vxor.u32 %v10016, 2147483648
      %v10049 = vxor.u32 %v10017, 2147483648
      %v10050 = vxor.u32 %v10018, 2147483648
      %v10051 = vxor.u32 %v10019, 2147483648
      %v10052 = vxor.u32 %v10020, 2147483648
      %v10053 = vxor.u32 %v10021, 2147483648
      %v10054 = vxor.u32 %v10022, 2147483648
      %v10055 = vxor.u32 %v10023, 2147483648
      %v10056 = vxor.u32 %v10024, 2147483648
      %v10057 = vxor.u32 %v10025, 2147483648
      %v10058 = vxor.u32 %v10026, 2147483648
      %v10059 = vxor.u32 %v10027, 2147483648
      %v10060 = vxor.u32 %v10028, 2147483648
      %v10061 = vxor.u32 %v10029, 2147483648
      %v10062 = vmul.f32 %v10030, 1.442695
      %v10063 = vpow.pop %v10062
      %v10064 = vmul.f32 %v10031, 1.442695
      %v10065 = vpow.pop %v10064
      %v10066 = vmul.f32 %v10032, 1.442695
      %v10067 = vpow.pop %v10066
      %v10068 = vmul.f32 %v10033, 1.442695
      %v10069 = vpow.pop %v10068
      %v10070 = vmul.f32 %v10034, 1.442695
      %v10071 = vpow.pop %v10070
      %v10072 = vmul.f32 %v10035, 1.442695
      %v10073 = vpow.pop %v10072
      %v10074 = vmul.f32 %v10036, 1.442695
      %v10075 = vpow.pop %v10074
      %v10076 = vmul.f32 %v10037, 1.442695
      %v10077 = vpow.pop %v10076
      %v10078 = vmul.f32 %v10038, 1.442695
      %v10079 = vpow.pop %v10078
      %v10080 = vmul.f32 %v10039, 1.442695
      %v10081 = vpow.pop %v10080
      %v10082 = vmul.f32 %v10040, 1.442695
      %v10083 = vpow.pop %v10082
      %v10084 = vmul.f32 %v10041, 1.442695
      %v10085 = vpow.pop %v10084
      %v10086 = vmul.f32 %v10042, 1.442695
      %v10087 = vpow.pop %v10086
      %v10088 = vmul.f32 %v10043, 1.442695
      %v10089 = vpow.pop %v10088
      %v10090 = vmul.f32 %v10044, 1.442695
      %v10091 = vpow.pop %v10090
      %v10092 = vmul.f32 %v10045, 1.442695
      %v10093 = vpow.pop %v10092
      %v10094 = vmul.f32 %v10046, 1.442695
      %v10095 = vpow.pop %v10094
      %v10096 = vmul.f32 %v10047, 1.442695
      %v10097 = vpow.pop %v10096
      %v10098 = vmul.f32 %v10048, 1.442695
      %v10099 = vpow.pop %v10098
      %v10100 = vmul.f32 %v10049, 1.442695
      %v10101 = vpow.pop %v10100
      %v10102 = vmul.f32 %v10050, 1.442695
      %v10103 = vpow.pop %v10102
      %v10104 = vmul.f32 %v10051, 1.442695
      %v10105 = vpow.pop %v10104
      %v10106 = vmul.f32 %v10052, 1.442695
      %v10107 = vpow.pop %v10106
      %v10108 = vmul.f32 %v10053, 1.442695
      %v10109 = vpow.pop %v10108
      %v10110 = vmul.f32 %v10054, 1.442695
      %v10111 = vpow.pop %v10110
      %v10112 = vmul.f32 %v10055, 1.442695
      %v10113 = vpow.pop %v10112
      %v10114 = vmul.f32 %v10056, 1.442695
      %v10115 = vpow.pop %v10114
      %v10116 = vmul.f32 %v10057, 1.442695
      %v10117 = vpow.pop %v10116
      %v10118 = vmul.f32 %v10058, 1.442695
      %v10119 = vpow.pop %v10118
      %v10120 = vmul.f32 %v10059, 1.442695
      %v10121 = vpow.pop %v10120
      %v10122 = vmul.f32 %v10060, 1.442695
      %v10123 = vpow.pop %v10122
      %v10124 = vmul.f32 %v10061, 1.442695
      %v10125 = vpow.pop %v10124
      %v10126 = vadd.f32 %v10063, 1.0
      %v10127 = vadd.f32 %v10065, 1.0
      %v10128 = vadd.f32 %v10067, 1.0
      %v10129 = vadd.f32 %v10069, 1.0
      %v10130 = vadd.f32 %v10071, 1.0
      %v10131 = vadd.f32 %v10073, 1.0
      %v10132 = vadd.f32 %v10075, 1.0
      %v10133 = vadd.f32 %v10077, 1.0
      %v10134 = vadd.f32 %v10079, 1.0
      %v10135 = vadd.f32 %v10081, 1.0
      %v10136 = vadd.f32 %v10083, 1.0
      %v10137 = vadd.f32 %v10085, 1.0
      %v10138 = vadd.f32 %v10087, 1.0
      %v10139 = vadd.f32 %v10089, 1.0
      %v10140 = vadd.f32 %v10091, 1.0
      %v10141 = vadd.f32 %v10093, 1.0
      %v10142 = vadd.f32 %v10095, 1.0
      %v10143 = vadd.f32 %v10097, 1.0
      %v10144 = vadd.f32 %v10099, 1.0
      %v10145 = vadd.f32 %v10101, 1.0
      %v10146 = vadd.f32 %v10103, 1.0
      %v10147 = vadd.f32 %v10105, 1.0
      %v10148 = vadd.f32 %v10107, 1.0
      %v10149 = vadd.f32 %v10109, 1.0
      %v10150 = vadd.f32 %v10111, 1.0
      %v10151 = vadd.f32 %v10113, 1.0
      %v10152 = vadd.f32 %v10115, 1.0
      %v10153 = vadd.f32 %v10117, 1.0
      %v10154 = vadd.f32 %v10119, 1.0
      %v10155 = vadd.f32 %v10121, 1.0
      %v10156 = vadd.f32 %v10123, 1.0
      %v10157 = vadd.f32 %v10125, 1.0
      %v10158 = vrcp.pop %v10126
      %v10159 = vmul.f32 %v10126, %v10158
      %v10160 = vsub.f32 1.0, %v10159
      %v10161 = vmul.f32 %v10158, %v10160
      %v10162 = vadd.f32 %v10158, %v10161
      %vm10163 = vweird.f32 %v10126
      %vm10164 = vweird.f32 %v10158
      %vm10165 = vmor %vm10163, %vm10164
      %v10166 = vsel %vm10165, %v10158, %v10162
      %v10167 = vand.u32 2147483647, %v10126
      %vm10168 = vcmp.eq.f32.partialorder %v10167, 8.507059e+37
      %v10169 = vand.u32 %v10126, 2147483648
      %v10170 = vor.u32 1.1754944e-38, %v10169
      %v10171 = vsel %vm10168, %v10170, %v10166
      %v10172 = vmul.f32 1.0, %v10171
      %v10173 = vrcp.pop %v10127
      %v10174 = vmul.f32 %v10127, %v10173
      %v10175 = vsub.f32 1.0, %v10174
      %v10176 = vmul.f32 %v10173, %v10175
      %v10177 = vadd.f32 %v10173, %v10176
      %vm10178 = vweird.f32 %v10127
      %vm10179 = vweird.f32 %v10173
      %vm10180 = vmor %vm10178, %vm10179
      %v10181 = vsel %vm10180, %v10173, %v10177
      %v10182 = vand.u32 2147483647, %v10127
      %vm10183 = vcmp.eq.f32.partialorder %v10182, 8.507059e+37
      %v10184 = vand.u32 %v10127, 2147483648
      %v10185 = vor.u32 1.1754944e-38, %v10184
      %v10186 = vsel %vm10183, %v10185, %v10181
      %v10187 = vmul.f32 1.0, %v10186
      %v10188 = vrcp.pop %v10128
      %v10189 = vmul.f32 %v10128, %v10188
      %v10190 = vsub.f32 1.0, %v10189
      %v10191 = vmul.f32 %v10188, %v10190
      %v10192 = vadd.f32 %v10188, %v10191
      %vm10193 = vweird.f32 %v10128
      %vm10194 = vweird.f32 %v10188
      %vm10195 = vmor %vm10193, %vm10194
      %v10196 = vsel %vm10195, %v10188, %v10192
      %v10197 = vand.u32 2147483647, %v10128
      %vm10198 = vcmp.eq.f32.partialorder %v10197, 8.507059e+37
      %v10199 = vand.u32 %v10128, 2147483648
      %v10200 = vor.u32 1.1754944e-38, %v10199
      %v10201 = vsel %vm10198, %v10200, %v10196
      %v10202 = vmul.f32 1.0, %v10201
      %v10203 = vrcp.pop %v10129
      %v10204 = vmul.f32 %v10129, %v10203
      %v10205 = vsub.f32 1.0, %v10204
      %v10206 = vmul.f32 %v10203, %v10205
      %v10207 = vadd.f32 %v10203, %v10206
      %vm10208 = vweird.f32 %v10129
      %vm10209 = vweird.f32 %v10203
      %vm10210 = vmor %vm10208, %vm10209
      %v10211 = vsel %vm10210, %v10203, %v10207
      %v10212 = vand.u32 2147483647, %v10129
      %vm10213 = vcmp.eq.f32.partialorder %v10212, 8.507059e+37
      %v10214 = vand.u32 %v10129, 2147483648
      %v10215 = vor.u32 1.1754944e-38, %v10214
      %v10216 = vsel %vm10213, %v10215, %v10211
      %v10217 = vmul.f32 1.0, %v10216
      %v10218 = vrcp.pop %v10130
      %v10219 = vmul.f32 %v10130, %v10218
      %v10220 = vsub.f32 1.0, %v10219
      %v10221 = vmul.f32 %v10218, %v10220
      %v10222 = vadd.f32 %v10218, %v10221
      %vm10223 = vweird.f32 %v10130
      %vm10224 = vweird.f32 %v10218
      %vm10225 = vmor %vm10223, %vm10224
      %v10226 = vsel %vm10225, %v10218, %v10222
      %v10227 = vand.u32 2147483647, %v10130
      %vm10228 = vcmp.eq.f32.partialorder %v10227, 8.507059e+37
      %v10229 = vand.u32 %v10130, 2147483648
      %v10230 = vor.u32 1.1754944e-38, %v10229
      %v10231 = vsel %vm10228, %v10230, %v10226
      %v10232 = vmul.f32 1.0, %v10231
      %v10233 = vrcp.pop %v10131
      %v10234 = vmul.f32 %v10131, %v10233
      %v10235 = vsub.f32 1.0, %v10234
      %v10236 = vmul.f32 %v10233, %v10235
      %v10237 = vadd.f32 %v10233, %v10236
      %vm10238 = vweird.f32 %v10131
      %vm10239 = vweird.f32 %v10233
      %vm10240 = vmor %vm10238, %vm10239
      %v10241 = vsel %vm10240, %v10233, %v10237
      %v10242 = vand.u32 2147483647, %v10131
      %vm10243 = vcmp.eq.f32.partialorder %v10242, 8.507059e+37
      %v10244 = vand.u32 %v10131, 2147483648
      %v10245 = vor.u32 1.1754944e-38, %v10244
      %v10246 = vsel %vm10243, %v10245, %v10241
      %v10247 = vmul.f32 1.0, %v10246
      %v10248 = vrcp.pop %v10132
      %v10249 = vmul.f32 %v10132, %v10248
      %v10250 = vsub.f32 1.0, %v10249
      %v10251 = vmul.f32 %v10248, %v10250
      %v10252 = vadd.f32 %v10248, %v10251
      %vm10253 = vweird.f32 %v10132
      %vm10254 = vweird.f32 %v10248
      %vm10255 = vmor %vm10253, %vm10254
      %v10256 = vsel %vm10255, %v10248, %v10252
      %v10257 = vand.u32 2147483647, %v10132
      %vm10258 = vcmp.eq.f32.partialorder %v10257, 8.507059e+37
      %v10259 = vand.u32 %v10132, 2147483648
      %v10260 = vor.u32 1.1754944e-38, %v10259
      %v10261 = vsel %vm10258, %v10260, %v10256
      %v10262 = vmul.f32 1.0, %v10261
      %v10263 = vrcp.pop %v10133
      %v10264 = vmul.f32 %v10133, %v10263
      %v10265 = vsub.f32 1.0, %v10264
      %v10266 = vmul.f32 %v10263, %v10265
      %v10267 = vadd.f32 %v10263, %v10266
      %vm10268 = vweird.f32 %v10133
      %vm10269 = vweird.f32 %v10263
      %vm10270 = vmor %vm10268, %vm10269
      %v10271 = vsel %vm10270, %v10263, %v10267
      %v10272 = vand.u32 2147483647, %v10133
      %vm10273 = vcmp.eq.f32.partialorder %v10272, 8.507059e+37
      %v10274 = vand.u32 %v10133, 2147483648
      %v10275 = vor.u32 1.1754944e-38, %v10274
      %v10276 = vsel %vm10273, %v10275, %v10271
      %v10277 = vmul.f32 1.0, %v10276
      %v10278 = vrcp.pop %v10134
      %v10279 = vmul.f32 %v10134, %v10278
      %v10280 = vsub.f32 1.0, %v10279
      %v10281 = vmul.f32 %v10278, %v10280
      %v10282 = vadd.f32 %v10278, %v10281
      %vm10283 = vweird.f32 %v10134
      %vm10284 = vweird.f32 %v10278
      %vm10285 = vmor %vm10283, %vm10284
      %v10286 = vsel %vm10285, %v10278, %v10282
      %v10287 = vand.u32 2147483647, %v10134
      %vm10288 = vcmp.eq.f32.partialorder %v10287, 8.507059e+37
      %v10289 = vand.u32 %v10134, 2147483648
      %v10290 = vor.u32 1.1754944e-38, %v10289
      %v10291 = vsel %vm10288, %v10290, %v10286
      %v10292 = vmul.f32 1.0, %v10291
      %v10293 = vrcp.pop %v10135
      %v10294 = vmul.f32 %v10135, %v10293
      %v10295 = vsub.f32 1.0, %v10294
      %v10296 = vmul.f32 %v10293, %v10295
      %v10297 = vadd.f32 %v10293, %v10296
      %vm10298 = vweird.f32 %v10135
      %vm10299 = vweird.f32 %v10293
      %vm10300 = vmor %vm10298, %vm10299
      %v10301 = vsel %vm10300, %v10293, %v10297
      %v10302 = vand.u32 2147483647, %v10135
      %vm10303 = vcmp.eq.f32.partialorder %v10302, 8.507059e+37
      %v10304 = vand.u32 %v10135, 2147483648
      %v10305 = vor.u32 1.1754944e-38, %v10304
      %v10306 = vsel %vm10303, %v10305, %v10301
      %v10307 = vmul.f32 1.0, %v10306
      %v10308 = vrcp.pop %v10136
      %v10309 = vmul.f32 %v10136, %v10308
      %v10310 = vsub.f32 1.0, %v10309
      %v10311 = vmul.f32 %v10308, %v10310
      %v10312 = vadd.f32 %v10308, %v10311
      %vm10313 = vweird.f32 %v10136
      %vm10314 = vweird.f32 %v10308
      %vm10315 = vmor %vm10313, %vm10314
      %v10316 = vsel %vm10315, %v10308, %v10312
      %v10317 = vand.u32 2147483647, %v10136
      %vm10318 = vcmp.eq.f32.partialorder %v10317, 8.507059e+37
      %v10319 = vand.u32 %v10136, 2147483648
      %v10320 = vor.u32 1.1754944e-38, %v10319
      %v10321 = vsel %vm10318, %v10320, %v10316
      %v10322 = vmul.f32 1.0, %v10321
      %v10323 = vrcp.pop %v10137
      %v10324 = vmul.f32 %v10137, %v10323
      %v10325 = vsub.f32 1.0, %v10324
      %v10326 = vmul.f32 %v10323, %v10325
      %v10327 = vadd.f32 %v10323, %v10326
      %vm10328 = vweird.f32 %v10137
      %vm10329 = vweird.f32 %v10323
      %vm10330 = vmor %vm10328, %vm10329
      %v10331 = vsel %vm10330, %v10323, %v10327
      %v10332 = vand.u32 2147483647, %v10137
      %vm10333 = vcmp.eq.f32.partialorder %v10332, 8.507059e+37
      %v10334 = vand.u32 %v10137, 2147483648
      %v10335 = vor.u32 1.1754944e-38, %v10334
      %v10336 = vsel %vm10333, %v10335, %v10331
      %v10337 = vmul.f32 1.0, %v10336
      %v10338 = vrcp.pop %v10138
      %v10339 = vmul.f32 %v10138, %v10338
      %v10340 = vsub.f32 1.0, %v10339
      %v10341 = vmul.f32 %v10338, %v10340
      %v10342 = vadd.f32 %v10338, %v10341
      %vm10343 = vweird.f32 %v10138
      %vm10344 = vweird.f32 %v10338
      %vm10345 = vmor %vm10343, %vm10344
      %v10346 = vsel %vm10345, %v10338, %v10342
      %v10347 = vand.u32 2147483647, %v10138
      %vm10348 = vcmp.eq.f32.partialorder %v10347, 8.507059e+37
      %v10349 = vand.u32 %v10138, 2147483648
      %v10350 = vor.u32 1.1754944e-38, %v10349
      %v10351 = vsel %vm10348, %v10350, %v10346
      %v10352 = vmul.f32 1.0, %v10351
      %v10353 = vrcp.pop %v10139
      %v10354 = vmul.f32 %v10139, %v10353
      %v10355 = vsub.f32 1.0, %v10354
      %v10356 = vmul.f32 %v10353, %v10355
      %v10357 = vadd.f32 %v10353, %v10356
      %vm10358 = vweird.f32 %v10139
      %vm10359 = vweird.f32 %v10353
      %vm10360 = vmor %vm10358, %vm10359
      %v10361 = vsel %vm10360, %v10353, %v10357
      %v10362 = vand.u32 2147483647, %v10139
      %vm10363 = vcmp.eq.f32.partialorder %v10362, 8.507059e+37
      %v10364 = vand.u32 %v10139, 2147483648
      %v10365 = vor.u32 1.1754944e-38, %v10364
      %v10366 = vsel %vm10363, %v10365, %v10361
      %v10367 = vmul.f32 1.0, %v10366
      %v10368 = vrcp.pop %v10140
      %v10369 = vmul.f32 %v10140, %v10368
      %v10370 = vsub.f32 1.0, %v10369
      %v10371 = vmul.f32 %v10368, %v10370
      %v10372 = vadd.f32 %v10368, %v10371
      %vm10373 = vweird.f32 %v10140
      %vm10374 = vweird.f32 %v10368
      %vm10375 = vmor %vm10373, %vm10374
      %v10376 = vsel %vm10375, %v10368, %v10372
      %v10377 = vand.u32 2147483647, %v10140
      %vm10378 = vcmp.eq.f32.partialorder %v10377, 8.507059e+37
      %v10379 = vand.u32 %v10140, 2147483648
      %v10380 = vor.u32 1.1754944e-38, %v10379
      %v10381 = vsel %vm10378, %v10380, %v10376
      %v10382 = vmul.f32 1.0, %v10381
      %v10383 = vrcp.pop %v10141
      %v10384 = vmul.f32 %v10141, %v10383
      %v10385 = vsub.f32 1.0, %v10384
      %v10386 = vmul.f32 %v10383, %v10385
      %v10387 = vadd.f32 %v10383, %v10386
      %vm10388 = vweird.f32 %v10141
      %vm10389 = vweird.f32 %v10383
      %vm10390 = vmor %vm10388, %vm10389
      %v10391 = vsel %vm10390, %v10383, %v10387
      %v10392 = vand.u32 2147483647, %v10141
      %vm10393 = vcmp.eq.f32.partialorder %v10392, 8.507059e+37
      %v10394 = vand.u32 %v10141, 2147483648
      %v10395 = vor.u32 1.1754944e-38, %v10394
      %v10396 = vsel %vm10393, %v10395, %v10391
      %v10397 = vmul.f32 1.0, %v10396
      %v10398 = vrcp.pop %v10142
      %v10399 = vmul.f32 %v10142, %v10398
      %v10400 = vsub.f32 1.0, %v10399
      %v10401 = vmul.f32 %v10398, %v10400
      %v10402 = vadd.f32 %v10398, %v10401
      %vm10403 = vweird.f32 %v10142
      %vm10404 = vweird.f32 %v10398
      %vm10405 = vmor %vm10403, %vm10404
      %v10406 = vsel %vm10405, %v10398, %v10402
      %v10407 = vand.u32 2147483647, %v10142
      %vm10408 = vcmp.eq.f32.partialorder %v10407, 8.507059e+37
      %v10409 = vand.u32 %v10142, 2147483648
      %v10410 = vor.u32 1.1754944e-38, %v10409
      %v10411 = vsel %vm10408, %v10410, %v10406
      %v10412 = vmul.f32 1.0, %v10411
      %v10413 = vrcp.pop %v10143
      %v10414 = vmul.f32 %v10143, %v10413
      %v10415 = vsub.f32 1.0, %v10414
      %v10416 = vmul.f32 %v10413, %v10415
      %v10417 = vadd.f32 %v10413, %v10416
      %vm10418 = vweird.f32 %v10143
      %vm10419 = vweird.f32 %v10413
      %vm10420 = vmor %vm10418, %vm10419
      %v10421 = vsel %vm10420, %v10413, %v10417
      %v10422 = vand.u32 2147483647, %v10143
      %vm10423 = vcmp.eq.f32.partialorder %v10422, 8.507059e+37
      %v10424 = vand.u32 %v10143, 2147483648
      %v10425 = vor.u32 1.1754944e-38, %v10424
      %v10426 = vsel %vm10423, %v10425, %v10421
      %v10427 = vmul.f32 1.0, %v10426
      %v10428 = vrcp.pop %v10144
      %v10429 = vmul.f32 %v10144, %v10428
      %v10430 = vsub.f32 1.0, %v10429
      %v10431 = vmul.f32 %v10428, %v10430
      %v10432 = vadd.f32 %v10428, %v10431
      %vm10433 = vweird.f32 %v10144
      %vm10434 = vweird.f32 %v10428
      %vm10435 = vmor %vm10433, %vm10434
      %v10436 = vsel %vm10435, %v10428, %v10432
      %v10437 = vand.u32 2147483647, %v10144
      %vm10438 = vcmp.eq.f32.partialorder %v10437, 8.507059e+37
      %v10439 = vand.u32 %v10144, 2147483648
      %v10440 = vor.u32 1.1754944e-38, %v10439
      %v10441 = vsel %vm10438, %v10440, %v10436
      %v10442 = vmul.f32 1.0, %v10441
      %v10443 = vrcp.pop %v10145
      %v10444 = vmul.f32 %v10145, %v10443
      %v10445 = vsub.f32 1.0, %v10444
      %v10446 = vmul.f32 %v10443, %v10445
      %v10447 = vadd.f32 %v10443, %v10446
      %vm10448 = vweird.f32 %v10145
      %vm10449 = vweird.f32 %v10443
      %vm10450 = vmor %vm10448, %vm10449
      %v10451 = vsel %vm10450, %v10443, %v10447
      %v10452 = vand.u32 2147483647, %v10145
      %vm10453 = vcmp.eq.f32.partialorder %v10452, 8.507059e+37
      %v10454 = vand.u32 %v10145, 2147483648
      %v10455 = vor.u32 1.1754944e-38, %v10454
      %v10456 = vsel %vm10453, %v10455, %v10451
      %v10457 = vmul.f32 1.0, %v10456
      %v10458 = vrcp.pop %v10146
      %v10459 = vmul.f32 %v10146, %v10458
      %v10460 = vsub.f32 1.0, %v10459
      %v10461 = vmul.f32 %v10458, %v10460
      %v10462 = vadd.f32 %v10458, %v10461
      %vm10463 = vweird.f32 %v10146
      %vm10464 = vweird.f32 %v10458
      %vm10465 = vmor %vm10463, %vm10464
      %v10466 = vsel %vm10465, %v10458, %v10462
      %v10467 = vand.u32 2147483647, %v10146
      %vm10468 = vcmp.eq.f32.partialorder %v10467, 8.507059e+37
      %v10469 = vand.u32 %v10146, 2147483648
      %v10470 = vor.u32 1.1754944e-38, %v10469
      %v10471 = vsel %vm10468, %v10470, %v10466
      %v10472 = vmul.f32 1.0, %v10471
      %v10473 = vrcp.pop %v10147
      %v10474 = vmul.f32 %v10147, %v10473
      %v10475 = vsub.f32 1.0, %v10474
      %v10476 = vmul.f32 %v10473, %v10475
      %v10477 = vadd.f32 %v10473, %v10476
      %vm10478 = vweird.f32 %v10147
      %vm10479 = vweird.f32 %v10473
      %vm10480 = vmor %vm10478, %vm10479
      %v10481 = vsel %vm10480, %v10473, %v10477
      %v10482 = vand.u32 2147483647, %v10147
      %vm10483 = vcmp.eq.f32.partialorder %v10482, 8.507059e+37
      %v10484 = vand.u32 %v10147, 2147483648
      %v10485 = vor.u32 1.1754944e-38, %v10484
      %v10486 = vsel %vm10483, %v10485, %v10481
      %v10487 = vmul.f32 1.0, %v10486
      %v10488 = vrcp.pop %v10148
      %v10489 = vmul.f32 %v10148, %v10488
      %v10490 = vsub.f32 1.0, %v10489
      %v10491 = vmul.f32 %v10488, %v10490
      %v10492 = vadd.f32 %v10488, %v10491
      %vm10493 = vweird.f32 %v10148
      %vm10494 = vweird.f32 %v10488
      %vm10495 = vmor %vm10493, %vm10494
      %v10496 = vsel %vm10495, %v10488, %v10492
      %v10497 = vand.u32 2147483647, %v10148
      %vm10498 = vcmp.eq.f32.partialorder %v10497, 8.507059e+37
      %v10499 = vand.u32 %v10148, 2147483648
      %v10500 = vor.u32 1.1754944e-38, %v10499
      %v10501 = vsel %vm10498, %v10500, %v10496
      %v10502 = vmul.f32 1.0, %v10501
      %v10503 = vrcp.pop %v10149
      %v10504 = vmul.f32 %v10149, %v10503
      %v10505 = vsub.f32 1.0, %v10504
      %v10506 = vmul.f32 %v10503, %v10505
      %v10507 = vadd.f32 %v10503, %v10506
      %vm10508 = vweird.f32 %v10149
      %vm10509 = vweird.f32 %v10503
      %vm10510 = vmor %vm10508, %vm10509
      %v10511 = vsel %vm10510, %v10503, %v10507
      %v10512 = vand.u32 2147483647, %v10149
      %vm10513 = vcmp.eq.f32.partialorder %v10512, 8.507059e+37
      %v10514 = vand.u32 %v10149, 2147483648
      %v10515 = vor.u32 1.1754944e-38, %v10514
      %v10516 = vsel %vm10513, %v10515, %v10511
      %v10517 = vmul.f32 1.0, %v10516
      %v10518 = vrcp.pop %v10150
      %v10519 = vmul.f32 %v10150, %v10518
      %v10520 = vsub.f32 1.0, %v10519
      %v10521 = vmul.f32 %v10518, %v10520
      %v10522 = vadd.f32 %v10518, %v10521
      %vm10523 = vweird.f32 %v10150
      %vm10524 = vweird.f32 %v10518
      %vm10525 = vmor %vm10523, %vm10524
      %v10526 = vsel %vm10525, %v10518, %v10522
      %v10527 = vand.u32 2147483647, %v10150
      %vm10528 = vcmp.eq.f32.partialorder %v10527, 8.507059e+37
      %v10529 = vand.u32 %v10150, 2147483648
      %v10530 = vor.u32 1.1754944e-38, %v10529
      %v10531 = vsel %vm10528, %v10530, %v10526
      %v10532 = vmul.f32 1.0, %v10531
      %v10533 = vrcp.pop %v10151
      %v10534 = vmul.f32 %v10151, %v10533
      %v10535 = vsub.f32 1.0, %v10534
      %v10536 = vmul.f32 %v10533, %v10535
      %v10537 = vadd.f32 %v10533, %v10536
      %vm10538 = vweird.f32 %v10151
      %vm10539 = vweird.f32 %v10533
      %vm10540 = vmor %vm10538, %vm10539
      %v10541 = vsel %vm10540, %v10533, %v10537
      %v10542 = vand.u32 2147483647, %v10151
      %vm10543 = vcmp.eq.f32.partialorder %v10542, 8.507059e+37
      %v10544 = vand.u32 %v10151, 2147483648
      %v10545 = vor.u32 1.1754944e-38, %v10544
      %v10546 = vsel %vm10543, %v10545, %v10541
      %v10547 = vmul.f32 1.0, %v10546
      %v10548 = vrcp.pop %v10152
      %v10549 = vmul.f32 %v10152, %v10548
      %v10550 = vsub.f32 1.0, %v10549
      %v10551 = vmul.f32 %v10548, %v10550
      %v10552 = vadd.f32 %v10548, %v10551
      %vm10553 = vweird.f32 %v10152
      %vm10554 = vweird.f32 %v10548
      %vm10555 = vmor %vm10553, %vm10554
      %v10556 = vsel %vm10555, %v10548, %v10552
      %v10557 = vand.u32 2147483647, %v10152
      %vm10558 = vcmp.eq.f32.partialorder %v10557, 8.507059e+37
      %v10559 = vand.u32 %v10152, 2147483648
      %v10560 = vor.u32 1.1754944e-38, %v10559
      %v10561 = vsel %vm10558, %v10560, %v10556
      %v10562 = vmul.f32 1.0, %v10561
      %v10563 = vrcp.pop %v10153
      %v10564 = vmul.f32 %v10153, %v10563
      %v10565 = vsub.f32 1.0, %v10564
      %v10566 = vmul.f32 %v10563, %v10565
      %v10567 = vadd.f32 %v10563, %v10566
      %vm10568 = vweird.f32 %v10153
      %vm10569 = vweird.f32 %v10563
      %vm10570 = vmor %vm10568, %vm10569
      %v10571 = vsel %vm10570, %v10563, %v10567
      %v10572 = vand.u32 2147483647, %v10153
      %vm10573 = vcmp.eq.f32.partialorder %v10572, 8.507059e+37
      %v10574 = vand.u32 %v10153, 2147483648
      %v10575 = vor.u32 1.1754944e-38, %v10574
      %v10576 = vsel %vm10573, %v10575, %v10571
      %v10577 = vmul.f32 1.0, %v10576
      %v10578 = vrcp.pop %v10154
      %v10579 = vmul.f32 %v10154, %v10578
      %v10580 = vsub.f32 1.0, %v10579
      %v10581 = vmul.f32 %v10578, %v10580
      %v10582 = vadd.f32 %v10578, %v10581
      %vm10583 = vweird.f32 %v10154
      %vm10584 = vweird.f32 %v10578
      %vm10585 = vmor %vm10583, %vm10584
      %v10586 = vsel %vm10585, %v10578, %v10582
      %v10587 = vand.u32 2147483647, %v10154
      %vm10588 = vcmp.eq.f32.partialorder %v10587, 8.507059e+37
      %v10589 = vand.u32 %v10154, 2147483648
      %v10590 = vor.u32 1.1754944e-38, %v10589
      %v10591 = vsel %vm10588, %v10590, %v10586
      %v10592 = vmul.f32 1.0, %v10591
      %v10593 = vrcp.pop %v10155
      %v10594 = vmul.f32 %v10155, %v10593
      %v10595 = vsub.f32 1.0, %v10594
      %v10596 = vmul.f32 %v10593, %v10595
      %v10597 = vadd.f32 %v10593, %v10596
      %vm10598 = vweird.f32 %v10155
      %vm10599 = vweird.f32 %v10593
      %vm10600 = vmor %vm10598, %vm10599
      %v10601 = vsel %vm10600, %v10593, %v10597
      %v10602 = vand.u32 2147483647, %v10155
      %vm10603 = vcmp.eq.f32.partialorder %v10602, 8.507059e+37
      %v10604 = vand.u32 %v10155, 2147483648
      %v10605 = vor.u32 1.1754944e-38, %v10604
      %v10606 = vsel %vm10603, %v10605, %v10601
      %v10607 = vmul.f32 1.0, %v10606
      %v10608 = vrcp.pop %v10156
      %v10609 = vmul.f32 %v10156, %v10608
      %v10610 = vsub.f32 1.0, %v10609
      %v10611 = vmul.f32 %v10608, %v10610
      %v10612 = vadd.f32 %v10608, %v10611
      %vm10613 = vweird.f32 %v10156
      %vm10614 = vweird.f32 %v10608
      %vm10615 = vmor %vm10613, %vm10614
      %v10616 = vsel %vm10615, %v10608, %v10612
      %v10617 = vand.u32 2147483647, %v10156
      %vm10618 = vcmp.eq.f32.partialorder %v10617, 8.507059e+37
      %v10619 = vand.u32 %v10156, 2147483648
      %v10620 = vor.u32 1.1754944e-38, %v10619
      %v10621 = vsel %vm10618, %v10620, %v10616
      %v10622 = vmul.f32 1.0, %v10621
      %v10623 = vrcp.pop %v10157
      %v10624 = vmul.f32 %v10157, %v10623
      %v10625 = vsub.f32 1.0, %v10624
      %v10626 = vmul.f32 %v10623, %v10625
      %v10627 = vadd.f32 %v10623, %v10626
      %vm10628 = vweird.f32 %v10157
      %vm10629 = vweird.f32 %v10623
      %vm10630 = vmor %vm10628, %vm10629
      %v10631 = vsel %vm10630, %v10623, %v10627
      %v10632 = vand.u32 2147483647, %v10157
      %vm10633 = vcmp.eq.f32.partialorder %v10632, 8.507059e+37
      %v10634 = vand.u32 %v10157, 2147483648
      %v10635 = vor.u32 1.1754944e-38, %v10634
      %v10636 = vsel %vm10633, %v10635, %v10631
      %v10637 = vmul.f32 1.0, %v10636
      %v10670 = vperm.slane %v10172, 0
      %v10671 = vperm.slane %v10172, 1
      %v10672 = vperm.slane %v10172, 2
      %v10673 = vperm.slane %v10172, 3
      %v10674 = vperm.slane %v10172, 4
      %v10675 = vperm.slane %v10172, 5
      %v10676 = vperm.slane %v10172, 6
      %v10677 = vperm.slane %v10172, 7
      %v10678 = vperm.slane %v10187, 0
      %v10679 = vperm.slane %v10187, 1
      %v10680 = vperm.slane %v10187, 2
      %v10681 = vperm.slane %v10187, 3
      %v10682 = vperm.slane %v10187, 4
      %v10683 = vperm.slane %v10187, 5
      %v10684 = vperm.slane %v10187, 6
      %v10685 = vperm.slane %v10187, 7
      %v10686 = vperm.slane %v10202, 0
      %v10687 = vperm.slane %v10202, 1
      %v10688 = vperm.slane %v10202, 2
      %v10689 = vperm.slane %v10202, 3
      %v10690 = vperm.slane %v10202, 4
      %v10691 = vperm.slane %v10202, 5
      %v10692 = vperm.slane %v10202, 6
      %v10693 = vperm.slane %v10202, 7
      %v10694 = vperm.slane %v10217, 0
      %v10695 = vperm.slane %v10217, 1
      %v10696 = vperm.slane %v10217, 2
      %v10697 = vperm.slane %v10217, 3
      %v10698 = vperm.slane %v10217, 4
      %v10699 = vperm.slane %v10217, 5
      %v10700 = vperm.slane %v10217, 6
      %v10701 = vperm.slane %v10217, 7
      %v10702 = vperm.slane %v10232, 0
      %v10703 = vperm.slane %v10232, 1
      %v10704 = vperm.slane %v10232, 2
      %v10705 = vperm.slane %v10232, 3
      %v10706 = vperm.slane %v10232, 4
      %v10707 = vperm.slane %v10232, 5
      %v10708 = vperm.slane %v10232, 6
      %v10709 = vperm.slane %v10232, 7
      %v10710 = vperm.slane %v10247, 0
      %v10711 = vperm.slane %v10247, 1
      %v10712 = vperm.slane %v10247, 2
      %v10713 = vperm.slane %v10247, 3
      %v10714 = vperm.slane %v10247, 4
      %v10715 = vperm.slane %v10247, 5
      %v10716 = vperm.slane %v10247, 6
      %v10717 = vperm.slane %v10247, 7
      %v10718 = vperm.slane %v10262, 0
      %v10719 = vperm.slane %v10262, 1
      %v10720 = vperm.slane %v10262, 2
      %v10721 = vperm.slane %v10262, 3
      %v10722 = vperm.slane %v10262, 4
      %v10723 = vperm.slane %v10262, 5
      %v10724 = vperm.slane %v10262, 6
      %v10725 = vperm.slane %v10262, 7
      %v10726 = vperm.slane %v10277, 0
      %v10727 = vperm.slane %v10277, 1
      %v10728 = vperm.slane %v10277, 2
      %v10729 = vperm.slane %v10277, 3
      %v10730 = vperm.slane %v10277, 4
      %v10731 = vperm.slane %v10277, 5
      %v10732 = vperm.slane %v10277, 6
      %v10733 = vperm.slane %v10277, 7
      %v10734 = vperm.slane %v10292, 0
      %v10735 = vperm.slane %v10292, 1
      %v10736 = vperm.slane %v10292, 2
      %v10737 = vperm.slane %v10292, 3
      %v10738 = vperm.slane %v10292, 4
      %v10739 = vperm.slane %v10292, 5
      %v10740 = vperm.slane %v10292, 6
      %v10741 = vperm.slane %v10292, 7
      %v10742 = vperm.slane %v10307, 0
      %v10743 = vperm.slane %v10307, 1
      %v10744 = vperm.slane %v10307, 2
      %v10745 = vperm.slane %v10307, 3
      %v10746 = vperm.slane %v10307, 4
      %v10747 = vperm.slane %v10307, 5
      %v10748 = vperm.slane %v10307, 6
      %v10749 = vperm.slane %v10307, 7
      %v10750 = vperm.slane %v10322, 0
      %v10751 = vperm.slane %v10322, 1
      %v10752 = vperm.slane %v10322, 2
      %v10753 = vperm.slane %v10322, 3
      %v10754 = vperm.slane %v10322, 4
      %v10755 = vperm.slane %v10322, 5
      %v10756 = vperm.slane %v10322, 6
      %v10757 = vperm.slane %v10322, 7
      %v10758 = vperm.slane %v10337, 0
      %v10759 = vperm.slane %v10337, 1
      %v10760 = vperm.slane %v10337, 2
      %v10761 = vperm.slane %v10337, 3
      %v10762 = vperm.slane %v10337, 4
      %v10763 = vperm.slane %v10337, 5
      %v10764 = vperm.slane %v10337, 6
      %v10765 = vperm.slane %v10337, 7
      %v10766 = vperm.slane %v10352, 0
      %v10767 = vperm.slane %v10352, 1
      %v10768 = vperm.slane %v10352, 2
      %v10769 = vperm.slane %v10352, 3
      %v10770 = vperm.slane %v10352, 4
      %v10771 = vperm.slane %v10352, 5
      %v10772 = vperm.slane %v10352, 6
      %v10773 = vperm.slane %v10352, 7
      %v10774 = vperm.slane %v10367, 0
      %v10775 = vperm.slane %v10367, 1
      %v10776 = vperm.slane %v10367, 2
      %v10777 = vperm.slane %v10367, 3
      %v10778 = vperm.slane %v10367, 4
      %v10779 = vperm.slane %v10367, 5
      %v10780 = vperm.slane %v10367, 6
      %v10781 = vperm.slane %v10367, 7
      %v10782 = vperm.slane %v10382, 0
      %v10783 = vperm.slane %v10382, 1
      %v10784 = vperm.slane %v10382, 2
      %v10785 = vperm.slane %v10382, 3
      %v10786 = vperm.slane %v10382, 4
      %v10787 = vperm.slane %v10382, 5
      %v10788 = vperm.slane %v10382, 6
      %v10789 = vperm.slane %v10382, 7
      %v10790 = vperm.slane %v10397, 0
      %v10791 = vperm.slane %v10397, 1
      %v10792 = vperm.slane %v10397, 2
      %v10793 = vperm.slane %v10397, 3
      %v10794 = vperm.slane %v10397, 4
      %v10795 = vperm.slane %v10397, 5
      %v10796 = vperm.slane %v10397, 6
      %v10797 = vperm.slane %v10397, 7
      %v10798 = vperm.slane %v10412, 0
      %v10799 = vperm.slane %v10412, 1
      %v10800 = vperm.slane %v10412, 2
      %v10801 = vperm.slane %v10412, 3
      %v10802 = vperm.slane %v10412, 4
      %v10803 = vperm.slane %v10412, 5
      %v10804 = vperm.slane %v10412, 6
      %v10805 = vperm.slane %v10412, 7
      %v10806 = vperm.slane %v10427, 0
      %v10807 = vperm.slane %v10427, 1
      %v10808 = vperm.slane %v10427, 2
      %v10809 = vperm.slane %v10427, 3
      %v10810 = vperm.slane %v10427, 4
      %v10811 = vperm.slane %v10427, 5
      %v10812 = vperm.slane %v10427, 6
      %v10813 = vperm.slane %v10427, 7
      %v10814 = vperm.slane %v10442, 0
      %v10815 = vperm.slane %v10442, 1
      %v10816 = vperm.slane %v10442, 2
      %v10817 = vperm.slane %v10442, 3
      %v10818 = vperm.slane %v10442, 4
      %v10819 = vperm.slane %v10442, 5
      %v10820 = vperm.slane %v10442, 6
      %v10821 = vperm.slane %v10442, 7
      %v10822 = vperm.slane %v10457, 0
      %v10823 = vperm.slane %v10457, 1
      %v10824 = vperm.slane %v10457, 2
      %v10825 = vperm.slane %v10457, 3
      %v10826 = vperm.slane %v10457, 4
      %v10827 = vperm.slane %v10457, 5
      %v10828 = vperm.slane %v10457, 6
      %v10829 = vperm.slane %v10457, 7
      %v10830 = vperm.slane %v10472, 0
      %v10831 = vperm.slane %v10472, 1
      %v10832 = vperm.slane %v10472, 2
      %v10833 = vperm.slane %v10472, 3
      %v10834 = vperm.slane %v10472, 4
      %v10835 = vperm.slane %v10472, 5
      %v10836 = vperm.slane %v10472, 6
      %v10837 = vperm.slane %v10472, 7
      %v10838 = vperm.slane %v10487, 0
      %v10839 = vperm.slane %v10487, 1
      %v10840 = vperm.slane %v10487, 2
      %v10841 = vperm.slane %v10487, 3
      %v10842 = vperm.slane %v10487, 4
      %v10843 = vperm.slane %v10487, 5
      %v10844 = vperm.slane %v10487, 6
      %v10845 = vperm.slane %v10487, 7
      %v10846 = vperm.slane %v10502, 0
      %v10847 = vperm.slane %v10502, 1
      %v10848 = vperm.slane %v10502, 2
      %v10849 = vperm.slane %v10502, 3
      %v10850 = vperm.slane %v10502, 4
      %v10851 = vperm.slane %v10502, 5
      %v10852 = vperm.slane %v10502, 6
      %v10853 = vperm.slane %v10502, 7
      %v10854 = vperm.slane %v10517, 0
      %v10855 = vperm.slane %v10517, 1
      %v10856 = vperm.slane %v10517, 2
      %v10857 = vperm.slane %v10517, 3
      %v10858 = vperm.slane %v10517, 4
      %v10859 = vperm.slane %v10517, 5
      %v10860 = vperm.slane %v10517, 6
      %v10861 = vperm.slane %v10517, 7
      %v10862 = vperm.slane %v10532, 0
      %v10863 = vperm.slane %v10532, 1
      %v10864 = vperm.slane %v10532, 2
      %v10865 = vperm.slane %v10532, 3
      %v10866 = vperm.slane %v10532, 4
      %v10867 = vperm.slane %v10532, 5
      %v10868 = vperm.slane %v10532, 6
      %v10869 = vperm.slane %v10532, 7
      %v10870 = vperm.slane %v10547, 0
      %v10871 = vperm.slane %v10547, 1
      %v10872 = vperm.slane %v10547, 2
      %v10873 = vperm.slane %v10547, 3
      %v10874 = vperm.slane %v10547, 4
      %v10875 = vperm.slane %v10547, 5
      %v10876 = vperm.slane %v10547, 6
      %v10877 = vperm.slane %v10547, 7
      %v10878 = vperm.slane %v10562, 0
      %v10879 = vperm.slane %v10562, 1
      %v10880 = vperm.slane %v10562, 2
      %v10881 = vperm.slane %v10562, 3
      %v10882 = vperm.slane %v10562, 4
      %v10883 = vperm.slane %v10562, 5
      %v10884 = vperm.slane %v10562, 6
      %v10885 = vperm.slane %v10562, 7
      %v10886 = vperm.slane %v10577, 0
      %v10887 = vperm.slane %v10577, 1
      %v10888 = vperm.slane %v10577, 2
      %v10889 = vperm.slane %v10577, 3
      %v10890 = vperm.slane %v10577, 4
      %v10891 = vperm.slane %v10577, 5
      %v10892 = vperm.slane %v10577, 6
      %v10893 = vperm.slane %v10577, 7
      %v10894 = vperm.slane %v10592, 0
      %v10895 = vperm.slane %v10592, 1
      %v10896 = vperm.slane %v10592, 2
      %v10897 = vperm.slane %v10592, 3
      %v10898 = vperm.slane %v10592, 4
      %v10899 = vperm.slane %v10592, 5
      %v10900 = vperm.slane %v10592, 6
      %v10901 = vperm.slane %v10592, 7
      %v10902 = vperm.slane %v10607, 0
      %v10903 = vperm.slane %v10607, 1
      %v10904 = vperm.slane %v10607, 2
      %v10905 = vperm.slane %v10607, 3
      %v10906 = vperm.slane %v10607, 4
      %v10907 = vperm.slane %v10607, 5
      %v10908 = vperm.slane %v10607, 6
      %v10909 = vperm.slane %v10607, 7
      %v10910 = vperm.slane %v10622, 0
      %v10911 = vperm.slane %v10622, 1
      %v10912 = vperm.slane %v10622, 2
      %v10913 = vperm.slane %v10622, 3
      %v10914 = vperm.slane %v10622, 4
      %v10915 = vperm.slane %v10622, 5
      %v10916 = vperm.slane %v10622, 6
      %v10917 = vperm.slane %v10622, 7
      %v10918 = vperm.slane %v10637, 0
      %v10919 = vperm.slane %v10637, 1
      %v10920 = vperm.slane %v10637, 2
      %v10921 = vperm.slane %v10637, 3
      %v10922 = vperm.slane %v10637, 4
      %v10923 = vperm.slane %v10637, 5
      %v10924 = vperm.slane %v10637, 6
      %v10925 = vperm.slane %v10637, 7
      %10926 = vst [vmem:[#allocation1] ss:$9 sm:$0xff] %v10670
      %s10927 = scalar_lea.vmem [#allocation1], 1
      %10928 = vst [vmem:[%s10927] ss:$9 sm:$0xff] %v10671
      %s10929 = scalar_lea.vmem [#allocation1], 2
      %10930 = vst [vmem:[%s10929] ss:$9 sm:$0xff] %v10672
      %s10931 = scalar_lea.vmem [#allocation1], 3
      %10932 = vst [vmem:[%s10931] ss:$9 sm:$0xff] %v10673
      %s10933 = scalar_lea.vmem [#allocation1], 4
      %10934 = vst [vmem:[%s10933] ss:$9 sm:$0xff] %v10674
      %s10935 = scalar_lea.vmem [#allocation1], 5
      %10936 = vst [vmem:[%s10935] ss:$9 sm:$0xff] %v10675
      %s10937 = scalar_lea.vmem [#allocation1], 6
      %10938 = vst [vmem:[%s10937] ss:$9 sm:$0xff] %v10676
      %s10939 = scalar_lea.vmem [#allocation1], 7
      %10940 = vst [vmem:[%s10939] ss:$9 sm:$0xff] %v10677
      %v10941 = vld [vmem:[#allocation1] sm:$0xff]
      %10942 = vst [vmem:[#allocation1] ss:$9 sm:$0xff] %v10678
      %10943 = vst [vmem:[%s10927] ss:$9 sm:$0xff] %v10679
      %10944 = vst [vmem:[%s10929] ss:$9 sm:$0xff] %v10680
      %10945 = vst [vmem:[%s10931] ss:$9 sm:$0xff] %v10681
      %10946 = vst [vmem:[%s10933] ss:$9 sm:$0xff] %v10682
      %10947 = vst [vmem:[%s10935] ss:$9 sm:$0xff] %v10683
      %10948 = vst [vmem:[%s10937] ss:$9 sm:$0xff] %v10684
      %10949 = vst [vmem:[%s10939] ss:$9 sm:$0xff] %v10685
      %v10950 = vld [vmem:[#allocation1] sm:$0xff]
      %10951 = vst [vmem:[#allocation1] ss:$9 sm:$0xff] %v10686
      %10952 = vst [vmem:[%s10927] ss:$9 sm:$0xff] %v10687
      %10953 = vst [vmem:[%s10929] ss:$9 sm:$0xff] %v10688
      %10954 = vst [vmem:[%s10931] ss:$9 sm:$0xff] %v10689
      %10955 = vst [vmem:[%s10933] ss:$9 sm:$0xff] %v10690
      %10956 = vst [vmem:[%s10935] ss:$9 sm:$0xff] %v10691
      %10957 = vst [vmem:[%s10937] ss:$9 sm:$0xff] %v10692
      %10958 = vst [vmem:[%s10939] ss:$9 sm:$0xff] %v10693
      %v10959 = vld [vmem:[#allocation1] sm:$0xff]
      %10960 = vst [vmem:[#allocation1] ss:$9 sm:$0xff] %v10694
      %10961 = vst [vmem:[%s10927] ss:$9 sm:$0xff] %v10695
      %10962 = vst [vmem:[%s10929] ss:$9 sm:$0xff] %v10696
      %10963 = vst [vmem:[%s10931] ss:$9 sm:$0xff] %v10697
      %10964 = vst [vmem:[%s10933] ss:$9 sm:$0xff] %v10698
      %10965 = vst [vmem:[%s10935] ss:$9 sm:$0xff] %v10699
      %10966 = vst [vmem:[%s10937] ss:$9 sm:$0xff] %v10700
      %10967 = vst [vmem:[%s10939] ss:$9 sm:$0xff] %v10701
      %v10968 = vld [vmem:[#allocation1] sm:$0xff]
      %10969 = vst [vmem:[#allocation1] ss:$9 sm:$0xff] %v10702
      %10970 = vst [vmem:[%s10927] ss:$9 sm:$0xff] %v10703
      %10971 = vst [vmem:[%s10929] ss:$9 sm:$0xff] %v10704
      %10972 = vst [vmem:[%s10931] ss:$9 sm:$0xff] %v10705
      %10973 = vst [vmem:[%s10933] ss:$9 sm:$0xff] %v10706
      %10974 = vst [vmem:[%s10935] ss:$9 sm:$0xff] %v10707
      %10975 = vst [vmem:[%s10937] ss:$9 sm:$0xff] %v10708
      %10976 = vst [vmem:[%s10939] ss:$9 sm:$0xff] %v10709
      %v10977 = vld [vmem:[#allocation1] sm:$0xff]
      %10978 = vst [vmem:[#allocation1] ss:$9 sm:$0xff] %v10710
      %10979 = vst [vmem:[%s10927] ss:$9 sm:$0xff] %v10711
      %10980 = vst [vmem:[%s10929] ss:$9 sm:$0xff] %v10712
      %10981 = vst [vmem:[%s10931] ss:$9 sm:$0xff] %v10713
      %10982 = vst [vmem:[%s10933] ss:$9 sm:$0xff] %v10714
      %10983 = vst [vmem:[%s10935] ss:$9 sm:$0xff] %v10715
      %10984 = vst [vmem:[%s10937] ss:$9 sm:$0xff] %v10716
      %10985 = vst [vmem:[%s10939] ss:$9 sm:$0xff] %v10717
      %v10986 = vld [vmem:[#allocation1] sm:$0xff]
      %10987 = vst [vmem:[#allocation1] ss:$9 sm:$0xff] %v10718
      %10988 = vst [vmem:[%s10927] ss:$9 sm:$0xff] %v10719
      %10989 = vst [vmem:[%s10929] ss:$9 sm:$0xff] %v10720
      %10990 = vst [vmem:[%s10931] ss:$9 sm:$0xff] %v10721
      %10991 = vst [vmem:[%s10933] ss:$9 sm:$0xff] %v10722
      %10992 = vst [vmem:[%s10935] ss:$9 sm:$0xff] %v10723
      %10993 = vst [vmem:[%s10937] ss:$9 sm:$0xff] %v10724
      %10994 = vst [vmem:[%s10939] ss:$9 sm:$0xff] %v10725
      %v10995 = vld [vmem:[#allocation1] sm:$0xff]
      %10996 = vst [vmem:[#allocation1] ss:$9 sm:$0xff] %v10726
      %10997 = vst [vmem:[%s10927] ss:$9 sm:$0xff] %v10727
      %10998 = vst [vmem:[%s10929] ss:$9 sm:$0xff] %v10728
      %10999 = vst [vmem:[%s10931] ss:$9 sm:$0xff] %v10729
      %11000 = vst [vmem:[%s10933] ss:$9 sm:$0xff] %v10730
      %11001 = vst [vmem:[%s10935] ss:$9 sm:$0xff] %v10731
      %11002 = vst [vmem:[%s10937] ss:$9 sm:$0xff] %v10732
      %11003 = vst [vmem:[%s10939] ss:$9 sm:$0xff] %v10733
      %v11004 = vld [vmem:[#allocation1] sm:$0xff]
      %11005 = vst [vmem:[#allocation1] ss:$9 sm:$0xff] %v10734
      %11006 = vst [vmem:[%s10927] ss:$9 sm:$0xff] %v10735
      %11007 = vst [vmem:[%s10929] ss:$9 sm:$0xff] %v10736
      %11008 = vst [vmem:[%s10931] ss:$9 sm:$0xff] %v10737
      %11009 = vst [vmem:[%s10933] ss:$9 sm:$0xff] %v10738
      %11010 = vst [vmem:[%s10935] ss:$9 sm:$0xff] %v10739
      %11011 = vst [vmem:[%s10937] ss:$9 sm:$0xff] %v10740
      %11012 = vst [vmem:[%s10939] ss:$9 sm:$0xff] %v10741
      %v11013 = vld [vmem:[#allocation1] sm:$0xff]
      %11014 = vst [vmem:[#allocation1] ss:$9 sm:$0xff] %v10742
      %11015 = vst [vmem:[%s10927] ss:$9 sm:$0xff] %v10743
      %11016 = vst [vmem:[%s10929] ss:$9 sm:$0xff] %v10744
      %11017 = vst [vmem:[%s10931] ss:$9 sm:$0xff] %v10745
      %11018 = vst [vmem:[%s10933] ss:$9 sm:$0xff] %v10746
      %11019 = vst [vmem:[%s10935] ss:$9 sm:$0xff] %v10747
      %11020 = vst [vmem:[%s10937] ss:$9 sm:$0xff] %v10748
      %11021 = vst [vmem:[%s10939] ss:$9 sm:$0xff] %v10749
      %v11022 = vld [vmem:[#allocation1] sm:$0xff]
      %11023 = vst [vmem:[#allocation1] ss:$9 sm:$0xff] %v10750
      %11024 = vst [vmem:[%s10927] ss:$9 sm:$0xff] %v10751
      %11025 = vst [vmem:[%s10929] ss:$9 sm:$0xff] %v10752
      %11026 = vst [vmem:[%s10931] ss:$9 sm:$0xff] %v10753
      %11027 = vst [vmem:[%s10933] ss:$9 sm:$0xff] %v10754
      %11028 = vst [vmem:[%s10935] ss:$9 sm:$0xff] %v10755
      %11029 = vst [vmem:[%s10937] ss:$9 sm:$0xff] %v10756
      %11030 = vst [vmem:[%s10939] ss:$9 sm:$0xff] %v10757
      %v11031 = vld [vmem:[#allocation1] sm:$0xff]
      %11032 = vst [vmem:[#allocation1] ss:$9 sm:$0xff] %v10758
      %11033 = vst [vmem:[%s10927] ss:$9 sm:$0xff] %v10759
      %11034 = vst [vmem:[%s10929] ss:$9 sm:$0xff] %v10760
      %11035 = vst [vmem:[%s10931] ss:$9 sm:$0xff] %v10761
      %11036 = vst [vmem:[%s10933] ss:$9 sm:$0xff] %v10762
      %11037 = vst [vmem:[%s10935] ss:$9 sm:$0xff] %v10763
      %11038 = vst [vmem:[%s10937] ss:$9 sm:$0xff] %v10764
      %11039 = vst [vmem:[%s10939] ss:$9 sm:$0xff] %v10765
      %v11040 = vld [vmem:[#allocation1] sm:$0xff]
      %11041 = vst [vmem:[#allocation1] ss:$9 sm:$0xff] %v10766
      %11042 = vst [vmem:[%s10927] ss:$9 sm:$0xff] %v10767
      %11043 = vst [vmem:[%s10929] ss:$9 sm:$0xff] %v10768
      %11044 = vst [vmem:[%s10931] ss:$9 sm:$0xff] %v10769
      %11045 = vst [vmem:[%s10933] ss:$9 sm:$0xff] %v10770
      %11046 = vst [vmem:[%s10935] ss:$9 sm:$0xff] %v10771
      %11047 = vst [vmem:[%s10937] ss:$9 sm:$0xff] %v10772
      %11048 = vst [vmem:[%s10939] ss:$9 sm:$0xff] %v10773
      %v11049 = vld [vmem:[#allocation1] sm:$0xff]
      %11050 = vst [vmem:[#allocation1] ss:$9 sm:$0xff] %v10774
      %11051 = vst [vmem:[%s10927] ss:$9 sm:$0xff] %v10775
      %11052 = vst [vmem:[%s10929] ss:$9 sm:$0xff] %v10776
      %11053 = vst [vmem:[%s10931] ss:$9 sm:$0xff] %v10777
      %11054 = vst [vmem:[%s10933] ss:$9 sm:$0xff] %v10778
      %11055 = vst [vmem:[%s10935] ss:$9 sm:$0xff] %v10779
      %11056 = vst [vmem:[%s10937] ss:$9 sm:$0xff] %v10780
      %11057 = vst [vmem:[%s10939] ss:$9 sm:$0xff] %v10781
      %v11058 = vld [vmem:[#allocation1] sm:$0xff]
      %11059 = vst [vmem:[#allocation1] ss:$9 sm:$0xff] %v10782
      %11060 = vst [vmem:[%s10927] ss:$9 sm:$0xff] %v10783
      %11061 = vst [vmem:[%s10929] ss:$9 sm:$0xff] %v10784
      %11062 = vst [vmem:[%s10931] ss:$9 sm:$0xff] %v10785
      %11063 = vst [vmem:[%s10933] ss:$9 sm:$0xff] %v10786
      %11064 = vst [vmem:[%s10935] ss:$9 sm:$0xff] %v10787
      %11065 = vst [vmem:[%s10937] ss:$9 sm:$0xff] %v10788
      %11066 = vst [vmem:[%s10939] ss:$9 sm:$0xff] %v10789
      %v11067 = vld [vmem:[#allocation1] sm:$0xff]
      %11068 = vst [vmem:[#allocation1] ss:$9 sm:$0xff] %v10790
      %11069 = vst [vmem:[%s10927] ss:$9 sm:$0xff] %v10791
      %11070 = vst [vmem:[%s10929] ss:$9 sm:$0xff] %v10792
      %11071 = vst [vmem:[%s10931] ss:$9 sm:$0xff] %v10793
      %11072 = vst [vmem:[%s10933] ss:$9 sm:$0xff] %v10794
      %11073 = vst [vmem:[%s10935] ss:$9 sm:$0xff] %v10795
      %11074 = vst [vmem:[%s10937] ss:$9 sm:$0xff] %v10796
      %11075 = vst [vmem:[%s10939] ss:$9 sm:$0xff] %v10797
      %v11076 = vld [vmem:[#allocation1] sm:$0xff]
      %11077 = vst [vmem:[#allocation1] ss:$9 sm:$0xff] %v10798
      %11078 = vst [vmem:[%s10927] ss:$9 sm:$0xff] %v10799
      %11079 = vst [vmem:[%s10929] ss:$9 sm:$0xff] %v10800
      %11080 = vst [vmem:[%s10931] ss:$9 sm:$0xff] %v10801
      %11081 = vst [vmem:[%s10933] ss:$9 sm:$0xff] %v10802
      %11082 = vst [vmem:[%s10935] ss:$9 sm:$0xff] %v10803
      %11083 = vst [vmem:[%s10937] ss:$9 sm:$0xff] %v10804
      %11084 = vst [vmem:[%s10939] ss:$9 sm:$0xff] %v10805
      %v11085 = vld [vmem:[#allocation1] sm:$0xff]
      %11086 = vst [vmem:[#allocation1] ss:$9 sm:$0xff] %v10806
      %11087 = vst [vmem:[%s10927] ss:$9 sm:$0xff] %v10807
      %11088 = vst [vmem:[%s10929] ss:$9 sm:$0xff] %v10808
      %11089 = vst [vmem:[%s10931] ss:$9 sm:$0xff] %v10809
      %11090 = vst [vmem:[%s10933] ss:$9 sm:$0xff] %v10810
      %11091 = vst [vmem:[%s10935] ss:$9 sm:$0xff] %v10811
      %11092 = vst [vmem:[%s10937] ss:$9 sm:$0xff] %v10812
      %11093 = vst [vmem:[%s10939] ss:$9 sm:$0xff] %v10813
      %v11094 = vld [vmem:[#allocation1] sm:$0xff]
      %11095 = vst [vmem:[#allocation1] ss:$9 sm:$0xff] %v10814
      %11096 = vst [vmem:[%s10927] ss:$9 sm:$0xff] %v10815
      %11097 = vst [vmem:[%s10929] ss:$9 sm:$0xff] %v10816
      %11098 = vst [vmem:[%s10931] ss:$9 sm:$0xff] %v10817
      %11099 = vst [vmem:[%s10933] ss:$9 sm:$0xff] %v10818
      %11100 = vst [vmem:[%s10935] ss:$9 sm:$0xff] %v10819
      %11101 = vst [vmem:[%s10937] ss:$9 sm:$0xff] %v10820
      %11102 = vst [vmem:[%s10939] ss:$9 sm:$0xff] %v10821
      %v11103 = vld [vmem:[#allocation1] sm:$0xff]
      %11104 = vst [vmem:[#allocation1] ss:$9 sm:$0xff] %v10822
      %11105 = vst [vmem:[%s10927] ss:$9 sm:$0xff] %v10823
      %11106 = vst [vmem:[%s10929] ss:$9 sm:$0xff] %v10824
      %11107 = vst [vmem:[%s10931] ss:$9 sm:$0xff] %v10825
      %11108 = vst [vmem:[%s10933] ss:$9 sm:$0xff] %v10826
      %11109 = vst [vmem:[%s10935] ss:$9 sm:$0xff] %v10827
      %11110 = vst [vmem:[%s10937] ss:$9 sm:$0xff] %v10828
      %11111 = vst [vmem:[%s10939] ss:$9 sm:$0xff] %v10829
      %v11112 = vld [vmem:[#allocation1] sm:$0xff]
      %11113 = vst [vmem:[#allocation1] ss:$9 sm:$0xff] %v10830
      %11114 = vst [vmem:[%s10927] ss:$9 sm:$0xff] %v10831
      %11115 = vst [vmem:[%s10929] ss:$9 sm:$0xff] %v10832
      %11116 = vst [vmem:[%s10931] ss:$9 sm:$0xff] %v10833
      %11117 = vst [vmem:[%s10933] ss:$9 sm:$0xff] %v10834
      %11118 = vst [vmem:[%s10935] ss:$9 sm:$0xff] %v10835
      %11119 = vst [vmem:[%s10937] ss:$9 sm:$0xff] %v10836
      %11120 = vst [vmem:[%s10939] ss:$9 sm:$0xff] %v10837
      %v11121 = vld [vmem:[#allocation1] sm:$0xff]
      %11122 = vst [vmem:[#allocation1] ss:$9 sm:$0xff] %v10838
      %11123 = vst [vmem:[%s10927] ss:$9 sm:$0xff] %v10839
      %11124 = vst [vmem:[%s10929] ss:$9 sm:$0xff] %v10840
      %11125 = vst [vmem:[%s10931] ss:$9 sm:$0xff] %v10841
      %11126 = vst [vmem:[%s10933] ss:$9 sm:$0xff] %v10842
      %11127 = vst [vmem:[%s10935] ss:$9 sm:$0xff] %v10843
      %11128 = vst [vmem:[%s10937] ss:$9 sm:$0xff] %v10844
      %11129 = vst [vmem:[%s10939] ss:$9 sm:$0xff] %v10845
      %v11130 = vld [vmem:[#allocation1] sm:$0xff]
      %11131 = vst [vmem:[#allocation1] ss:$9 sm:$0xff] %v10846
      %11132 = vst [vmem:[%s10927] ss:$9 sm:$0xff] %v10847
      %11133 = vst [vmem:[%s10929] ss:$9 sm:$0xff] %v10848
      %11134 = vst [vmem:[%s10931] ss:$9 sm:$0xff] %v10849
      %11135 = vst [vmem:[%s10933] ss:$9 sm:$0xff] %v10850
      %11136 = vst [vmem:[%s10935] ss:$9 sm:$0xff] %v10851
      %11137 = vst [vmem:[%s10937] ss:$9 sm:$0xff] %v10852
      %11138 = vst [vmem:[%s10939] ss:$9 sm:$0xff] %v10853
      %v11139 = vld [vmem:[#allocation1] sm:$0xff]
      %11140 = vst [vmem:[#allocation1] ss:$9 sm:$0xff] %v10854
      %11141 = vst [vmem:[%s10927] ss:$9 sm:$0xff] %v10855
      %11142 = vst [vmem:[%s10929] ss:$9 sm:$0xff] %v10856
      %11143 = vst [vmem:[%s10931] ss:$9 sm:$0xff] %v10857
      %11144 = vst [vmem:[%s10933] ss:$9 sm:$0xff] %v10858
      %11145 = vst [vmem:[%s10935] ss:$9 sm:$0xff] %v10859
      %11146 = vst [vmem:[%s10937] ss:$9 sm:$0xff] %v10860
      %11147 = vst [vmem:[%s10939] ss:$9 sm:$0xff] %v10861
      %v11148 = vld [vmem:[#allocation1] sm:$0xff]
      %11149 = vst [vmem:[#allocation1] ss:$9 sm:$0xff] %v10862
      %11150 = vst [vmem:[%s10927] ss:$9 sm:$0xff] %v10863
      %11151 = vst [vmem:[%s10929] ss:$9 sm:$0xff] %v10864
      %11152 = vst [vmem:[%s10931] ss:$9 sm:$0xff] %v10865
      %11153 = vst [vmem:[%s10933] ss:$9 sm:$0xff] %v10866
      %11154 = vst [vmem:[%s10935] ss:$9 sm:$0xff] %v10867
      %11155 = vst [vmem:[%s10937] ss:$9 sm:$0xff] %v10868
      %11156 = vst [vmem:[%s10939] ss:$9 sm:$0xff] %v10869
      %v11157 = vld [vmem:[#allocation1] sm:$0xff]
      %11158 = vst [vmem:[#allocation1] ss:$9 sm:$0xff] %v10870
      %11159 = vst [vmem:[%s10927] ss:$9 sm:$0xff] %v10871
      %11160 = vst [vmem:[%s10929] ss:$9 sm:$0xff] %v10872
      %11161 = vst [vmem:[%s10931] ss:$9 sm:$0xff] %v10873
      %11162 = vst [vmem:[%s10933] ss:$9 sm:$0xff] %v10874
      %11163 = vst [vmem:[%s10935] ss:$9 sm:$0xff] %v10875
      %11164 = vst [vmem:[%s10937] ss:$9 sm:$0xff] %v10876
      %11165 = vst [vmem:[%s10939] ss:$9 sm:$0xff] %v10877
      %v11166 = vld [vmem:[#allocation1] sm:$0xff]
      %11167 = vst [vmem:[#allocation1] ss:$9 sm:$0xff] %v10878
      %11168 = vst [vmem:[%s10927] ss:$9 sm:$0xff] %v10879
      %11169 = vst [vmem:[%s10929] ss:$9 sm:$0xff] %v10880
      %11170 = vst [vmem:[%s10931] ss:$9 sm:$0xff] %v10881
      %11171 = vst [vmem:[%s10933] ss:$9 sm:$0xff] %v10882
      %11172 = vst [vmem:[%s10935] ss:$9 sm:$0xff] %v10883
      %11173 = vst [vmem:[%s10937] ss:$9 sm:$0xff] %v10884
      %11174 = vst [vmem:[%s10939] ss:$9 sm:$0xff] %v10885
      %v11175 = vld [vmem:[#allocation1] sm:$0xff]
      %11176 = vst [vmem:[#allocation1] ss:$9 sm:$0xff] %v10886
      %11177 = vst [vmem:[%s10927] ss:$9 sm:$0xff] %v10887
      %11178 = vst [vmem:[%s10929] ss:$9 sm:$0xff] %v10888
      %11179 = vst [vmem:[%s10931] ss:$9 sm:$0xff] %v10889
      %11180 = vst [vmem:[%s10933] ss:$9 sm:$0xff] %v10890
      %11181 = vst [vmem:[%s10935] ss:$9 sm:$0xff] %v10891
      %11182 = vst [vmem:[%s10937] ss:$9 sm:$0xff] %v10892
      %11183 = vst [vmem:[%s10939] ss:$9 sm:$0xff] %v10893
      %v11184 = vld [vmem:[#allocation1] sm:$0xff]
      %11185 = vst [vmem:[#allocation1] ss:$9 sm:$0xff] %v10894
      %11186 = vst [vmem:[%s10927] ss:$9 sm:$0xff] %v10895
      %11187 = vst [vmem:[%s10929] ss:$9 sm:$0xff] %v10896
      %11188 = vst [vmem:[%s10931] ss:$9 sm:$0xff] %v10897
      %11189 = vst [vmem:[%s10933] ss:$9 sm:$0xff] %v10898
      %11190 = vst [vmem:[%s10935] ss:$9 sm:$0xff] %v10899
      %11191 = vst [vmem:[%s10937] ss:$9 sm:$0xff] %v10900
      %11192 = vst [vmem:[%s10939] ss:$9 sm:$0xff] %v10901
      %v11193 = vld [vmem:[#allocation1] sm:$0xff]
      %11194 = vst [vmem:[#allocation1] ss:$9 sm:$0xff] %v10902
      %11195 = vst [vmem:[%s10927] ss:$9 sm:$0xff] %v10903
      %11196 = vst [vmem:[%s10929] ss:$9 sm:$0xff] %v10904
      %11197 = vst [vmem:[%s10931] ss:$9 sm:$0xff] %v10905
      %11198 = vst [vmem:[%s10933] ss:$9 sm:$0xff] %v10906
      %11199 = vst [vmem:[%s10935] ss:$9 sm:$0xff] %v10907
      %11200 = vst [vmem:[%s10937] ss:$9 sm:$0xff] %v10908
      %11201 = vst [vmem:[%s10939] ss:$9 sm:$0xff] %v10909
      %v11202 = vld [vmem:[#allocation1] sm:$0xff]
      %11203 = vst [vmem:[#allocation1] ss:$9 sm:$0xff] %v10910
      %11204 = vst [vmem:[%s10927] ss:$9 sm:$0xff] %v10911
      %11205 = vst [vmem:[%s10929] ss:$9 sm:$0xff] %v10912
      %11206 = vst [vmem:[%s10931] ss:$9 sm:$0xff] %v10913
      %11207 = vst [vmem:[%s10933] ss:$9 sm:$0xff] %v10914
      %11208 = vst [vmem:[%s10935] ss:$9 sm:$0xff] %v10915
      %11209 = vst [vmem:[%s10937] ss:$9 sm:$0xff] %v10916
      %11210 = vst [vmem:[%s10939] ss:$9 sm:$0xff] %v10917
      %v11211 = vld [vmem:[#allocation1] sm:$0xff]
      %11212 = vst [vmem:[#allocation1] ss:$9 sm:$0xff] %v10918
      %11213 = vst [vmem:[%s10927] ss:$9 sm:$0xff] %v10919
      %11214 = vst [vmem:[%s10929] ss:$9 sm:$0xff] %v10920
      %11215 = vst [vmem:[%s10931] ss:$9 sm:$0xff] %v10921
      %11216 = vst [vmem:[%s10933] ss:$9 sm:$0xff] %v10922
      %11217 = vst [vmem:[%s10935] ss:$9 sm:$0xff] %v10923
      %11218 = vst [vmem:[%s10937] ss:$9 sm:$0xff] %v10924
      %11219 = vst [vmem:[%s10939] ss:$9 sm:$0xff] %v10925
      %v11220 = vld [vmem:[#allocation1] sm:$0xff]
      %11221 = vset.pattern.permute.xlu0 0
      %11222 = vperm.xlu0 %11221, %v10941
      %v11223 = vpop.permute.xlu0 %11222
      %11224 = vset.pattern.permute.xlu0 0
      %11225 = vperm.xlu0 %11224, %v10950
      %v11226 = vpop.permute.xlu0 %11225
      %11227 = vset.pattern.permute.xlu0 0
      %11228 = vperm.xlu0 %11227, %v10959
      %v11229 = vpop.permute.xlu0 %11228
      %11230 = vset.pattern.permute.xlu0 0
      %11231 = vperm.xlu0 %11230, %v10968
      %v11232 = vpop.permute.xlu0 %11231
      %11233 = vset.pattern.permute.xlu0 0
      %11234 = vperm.xlu0 %11233, %v10977
      %v11235 = vpop.permute.xlu0 %11234
      %11236 = vset.pattern.permute.xlu0 0
      %11237 = vperm.xlu0 %11236, %v10986
      %v11238 = vpop.permute.xlu0 %11237
      %11239 = vset.pattern.permute.xlu0 0
      %11240 = vperm.xlu0 %11239, %v10995
      %v11241 = vpop.permute.xlu0 %11240
      %11242 = vset.pattern.permute.xlu0 0
      %11243 = vperm.xlu0 %11242, %v11004
      %v11244 = vpop.permute.xlu0 %11243
      %11245 = vset.pattern.permute.xlu0 0
      %11246 = vperm.xlu0 %11245, %v11013
      %v11247 = vpop.permute.xlu0 %11246
      %11248 = vset.pattern.permute.xlu0 0
      %11249 = vperm.xlu0 %11248, %v11022
      %v11250 = vpop.permute.xlu0 %11249
      %11251 = vset.pattern.permute.xlu0 0
      %11252 = vperm.xlu0 %11251, %v11031
      %v11253 = vpop.permute.xlu0 %11252
      %11254 = vset.pattern.permute.xlu0 0
      %11255 = vperm.xlu0 %11254, %v11040
      %v11256 = vpop.permute.xlu0 %11255
      %11257 = vset.pattern.permute.xlu0 0
      %11258 = vperm.xlu0 %11257, %v11049
      %v11259 = vpop.permute.xlu0 %11258
      %11260 = vset.pattern.permute.xlu0 0
      %11261 = vperm.xlu0 %11260, %v11058
      %v11262 = vpop.permute.xlu0 %11261
      %11263 = vset.pattern.permute.xlu0 0
      %11264 = vperm.xlu0 %11263, %v11067
      %v11265 = vpop.permute.xlu0 %11264
      %11266 = vset.pattern.permute.xlu0 0
      %11267 = vperm.xlu0 %11266, %v11076
      %v11268 = vpop.permute.xlu0 %11267
      %11269 = vset.pattern.permute.xlu0 0
      %11270 = vperm.xlu0 %11269, %v11085
      %v11271 = vpop.permute.xlu0 %11270
      %11272 = vset.pattern.permute.xlu0 0
      %11273 = vperm.xlu0 %11272, %v11094
      %v11274 = vpop.permute.xlu0 %11273
      %11275 = vset.pattern.permute.xlu0 0
      %11276 = vperm.xlu0 %11275, %v11103
      %v11277 = vpop.permute.xlu0 %11276
      %11278 = vset.pattern.permute.xlu0 0
      %11279 = vperm.xlu0 %11278, %v11112
      %v11280 = vpop.permute.xlu0 %11279
      %11281 = vset.pattern.permute.xlu0 0
      %11282 = vperm.xlu0 %11281, %v11121
      %v11283 = vpop.permute.xlu0 %11282
      %11284 = vset.pattern.permute.xlu0 0
      %11285 = vperm.xlu0 %11284, %v11130
      %v11286 = vpop.permute.xlu0 %11285
      %11287 = vset.pattern.permute.xlu0 0
      %11288 = vperm.xlu0 %11287, %v11139
      %v11289 = vpop.permute.xlu0 %11288
      %11290 = vset.pattern.permute.xlu0 0
      %11291 = vperm.xlu0 %11290, %v11148
      %v11292 = vpop.permute.xlu0 %11291
      %11293 = vset.pattern.permute.xlu0 0
      %11294 = vperm.xlu0 %11293, %v11157
      %v11295 = vpop.permute.xlu0 %11294
      %11296 = vset.pattern.permute.xlu0 0
      %11297 = vperm.xlu0 %11296, %v11166
      %v11298 = vpop.permute.xlu0 %11297
      %11299 = vset.pattern.permute.xlu0 0
      %11300 = vperm.xlu0 %11299, %v11175
      %v11301 = vpop.permute.xlu0 %11300
      %11302 = vset.pattern.permute.xlu0 0
      %11303 = vperm.xlu0 %11302, %v11184
      %v11304 = vpop.permute.xlu0 %11303
      %11305 = vset.pattern.permute.xlu0 0
      %11306 = vperm.xlu0 %11305, %v11193
      %v11307 = vpop.permute.xlu0 %11306
      %11308 = vset.pattern.permute.xlu0 0
      %11309 = vperm.xlu0 %11308, %v11202
      %v11310 = vpop.permute.xlu0 %11309
      %11311 = vset.pattern.permute.xlu0 0
      %11312 = vperm.xlu0 %11311, %v11211
      %v11313 = vpop.permute.xlu0 %11312
      %11314 = vset.pattern.permute.xlu0 0
      %11315 = vperm.xlu0 %11314, %v11220
      %v11316 = vpop.permute.xlu0 %11315
      %v11317 = vlaneseq
      %v11318 = vand.u32 %v11317, 127
      %v11319 = vperm.slane %v11223, %v11318
      %v11320 = vadd.s32 %v11318, 4294967288
      %v11321 = vperm.slane %v11226, %v11320
      %vm11322 = vcmask 130112
      %v11323 = vsel %vm11322, %v11321, %v11319
      %v11324 = vadd.s32 %v11318, 4294967280
      %v11325 = vperm.slane %v11229, %v11324
      %vm11326 = vcmask 195712
      %v11327 = vsel %vm11326, %v11325, %v11323
      %v11328 = vadd.s32 %v11318, 4294967272
      %v11329 = vperm.slane %v11232, %v11328
      %vm11330 = vcmask 261312
      %v11331 = vsel %vm11330, %v11329, %v11327
      %v11332 = vadd.s32 %v11318, 4294967264
      %v11333 = vperm.slane %v11235, %v11332
      %vm11334 = vcmask 326912
      %v11335 = vsel %vm11334, %v11333, %v11331
      %v11336 = vadd.s32 %v11318, 4294967256
      %v11337 = vperm.slane %v11238, %v11336
      %vm11338 = vcmask 392512
      %v11339 = vsel %vm11338, %v11337, %v11335
      %v11340 = vadd.s32 %v11318, 4294967248
      %v11341 = vperm.slane %v11241, %v11340
      %vm11342 = vcmask 458112
      %v11343 = vsel %vm11342, %v11341, %v11339
      %v11344 = vadd.s32 %v11318, 4294967240
      %v11345 = vperm.slane %v11244, %v11344
      %vm11346 = vcmask 523712
      %v11347 = vsel %vm11346, %v11345, %v11343
      %v11348 = vadd.s32 %v11318, 4294967232
      %v11349 = vperm.slane %v11247, %v11348
      %vm11350 = vcmask 589312
      %v11351 = vsel %vm11350, %v11349, %v11347
      %v11352 = vadd.s32 %v11318, 4294967224
      %v11353 = vperm.slane %v11250, %v11352
      %vm11354 = vcmask 654912
      %v11355 = vsel %vm11354, %v11353, %v11351
      %v11356 = vadd.s32 %v11318, 4294967216
      %v11357 = vperm.slane %v11253, %v11356
      %vm11358 = vcmask 720512
      %v11359 = vsel %vm11358, %v11357, %v11355
      %v11360 = vadd.s32 %v11318, 4294967208
      %v11361 = vperm.slane %v11256, %v11360
      %vm11362 = vcmask 786112
      %v11363 = vsel %vm11362, %v11361, %v11359
      %v11364 = vadd.s32 %v11318, 4294967200
      %v11365 = vperm.slane %v11259, %v11364
      %vm11366 = vcmask 851712
      %v11367 = vsel %vm11366, %v11365, %v11363
      %v11368 = vadd.s32 %v11318, 4294967192
      %v11369 = vperm.slane %v11262, %v11368
      %vm11370 = vcmask 917312
      %v11371 = vsel %vm11370, %v11369, %v11367
      %v11372 = vadd.s32 %v11318, 4294967184
      %v11373 = vperm.slane %v11265, %v11372
      %vm11374 = vcmask 982912
      %v11375 = vsel %vm11374, %v11373, %v11371
      %v11376 = vadd.s32 %v11318, 4294967176
      %v11377 = vperm.slane %v11268, %v11376
      %vm11378 = vcmask 1048512
      %v11379 = vsel %vm11378, %v11377, %v11375
      %v11380 = vperm.slane %v11271, %v11318
      %v11381 = vperm.slane %v11274, %v11320
      %v11382 = vsel %vm11322, %v11381, %v11380
      %v11383 = vperm.slane %v11277, %v11324
      %v11384 = vsel %vm11326, %v11383, %v11382
      %v11385 = vperm.slane %v11280, %v11328
      %v11386 = vsel %vm11330, %v11385, %v11384
      %v11387 = vperm.slane %v11283, %v11332
      %v11388 = vsel %vm11334, %v11387, %v11386
      %v11389 = vperm.slane %v11286, %v11336
      %v11390 = vsel %vm11338, %v11389, %v11388
      %v11391 = vperm.slane %v11289, %v11340
      %v11392 = vsel %vm11342, %v11391, %v11390
      %v11393 = vperm.slane %v11292, %v11344
      %v11394 = vsel %vm11346, %v11393, %v11392
      %v11395 = vperm.slane %v11295, %v11348
      %v11396 = vsel %vm11350, %v11395, %v11394
      %v11397 = vperm.slane %v11298, %v11352
      %v11398 = vsel %vm11354, %v11397, %v11396
      %v11399 = vperm.slane %v11301, %v11356
      %v11400 = vsel %vm11358, %v11399, %v11398
      %v11401 = vperm.slane %v11304, %v11360
      %v11402 = vsel %vm11362, %v11401, %v11400
      %v11403 = vperm.slane %v11307, %v11364
      %v11404 = vsel %vm11366, %v11403, %v11402
      %v11405 = vperm.slane %v11310, %v11368
      %v11406 = vsel %vm11370, %v11405, %v11404
      %v11407 = vperm.slane %v11313, %v11372
      %v11408 = vsel %vm11374, %v11407, %v11406
      %v11409 = vperm.slane %v11316, %v11376
      %v11410 = vsel %vm11378, %v11409, %v11408
      %v11411 = vrot.slane %v11410, 7
      %v11412 = vsel %vm4292, %v11379, %v11411
      %v11414 = vlaneseq
      %vm11415 = vcmp.ge.s32.totalorder %v11414, 0
      %vm11416 = vcmp.lt.s32.totalorder %v11414, 256
      %vm11417 = vmand %vm11415, %vm11416
      %11418 = vst.msk [vmem:[%s440] sm:$0x3] %vm11417, %v11412
      %p11419 = scmp.lt.s32.totalorder %s26, 1
      %s11420 = scalar_select %p11419, %s26, 1
      %s11421 = smul.addr %s11420, 2
      %s11422 = scalar_lea.vmem %s13, %s11421
      // Predicated region
      $region73: #{change_detector_forward.1} parent=71 // pred_check
        %p11423 = pneg %p322
      $region74: #{change_detector_forward.1} parent=71 // pred_check_branch
        %11425 = sbr.rel (%p11423) target = $region76
      $region75: #{change_detector_forward.1} parent=71 // pred_region
        _
      $region76: #{change_detector_forward.1} parent=71 // pred_fallthru
        _
    $region72: #{change_detector_forward.1} parent=5 // pred_fallthru
      _
    %p11426 = scmp.le.s32.totalorder 2, %s21
    // Predicated region
    $region77: #{change_detector_forward.1} parent=5 // pred_check
      %p11427 = pneg %p11426
    $region78: #{change_detector_forward.1} parent=5 // pred_check_branch
      %11429 = sbr.rel (%p11427) target = $region80
    $region79: #{change_detector_forward.1} parent=5 // pred_region
      %s11430 = ssub.s32 %s21, 2
      // Predicated region
      $region81: #{change_detector_forward.1} parent=79 // pred_check
        %p11431 = pneg %p328
      $region82: #{change_detector_forward.1} parent=79 // pred_check_branch
        %11433 = sbr.rel (%p11431) target = $region84
      $region83: #{change_detector_forward.1} parent=79 // pred_region
        %p11434 = scmp.lt.s32.totalorder %s27, 1
        %s11435 = scalar_select %p11434, %s27, 1
        %s11436 = smul.addr %s11435, 2
        %s11437 = scalar_lea.vmem %s13, %s11436
      $region84: #{change_detector_forward.1} parent=79 // pred_fallthru
        _
    $region80: #{change_detector_forward.1} parent=5 // pred_fallthru
      _
  $region6: #{change_detector_forward.1} parent=0 // loop_footer
    %s25 = sadd.s32 1, %s21
  $region7: #{change_detector_forward.1} parent=0 // loop_footer_branch
    %20 = sbr.rel target = $region3
  $region8: #{change_detector_forward.1} parent=0 // loop_exit
    _

</llo_original>
